<compile_context>
chip_gen: v6e
topology: v6e:2x2x1
jax: 0.10.0
libtpu: 0.0.40
codegen_flags: <defaults>
</compile_context>

<pallas_src>
import jax
import jax.numpy as jnp
from jax.experimental import pallas as pl
from jax.experimental.pallas import tpu as pltpu

KW = 4          # conv kernel size
PAD = 1         # conv padding
NEG_SLOPE = 0.2
MAX_TH = 16     # max output rows per grid step


def _pick_row_tile(ho):
    """Largest divisor of Ho that is <= MAX_TH (keeps blocks exactly divisible)."""
    for th in range(min(ho, MAX_TH), 0, -1):
        if ho % th == 0:
            return th
    return 1


# -----------------------------------------------------------------------------
# Pallas kernel: fused conv4x4 + per-channel affine + LeakyReLU on one row tile
# -----------------------------------------------------------------------------
def _make_conv_kernel(n_views, th, wo, cin, cout, relu):
    def kernel(*refs):
        views = refs[:n_views]                       # each (1, TH, vW, Cin) bf16
        w_ref, sc_ref, sh_ref, o_ref = refs[n_views:]

        # Hoist the per-channel affine broadcast out of the row loop.
        scale_b = jnp.broadcast_to(sc_ref[...].astype(jnp.float32), (wo, cout))
        shift_b = jnp.broadcast_to(sh_ref[...].astype(jnp.float32), (wo, cout))

        for r in range(th):                          # static (unrolled) row loop
            acc = jnp.zeros((wo, cout), jnp.float32)
            for kh in range(KW):
                # Fold the kw taps into the contraction dim: K = KW * Cin.
                parts = []
                for kw in range(KW):
                    if n_views == 8:                 # stride 2: [2*kh + (kw % 2)]
                        v = views[2 * kh + (kw % 2)]
                        c0 = kw // 2
                    else:                            # stride 1: [kh]
                        v = views[kh]
                        c0 = kw
                    parts.append(v[0, r, pl.ds(c0, wo), :])      # (Wo, Cin) bf16
                lhs = jnp.concatenate(parts, axis=-1)            # (Wo, KW*Cin)
                acc = acc + jnp.dot(lhs, w_ref[kh],
                                    preferred_element_type=jnp.float32)
            y = acc * scale_b + shift_b
            if relu:
                y = jnp.where(y >= 0, y, NEG_SLOPE * y)          # LeakyReLU(0.2)
            o_ref[0, r, :, :] = y.astype(o_ref.dtype)

    return kernel


# -----------------------------------------------------------------------------
# Wrapper for one discriminator block
# -----------------------------------------------------------------------------
def conv_block_pallas(x_nhwc, w_folded, scale, shift, stride, relu):
    """x_nhwc: (N,H,W,Cin) f32; w_folded: (KW, KW*Cin, Cout) bf16; scale/shift f32."""
    n, hin, win, cin = x_nhwc.shape
    cout = w_folded.shape[-1]
    ho = (hin + 2 * PAD - KW) // stride + 1
    wo = (win + 2 * PAD - KW) // stride + 1

    # Lane-dense head: pad the 1-channel final conv to 128 lanes, slice afterwards.
    cout_k = 128 if cout < 8 else cout
    if cout_k != cout:
        w_folded = jnp.pad(w_folded, ((0, 0), (0, 0), (0, cout_k - cout)))
        scale = jnp.pad(scale, (0, cout_k - cout))
        shift = jnp.pad(shift, (0, cout_k - cout))

    x = x_nhwc.astype(jnp.bfloat16)
    xp = jnp.pad(x, ((0, 0), (PAD, PAD), (PAD, PAD), (0, 0)))

    # Row-shifted (and column-parity for stride 2) views: per output-row tile the
    # kernel only touches block-aligned rows -> halo-free H tiling, contiguous loads.
    views = []
    if stride == 2:
        # TODO(synk): stride-2 path assumes even H, W (as in the reference usage).
        assert hin % 2 == 0 and win % 2 == 0
        vw = wo + 1
        for kh in range(KW):
            for cp in range(2):
                views.append(xp[:, kh::2, cp::2, :][:, :ho, :vw, :])
    else:
        vw = win + 2 * PAD
        for kh in range(KW):
            views.append(xp[:, kh:kh + ho, :, :])
    n_views = len(views)

    th = _pick_row_tile(ho)
    grid = (n, ho // th)

    vspec = pl.BlockSpec((1, th, vw, cin), lambda b, t: (b, t, 0, 0))
    in_specs = [vspec] * n_views + [
        pl.BlockSpec((KW, KW * cin, cout_k), lambda b, t: (0, 0, 0)),
        pl.BlockSpec((1, cout_k), lambda b, t: (0, 0)),
        pl.BlockSpec((1, cout_k), lambda b, t: (0, 0)),
    ]
    out_spec = pl.BlockSpec((1, th, wo, cout_k), lambda b, t: (b, t, 0, 0))

    # VMEM budget from the block shapes (double-buffered ins/outs + weights + slack).
    block_bytes = 2 * (n_views * th * vw * cin * 2 + th * wo * cout_k * 4)
    block_bytes += 2 * (KW * KW * cin * cout_k * 2 + 2 * cout_k * 4)
    vmem_limit = int(min(max(2 * block_bytes + (8 << 20), 32 << 20), 64 << 20))

    kernel = _make_conv_kernel(n_views, th, wo, cin, cout_k, relu)

    out = pl.pallas_call(
        kernel,
        out_shape=jax.ShapeDtypeStruct((n, ho, wo, cout_k), jnp.float32),
        grid=grid,
        in_specs=in_specs,
        out_specs=out_spec,
        compiler_params=pltpu.CompilerParams(
            dimension_semantics=("parallel", "parallel"),
            vmem_limit_bytes=vmem_limit),
    )(*views, w_folded, scale.reshape(1, cout_k), shift.reshape(1, cout_k))

    if cout_k != cout:
        out = out[..., :cout]
    return out


# -----------------------------------------------------------------------------
# Parameter setup (deterministic, plain-JAX glue)
# -----------------------------------------------------------------------------
def _spectral_normalize(w_oihw, key, n_iter=5, eps=1e-12):
    """SpectralNorm on the OIHW conv weight (power iteration, as PyTorch does)."""
    cout = w_oihw.shape[0]
    wm = w_oihw.reshape(cout, -1)
    u = jax.random.normal(key, (cout,), jnp.float32)
    u = u / (jnp.linalg.norm(u) + eps)
    v = None
    for _ in range(n_iter):
        v = wm.T @ u
        v = v / (jnp.linalg.norm(v) + eps)
        u = wm @ v
        u = u / (jnp.linalg.norm(u) + eps)
    sigma = u @ (wm @ v)
    return w_oihw / sigma


def build_params(key, input_nc=3, ndf=64, n_layers=3):
    """Mirrors NLayerDiscriminator.__init__ (norm_layer=BatchNorm2d -> use_bias=False)."""
    cfgs = [dict(cin=input_nc, cout=ndf, stride=2, bias=True, bn=False, relu=True)]
    nf_mult = 1
    for ln in range(1, n_layers):
        nf_mult_prev, nf_mult = nf_mult, min(2 ** ln, 8)
        cfgs.append(dict(cin=ndf * nf_mult_prev, cout=ndf * nf_mult,
                         stride=2, bias=False, bn=True, relu=True))
    nf_mult_prev, nf_mult = nf_mult, min(2 ** n_layers, 8)
    cfgs.append(dict(cin=ndf * nf_mult_prev, cout=ndf * nf_mult,
                     stride=1, bias=False, bn=True, relu=True))
    cfgs.append(dict(cin=ndf * nf_mult, cout=1, stride=1, bias=True, bn=False, relu=False))

    layers = []
    for cfg in cfgs:
        key, kw_, kb, kg, kbe, km, kv, ku = jax.random.split(key, 8)
        cout, cin = cfg["cout"], cfg["cin"]
        w_oihw = 0.1 * jax.random.normal(kw_, (cout, cin, KW, KW), jnp.float32)
        w_oihw = _spectral_normalize(w_oihw, ku)
        w_hwio = jnp.transpose(w_oihw, (2, 3, 1, 0)).astype(jnp.bfloat16)  # (kh,kw,Cin,Cout)
        w_folded = w_hwio.reshape(KW, KW * cin, cout)                      # kw-major K fold

        bias = (0.1 * jax.random.normal(kb, (cout,), jnp.float32)
                if cfg["bias"] else jnp.zeros((cout,), jnp.float32))

        if cfg["bn"]:
            # TODO(synk): eval-mode BatchNorm (running stats folded into scale/shift);
            # training-mode batch statistics would need an extra cross-batch reduction.
            gamma = 1.0 + 0.1 * jax.random.normal(kg, (cout,), jnp.float32)
            beta = 0.1 * jax.random.normal(kbe, (cout,), jnp.float32)
            mean = 0.1 * jax.random.normal(km, (cout,), jnp.float32)
            var = 1.0 + 0.1 * jax.random.uniform(kv, (cout,), jnp.float32)
            s = gamma / jnp.sqrt(var + 1e-5)
            scale = s
            shift = beta + (bias - mean) * s
        else:
            scale = jnp.ones((cout,), jnp.float32)
            shift = bias

        layers.append(dict(w_hwio=w_hwio, w_folded=w_folded, scale=scale, shift=shift,
                           stride=cfg["stride"], relu=cfg["relu"]))
    return layers


# -----------------------------------------------------------------------------
# Forward (get_intermediate_features=True -> returns results[1:])
# -----------------------------------------------------------------------------
def nlayer_discriminator_forward(x_nchw, layers):
    x = jnp.transpose(x_nchw, (0, 2, 3, 1)).astype(jnp.float32)  # NCHW -> NHWC
    feats = []
    for layer in layers:
        x = conv_block_pallas(x, layer["w_folded"], layer["scale"], layer["shift"],
                              layer["stride"], layer["relu"])
        feats.append(jnp.transpose(x, (0, 3, 1, 2)))             # NHWC -> NCHW (f32)
    return feats


# -----------------------------------------------------------------------------
# Pure-JAX reference (same bf16 inputs/weights, f32 accumulation) for validation
# -----------------------------------------------------------------------------
def reference_forward(x_nchw, layers):
    x = jnp.transpose(x_nchw, (0, 2, 3, 1)).astype(jnp.float32)
    feats = []
    for layer in layers:
        xb = x.astype(jnp.bfloat16)
        y = jax.lax.conv_general_dilated(
            xb, layer["w_hwio"],
            window_strides=(layer["stride"], layer["stride"]),
            padding=((PAD, PAD), (PAD, PAD)),
            dimension_numbers=("NHWC", "HWIO", "NHWC"),
            preferred_element_type=jnp.float32)
        y = y * layer["scale"] + layer["shift"]
        if layer["relu"]:
            y = jnp.where(y >= 0, y, NEG_SLOPE * y)
        x = y
        feats.append(jnp.transpose(y, (0, 3, 1, 2)))
    return feats


if __name__ == "__main__":
    key = jax.random.PRNGKey(0)
    kx, kp = jax.random.split(key)

    # Small synthetic configuration (module defaults are input_nc=3, ndf=64).
    N, C, H, W = 2, 4, 32, 32
    NDF, N_LAYERS = 8, 3

    x = jax.random.normal(kx, (N, C, H, W), jnp.float32)
    layers = build_params(kp, input_nc=C, ndf=NDF, n_layers=N_LAYERS)

    feats = nlayer_discriminator_forward(x, layers)
    feats = [jax.block_until_ready(f) for f in feats]

    ref = reference_forward(x, layers)
    assert len(feats) == N_LAYERS + 2
    for got, want in zip(feats, ref):
        assert got.shape == want.shape, (got.shape, want.shape)
        err = float(jnp.max(jnp.abs(got - want)))
        assert jnp.allclose(got, want, atol=1e-2, rtol=1e-2), err

    print("KERNEL_OK")
</pallas_src>

<mosaic_0001>
module attributes {stable_mosaic.version = 11 : i64} {
  func.func @kernel(%arg0: i32, %arg1: i32, %arg2: memref<1x16x17x4xbf16, #tpu.memory_space<vmem>>, %arg3: memref<1x16x17x4xbf16, #tpu.memory_space<vmem>>, %arg4: memref<1x16x17x4xbf16, #tpu.memory_space<vmem>>, %arg5: memref<1x16x17x4xbf16, #tpu.memory_space<vmem>>, %arg6: memref<1x16x17x4xbf16, #tpu.memory_space<vmem>>, %arg7: memref<1x16x17x4xbf16, #tpu.memory_space<vmem>>, %arg8: memref<1x16x17x4xbf16, #tpu.memory_space<vmem>>, %arg9: memref<1x16x17x4xbf16, #tpu.memory_space<vmem>>, %arg10: memref<4x16x8xbf16, #tpu.memory_space<vmem>>, %arg11: memref<1x8xf32, #tpu.memory_space<vmem>>, %arg12: memref<1x8xf32, #tpu.memory_space<vmem>>, %arg13: memref<1x16x16x8xf32, #tpu.memory_space<vmem>>) attributes {dimension_semantics = [#tpu.dimension_semantics<parallel>, #tpu.dimension_semantics<parallel>], iteration_bounds = array<i64: 2, 1>, scalar_prefetch = 0 : i64, scratch_operands = 0 : i64, tpu.core_type = #tpu.core_type<tc>, window_params = [{transform_indices = @transform_0, window_bounds = array<i64: 1, 16, 17, 4>}, {transform_indices = @transform_1, window_bounds = array<i64: 1, 16, 17, 4>}, {transform_indices = @transform_2, window_bounds = array<i64: 1, 16, 17, 4>}, {transform_indices = @transform_3, window_bounds = array<i64: 1, 16, 17, 4>}, {transform_indices = @transform_4, window_bounds = array<i64: 1, 16, 17, 4>}, {transform_indices = @transform_5, window_bounds = array<i64: 1, 16, 17, 4>}, {transform_indices = @transform_6, window_bounds = array<i64: 1, 16, 17, 4>}, {transform_indices = @transform_7, window_bounds = array<i64: 1, 16, 17, 4>}, {pipeline_mode = #tpu.pipeline_mode<synchronous>, transform_indices = @transform_8, window_bounds = array<i64: 4, 16, 8>}, {pipeline_mode = #tpu.pipeline_mode<synchronous>, transform_indices = @transform_9, window_bounds = array<i64: 1, 8>}, {pipeline_mode = #tpu.pipeline_mode<synchronous>, transform_indices = @transform_10, window_bounds = array<i64: 1, 8>}, {transform_indices = @transform_11, window_bounds = array<i64: 1, 16, 16, 8>}]} {
    %c0 = arith.constant 0 : index
    %c0_0 = arith.constant 0 : index
    %0 = vector.load %arg11[%c0, %c0_0] : memref<1x8xf32, #tpu.memory_space<vmem>>, vector<1x8xf32>
    %1 = vector.shape_cast %0 : vector<1x8xf32> to vector<1x8xf32>
    %2 = vector.broadcast %1 : vector<1x8xf32> to vector<16x8xf32>
    %c0_1 = arith.constant 0 : index
    %c0_2 = arith.constant 0 : index
    %3 = vector.load %arg12[%c0_1, %c0_2] : memref<1x8xf32, #tpu.memory_space<vmem>>, vector<1x8xf32>
    %4 = vector.shape_cast %3 : vector<1x8xf32> to vector<1x8xf32>
    %5 = vector.broadcast %4 : vector<1x8xf32> to vector<16x8xf32>
    %cst = arith.constant 0.000000e+00 : f32
    %6 = vector.broadcast %cst : f32 to vector<16x8xf32>
    %c0_3 = arith.constant 0 : index
    %c0_4 = arith.constant 0 : index
    %c0_5 = arith.constant 0 : index
    %c0_6 = arith.constant 0 : index
    %7 = vector.load %arg2[%c0_3, %c0_4, %c0_5, %c0_6] : memref<1x16x17x4xbf16, #tpu.memory_space<vmem>>, vector<1x1x16x4xbf16>
    %8 = vector.shape_cast %7 : vector<1x1x16x4xbf16> to vector<16x4xbf16>
    %c0_7 = arith.constant 0 : index
    %c0_8 = arith.constant 0 : index
    %c0_9 = arith.constant 0 : index
    %c0_10 = arith.constant 0 : index
    %9 = vector.load %arg3[%c0_7, %c0_8, %c0_9, %c0_10] : memref<1x16x17x4xbf16, #tpu.memory_space<vmem>>, vector<1x1x16x4xbf16>
    %10 = vector.shape_cast %9 : vector<1x1x16x4xbf16> to vector<16x4xbf16>
    %c0_11 = arith.constant 0 : index
    %c0_12 = arith.constant 0 : index
    %c1 = arith.constant 1 : index
    %c0_13 = arith.constant 0 : index
    %11 = vector.load %arg2[%c0_11, %c0_12, %c1, %c0_13] : memref<1x16x17x4xbf16, #tpu.memory_space<vmem>>, vector<1x1x16x4xbf16>
    %12 = vector.shape_cast %11 : vector<1x1x16x4xbf16> to vector<16x4xbf16>
    %c0_14 = arith.constant 0 : index
    %c0_15 = arith.constant 0 : index
    %c1_16 = arith.constant 1 : index
    %c0_17 = arith.constant 0 : index
    %13 = vector.load %arg3[%c0_14, %c0_15, %c1_16, %c0_17] : memref<1x16x17x4xbf16, #tpu.memory_space<vmem>>, vector<1x1x16x4xbf16>
    %14 = vector.shape_cast %13 : vector<1x1x16x4xbf16> to vector<16x4xbf16>
    %15 = tpu.concatenate %8, %10, %12, %14 in 1 : vector<16x4xbf16>, vector<16x4xbf16>, vector<16x4xbf16>, vector<16x4xbf16> -> vector<16x16xbf16>
    %c0_18 = arith.constant 0 : index
    %c0_19 = arith.constant 0 : index
    %c0_20 = arith.constant 0 : index
    %16 = vector.load %arg10[%c0_18, %c0_19, %c0_20] : memref<4x16x8xbf16, #tpu.memory_space<vmem>>, vector<1x16x8xbf16>
    %17 = vector.shape_cast %16 : vector<1x16x8xbf16> to vector<16x8xbf16>
    %cst_21 = arith.constant dense<0.000000e+00> : vector<16x8xf32>
    %18 = tpu.matmul %15, %17, %cst_21 {dimension_numbers = #tpu.dot_dimension_numbers<[1], [0], [0], [1], [0, 0, 1, 1], [], []>} : vector<16x16xbf16>, vector<16x8xbf16>, vector<16x8xf32> -> vector<16x8xf32>
    %19 = arith.addf %6, %18 : vector<16x8xf32>
    %c0_22 = arith.constant 0 : index
    %c0_23 = arith.constant 0 : index
    %c0_24 = arith.constant 0 : index
    %c0_25 = arith.constant 0 : index
    %20 = vector.load %arg4[%c0_22, %c0_23, %c0_24, %c0_25] : memref<1x16x17x4xbf16, #tpu.memory_space<vmem>>, vector<1x1x16x4xbf16>
    %21 = vector.shape_cast %20 : vector<1x1x16x4xbf16> to vector<16x4xbf16>
    %c0_26 = arith.constant 0 : index
    %c0_27 = arith.constant 0 : index
    %c0_28 = arith.constant 0 : index
    %c0_29 = arith.constant 0 : index
    %22 = vector.load %arg5[%c0_26, %c0_27, %c0_28, %c0_29] : memref<1x16x17x4xbf16, #tpu.memory_space<vmem>>, vector<1x1x16x4xbf16>
    %23 = vector.shape_cast %22 : vector<1x1x16x4xbf16> to vector<16x4xbf16>
    %c0_30 = arith.constant 0 : index
    %c0_31 = arith.constant 0 : index
    %c1_32 = arith.constant 1 : index
    %c0_33 = arith.constant 0 : index
    %24 = vector.load %arg4[%c0_30, %c0_31, %c1_32, %c0_33] : memref<1x16x17x4xbf16, #tpu.memory_space<vmem>>, vector<1x1x16x4xbf16>
    %25 = vector.shape_cast %24 : vector<1x1x16x4xbf16> to vector<16x4xbf16>
    %c0_34 = arith.constant 0 : index
    %c0_35 = arith.constant 0 : index
    %c1_36 = arith.constant 1 : index
    %c0_37 = arith.constant 0 : index
    %26 = vector.load %arg5[%c0_34, %c0_35, %c1_36, %c0_37] : memref<1x16x17x4xbf16, #tpu.memory_space<vmem>>, vector<1x1x16x4xbf16>
    %27 = vector.shape_cast %26 : vector<1x1x16x4xbf16> to vector<16x4xbf16>
    %28 = tpu.concatenate %21, %23, %25, %27 in 1 : vector<16x4xbf16>, vector<16x4xbf16>, vector<16x4xbf16>, vector<16x4xbf16> -> vector<16x16xbf16>
    %c1_38 = arith.constant 1 : index
    %c0_39 = arith.constant 0 : index
    %c0_40 = arith.constant 0 : index
    %29 = vector.load %arg10[%c1_38, %c0_39, %c0_40] : memref<4x16x8xbf16, #tpu.memory_space<vmem>>, vector<1x16x8xbf16>
    %30 = vector.shape_cast %29 : vector<1x16x8xbf16> to vector<16x8xbf16>
    %cst_41 = arith.constant dense<0.000000e+00> : vector<16x8xf32>
    %31 = tpu.matmul %28, %30, %cst_41 {dimension_numbers = #tpu.dot_dimension_numbers<[1], [0], [0], [1], [0, 0, 1, 1], [], []>} : vector<16x16xbf16>, vector<16x8xbf16>, vector<16x8xf32> -> vector<16x8xf32>
    %32 = arith.addf %19, %31 : vector<16x8xf32>
    %c0_42 = arith.constant 0 : index
    %c0_43 = arith.constant 0 : index
    %c0_44 = arith.constant 0 : index
    %c0_45 = arith.constant 0 : index
    %33 = vector.load %arg6[%c0_42, %c0_43, %c0_44, %c0_45] : memref<1x16x17x4xbf16, #tpu.memory_space<vmem>>, vector<1x1x16x4xbf16>
    %34 = vector.shape_cast %33 : vector<1x1x16x4xbf16> to vector<16x4xbf16>
    %c0_46 = arith.constant 0 : index
    %c0_47 = arith.constant 0 : index
    %c0_48 = arith.constant 0 : index
    %c0_49 = arith.constant 0 : index
    %35 = vector.load %arg7[%c0_46, %c0_47, %c0_48, %c0_49] : memref<1x16x17x4xbf16, #tpu.memory_space<vmem>>, vector<1x1x16x4xbf16>
    %36 = vector.shape_cast %35 : vector<1x1x16x4xbf16> to vector<16x4xbf16>
    %c0_50 = arith.constant 0 : index
    %c0_51 = arith.constant 0 : index
    %c1_52 = arith.constant 1 : index
    %c0_53 = arith.constant 0 : index
    %37 = vector.load %arg6[%c0_50, %c0_51, %c1_52, %c0_53] : memref<1x16x17x4xbf16, #tpu.memory_space<vmem>>, vector<1x1x16x4xbf16>
    %38 = vector.shape_cast %37 : vector<1x1x16x4xbf16> to vector<16x4xbf16>
    %c0_54 = arith.constant 0 : index
    %c0_55 = arith.constant 0 : index
    %c1_56 = arith.constant 1 : index
    %c0_57 = arith.constant 0 : index
    %39 = vector.load %arg7[%c0_54, %c0_55, %c1_56, %c0_57] : memref<1x16x17x4xbf16, #tpu.memory_space<vmem>>, vector<1x1x16x4xbf16>
    %40 = vector.shape_cast %39 : vector<1x1x16x4xbf16> to vector<16x4xbf16>
    %41 = tpu.concatenate %34, %36, %38, %40 in 1 : vector<16x4xbf16>, vector<16x4xbf16>, vector<16x4xbf16>, vector<16x4xbf16> -> vector<16x16xbf16>
    %c2 = arith.constant 2 : index
    %c0_58 = arith.constant 0 : index
    %c0_59 = arith.constant 0 : index
    %42 = vector.load %arg10[%c2, %c0_58, %c0_59] : memref<4x16x8xbf16, #tpu.memory_space<vmem>>, vector<1x16x8xbf16>
    %43 = vector.shape_cast %42 : vector<1x16x8xbf16> to vector<16x8xbf16>
    %cst_60 = arith.constant dense<0.000000e+00> : vector<16x8xf32>
    %44 = tpu.matmul %41, %43, %cst_60 {dimension_numbers = #tpu.dot_dimension_numbers<[1], [0], [0], [1], [0, 0, 1, 1], [], []>} : vector<16x16xbf16>, vector<16x8xbf16>, vector<16x8xf32> -> vector<16x8xf32>
    %45 = arith.addf %32, %44 : vector<16x8xf32>
    %c0_61 = arith.constant 0 : index
    %c0_62 = arith.constant 0 : index
    %c0_63 = arith.constant 0 : index
    %c0_64 = arith.constant 0 : index
    %46 = vector.load %arg8[%c0_61, %c0_62, %c0_63, %c0_64] : memref<1x16x17x4xbf16, #tpu.memory_space<vmem>>, vector<1x1x16x4xbf16>
    %47 = vector.shape_cast %46 : vector<1x1x16x4xbf16> to vector<16x4xbf16>
    %c0_65 = arith.constant 0 : index
    %c0_66 = arith.constant 0 : index
    %c0_67 = arith.constant 0 : index
    %c0_68 = arith.constant 0 : index
    %48 = vector.load %arg9[%c0_65, %c0_66, %c0_67, %c0_68] : memref<1x16x17x4xbf16, #tpu.memory_space<vmem>>, vector<1x1x16x4xbf16>
    %49 = vector.shape_cast %48 : vector<1x1x16x4xbf16> to vector<16x4xbf16>
    %c0_69 = arith.constant 0 : index
    %c0_70 = arith.constant 0 : index
    %c1_71 = arith.constant 1 : index
    %c0_72 = arith.constant 0 : index
    %50 = vector.load %arg8[%c0_69, %c0_70, %c1_71, %c0_72] : memref<1x16x17x4xbf16, #tpu.memory_space<vmem>>, vector<1x1x16x4xbf16>
    %51 = vector.shape_cast %50 : vector<1x1x16x4xbf16> to vector<16x4xbf16>
    %c0_73 = arith.constant 0 : index
    %c0_74 = arith.constant 0 : index
    %c1_75 = arith.constant 1 : index
    %c0_76 = arith.constant 0 : index
    %52 = vector.load %arg9[%c0_73, %c0_74, %c1_75, %c0_76] : memref<1x16x17x4xbf16, #tpu.memory_space<vmem>>, vector<1x1x16x4xbf16>
    %53 = vector.shape_cast %52 : vector<1x1x16x4xbf16> to vector<16x4xbf16>
    %54 = tpu.concatenate %47, %49, %51, %53 in 1 : vector<16x4xbf16>, vector<16x4xbf16>, vector<16x4xbf16>, vector<16x4xbf16> -> vector<16x16xbf16>
    %c3 = arith.constant 3 : index
    %c0_77 = arith.constant 0 : index
    %c0_78 = arith.constant 0 : index
    %55 = vector.load %arg10[%c3, %c0_77, %c0_78] : memref<4x16x8xbf16, #tpu.memory_space<vmem>>, vector<1x16x8xbf16>
    %56 = vector.shape_cast %55 : vector<1x16x8xbf16> to vector<16x8xbf16>
    %cst_79 = arith.constant dense<0.000000e+00> : vector<16x8xf32>
    %57 = tpu.matmul %54, %56, %cst_79 {dimension_numbers = #tpu.dot_dimension_numbers<[1], [0], [0], [1], [0, 0, 1, 1], [], []>} : vector<16x16xbf16>, vector<16x8xbf16>, vector<16x8xf32> -> vector<16x8xf32>
    %58 = arith.addf %45, %57 : vector<16x8xf32>
    %59 = arith.mulf %58, %2 : vector<16x8xf32>
    %60 = arith.addf %59, %5 : vector<16x8xf32>
    %cst_80 = arith.constant 0.000000e+00 : f32
    %61 = vector.broadcast %cst_80 : f32 to vector<16x8xf32>
    %62 = arith.cmpf oge, %60, %61 : vector<16x8xf32>
    %cst_81 = arith.constant 2.000000e-01 : f32
    %63 = vector.broadcast %cst_81 : f32 to vector<16x8xf32>
    %64 = arith.mulf %63, %60 : vector<16x8xf32>
    %65 = arith.select %62, %60, %64 : vector<16x8xi1>, vector<16x8xf32>
    %c0_82 = arith.constant 0 : index
    %c0_83 = arith.constant 0 : index
    %c0_84 = arith.constant 0 : index
    %c0_85 = arith.constant 0 : index
    %66 = vector.load %arg13[%c0_82, %c0_83, %c0_84, %c0_85] : memref<1x16x16x8xf32, #tpu.memory_space<vmem>>, vector<1x1x16x8xf32>
    %67 = vector.shape_cast %66 : vector<1x1x16x8xf32> to vector<16x8xf32>
    %68 = vector.shape_cast %65 : vector<16x8xf32> to vector<1x1x16x8xf32>
    tpu.vector_store %arg13[%c0_82, %c0_83, %c0_84, %c0_85], %68 {strides = array<i32>} : memref<1x16x16x8xf32, #tpu.memory_space<vmem>>, vector<1x1x16x8xf32>,
    %cst_86 = arith.constant 0.000000e+00 : f32
    %69 = vector.broadcast %cst_86 : f32 to vector<16x8xf32>
    %c0_87 = arith.constant 0 : index
    %c1_88 = arith.constant 1 : index
    %c0_89 = arith.constant 0 : index
    %c0_90 = arith.constant 0 : index
    %70 = vector.load %arg2[%c0_87, %c1_88, %c0_89, %c0_90] : memref<1x16x17x4xbf16, #tpu.memory_space<vmem>>, vector<1x1x16x4xbf16>
    %71 = vector.shape_cast %70 : vector<1x1x16x4xbf16> to vector<16x4xbf16>
    %c0_91 = arith.constant 0 : index
    %c1_92 = arith.constant 1 : index
    %c0_93 = arith.constant 0 : index
    %c0_94 = arith.constant 0 : index
    %72 = vector.load %arg3[%c0_91, %c1_92, %c0_93, %c0_94] : memref<1x16x17x4xbf16, #tpu.memory_space<vmem>>, vector<1x1x16x4xbf16>
    %73 = vector.shape_cast %72 : vector<1x1x16x4xbf16> to vector<16x4xbf16>
    %c0_95 = arith.constant 0 : index
    %c1_96 = arith.constant 1 : index
    %c1_97 = arith.constant 1 : index
    %c0_98 = arith.constant 0 : index
    %74 = vector.load %arg2[%c0_95, %c1_96, %c1_97, %c0_98] : memref<1x16x17x4xbf16, #tpu.memory_space<vmem>>, vector<1x1x16x4xbf16>
    %75 = vector.shape_cast %74 : vector<1x1x16x4xbf16> to vector<16x4xbf16>
    %c0_99 = arith.constant 0 : index
    %c1_100 = arith.constant 1 : index
    %c1_101 = arith.constant 1 : index
    %c0_102 = arith.constant 0 : index
    %76 = vector.load %arg3[%c0_99, %c1_100, %c1_101, %c0_102] : memref<1x16x17x4xbf16, #tpu.memory_space<vmem>>, vector<1x1x16x4xbf16>
    %77 = vector.shape_cast %76 : vector<1x1x16x4xbf16> to vector<16x4xbf16>
    %78 = tpu.concatenate %71, %73, %75, %77 in 1 : vector<16x4xbf16>, vector<16x4xbf16>, vector<16x4xbf16>, vector<16x4xbf16> -> vector<16x16xbf16>
    %c0_103 = arith.constant 0 : index
    %c0_104 = arith.constant 0 : index
    %c0_105 = arith.constant 0 : index
    %79 = vector.load %arg10[%c0_103, %c0_104, %c0_105] : memref<4x16x8xbf16, #tpu.memory_space<vmem>>, vector<1x16x8xbf16>
    %80 = vector.shape_cast %79 : vector<1x16x8xbf16> to vector<16x8xbf16>
    %cst_106 = arith.constant dense<0.000000e+00> : vector<16x8xf32>
    %81 = tpu.matmul %78, %80, %cst_106 {dimension_numbers = #tpu.dot_dimension_numbers<[1], [0], [0], [1], [0, 0, 1, 1], [], []>} : vector<16x16xbf16>, vector<16x8xbf16>, vector<16x8xf32> -> vector<16x8xf32>
    %82 = arith.addf %69, %81 : vector<16x8xf32>
    %c0_107 = arith.constant 0 : index
    %c1_108 = arith.constant 1 : index
    %c0_109 = arith.constant 0 : index
    %c0_110 = arith.constant 0 : index
    %83 = vector.load %arg4[%c0_107, %c1_108, %c0_109, %c0_110] : memref<1x16x17x4xbf16, #tpu.memory_space<vmem>>, vector<1x1x16x4xbf16>
    %84 = vector.shape_cast %83 : vector<1x1x16x4xbf16> to vector<16x4xbf16>
    %c0_111 = arith.constant 0 : index
    %c1_112 = arith.constant 1 : index
    %c0_113 = arith.constant 0 : index
    %c0_114 = arith.constant 0 : index
    %85 = vector.load %arg5[%c0_111, %c1_112, %c0_113, %c0_114] : memref<1x16x17x4xbf16, #tpu.memory_space<vmem>>, vector<1x1x16x4xbf16>
    %86 = vector.shape_cast %85 : vector<1x1x16x4xbf16> to vector<16x4xbf16>
    %c0_115 = arith.constant 0 : index
    %c1_116 = arith.constant 1 : index
    %c1_117 = arith.constant 1 : index
    %c0_118 = arith.constant 0 : index
    %87 = vector.load %arg4[%c0_115, %c1_116, %c1_117, %c0_118] : memref<1x16x17x4xbf16, #tpu.memory_space<vmem>>, vector<1x1x16x4xbf16>
    %88 = vector.shape_cast %87 : vector<1x1x16x4xbf16> to vector<16x4xbf16>
    %c0_119 = arith.constant 0 : index
    %c1_120 = arith.constant 1 : index
    %c1_121 = arith.constant 1 : index
    %c0_122 = arith.constant 0 : index
    %89 = vector.load %arg5[%c0_119, %c1_120, %c1_121, %c0_122] : memref<1x16x17x4xbf16, #tpu.memory_space<vmem>>, vector<1x1x16x4xbf16>
    %90 = vector.shape_cast %89 : vector<1x1x16x4xbf16> to vector<16x4xbf16>
    %91 = tpu.concatenate %84, %86, %88, %90 in 1 : vector<16x4xbf16>, vector<16x4xbf16>, vector<16x4xbf16>, vector<16x4xbf16> -> vector<16x16xbf16>
    %c1_123 = arith.constant 1 : index
    %c0_124 = arith.constant 0 : index
    %c0_125 = arith.constant 0 : index
    %92 = vector.load %arg10[%c1_123, %c0_124, %c0_125] : memref<4x16x8xbf16, #tpu.memory_space<vmem>>, vector<1x16x8xbf16>
    %93 = vector.shape_cast %92 : vector<1x16x8xbf16> to vector<16x8xbf16>
    %cst_126 = arith.constant dense<0.000000e+00> : vector<16x8xf32>
    %94 = tpu.matmul %91, %93, %cst_126 {dimension_numbers = #tpu.dot_dimension_numbers<[1], [0], [0], [1], [0, 0, 1, 1], [], []>} : vector<16x16xbf16>, vector<16x8xbf16>, vector<16x8xf32> -> vector<16x8xf32>
    %95 = arith.addf %82, %94 : vector<16x8xf32>
    %c0_127 = arith.constant 0 : index
    %c1_128 = arith.constant 1 : index
    %c0_129 = arith.constant 0 : index
    %c0_130 = arith.constant 0 : index
    %96 = vector.load %arg6[%c0_127, %c1_128, %c0_129, %c0_130] : memref<1x16x17x4xbf16, #tpu.memory_space<vmem>>, vector<1x1x16x4xbf16>
    %97 = vector.shape_cast %96 : vector<1x1x16x4xbf16> to vector<16x4xbf16>
    %c0_131 = arith.constant 0 : index
    %c1_132 = arith.constant 1 : index
    %c0_133 = arith.constant 0 : index
    %c0_134 = arith.constant 0 : index
    %98 = vector.load %arg7[%c0_131, %c1_132, %c0_133, %c0_134] : memref<1x16x17x4xbf16, #tpu.memory_space<vmem>>, vector<1x1x16x4xbf16>
    %99 = vector.shape_cast %98 : vector<1x1x16x4xbf16> to vector<16x4xbf16>
    %c0_135 = arith.constant 0 : index
    %c1_136 = arith.constant 1 : index
    %c1_137 = arith.constant 1 : index
    %c0_138 = arith.constant 0 : index
    %100 = vector.load %arg6[%c0_135, %c1_136, %c1_137, %c0_138] : memref<1x16x17x4xbf16, #tpu.memory_space<vmem>>, vector<1x1x16x4xbf16>
    %101 = vector.shape_cast %100 : vector<1x1x16x4xbf16> to vector<16x4xbf16>
    %c0_139 = arith.constant 0 : index
    %c1_140 = arith.constant 1 : index
    %c1_141 = arith.constant 1 : index
    %c0_142 = arith.constant 0 : index
    %102 = vector.load %arg7[%c0_139, %c1_140, %c1_141, %c0_142] : memref<1x16x17x4xbf16, #tpu.memory_space<vmem>>, vector<1x1x16x4xbf16>
    %103 = vector.shape_cast %102 : vector<1x1x16x4xbf16> to vector<16x4xbf16>
    %104 = tpu.concatenate %97, %99, %101, %103 in 1 : vector<16x4xbf16>, vector<16x4xbf16>, vector<16x4xbf16>, vector<16x4xbf16> -> vector<16x16xbf16>
    %c2_143 = arith.constant 2 : index
    %c0_144 = arith.constant 0 : index
    %c0_145 = arith.constant 0 : index
    %105 = vector.load %arg10[%c2_143, %c0_144, %c0_145] : memref<4x16x8xbf16, #tpu.memory_space<vmem>>, vector<1x16x8xbf16>
    %106 = vector.shape_cast %105 : vector<1x16x8xbf16> to vector<16x8xbf16>
    %cst_146 = arith.constant dense<0.000000e+00> : vector<16x8xf32>
    %107 = tpu.matmul %104, %106, %cst_146 {dimension_numbers = #tpu.dot_dimension_numbers<[1], [0], [0], [1], [0, 0, 1, 1], [], []>} : vector<16x16xbf16>, vector<16x8xbf16>, vector<16x8xf32> -> vector<16x8xf32>
    %108 = arith.addf %95, %107 : vector<16x8xf32>
    %c0_147 = arith.constant 0 : index
    %c1_148 = arith.constant 1 : index
    %c0_149 = arith.constant 0 : index
    %c0_150 = arith.constant 0 : index
    %109 = vector.load %arg8[%c0_147, %c1_148, %c0_149, %c0_150] : memref<1x16x17x4xbf16, #tpu.memory_space<vmem>>, vector<1x1x16x4xbf16>
    %110 = vector.shape_cast %109 : vector<1x1x16x4xbf16> to vector<16x4xbf16>
    %c0_151 = arith.constant 0 : index
    %c1_152 = arith.constant 1 : index
    %c0_153 = arith.constant 0 : index
    %c0_154 = arith.constant 0 : index
    %111 = vector.load %arg9[%c0_151, %c1_152, %c0_153, %c0_154] : memref<1x16x17x4xbf16, #tpu.memory_space<vmem>>, vector<1x1x16x4xbf16>
    %112 = vector.shape_cast %111 : vector<1x1x16x4xbf16> to vector<16x4xbf16>
    %c0_155 = arith.constant 0 : index
    %c1_156 = arith.constant 1 : index
    %c1_157 = arith.constant 1 : index
    %c0_158 = arith.constant 0 : index
    %113 = vector.load %arg8[%c0_155, %c1_156, %c1_157, %c0_158] : memref<1x16x17x4xbf16, #tpu.memory_space<vmem>>, vector<1x1x16x4xbf16>
    %114 = vector.shape_cast %113 : vector<1x1x16x4xbf16> to vector<16x4xbf16>
    %c0_159 = arith.constant 0 : index
    %c1_160 = arith.constant 1 : index
    %c1_161 = arith.constant 1 : index
    %c0_162 = arith.constant 0 : index
    %115 = vector.load %arg9[%c0_159, %c1_160, %c1_161, %c0_162] : memref<1x16x17x4xbf16, #tpu.memory_space<vmem>>, vector<1x1x16x4xbf16>
    %116 = vector.shape_cast %115 : vector<1x1x16x4xbf16> to vector<16x4xbf16>
    %117 = tpu.concatenate %110, %112, %114, %116 in 1 : vector<16x4xbf16>, vector<16x4xbf16>, vector<16x4xbf16>, vector<16x4xbf16> -> vector<16x16xbf16>
    %c3_163 = arith.constant 3 : index
    %c0_164 = arith.constant 0 : index
    %c0_165 = arith.constant 0 : index
    %118 = vector.load %arg10[%c3_163, %c0_164, %c0_165] : memref<4x16x8xbf16, #tpu.memory_space<vmem>>, vector<1x16x8xbf16>
    %119 = vector.shape_cast %118 : vector<1x16x8xbf16> to vector<16x8xbf16>
    %cst_166 = arith.constant dense<0.000000e+00> : vector<16x8xf32>
    %120 = tpu.matmul %117, %119, %cst_166 {dimension_numbers = #tpu.dot_dimension_numbers<[1], [0], [0], [1], [0, 0, 1, 1], [], []>} : vector<16x16xbf16>, vector<16x8xbf16>, vector<16x8xf32> -> vector<16x8xf32>
    %121 = arith.addf %108, %120 : vector<16x8xf32>
    %122 = arith.mulf %121, %2 : vector<16x8xf32>
    %123 = arith.addf %122, %5 : vector<16x8xf32>
    %cst_167 = arith.constant 0.000000e+00 : f32
    %124 = vector.broadcast %cst_167 : f32 to vector<16x8xf32>
    %125 = arith.cmpf oge, %123, %124 : vector<16x8xf32>
    %cst_168 = arith.constant 2.000000e-01 : f32
    %126 = vector.broadcast %cst_168 : f32 to vector<16x8xf32>
    %127 = arith.mulf %126, %123 : vector<16x8xf32>
    %128 = arith.select %125, %123, %127 : vector<16x8xi1>, vector<16x8xf32>
    %c0_169 = arith.constant 0 : index
    %c1_170 = arith.constant 1 : index
    %c0_171 = arith.constant 0 : index
    %c0_172 = arith.constant 0 : index
    %129 = vector.load %arg13[%c0_169, %c1_170, %c0_171, %c0_172] : memref<1x16x16x8xf32, #tpu.memory_space<vmem>>, vector<1x1x16x8xf32>
    %130 = vector.shape_cast %129 : vector<1x1x16x8xf32> to vector<16x8xf32>
    %131 = vector.shape_cast %128 : vector<16x8xf32> to vector<1x1x16x8xf32>
    tpu.vector_store %arg13[%c0_169, %c1_170, %c0_171, %c0_172], %131 {strides = array<i32>} : memref<1x16x16x8xf32, #tpu.memory_space<vmem>>, vector<1x1x16x8xf32>,
    %cst_173 = arith.constant 0.000000e+00 : f32
    %132 = vector.broadcast %cst_173 : f32 to vector<16x8xf32>
    %c0_174 = arith.constant 0 : index
    %c2_175 = arith.constant 2 : index
    %c0_176 = arith.constant 0 : index
    %c0_177 = arith.constant 0 : index
    %133 = vector.load %arg2[%c0_174, %c2_175, %c0_176, %c0_177] : memref<1x16x17x4xbf16, #tpu.memory_space<vmem>>, vector<1x1x16x4xbf16>
    %134 = vector.shape_cast %133 : vector<1x1x16x4xbf16> to vector<16x4xbf16>
    %c0_178 = arith.constant 0 : index
    %c2_179 = arith.constant 2 : index
    %c0_180 = arith.constant 0 : index
    %c0_181 = arith.constant 0 : index
    %135 = vector.load %arg3[%c0_178, %c2_179, %c0_180, %c0_181] : memref<1x16x17x4xbf16, #tpu.memory_space<vmem>>, vector<1x1x16x4xbf16>
    %136 = vector.shape_cast %135 : vector<1x1x16x4xbf16> to vector<16x4xbf16>
    %c0_182 = arith.constant 0 : index
    %c2_183 = arith.constant 2 : index
    %c1_184 = arith.constant 1 : index
    %c0_185 = arith.constant 0 : index
    %137 = vector.load %arg2[%c0_182, %c2_183, %c1_184, %c0_185] : memref<1x16x17x4xbf16, #tpu.memory_space<vmem>>, vector<1x1x16x4xbf16>
    %138 = vector.shape_cast %137 : vector<1x1x16x4xbf16> to vector<16x4xbf16>
    %c0_186 = arith.constant 0 : index
    %c2_187 = arith.constant 2 : index
    %c1_188 = arith.constant 1 : index
    %c0_189 = arith.constant 0 : index
    %139 = vector.load %arg3[%c0_186, %c2_187, %c1_188, %c0_189] : memref<1x16x17x4xbf16, #tpu.memory_space<vmem>>, vector<1x1x16x4xbf16>
    %140 = vector.shape_cast %139 : vector<1x1x16x4xbf16> to vector<16x4xbf16>
    %141 = tpu.concatenate %134, %136, %138, %140 in 1 : vector<16x4xbf16>, vector<16x4xbf16>, vector<16x4xbf16>, vector<16x4xbf16> -> vector<16x16xbf16>
    %c0_190 = arith.constant 0 : index
    %c0_191 = arith.constant 0 : index
    %c0_192 = arith.constant 0 : index
    %142 = vector.load %arg10[%c0_190, %c0_191, %c0_192] : memref<4x16x8xbf16, #tpu.memory_space<vmem>>, vector<1x16x8xbf16>
    %143 = vector.shape_cast %142 : vector<1x16x8xbf16> to vector<16x8xbf16>
    %cst_193 = arith.constant dense<0.000000e+00> : vector<16x8xf32>
    %144 = tpu.matmul %141, %143, %cst_193 {dimension_numbers = #tpu.dot_dimension_numbers<[1], [0], [0], [1], [0, 0, 1, 1], [], []>} : vector<16x16xbf16>, vector<16x8xbf16>, vector<16x8xf32> -> vector<16x8xf32>
    %145 = arith.addf %132, %144 : vector<16x8xf32>
    %c0_194 = arith.constant 0 : index
    %c2_195 = arith.constant 2 : index
    %c0_196 = arith.constant 0 : index
    %c0_197 = arith.constant 0 : index
    %146 = vector.load %arg4[%c0_194, %c2_195, %c0_196, %c0_197] : memref<1x16x17x4xbf16, #tpu.memory_space<vmem>>, vector<1x1x16x4xbf16>
    %147 = vector.shape_cast %146 : vector<1x1x16x4xbf16> to vector<16x4xbf16>
    %c0_198 = arith.constant 0 : index
    %c2_199 = arith.constant 2 : index
    %c0_200 = arith.constant 0 : index
    %c0_201 = arith.constant 0 : index
    %148 = vector.load %arg5[%c0_198, %c2_199, %c0_200, %c0_201] : memref<1x16x17x4xbf16, #tpu.memory_space<vmem>>, vector<1x1x16x4xbf16>
    %149 = vector.shape_cast %148 : vector<1x1x16x4xbf16> to vector<16x4xbf16>
    %c0_202 = arith.constant 0 : index
    %c2_203 = arith.constant 2 : index
    %c1_204 = arith.constant 1 : index
    %c0_205 = arith.constant 0 : index
    %150 = vector.load %arg4[%c0_202, %c2_203, %c1_204, %c0_205] : memref<1x16x17x4xbf16, #tpu.memory_space<vmem>>, vector<1x1x16x4xbf16>
    %151 = vector.shape_cast %150 : vector<1x1x16x4xbf16> to vector<16x4xbf16>
    %c0_206 = arith.constant 0 : index
    %c2_207 = arith.constant 2 : index
    %c1_208 = arith.constant 1 : index
    %c0_209 = arith.constant 0 : index
    %152 = vector.load %arg5[%c0_206, %c2_207, %c1_208, %c0_209] : memref<1x16x17x4xbf16, #tpu.memory_space<vmem>>, vector<1x1x16x4xbf16>
    %153 = vector.shape_cast %152 : vector<1x1x16x4xbf16> to vector<16x4xbf16>
    %154 = tpu.concatenate %147, %149, %151, %153 in 1 : vector<16x4xbf16>, vector<16x4xbf16>, vector<16x4xbf16>, vector<16x4xbf16> -> vector<16x16xbf16>
    %c1_210 = arith.constant 1 : index
    %c0_211 = arith.constant 0 : index
    %c0_212 = arith.constant 0 : index
    %155 = vector.load %arg10[%c1_210, %c0_211, %c0_212] : memref<4x16x8xbf16, #tpu.memory_space<vmem>>, vector<1x16x8xbf16>
    %156 = vector.shape_cast %155 : vector<1x16x8xbf16> to vector<16x8xbf16>
    %cst_213 = arith.constant dense<0.000000e+00> : vector<16x8xf32>
    %157 = tpu.matmul %154, %156, %cst_213 {dimension_numbers = #tpu.dot_dimension_numbers<[1], [0], [0], [1], [0, 0, 1, 1], [], []>} : vector<16x16xbf16>, vector<16x8xbf16>, vector<16x8xf32> -> vector<16x8xf32>
    %158 = arith.addf %145, %157 : vector<16x8xf32>
    %c0_214 = arith.constant 0 : index
    %c2_215 = arith.constant 2 : index
    %c0_216 = arith.constant 0 : index
    %c0_217 = arith.constant 0 : index
    %159 = vector.load %arg6[%c0_214, %c2_215, %c0_216, %c0_217] : memref<1x16x17x4xbf16, #tpu.memory_space<vmem>>, vector<1x1x16x4xbf16>
    %160 = vector.shape_cast %159 : vector<1x1x16x4xbf16> to vector<16x4xbf16>
    %c0_218 = arith.constant 0 : index
    %c2_219 = arith.constant 2 : index
    %c0_220 = arith.constant 0 : index
    %c0_221 = arith.constant 0 : index
    %161 = vector.load %arg7[%c0_218, %c2_219, %c0_220, %c0_221] : memref<1x16x17x4xbf16, #tpu.memory_space<vmem>>, vector<1x1x16x4xbf16>
    %162 = vector.shape_cast %161 : vector<1x1x16x4xbf16> to vector<16x4xbf16>
    %c0_222 = arith.constant 0 : index
    %c2_223 = arith.constant 2 : index
    %c1_224 = arith.constant 1 : index
    %c0_225 = arith.constant 0 : index
    %163 = vector.load %arg6[%c0_222, %c2_223, %c1_224, %c0_225] : memref<1x16x17x4xbf16, #tpu.memory_space<vmem>>, vector<1x1x16x4xbf16>
    %164 = vector.shape_cast %163 : vector<1x1x16x4xbf16> to vector<16x4xbf16>
    %c0_226 = arith.constant 0 : index
    %c2_227 = arith.constant 2 : index
    %c1_228 = arith.constant 1 : index
    %c0_229 = arith.constant 0 : index
    %165 = vector.load %arg7[%c0_226, %c2_227, %c1_228, %c0_229] : memref<1x16x17x4xbf16, #tpu.memory_space<vmem>>, vector<1x1x16x4xbf16>
    %166 = vector.shape_cast %165 : vector<1x1x16x4xbf16> to vector<16x4xbf16>
    %167 = tpu.concatenate %160, %162, %164, %166 in 1 : vector<16x4xbf16>, vector<16x4xbf16>, vector<16x4xbf16>, vector<16x4xbf16> -> vector<16x16xbf16>
    %c2_230 = arith.constant 2 : index
    %c0_231 = arith.constant 0 : index
    %c0_232 = arith.constant 0 : index
    %168 = vector.load %arg10[%c2_230, %c0_231, %c0_232] : memref<4x16x8xbf16, #tpu.memory_space<vmem>>, vector<1x16x8xbf16>
    %169 = vector.shape_cast %168 : vector<1x16x8xbf16> to vector<16x8xbf16>
    %cst_233 = arith.constant dense<0.000000e+00> : vector<16x8xf32>
    %170 = tpu.matmul %167, %169, %cst_233 {dimension_numbers = #tpu.dot_dimension_numbers<[1], [0], [0], [1], [0, 0, 1, 1], [], []>} : vector<16x16xbf16>, vector<16x8xbf16>, vector<16x8xf32> -> vector<16x8xf32>
    %171 = arith.addf %158, %170 : vector<16x8xf32>
    %c0_234 = arith.constant 0 : index
    %c2_235 = arith.constant 2 : index
    %c0_236 = arith.constant 0 : index
    %c0_237 = arith.constant 0 : index
    %172 = vector.load %arg8[%c0_234, %c2_235, %c0_236, %c0_237] : memref<1x16x17x4xbf16, #tpu.memory_space<vmem>>, vector<1x1x16x4xbf16>
    %173 = vector.shape_cast %172 : vector<1x1x16x4xbf16> to vector<16x4xbf16>
    %c0_238 = arith.constant 0 : index
    %c2_239 = arith.constant 2 : index
    %c0_240 = arith.constant 0 : index
    %c0_241 = arith.constant 0 : index
    %174 = vector.load %arg9[%c0_238, %c2_239, %c0_240, %c0_241] : memref<1x16x17x4xbf16, #tpu.memory_space<vmem>>, vector<1x1x16x4xbf16>
    %175 = vector.shape_cast %174 : vector<1x1x16x4xbf16> to vector<16x4xbf16>
    %c0_242 = arith.constant 0 : index
    %c2_243 = arith.constant 2 : index
    %c1_244 = arith.constant 1 : index
    %c0_245 = arith.constant 0 : index
    %176 = vector.load %arg8[%c0_242, %c2_243, %c1_244, %c0_245] : memref<1x16x17x4xbf16, #tpu.memory_space<vmem>>, vector<1x1x16x4xbf16>
    %177 = vector.shape_cast %176 : vector<1x1x16x4xbf16> to vector<16x4xbf16>
    %c0_246 = arith.constant 0 : index
    %c2_247 = arith.constant 2 : index
    %c1_248 = arith.constant 1 : index
    %c0_249 = arith.constant 0 : index
    %178 = vector.load %arg9[%c0_246, %c2_247, %c1_248, %c0_249] : memref<1x16x17x4xbf16, #tpu.memory_space<vmem>>, vector<1x1x16x4xbf16>
    %179 = vector.shape_cast %178 : vector<1x1x16x4xbf16> to vector<16x4xbf16>
    %180 = tpu.concatenate %173, %175, %177, %179 in 1 : vector<16x4xbf16>, vector<16x4xbf16>, vector<16x4xbf16>, vector<16x4xbf16> -> vector<16x16xbf16>
    %c3_250 = arith.constant 3 : index
    %c0_251 = arith.constant 0 : index
    %c0_252 = arith.constant 0 : index
    %181 = vector.load %arg10[%c3_250, %c0_251, %c0_252] : memref<4x16x8xbf16, #tpu.memory_space<vmem>>, vector<1x16x8xbf16>
    %182 = vector.shape_cast %181 : vector<1x16x8xbf16> to vector<16x8xbf16>
    %cst_253 = arith.constant dense<0.000000e+00> : vector<16x8xf32>
    %183 = tpu.matmul %180, %182, %cst_253 {dimension_numbers = #tpu.dot_dimension_numbers<[1], [0], [0], [1], [0, 0, 1, 1], [], []>} : vector<16x16xbf16>, vector<16x8xbf16>, vector<16x8xf32> -> vector<16x8xf32>
    %184 = arith.addf %171, %183 : vector<16x8xf32>
    %185 = arith.mulf %184, %2 : vector<16x8xf32>
    %186 = arith.addf %185, %5 : vector<16x8xf32>
    %cst_254 = arith.constant 0.000000e+00 : f32
    %187 = vector.broadcast %cst_254 : f32 to vector<16x8xf32>
    %188 = arith.cmpf oge, %186, %187 : vector<16x8xf32>
    %cst_255 = arith.constant 2.000000e-01 : f32
    %189 = vector.broadcast %cst_255 : f32 to vector<16x8xf32>
    %190 = arith.mulf %189, %186 : vector<16x8xf32>
    %191 = arith.select %188, %186, %190 : vector<16x8xi1>, vector<16x8xf32>
    %c0_256 = arith.constant 0 : index
    %c2_257 = arith.constant 2 : index
    %c0_258 = arith.constant 0 : index
    %c0_259 = arith.constant 0 : index
    %192 = vector.load %arg13[%c0_256, %c2_257, %c0_258, %c0_259] : memref<1x16x16x8xf32, #tpu.memory_space<vmem>>, vector<1x1x16x8xf32>
    %193 = vector.shape_cast %192 : vector<1x1x16x8xf32> to vector<16x8xf32>
    %194 = vector.shape_cast %191 : vector<16x8xf32> to vector<1x1x16x8xf32>
    tpu.vector_store %arg13[%c0_256, %c2_257, %c0_258, %c0_259], %194 {strides = array<i32>} : memref<1x16x16x8xf32, #tpu.memory_space<vmem>>, vector<1x1x16x8xf32>,
    %cst_260 = arith.constant 0.000000e+00 : f32
    %195 = vector.broadcast %cst_260 : f32 to vector<16x8xf32>
    %c0_261 = arith.constant 0 : index
    %c3_262 = arith.constant 3 : index
    %c0_263 = arith.constant 0 : index
    %c0_264 = arith.constant 0 : index
    %196 = vector.load %arg2[%c0_261, %c3_262, %c0_263, %c0_264] : memref<1x16x17x4xbf16, #tpu.memory_space<vmem>>, vector<1x1x16x4xbf16>
    %197 = vector.shape_cast %196 : vector<1x1x16x4xbf16> to vector<16x4xbf16>
    %c0_265 = arith.constant 0 : index
    %c3_266 = arith.constant 3 : index
    %c0_267 = arith.constant 0 : index
    %c0_268 = arith.constant 0 : index
    %198 = vector.load %arg3[%c0_265, %c3_266, %c0_267, %c0_268] : memref<1x16x17x4xbf16, #tpu.memory_space<vmem>>, vector<1x1x16x4xbf16>
    %199 = vector.shape_cast %198 : vector<1x1x16x4xbf16> to vector<16x4xbf16>
    %c0_269 = arith.constant 0 : index
    %c3_270 = arith.constant 3 : index
    %c1_271 = arith.constant 1 : index
    %c0_272 = arith.constant 0 : index
    %200 = vector.load %arg2[%c0_269, %c3_270, %c1_271, %c0_272] : memref<1x16x17x4xbf16, #tpu.memory_space<vmem>>, vector<1x1x16x4xbf16>
    %201 = vector.shape_cast %200 : vector<1x1x16x4xbf16> to vector<16x4xbf16>
    %c0_273 = arith.constant 0 : index
    %c3_274 = arith.constant 3 : index
    %c1_275 = arith.constant 1 : index
    %c0_276 = arith.constant 0 : index
    %202 = vector.load %arg3[%c0_273, %c3_274, %c1_275, %c0_276] : memref<1x16x17x4xbf16, #tpu.memory_space<vmem>>, vector<1x1x16x4xbf16>
    %203 = vector.shape_cast %202 : vector<1x1x16x4xbf16> to vector<16x4xbf16>
    %204 = tpu.concatenate %197, %199, %201, %203 in 1 : vector<16x4xbf16>, vector<16x4xbf16>, vector<16x4xbf16>, vector<16x4xbf16> -> vector<16x16xbf16>
    %c0_277 = arith.constant 0 : index
    %c0_278 = arith.constant 0 : index
    %c0_279 = arith.constant 0 : index
    %205 = vector.load %arg10[%c0_277, %c0_278, %c0_279] : memref<4x16x8xbf16, #tpu.memory_space<vmem>>, vector<1x16x8xbf16>
    %206 = vector.shape_cast %205 : vector<1x16x8xbf16> to vector<16x8xbf16>
    %cst_280 = arith.constant dense<0.000000e+00> : vector<16x8xf32>
    %207 = tpu.matmul %204, %206, %cst_280 {dimension_numbers = #tpu.dot_dimension_numbers<[1], [0], [0], [1], [0, 0, 1, 1], [], []>} : vector<16x16xbf16>, vector<16x8xbf16>, vector<16x8xf32> -> vector<16x8xf32>
    %208 = arith.addf %195, %207 : vector<16x8xf32>
    %c0_281 = arith.constant 0 : index
    %c3_282 = arith.constant 3 : index
    %c0_283 = arith.constant 0 : index
    %c0_284 = arith.constant 0 : index
    %209 = vector.load %arg4[%c0_281, %c3_282, %c0_283, %c0_284] : memref<1x16x17x4xbf16, #tpu.memory_space<vmem>>, vector<1x1x16x4xbf16>
    %210 = vector.shape_cast %209 : vector<1x1x16x4xbf16> to vector<16x4xbf16>
    %c0_285 = arith.constant 0 : index
    %c3_286 = arith.constant 3 : index
    %c0_287 = arith.constant 0 : index
    %c0_288 = arith.constant 0 : index
    %211 = vector.load %arg5[%c0_285, %c3_286, %c0_287, %c0_288] : memref<1x16x17x4xbf16, #tpu.memory_space<vmem>>, vector<1x1x16x4xbf16>
    %212 = vector.shape_cast %211 : vector<1x1x16x4xbf16> to vector<16x4xbf16>
    %c0_289 = arith.constant 0 : index
    %c3_290 = arith.constant 3 : index
    %c1_291 = arith.constant 1 : index
    %c0_292 = arith.constant 0 : index
    %213 = vector.load %arg4[%c0_289, %c3_290, %c1_291, %c0_292] : memref<1x16x17x4xbf16, #tpu.memory_space<vmem>>, vector<1x1x16x4xbf16>
    %214 = vector.shape_cast %213 : vector<1x1x16x4xbf16> to vector<16x4xbf16>
    %c0_293 = arith.constant 0 : index
    %c3_294 = arith.constant 3 : index
    %c1_295 = arith.constant 1 : index
    %c0_296 = arith.constant 0 : index
    %215 = vector.load %arg5[%c0_293, %c3_294, %c1_295, %c0_296] : memref<1x16x17x4xbf16, #tpu.memory_space<vmem>>, vector<1x1x16x4xbf16>
    %216 = vector.shape_cast %215 : vector<1x1x16x4xbf16> to vector<16x4xbf16>
    %217 = tpu.concatenate %210, %212, %214, %216 in 1 : vector<16x4xbf16>, vector<16x4xbf16>, vector<16x4xbf16>, vector<16x4xbf16> -> vector<16x16xbf16>
    %c1_297 = arith.constant 1 : index
    %c0_298 = arith.constant 0 : index
    %c0_299 = arith.constant 0 : index
    %218 = vector.load %arg10[%c1_297, %c0_298, %c0_299] : memref<4x16x8xbf16, #tpu.memory_space<vmem>>, vector<1x16x8xbf16>
    %219 = vector.shape_cast %218 : vector<1x16x8xbf16> to vector<16x8xbf16>
    %cst_300 = arith.constant dense<0.000000e+00> : vector<16x8xf32>
    %220 = tpu.matmul %217, %219, %cst_300 {dimension_numbers = #tpu.dot_dimension_numbers<[1], [0], [0], [1], [0, 0, 1, 1], [], []>} : vector<16x16xbf16>, vector<16x8xbf16>, vector<16x8xf32> -> vector<16x8xf32>
    %221 = arith.addf %208, %220 : vector<16x8xf32>
    %c0_301 = arith.constant 0 : index
    %c3_302 = arith.constant 3 : index
    %c0_303 = arith.constant 0 : index
    %c0_304 = arith.constant 0 : index
    %222 = vector.load %arg6[%c0_301, %c3_302, %c0_303, %c0_304] : memref<1x16x17x4xbf16, #tpu.memory_space<vmem>>, vector<1x1x16x4xbf16>
    %223 = vector.shape_cast %222 : vector<1x1x16x4xbf16> to vector<16x4xbf16>
    %c0_305 = arith.constant 0 : index
    %c3_306 = arith.constant 3 : index
    %c0_307 = arith.constant 0 : index
    %c0_308 = arith.constant 0 : index
    %224 = vector.load %arg7[%c0_305, %c3_306, %c0_307, %c0_308] : memref<1x16x17x4xbf16, #tpu.memory_space<vmem>>, vector<1x1x16x4xbf16>
    %225 = vector.shape_cast %224 : vector<1x1x16x4xbf16> to vector<16x4xbf16>
    %c0_309 = arith.constant 0 : index
    %c3_310 = arith.constant 3 : index
    %c1_311 = arith.constant 1 : index
    %c0_312 = arith.constant 0 : index
    %226 = vector.load %arg6[%c0_309, %c3_310, %c1_311, %c0_312] : memref<1x16x17x4xbf16, #tpu.memory_space<vmem>>, vector<1x1x16x4xbf16>
    %227 = vector.shape_cast %226 : vector<1x1x16x4xbf16> to vector<16x4xbf16>
    %c0_313 = arith.constant 0 : index
    %c3_314 = arith.constant 3 : index
    %c1_315 = arith.constant 1 : index
    %c0_316 = arith.constant 0 : index
    %228 = vector.load %arg7[%c0_313, %c3_314, %c1_315, %c0_316] : memref<1x16x17x4xbf16, #tpu.memory_space<vmem>>, vector<1x1x16x4xbf16>
    %229 = vector.shape_cast %228 : vector<1x1x16x4xbf16> to vector<16x4xbf16>
    %230 = tpu.concatenate %223, %225, %227, %229 in 1 : vector<16x4xbf16>, vector<16x4xbf16>, vector<16x4xbf16>, vector<16x4xbf16> -> vector<16x16xbf16>
    %c2_317 = arith.constant 2 : index
    %c0_318 = arith.constant 0 : index
    %c0_319 = arith.constant 0 : index
    %231 = vector.load %arg10[%c2_317, %c0_318, %c0_319] : memref<4x16x8xbf16, #tpu.memory_space<vmem>>, vector<1x16x8xbf16>
    %232 = vector.shape_cast %231 : vector<1x16x8xbf16> to vector<16x8xbf16>
    %cst_320 = arith.constant dense<0.000000e+00> : vector<16x8xf32>
    %233 = tpu.matmul %230, %232, %cst_320 {dimension_numbers = #tpu.dot_dimension_numbers<[1], [0], [0], [1], [0, 0, 1, 1], [], []>} : vector<16x16xbf16>, vector<16x8xbf16>, vector<16x8xf32> -> vector<16x8xf32>
    %234 = arith.addf %221, %233 : vector<16x8xf32>
    %c0_321 = arith.constant 0 : index
    %c3_322 = arith.constant 3 : index
    %c0_323 = arith.constant 0 : index
    %c0_324 = arith.constant 0 : index
    %235 = vector.load %arg8[%c0_321, %c3_322, %c0_323, %c0_324] : memref<1x16x17x4xbf16, #tpu.memory_space<vmem>>, vector<1x1x16x4xbf16>
    %236 = vector.shape_cast %235 : vector<1x1x16x4xbf16> to vector<16x4xbf16>
    %c0_325 = arith.constant 0 : index
    %c3_326 = arith.constant 3 : index
    %c0_327 = arith.constant 0 : index
    %c0_328 = arith.constant 0 : index
    %237 = vector.load %arg9[%c0_325, %c3_326, %c0_327, %c0_328] : memref<1x16x17x4xbf16, #tpu.memory_space<vmem>>, vector<1x1x16x4xbf16>
    %238 = vector.shape_cast %237 : vector<1x1x16x4xbf16> to vector<16x4xbf16>
    %c0_329 = arith.constant 0 : index
    %c3_330 = arith.constant 3 : index
    %c1_331 = arith.constant 1 : index
    %c0_332 = arith.constant 0 : index
    %239 = vector.load %arg8[%c0_329, %c3_330, %c1_331, %c0_332] : memref<1x16x17x4xbf16, #tpu.memory_space<vmem>>, vector<1x1x16x4xbf16>
    %240 = vector.shape_cast %239 : vector<1x1x16x4xbf16> to vector<16x4xbf16>
    %c0_333 = arith.constant 0 : index
    %c3_334 = arith.constant 3 : index
    %c1_335 = arith.constant 1 : index
    %c0_336 = arith.constant 0 : index
    %241 = vector.load %arg9[%c0_333, %c3_334, %c1_335, %c0_336] : memref<1x16x17x4xbf16, #tpu.memory_space<vmem>>, vector<1x1x16x4xbf16>
    %242 = vector.shape_cast %241 : vector<1x1x16x4xbf16> to vector<16x4xbf16>
    %243 = tpu.concatenate %236, %238, %240, %242 in 1 : vector<16x4xbf16>, vector<16x4xbf16>, vector<16x4xbf16>, vector<16x4xbf16> -> vector<16x16xbf16>
    %c3_337 = arith.constant 3 : index
    %c0_338 = arith.constant 0 : index
    %c0_339 = arith.constant 0 : index
    %244 = vector.load %arg10[%c3_337, %c0_338, %c0_339] : memref<4x16x8xbf16, #tpu.memory_space<vmem>>, vector<1x16x8xbf16>
    %245 = vector.shape_cast %244 : vector<1x16x8xbf16> to vector<16x8xbf16>
    %cst_340 = arith.constant dense<0.000000e+00> : vector<16x8xf32>
    %246 = tpu.matmul %243, %245, %cst_340 {dimension_numbers = #tpu.dot_dimension_numbers<[1], [0], [0], [1], [0, 0, 1, 1], [], []>} : vector<16x16xbf16>, vector<16x8xbf16>, vector<16x8xf32> -> vector<16x8xf32>
    %247 = arith.addf %234, %246 : vector<16x8xf32>
    %248 = arith.mulf %247, %2 : vector<16x8xf32>
    %249 = arith.addf %248, %5 : vector<16x8xf32>
    %cst_341 = arith.constant 0.000000e+00 : f32
    %250 = vector.broadcast %cst_341 : f32 to vector<16x8xf32>
    %251 = arith.cmpf oge, %249, %250 : vector<16x8xf32>
    %cst_342 = arith.constant 2.000000e-01 : f32
    %252 = vector.broadcast %cst_342 : f32 to vector<16x8xf32>
    %253 = arith.mulf %252, %249 : vector<16x8xf32>
    %254 = arith.select %251, %249, %253 : vector<16x8xi1>, vector<16x8xf32>
    %c0_343 = arith.constant 0 : index
    %c3_344 = arith.constant 3 : index
    %c0_345 = arith.constant 0 : index
    %c0_346 = arith.constant 0 : index
    %255 = vector.load %arg13[%c0_343, %c3_344, %c0_345, %c0_346] : memref<1x16x16x8xf32, #tpu.memory_space<vmem>>, vector<1x1x16x8xf32>
    %256 = vector.shape_cast %255 : vector<1x1x16x8xf32> to vector<16x8xf32>
    %257 = vector.shape_cast %254 : vector<16x8xf32> to vector<1x1x16x8xf32>
    tpu.vector_store %arg13[%c0_343, %c3_344, %c0_345, %c0_346], %257 {strides = array<i32>} : memref<1x16x16x8xf32, #tpu.memory_space<vmem>>, vector<1x1x16x8xf32>,
    %cst_347 = arith.constant 0.000000e+00 : f32
    %258 = vector.broadcast %cst_347 : f32 to vector<16x8xf32>
    %c0_348 = arith.constant 0 : index
    %c4 = arith.constant 4 : index
    %c0_349 = arith.constant 0 : index
    %c0_350 = arith.constant 0 : index
    %259 = vector.load %arg2[%c0_348, %c4, %c0_349, %c0_350] : memref<1x16x17x4xbf16, #tpu.memory_space<vmem>>, vector<1x1x16x4xbf16>
    %260 = vector.shape_cast %259 : vector<1x1x16x4xbf16> to vector<16x4xbf16>
    %c0_351 = arith.constant 0 : index
    %c4_352 = arith.constant 4 : index
    %c0_353 = arith.constant 0 : index
    %c0_354 = arith.constant 0 : index
    %261 = vector.load %arg3[%c0_351, %c4_352, %c0_353, %c0_354] : memref<1x16x17x4xbf16, #tpu.memory_space<vmem>>, vector<1x1x16x4xbf16>
    %262 = vector.shape_cast %261 : vector<1x1x16x4xbf16> to vector<16x4xbf16>
    %c0_355 = arith.constant 0 : index
    %c4_356 = arith.constant 4 : index
    %c1_357 = arith.constant 1 : index
    %c0_358 = arith.constant 0 : index
    %263 = vector.load %arg2[%c0_355, %c4_356, %c1_357, %c0_358] : memref<1x16x17x4xbf16, #tpu.memory_space<vmem>>, vector<1x1x16x4xbf16>
    %264 = vector.shape_cast %263 : vector<1x1x16x4xbf16> to vector<16x4xbf16>
    %c0_359 = arith.constant 0 : index
    %c4_360 = arith.constant 4 : index
    %c1_361 = arith.constant 1 : index
    %c0_362 = arith.constant 0 : index
    %265 = vector.load %arg3[%c0_359, %c4_360, %c1_361, %c0_362] : memref<1x16x17x4xbf16, #tpu.memory_space<vmem>>, vector<1x1x16x4xbf16>
    %266 = vector.shape_cast %265 : vector<1x1x16x4xbf16> to vector<16x4xbf16>
    %267 = tpu.concatenate %260, %262, %264, %266 in 1 : vector<16x4xbf16>, vector<16x4xbf16>, vector<16x4xbf16>, vector<16x4xbf16> -> vector<16x16xbf16>
    %c0_363 = arith.constant 0 : index
    %c0_364 = arith.constant 0 : index
    %c0_365 = arith.constant 0 : index
    %268 = vector.load %arg10[%c0_363, %c0_364, %c0_365] : memref<4x16x8xbf16, #tpu.memory_space<vmem>>, vector<1x16x8xbf16>
    %269 = vector.shape_cast %268 : vector<1x16x8xbf16> to vector<16x8xbf16>
    %cst_366 = arith.constant dense<0.000000e+00> : vector<16x8xf32>
    %270 = tpu.matmul %267, %269, %cst_366 {dimension_numbers = #tpu.dot_dimension_numbers<[1], [0], [0], [1], [0, 0, 1, 1], [], []>} : vector<16x16xbf16>, vector<16x8xbf16>, vector<16x8xf32> -> vector<16x8xf32>
    %271 = arith.addf %258, %270 : vector<16x8xf32>
    %c0_367 = arith.constant 0 : index
    %c4_368 = arith.constant 4 : index
    %c0_369 = arith.constant 0 : index
    %c0_370 = arith.constant 0 : index
    %272 = vector.load %arg4[%c0_367, %c4_368, %c0_369, %c0_370] : memref<1x16x17x4xbf16, #tpu.memory_space<vmem>>, vector<1x1x16x4xbf16>
    %273 = vector.shape_cast %272 : vector<1x1x16x4xbf16> to vector<16x4xbf16>
    %c0_371 = arith.constant 0 : index
    %c4_372 = arith.constant 4 : index
    %c0_373 = arith.constant 0 : index
    %c0_374 = arith.constant 0 : index
    %274 = vector.load %arg5[%c0_371, %c4_372, %c0_373, %c0_374] : memref<1x16x17x4xbf16, #tpu.memory_space<vmem>>, vector<1x1x16x4xbf16>
    %275 = vector.shape_cast %274 : vector<1x1x16x4xbf16> to vector<16x4xbf16>
    %c0_375 = arith.constant 0 : index
    %c4_376 = arith.constant 4 : index
    %c1_377 = arith.constant 1 : index
    %c0_378 = arith.constant 0 : index
    %276 = vector.load %arg4[%c0_375, %c4_376, %c1_377, %c0_378] : memref<1x16x17x4xbf16, #tpu.memory_space<vmem>>, vector<1x1x16x4xbf16>
    %277 = vector.shape_cast %276 : vector<1x1x16x4xbf16> to vector<16x4xbf16>
    %c0_379 = arith.constant 0 : index
    %c4_380 = arith.constant 4 : index
    %c1_381 = arith.constant 1 : index
    %c0_382 = arith.constant 0 : index
    %278 = vector.load %arg5[%c0_379, %c4_380, %c1_381, %c0_382] : memref<1x16x17x4xbf16, #tpu.memory_space<vmem>>, vector<1x1x16x4xbf16>
    %279 = vector.shape_cast %278 : vector<1x1x16x4xbf16> to vector<16x4xbf16>
    %280 = tpu.concatenate %273, %275, %277, %279 in 1 : vector<16x4xbf16>, vector<16x4xbf16>, vector<16x4xbf16>, vector<16x4xbf16> -> vector<16x16xbf16>
    %c1_383 = arith.constant 1 : index
    %c0_384 = arith.constant 0 : index
    %c0_385 = arith.constant 0 : index
    %281 = vector.load %arg10[%c1_383, %c0_384, %c0_385] : memref<4x16x8xbf16, #tpu.memory_space<vmem>>, vector<1x16x8xbf16>
    %282 = vector.shape_cast %281 : vector<1x16x8xbf16> to vector<16x8xbf16>
    %cst_386 = arith.constant dense<0.000000e+00> : vector<16x8xf32>
    %283 = tpu.matmul %280, %282, %cst_386 {dimension_numbers = #tpu.dot_dimension_numbers<[1], [0], [0], [1], [0, 0, 1, 1], [], []>} : vector<16x16xbf16>, vector<16x8xbf16>, vector<16x8xf32> -> vector<16x8xf32>
    %284 = arith.addf %271, %283 : vector<16x8xf32>
    %c0_387 = arith.constant 0 : index
    %c4_388 = arith.constant 4 : index
    %c0_389 = arith.constant 0 : index
    %c0_390 = arith.constant 0 : index
    %285 = vector.load %arg6[%c0_387, %c4_388, %c0_389, %c0_390] : memref<1x16x17x4xbf16, #tpu.memory_space<vmem>>, vector<1x1x16x4xbf16>
    %286 = vector.shape_cast %285 : vector<1x1x16x4xbf16> to vector<16x4xbf16>
    %c0_391 = arith.constant 0 : index
    %c4_392 = arith.constant 4 : index
    %c0_393 = arith.constant 0 : index
    %c0_394 = arith.constant 0 : index
    %287 = vector.load %arg7[%c0_391, %c4_392, %c0_393, %c0_394] : memref<1x16x17x4xbf16, #tpu.memory_space<vmem>>, vector<1x1x16x4xbf16>
    %288 = vector.shape_cast %287 : vector<1x1x16x4xbf16> to vector<16x4xbf16>
    %c0_395 = arith.constant 0 : index
    %c4_396 = arith.constant 4 : index
    %c1_397 = arith.constant 1 : index
    %c0_398 = arith.constant 0 : index
    %289 = vector.load %arg6[%c0_395, %c4_396, %c1_397, %c0_398] : memref<1x16x17x4xbf16, #tpu.memory_space<vmem>>, vector<1x1x16x4xbf16>
    %290 = vector.shape_cast %289 : vector<1x1x16x4xbf16> to vector<16x4xbf16>
    %c0_399 = arith.constant 0 : index
    %c4_400 = arith.constant 4 : index
    %c1_401 = arith.constant 1 : index
    %c0_402 = arith.constant 0 : index
    %291 = vector.load %arg7[%c0_399, %c4_400, %c1_401, %c0_402] : memref<1x16x17x4xbf16, #tpu.memory_space<vmem>>, vector<1x1x16x4xbf16>
    %292 = vector.shape_cast %291 : vector<1x1x16x4xbf16> to vector<16x4xbf16>
    %293 = tpu.concatenate %286, %288, %290, %292 in 1 : vector<16x4xbf16>, vector<16x4xbf16>, vector<16x4xbf16>, vector<16x4xbf16> -> vector<16x16xbf16>
    %c2_403 = arith.constant 2 : index
    %c0_404 = arith.constant 0 : index
    %c0_405 = arith.constant 0 : index
    %294 = vector.load %arg10[%c2_403, %c0_404, %c0_405] : memref<4x16x8xbf16, #tpu.memory_space<vmem>>, vector<1x16x8xbf16>
    %295 = vector.shape_cast %294 : vector<1x16x8xbf16> to vector<16x8xbf16>
    %cst_406 = arith.constant dense<0.000000e+00> : vector<16x8xf32>
    %296 = tpu.matmul %293, %295, %cst_406 {dimension_numbers = #tpu.dot_dimension_numbers<[1], [0], [0], [1], [0, 0, 1, 1], [], []>} : vector<16x16xbf16>, vector<16x8xbf16>, vector<16x8xf32> -> vector<16x8xf32>
    %297 = arith.addf %284, %296 : vector<16x8xf32>
    %c0_407 = arith.constant 0 : index
    %c4_408 = arith.constant 4 : index
    %c0_409 = arith.constant 0 : index
    %c0_410 = arith.constant 0 : index
    %298 = vector.load %arg8[%c0_407, %c4_408, %c0_409, %c0_410] : memref<1x16x17x4xbf16, #tpu.memory_space<vmem>>, vector<1x1x16x4xbf16>
    %299 = vector.shape_cast %298 : vector<1x1x16x4xbf16> to vector<16x4xbf16>
    %c0_411 = arith.constant 0 : index
    %c4_412 = arith.constant 4 : index
    %c0_413 = arith.constant 0 : index
    %c0_414 = arith.constant 0 : index
    %300 = vector.load %arg9[%c0_411, %c4_412, %c0_413, %c0_414] : memref<1x16x17x4xbf16, #tpu.memory_space<vmem>>, vector<1x1x16x4xbf16>
    %301 = vector.shape_cast %300 : vector<1x1x16x4xbf16> to vector<16x4xbf16>
    %c0_415 = arith.constant 0 : index
    %c4_416 = arith.constant 4 : index
    %c1_417 = arith.constant 1 : index
    %c0_418 = arith.constant 0 : index
    %302 = vector.load %arg8[%c0_415, %c4_416, %c1_417, %c0_418] : memref<1x16x17x4xbf16, #tpu.memory_space<vmem>>, vector<1x1x16x4xbf16>
    %303 = vector.shape_cast %302 : vector<1x1x16x4xbf16> to vector<16x4xbf16>
    %c0_419 = arith.constant 0 : index
    %c4_420 = arith.constant 4 : index
    %c1_421 = arith.constant 1 : index
    %c0_422 = arith.constant 0 : index
    %304 = vector.load %arg9[%c0_419, %c4_420, %c1_421, %c0_422] : memref<1x16x17x4xbf16, #tpu.memory_space<vmem>>, vector<1x1x16x4xbf16>
    %305 = vector.shape_cast %304 : vector<1x1x16x4xbf16> to vector<16x4xbf16>
    %306 = tpu.concatenate %299, %301, %303, %305 in 1 : vector<16x4xbf16>, vector<16x4xbf16>, vector<16x4xbf16>, vector<16x4xbf16> -> vector<16x16xbf16>
    %c3_423 = arith.constant 3 : index
    %c0_424 = arith.constant 0 : index
    %c0_425 = arith.constant 0 : index
    %307 = vector.load %arg10[%c3_423, %c0_424, %c0_425] : memref<4x16x8xbf16, #tpu.memory_space<vmem>>, vector<1x16x8xbf16>
    %308 = vector.shape_cast %307 : vector<1x16x8xbf16> to vector<16x8xbf16>
    %cst_426 = arith.constant dense<0.000000e+00> : vector<16x8xf32>
    %309 = tpu.matmul %306, %308, %cst_426 {dimension_numbers = #tpu.dot_dimension_numbers<[1], [0], [0], [1], [0, 0, 1, 1], [], []>} : vector<16x16xbf16>, vector<16x8xbf16>, vector<16x8xf32> -> vector<16x8xf32>
    %310 = arith.addf %297, %309 : vector<16x8xf32>
    %311 = arith.mulf %310, %2 : vector<16x8xf32>
    %312 = arith.addf %311, %5 : vector<16x8xf32>
    %cst_427 = arith.constant 0.000000e+00 : f32
    %313 = vector.broadcast %cst_427 : f32 to vector<16x8xf32>
    %314 = arith.cmpf oge, %312, %313 : vector<16x8xf32>
    %cst_428 = arith.constant 2.000000e-01 : f32
    %315 = vector.broadcast %cst_428 : f32 to vector<16x8xf32>
    %316 = arith.mulf %315, %312 : vector<16x8xf32>
    %317 = arith.select %314, %312, %316 : vector<16x8xi1>, vector<16x8xf32>
    %c0_429 = arith.constant 0 : index
    %c4_430 = arith.constant 4 : index
    %c0_431 = arith.constant 0 : index
    %c0_432 = arith.constant 0 : index
    %318 = vector.load %arg13[%c0_429, %c4_430, %c0_431, %c0_432] : memref<1x16x16x8xf32, #tpu.memory_space<vmem>>, vector<1x1x16x8xf32>
    %319 = vector.shape_cast %318 : vector<1x1x16x8xf32> to vector<16x8xf32>
    %320 = vector.shape_cast %317 : vector<16x8xf32> to vector<1x1x16x8xf32>
    tpu.vector_store %arg13[%c0_429, %c4_430, %c0_431, %c0_432], %320 {strides = array<i32>} : memref<1x16x16x8xf32, #tpu.memory_space<vmem>>, vector<1x1x16x8xf32>,
    %cst_433 = arith.constant 0.000000e+00 : f32
    %321 = vector.broadcast %cst_433 : f32 to vector<16x8xf32>
    %c0_434 = arith.constant 0 : index
    %c5 = arith.constant 5 : index
    %c0_435 = arith.constant 0 : index
    %c0_436 = arith.constant 0 : index
    %322 = vector.load %arg2[%c0_434, %c5, %c0_435, %c0_436] : memref<1x16x17x4xbf16, #tpu.memory_space<vmem>>, vector<1x1x16x4xbf16>
    %323 = vector.shape_cast %322 : vector<1x1x16x4xbf16> to vector<16x4xbf16>
    %c0_437 = arith.constant 0 : index
    %c5_438 = arith.constant 5 : index
    %c0_439 = arith.constant 0 : index
    %c0_440 = arith.constant 0 : index
    %324 = vector.load %arg3[%c0_437, %c5_438, %c0_439, %c0_440] : memref<1x16x17x4xbf16, #tpu.memory_space<vmem>>, vector<1x1x16x4xbf16>
    %325 = vector.shape_cast %324 : vector<1x1x16x4xbf16> to vector<16x4xbf16>
    %c0_441 = arith.constant 0 : index
    %c5_442 = arith.constant 5 : index
    %c1_443 = arith.constant 1 : index
    %c0_444 = arith.constant 0 : index
    %326 = vector.load %arg2[%c0_441, %c5_442, %c1_443, %c0_444] : memref<1x16x17x4xbf16, #tpu.memory_space<vmem>>, vector<1x1x16x4xbf16>
    %327 = vector.shape_cast %326 : vector<1x1x16x4xbf16> to vector<16x4xbf16>
    %c0_445 = arith.constant 0 : index
    %c5_446 = arith.constant 5 : index
    %c1_447 = arith.constant 1 : index
    %c0_448 = arith.constant 0 : index
    %328 = vector.load %arg3[%c0_445, %c5_446, %c1_447, %c0_448] : memref<1x16x17x4xbf16, #tpu.memory_space<vmem>>, vector<1x1x16x4xbf16>
    %329 = vector.shape_cast %328 : vector<1x1x16x4xbf16> to vector<16x4xbf16>
    %330 = tpu.concatenate %323, %325, %327, %329 in 1 : vector<16x4xbf16>, vector<16x4xbf16>, vector<16x4xbf16>, vector<16x4xbf16> -> vector<16x16xbf16>
    %c0_449 = arith.constant 0 : index
    %c0_450 = arith.constant 0 : index
    %c0_451 = arith.constant 0 : index
    %331 = vector.load %arg10[%c0_449, %c0_450, %c0_451] : memref<4x16x8xbf16, #tpu.memory_space<vmem>>, vector<1x16x8xbf16>
    %332 = vector.shape_cast %331 : vector<1x16x8xbf16> to vector<16x8xbf16>
    %cst_452 = arith.constant dense<0.000000e+00> : vector<16x8xf32>
    %333 = tpu.matmul %330, %332, %cst_452 {dimension_numbers = #tpu.dot_dimension_numbers<[1], [0], [0], [1], [0, 0, 1, 1], [], []>} : vector<16x16xbf16>, vector<16x8xbf16>, vector<16x8xf32> -> vector<16x8xf32>
    %334 = arith.addf %321, %333 : vector<16x8xf32>
    %c0_453 = arith.constant 0 : index
    %c5_454 = arith.constant 5 : index
    %c0_455 = arith.constant 0 : index
    %c0_456 = arith.constant 0 : index
    %335 = vector.load %arg4[%c0_453, %c5_454, %c0_455, %c0_456] : memref<1x16x17x4xbf16, #tpu.memory_space<vmem>>, vector<1x1x16x4xbf16>
    %336 = vector.shape_cast %335 : vector<1x1x16x4xbf16> to vector<16x4xbf16>
    %c0_457 = arith.constant 0 : index
    %c5_458 = arith.constant 5 : index
    %c0_459 = arith.constant 0 : index
    %c0_460 = arith.constant 0 : index
    %337 = vector.load %arg5[%c0_457, %c5_458, %c0_459, %c0_460] : memref<1x16x17x4xbf16, #tpu.memory_space<vmem>>, vector<1x1x16x4xbf16>
    %338 = vector.shape_cast %337 : vector<1x1x16x4xbf16> to vector<16x4xbf16>
    %c0_461 = arith.constant 0 : index
    %c5_462 = arith.constant 5 : index
    %c1_463 = arith.constant 1 : index
    %c0_464 = arith.constant 0 : index
    %339 = vector.load %arg4[%c0_461, %c5_462, %c1_463, %c0_464] : memref<1x16x17x4xbf16, #tpu.memory_space<vmem>>, vector<1x1x16x4xbf16>
    %340 = vector.shape_cast %339 : vector<1x1x16x4xbf16> to vector<16x4xbf16>
    %c0_465 = arith.constant 0 : index
    %c5_466 = arith.constant 5 : index
    %c1_467 = arith.constant 1 : index
    %c0_468 = arith.constant 0 : index
    %341 = vector.load %arg5[%c0_465, %c5_466, %c1_467, %c0_468] : memref<1x16x17x4xbf16, #tpu.memory_space<vmem>>, vector<1x1x16x4xbf16>
    %342 = vector.shape_cast %341 : vector<1x1x16x4xbf16> to vector<16x4xbf16>
    %343 = tpu.concatenate %336, %338, %340, %342 in 1 : vector<16x4xbf16>, vector<16x4xbf16>, vector<16x4xbf16>, vector<16x4xbf16> -> vector<16x16xbf16>
    %c1_469 = arith.constant 1 : index
    %c0_470 = arith.constant 0 : index
    %c0_471 = arith.constant 0 : index
    %344 = vector.load %arg10[%c1_469, %c0_470, %c0_471] : memref<4x16x8xbf16, #tpu.memory_space<vmem>>, vector<1x16x8xbf16>
    %345 = vector.shape_cast %344 : vector<1x16x8xbf16> to vector<16x8xbf16>
    %cst_472 = arith.constant dense<0.000000e+00> : vector<16x8xf32>
    %346 = tpu.matmul %343, %345, %cst_472 {dimension_numbers = #tpu.dot_dimension_numbers<[1], [0], [0], [1], [0, 0, 1, 1], [], []>} : vector<16x16xbf16>, vector<16x8xbf16>, vector<16x8xf32> -> vector<16x8xf32>
    %347 = arith.addf %334, %346 : vector<16x8xf32>
    %c0_473 = arith.constant 0 : index
    %c5_474 = arith.constant 5 : index
    %c0_475 = arith.constant 0 : index
    %c0_476 = arith.constant 0 : index
    %348 = vector.load %arg6[%c0_473, %c5_474, %c0_475, %c0_476] : memref<1x16x17x4xbf16, #tpu.memory_space<vmem>>, vector<1x1x16x4xbf16>
    %349 = vector.shape_cast %348 : vector<1x1x16x4xbf16> to vector<16x4xbf16>
    %c0_477 = arith.constant 0 : index
    %c5_478 = arith.constant 5 : index
    %c0_479 = arith.constant 0 : index
    %c0_480 = arith.constant 0 : index
    %350 = vector.load %arg7[%c0_477, %c5_478, %c0_479, %c0_480] : memref<1x16x17x4xbf16, #tpu.memory_space<vmem>>, vector<1x1x16x4xbf16>
    %351 = vector.shape_cast %350 : vector<1x1x16x4xbf16> to vector<16x4xbf16>
    %c0_481 = arith.constant 0 : index
    %c5_482 = arith.constant 5 : index
    %c1_483 = arith.constant 1 : index
    %c0_484 = arith.constant 0 : index
    %352 = vector.load %arg6[%c0_481, %c5_482, %c1_483, %c0_484] : memref<1x16x17x4xbf16, #tpu.memory_space<vmem>>, vector<1x1x16x4xbf16>
    %353 = vector.shape_cast %352 : vector<1x1x16x4xbf16> to vector<16x4xbf16>
    %c0_485 = arith.constant 0 : index
    %c5_486 = arith.constant 5 : index
    %c1_487 = arith.constant 1 : index
    %c0_488 = arith.constant 0 : index
    %354 = vector.load %arg7[%c0_485, %c5_486, %c1_487, %c0_488] : memref<1x16x17x4xbf16, #tpu.memory_space<vmem>>, vector<1x1x16x4xbf16>
    %355 = vector.shape_cast %354 : vector<1x1x16x4xbf16> to vector<16x4xbf16>
    %356 = tpu.concatenate %349, %351, %353, %355 in 1 : vector<16x4xbf16>, vector<16x4xbf16>, vector<16x4xbf16>, vector<16x4xbf16> -> vector<16x16xbf16>
    %c2_489 = arith.constant 2 : index
    %c0_490 = arith.constant 0 : index
    %c0_491 = arith.constant 0 : index
    %357 = vector.load %arg10[%c2_489, %c0_490, %c0_491] : memref<4x16x8xbf16, #tpu.memory_space<vmem>>, vector<1x16x8xbf16>
    %358 = vector.shape_cast %357 : vector<1x16x8xbf16> to vector<16x8xbf16>
    %cst_492 = arith.constant dense<0.000000e+00> : vector<16x8xf32>
    %359 = tpu.matmul %356, %358, %cst_492 {dimension_numbers = #tpu.dot_dimension_numbers<[1], [0], [0], [1], [0, 0, 1, 1], [], []>} : vector<16x16xbf16>, vector<16x8xbf16>, vector<16x8xf32> -> vector<16x8xf32>
    %360 = arith.addf %347, %359 : vector<16x8xf32>
    %c0_493 = arith.constant 0 : index
    %c5_494 = arith.constant 5 : index
    %c0_495 = arith.constant 0 : index
    %c0_496 = arith.constant 0 : index
    %361 = vector.load %arg8[%c0_493, %c5_494, %c0_495, %c0_496] : memref<1x16x17x4xbf16, #tpu.memory_space<vmem>>, vector<1x1x16x4xbf16>
    %362 = vector.shape_cast %361 : vector<1x1x16x4xbf16> to vector<16x4xbf16>
    %c0_497 = arith.constant 0 : index
    %c5_498 = arith.constant 5 : index
    %c0_499 = arith.constant 0 : index
    %c0_500 = arith.constant 0 : index
    %363 = vector.load %arg9[%c0_497, %c5_498, %c0_499, %c0_500] : memref<1x16x17x4xbf16, #tpu.memory_space<vmem>>, vector<1x1x16x4xbf16>
    %364 = vector.shape_cast %363 : vector<1x1x16x4xbf16> to vector<16x4xbf16>
    %c0_501 = arith.constant 0 : index
    %c5_502 = arith.constant 5 : index
    %c1_503 = arith.constant 1 : index
    %c0_504 = arith.constant 0 : index
    %365 = vector.load %arg8[%c0_501, %c5_502, %c1_503, %c0_504] : memref<1x16x17x4xbf16, #tpu.memory_space<vmem>>, vector<1x1x16x4xbf16>
    %366 = vector.shape_cast %365 : vector<1x1x16x4xbf16> to vector<16x4xbf16>
    %c0_505 = arith.constant 0 : index
    %c5_506 = arith.constant 5 : index
    %c1_507 = arith.constant 1 : index
    %c0_508 = arith.constant 0 : index
    %367 = vector.load %arg9[%c0_505, %c5_506, %c1_507, %c0_508] : memref<1x16x17x4xbf16, #tpu.memory_space<vmem>>, vector<1x1x16x4xbf16>
    %368 = vector.shape_cast %367 : vector<1x1x16x4xbf16> to vector<16x4xbf16>
    %369 = tpu.concatenate %362, %364, %366, %368 in 1 : vector<16x4xbf16>, vector<16x4xbf16>, vector<16x4xbf16>, vector<16x4xbf16> -> vector<16x16xbf16>
    %c3_509 = arith.constant 3 : index
    %c0_510 = arith.constant 0 : index
    %c0_511 = arith.constant 0 : index
    %370 = vector.load %arg10[%c3_509, %c0_510, %c0_511] : memref<4x16x8xbf16, #tpu.memory_space<vmem>>, vector<1x16x8xbf16>
    %371 = vector.shape_cast %370 : vector<1x16x8xbf16> to vector<16x8xbf16>
    %cst_512 = arith.constant dense<0.000000e+00> : vector<16x8xf32>
    %372 = tpu.matmul %369, %371, %cst_512 {dimension_numbers = #tpu.dot_dimension_numbers<[1], [0], [0], [1], [0, 0, 1, 1], [], []>} : vector<16x16xbf16>, vector<16x8xbf16>, vector<16x8xf32> -> vector<16x8xf32>
    %373 = arith.addf %360, %372 : vector<16x8xf32>
    %374 = arith.mulf %373, %2 : vector<16x8xf32>
    %375 = arith.addf %374, %5 : vector<16x8xf32>
    %cst_513 = arith.constant 0.000000e+00 : f32
    %376 = vector.broadcast %cst_513 : f32 to vector<16x8xf32>
    %377 = arith.cmpf oge, %375, %376 : vector<16x8xf32>
    %cst_514 = arith.constant 2.000000e-01 : f32
    %378 = vector.broadcast %cst_514 : f32 to vector<16x8xf32>
    %379 = arith.mulf %378, %375 : vector<16x8xf32>
    %380 = arith.select %377, %375, %379 : vector<16x8xi1>, vector<16x8xf32>
    %c0_515 = arith.constant 0 : index
    %c5_516 = arith.constant 5 : index
    %c0_517 = arith.constant 0 : index
    %c0_518 = arith.constant 0 : index
    %381 = vector.load %arg13[%c0_515, %c5_516, %c0_517, %c0_518] : memref<1x16x16x8xf32, #tpu.memory_space<vmem>>, vector<1x1x16x8xf32>
    %382 = vector.shape_cast %381 : vector<1x1x16x8xf32> to vector<16x8xf32>
    %383 = vector.shape_cast %380 : vector<16x8xf32> to vector<1x1x16x8xf32>
    tpu.vector_store %arg13[%c0_515, %c5_516, %c0_517, %c0_518], %383 {strides = array<i32>} : memref<1x16x16x8xf32, #tpu.memory_space<vmem>>, vector<1x1x16x8xf32>,
    %cst_519 = arith.constant 0.000000e+00 : f32
    %384 = vector.broadcast %cst_519 : f32 to vector<16x8xf32>
    %c0_520 = arith.constant 0 : index
    %c6 = arith.constant 6 : index
    %c0_521 = arith.constant 0 : index
    %c0_522 = arith.constant 0 : index
    %385 = vector.load %arg2[%c0_520, %c6, %c0_521, %c0_522] : memref<1x16x17x4xbf16, #tpu.memory_space<vmem>>, vector<1x1x16x4xbf16>
    %386 = vector.shape_cast %385 : vector<1x1x16x4xbf16> to vector<16x4xbf16>
    %c0_523 = arith.constant 0 : index
    %c6_524 = arith.constant 6 : index
    %c0_525 = arith.constant 0 : index
    %c0_526 = arith.constant 0 : index
    %387 = vector.load %arg3[%c0_523, %c6_524, %c0_525, %c0_526] : memref<1x16x17x4xbf16, #tpu.memory_space<vmem>>, vector<1x1x16x4xbf16>
    %388 = vector.shape_cast %387 : vector<1x1x16x4xbf16> to vector<16x4xbf16>
    %c0_527 = arith.constant 0 : index
    %c6_528 = arith.constant 6 : index
    %c1_529 = arith.constant 1 : index
    %c0_530 = arith.constant 0 : index
    %389 = vector.load %arg2[%c0_527, %c6_528, %c1_529, %c0_530] : memref<1x16x17x4xbf16, #tpu.memory_space<vmem>>, vector<1x1x16x4xbf16>
    %390 = vector.shape_cast %389 : vector<1x1x16x4xbf16> to vector<16x4xbf16>
    %c0_531 = arith.constant 0 : index
    %c6_532 = arith.constant 6 : index
    %c1_533 = arith.constant 1 : index
    %c0_534 = arith.constant 0 : index
    %391 = vector.load %arg3[%c0_531, %c6_532, %c1_533, %c0_534] : memref<1x16x17x4xbf16, #tpu.memory_space<vmem>>, vector<1x1x16x4xbf16>
    %392 = vector.shape_cast %391 : vector<1x1x16x4xbf16> to vector<16x4xbf16>
    %393 = tpu.concatenate %386, %388, %390, %392 in 1 : vector<16x4xbf16>, vector<16x4xbf16>, vector<16x4xbf16>, vector<16x4xbf16> -> vector<16x16xbf16>
    %c0_535 = arith.constant 0 : index
    %c0_536 = arith.constant 0 : index
    %c0_537 = arith.constant 0 : index
    %394 = vector.load %arg10[%c0_535, %c0_536, %c0_537] : memref<4x16x8xbf16, #tpu.memory_space<vmem>>, vector<1x16x8xbf16>
    %395 = vector.shape_cast %394 : vector<1x16x8xbf16> to vector<16x8xbf16>
    %cst_538 = arith.constant dense<0.000000e+00> : vector<16x8xf32>
    %396 = tpu.matmul %393, %395, %cst_538 {dimension_numbers = #tpu.dot_dimension_numbers<[1], [0], [0], [1], [0, 0, 1, 1], [], []>} : vector<16x16xbf16>, vector<16x8xbf16>, vector<16x8xf32> -> vector<16x8xf32>
    %397 = arith.addf %384, %396 : vector<16x8xf32>
    %c0_539 = arith.constant 0 : index
    %c6_540 = arith.constant 6 : index
    %c0_541 = arith.constant 0 : index
    %c0_542 = arith.constant 0 : index
    %398 = vector.load %arg4[%c0_539, %c6_540, %c0_541, %c0_542] : memref<1x16x17x4xbf16, #tpu.memory_space<vmem>>, vector<1x1x16x4xbf16>
    %399 = vector.shape_cast %398 : vector<1x1x16x4xbf16> to vector<16x4xbf16>
    %c0_543 = arith.constant 0 : index
    %c6_544 = arith.constant 6 : index
    %c0_545 = arith.constant 0 : index
    %c0_546 = arith.constant 0 : index
    %400 = vector.load %arg5[%c0_543, %c6_544, %c0_545, %c0_546] : memref<1x16x17x4xbf16, #tpu.memory_space<vmem>>, vector<1x1x16x4xbf16>
    %401 = vector.shape_cast %400 : vector<1x1x16x4xbf16> to vector<16x4xbf16>
    %c0_547 = arith.constant 0 : index
    %c6_548 = arith.constant 6 : index
    %c1_549 = arith.constant 1 : index
    %c0_550 = arith.constant 0 : index
    %402 = vector.load %arg4[%c0_547, %c6_548, %c1_549, %c0_550] : memref<1x16x17x4xbf16, #tpu.memory_space<vmem>>, vector<1x1x16x4xbf16>
    %403 = vector.shape_cast %402 : vector<1x1x16x4xbf16> to vector<16x4xbf16>
    %c0_551 = arith.constant 0 : index
    %c6_552 = arith.constant 6 : index
    %c1_553 = arith.constant 1 : index
    %c0_554 = arith.constant 0 : index
    %404 = vector.load %arg5[%c0_551, %c6_552, %c1_553, %c0_554] : memref<1x16x17x4xbf16, #tpu.memory_space<vmem>>, vector<1x1x16x4xbf16>
    %405 = vector.shape_cast %404 : vector<1x1x16x4xbf16> to vector<16x4xbf16>
    %406 = tpu.concatenate %399, %401, %403, %405 in 1 : vector<16x4xbf16>, vector<16x4xbf16>, vector<16x4xbf16>, vector<16x4xbf16> -> vector<16x16xbf16>
    %c1_555 = arith.constant 1 : index
    %c0_556 = arith.constant 0 : index
    %c0_557 = arith.constant 0 : index
    %407 = vector.load %arg10[%c1_555, %c0_556, %c0_557] : memref<4x16x8xbf16, #tpu.memory_space<vmem>>, vector<1x16x8xbf16>
    %408 = vector.shape_cast %407 : vector<1x16x8xbf16> to vector<16x8xbf16>
    %cst_558 = arith.constant dense<0.000000e+00> : vector<16x8xf32>
    %409 = tpu.matmul %406, %408, %cst_558 {dimension_numbers = #tpu.dot_dimension_numbers<[1], [0], [0], [1], [0, 0, 1, 1], [], []>} : vector<16x16xbf16>, vector<16x8xbf16>, vector<16x8xf32> -> vector<16x8xf32>
    %410 = arith.addf %397, %409 : vector<16x8xf32>
    %c0_559 = arith.constant 0 : index
    %c6_560 = arith.constant 6 : index
    %c0_561 = arith.constant 0 : index
    %c0_562 = arith.constant 0 : index
    %411 = vector.load %arg6[%c0_559, %c6_560, %c0_561, %c0_562] : memref<1x16x17x4xbf16, #tpu.memory_space<vmem>>, vector<1x1x16x4xbf16>
    %412 = vector.shape_cast %411 : vector<1x1x16x4xbf16> to vector<16x4xbf16>
    %c0_563 = arith.constant 0 : index
    %c6_564 = arith.constant 6 : index
    %c0_565 = arith.constant 0 : index
    %c0_566 = arith.constant 0 : index
    %413 = vector.load %arg7[%c0_563, %c6_564, %c0_565, %c0_566] : memref<1x16x17x4xbf16, #tpu.memory_space<vmem>>, vector<1x1x16x4xbf16>
    %414 = vector.shape_cast %413 : vector<1x1x16x4xbf16> to vector<16x4xbf16>
    %c0_567 = arith.constant 0 : index
    %c6_568 = arith.constant 6 : index
    %c1_569 = arith.constant 1 : index
    %c0_570 = arith.constant 0 : index
    %415 = vector.load %arg6[%c0_567, %c6_568, %c1_569, %c0_570] : memref<1x16x17x4xbf16, #tpu.memory_space<vmem>>, vector<1x1x16x4xbf16>
    %416 = vector.shape_cast %415 : vector<1x1x16x4xbf16> to vector<16x4xbf16>
    %c0_571 = arith.constant 0 : index
    %c6_572 = arith.constant 6 : index
    %c1_573 = arith.constant 1 : index
    %c0_574 = arith.constant 0 : index
    %417 = vector.load %arg7[%c0_571, %c6_572, %c1_573, %c0_574] : memref<1x16x17x4xbf16, #tpu.memory_space<vmem>>, vector<1x1x16x4xbf16>
    %418 = vector.shape_cast %417 : vector<1x1x16x4xbf16> to vector<16x4xbf16>
    %419 = tpu.concatenate %412, %414, %416, %418 in 1 : vector<16x4xbf16>, vector<16x4xbf16>, vector<16x4xbf16>, vector<16x4xbf16> -> vector<16x16xbf16>
    %c2_575 = arith.constant 2 : index
    %c0_576 = arith.constant 0 : index
    %c0_577 = arith.constant 0 : index
    %420 = vector.load %arg10[%c2_575, %c0_576, %c0_577] : memref<4x16x8xbf16, #tpu.memory_space<vmem>>, vector<1x16x8xbf16>
    %421 = vector.shape_cast %420 : vector<1x16x8xbf16> to vector<16x8xbf16>
    %cst_578 = arith.constant dense<0.000000e+00> : vector<16x8xf32>
    %422 = tpu.matmul %419, %421, %cst_578 {dimension_numbers = #tpu.dot_dimension_numbers<[1], [0], [0], [1], [0, 0, 1, 1], [], []>} : vector<16x16xbf16>, vector<16x8xbf16>, vector<16x8xf32> -> vector<16x8xf32>
    %423 = arith.addf %410, %422 : vector<16x8xf32>
    %c0_579 = arith.constant 0 : index
    %c6_580 = arith.constant 6 : index
    %c0_581 = arith.constant 0 : index
    %c0_582 = arith.constant 0 : index
    %424 = vector.load %arg8[%c0_579, %c6_580, %c0_581, %c0_582] : memref<1x16x17x4xbf16, #tpu.memory_space<vmem>>, vector<1x1x16x4xbf16>
    %425 = vector.shape_cast %424 : vector<1x1x16x4xbf16> to vector<16x4xbf16>
    %c0_583 = arith.constant 0 : index
    %c6_584 = arith.constant 6 : index
    %c0_585 = arith.constant 0 : index
    %c0_586 = arith.constant 0 : index
    %426 = vector.load %arg9[%c0_583, %c6_584, %c0_585, %c0_586] : memref<1x16x17x4xbf16, #tpu.memory_space<vmem>>, vector<1x1x16x4xbf16>
    %427 = vector.shape_cast %426 : vector<1x1x16x4xbf16> to vector<16x4xbf16>
    %c0_587 = arith.constant 0 : index
    %c6_588 = arith.constant 6 : index
    %c1_589 = arith.constant 1 : index
    %c0_590 = arith.constant 0 : index
    %428 = vector.load %arg8[%c0_587, %c6_588, %c1_589, %c0_590] : memref<1x16x17x4xbf16, #tpu.memory_space<vmem>>, vector<1x1x16x4xbf16>
    %429 = vector.shape_cast %428 : vector<1x1x16x4xbf16> to vector<16x4xbf16>
    %c0_591 = arith.constant 0 : index
    %c6_592 = arith.constant 6 : index
    %c1_593 = arith.constant 1 : index
    %c0_594 = arith.constant 0 : index
    %430 = vector.load %arg9[%c0_591, %c6_592, %c1_593, %c0_594] : memref<1x16x17x4xbf16, #tpu.memory_space<vmem>>, vector<1x1x16x4xbf16>
    %431 = vector.shape_cast %430 : vector<1x1x16x4xbf16> to vector<16x4xbf16>
    %432 = tpu.concatenate %425, %427, %429, %431 in 1 : vector<16x4xbf16>, vector<16x4xbf16>, vector<16x4xbf16>, vector<16x4xbf16> -> vector<16x16xbf16>
    %c3_595 = arith.constant 3 : index
    %c0_596 = arith.constant 0 : index
    %c0_597 = arith.constant 0 : index
    %433 = vector.load %arg10[%c3_595, %c0_596, %c0_597] : memref<4x16x8xbf16, #tpu.memory_space<vmem>>, vector<1x16x8xbf16>
    %434 = vector.shape_cast %433 : vector<1x16x8xbf16> to vector<16x8xbf16>
    %cst_598 = arith.constant dense<0.000000e+00> : vector<16x8xf32>
    %435 = tpu.matmul %432, %434, %cst_598 {dimension_numbers = #tpu.dot_dimension_numbers<[1], [0], [0], [1], [0, 0, 1, 1], [], []>} : vector<16x16xbf16>, vector<16x8xbf16>, vector<16x8xf32> -> vector<16x8xf32>
    %436 = arith.addf %423, %435 : vector<16x8xf32>
    %437 = arith.mulf %436, %2 : vector<16x8xf32>
    %438 = arith.addf %437, %5 : vector<16x8xf32>
    %cst_599 = arith.constant 0.000000e+00 : f32
    %439 = vector.broadcast %cst_599 : f32 to vector<16x8xf32>
    %440 = arith.cmpf oge, %438, %439 : vector<16x8xf32>
    %cst_600 = arith.constant 2.000000e-01 : f32
    %441 = vector.broadcast %cst_600 : f32 to vector<16x8xf32>
    %442 = arith.mulf %441, %438 : vector<16x8xf32>
    %443 = arith.select %440, %438, %442 : vector<16x8xi1>, vector<16x8xf32>
    %c0_601 = arith.constant 0 : index
    %c6_602 = arith.constant 6 : index
    %c0_603 = arith.constant 0 : index
    %c0_604 = arith.constant 0 : index
    %444 = vector.load %arg13[%c0_601, %c6_602, %c0_603, %c0_604] : memref<1x16x16x8xf32, #tpu.memory_space<vmem>>, vector<1x1x16x8xf32>
    %445 = vector.shape_cast %444 : vector<1x1x16x8xf32> to vector<16x8xf32>
    %446 = vector.shape_cast %443 : vector<16x8xf32> to vector<1x1x16x8xf32>
    tpu.vector_store %arg13[%c0_601, %c6_602, %c0_603, %c0_604], %446 {strides = array<i32>} : memref<1x16x16x8xf32, #tpu.memory_space<vmem>>, vector<1x1x16x8xf32>,
    %cst_605 = arith.constant 0.000000e+00 : f32
    %447 = vector.broadcast %cst_605 : f32 to vector<16x8xf32>
    %c0_606 = arith.constant 0 : index
    %c7 = arith.constant 7 : index
    %c0_607 = arith.constant 0 : index
    %c0_608 = arith.constant 0 : index
    %448 = vector.load %arg2[%c0_606, %c7, %c0_607, %c0_608] : memref<1x16x17x4xbf16, #tpu.memory_space<vmem>>, vector<1x1x16x4xbf16>
    %449 = vector.shape_cast %448 : vector<1x1x16x4xbf16> to vector<16x4xbf16>
    %c0_609 = arith.constant 0 : index
    %c7_610 = arith.constant 7 : index
    %c0_611 = arith.constant 0 : index
    %c0_612 = arith.constant 0 : index
    %450 = vector.load %arg3[%c0_609, %c7_610, %c0_611, %c0_612] : memref<1x16x17x4xbf16, #tpu.memory_space<vmem>>, vector<1x1x16x4xbf16>
    %451 = vector.shape_cast %450 : vector<1x1x16x4xbf16> to vector<16x4xbf16>
    %c0_613 = arith.constant 0 : index
    %c7_614 = arith.constant 7 : index
    %c1_615 = arith.constant 1 : index
    %c0_616 = arith.constant 0 : index
    %452 = vector.load %arg2[%c0_613, %c7_614, %c1_615, %c0_616] : memref<1x16x17x4xbf16, #tpu.memory_space<vmem>>, vector<1x1x16x4xbf16>
    %453 = vector.shape_cast %452 : vector<1x1x16x4xbf16> to vector<16x4xbf16>
    %c0_617 = arith.constant 0 : index
    %c7_618 = arith.constant 7 : index
    %c1_619 = arith.constant 1 : index
    %c0_620 = arith.constant 0 : index
    %454 = vector.load %arg3[%c0_617, %c7_618, %c1_619, %c0_620] : memref<1x16x17x4xbf16, #tpu.memory_space<vmem>>, vector<1x1x16x4xbf16>
    %455 = vector.shape_cast %454 : vector<1x1x16x4xbf16> to vector<16x4xbf16>
    %456 = tpu.concatenate %449, %451, %453, %455 in 1 : vector<16x4xbf16>, vector<16x4xbf16>, vector<16x4xbf16>, vector<16x4xbf16> -> vector<16x16xbf16>
    %c0_621 = arith.constant 0 : index
    %c0_622 = arith.constant 0 : index
    %c0_623 = arith.constant 0 : index
    %457 = vector.load %arg10[%c0_621, %c0_622, %c0_623] : memref<4x16x8xbf16, #tpu.memory_space<vmem>>, vector<1x16x8xbf16>
    %458 = vector.shape_cast %457 : vector<1x16x8xbf16> to vector<16x8xbf16>
    %cst_624 = arith.constant dense<0.000000e+00> : vector<16x8xf32>
    %459 = tpu.matmul %456, %458, %cst_624 {dimension_numbers = #tpu.dot_dimension_numbers<[1], [0], [0], [1], [0, 0, 1, 1], [], []>} : vector<16x16xbf16>, vector<16x8xbf16>, vector<16x8xf32> -> vector<16x8xf32>
    %460 = arith.addf %447, %459 : vector<16x8xf32>
    %c0_625 = arith.constant 0 : index
    %c7_626 = arith.constant 7 : index
    %c0_627 = arith.constant 0 : index
    %c0_628 = arith.constant 0 : index
    %461 = vector.load %arg4[%c0_625, %c7_626, %c0_627, %c0_628] : memref<1x16x17x4xbf16, #tpu.memory_space<vmem>>, vector<1x1x16x4xbf16>
    %462 = vector.shape_cast %461 : vector<1x1x16x4xbf16> to vector<16x4xbf16>
    %c0_629 = arith.constant 0 : index
    %c7_630 = arith.constant 7 : index
    %c0_631 = arith.constant 0 : index
    %c0_632 = arith.constant 0 : index
    %463 = vector.load %arg5[%c0_629, %c7_630, %c0_631, %c0_632] : memref<1x16x17x4xbf16, #tpu.memory_space<vmem>>, vector<1x1x16x4xbf16>
    %464 = vector.shape_cast %463 : vector<1x1x16x4xbf16> to vector<16x4xbf16>
    %c0_633 = arith.constant 0 : index
    %c7_634 = arith.constant 7 : index
    %c1_635 = arith.constant 1 : index
    %c0_636 = arith.constant 0 : index
    %465 = vector.load %arg4[%c0_633, %c7_634, %c1_635, %c0_636] : memref<1x16x17x4xbf16, #tpu.memory_space<vmem>>, vector<1x1x16x4xbf16>
    %466 = vector.shape_cast %465 : vector<1x1x16x4xbf16> to vector<16x4xbf16>
    %c0_637 = arith.constant 0 : index
    %c7_638 = arith.constant 7 : index
    %c1_639 = arith.constant 1 : index
    %c0_640 = arith.constant 0 : index
    %467 = vector.load %arg5[%c0_637, %c7_638, %c1_639, %c0_640] : memref<1x16x17x4xbf16, #tpu.memory_space<vmem>>, vector<1x1x16x4xbf16>
    %468 = vector.shape_cast %467 : vector<1x1x16x4xbf16> to vector<16x4xbf16>
    %469 = tpu.concatenate %462, %464, %466, %468 in 1 : vector<16x4xbf16>, vector<16x4xbf16>, vector<16x4xbf16>, vector<16x4xbf16> -> vector<16x16xbf16>
    %c1_641 = arith.constant 1 : index
    %c0_642 = arith.constant 0 : index
    %c0_643 = arith.constant 0 : index
    %470 = vector.load %arg10[%c1_641, %c0_642, %c0_643] : memref<4x16x8xbf16, #tpu.memory_space<vmem>>, vector<1x16x8xbf16>
    %471 = vector.shape_cast %470 : vector<1x16x8xbf16> to vector<16x8xbf16>
    %cst_644 = arith.constant dense<0.000000e+00> : vector<16x8xf32>
    %472 = tpu.matmul %469, %471, %cst_644 {dimension_numbers = #tpu.dot_dimension_numbers<[1], [0], [0], [1], [0, 0, 1, 1], [], []>} : vector<16x16xbf16>, vector<16x8xbf16>, vector<16x8xf32> -> vector<16x8xf32>
    %473 = arith.addf %460, %472 : vector<16x8xf32>
    %c0_645 = arith.constant 0 : index
    %c7_646 = arith.constant 7 : index
    %c0_647 = arith.constant 0 : index
    %c0_648 = arith.constant 0 : index
    %474 = vector.load %arg6[%c0_645, %c7_646, %c0_647, %c0_648] : memref<1x16x17x4xbf16, #tpu.memory_space<vmem>>, vector<1x1x16x4xbf16>
    %475 = vector.shape_cast %474 : vector<1x1x16x4xbf16> to vector<16x4xbf16>
    %c0_649 = arith.constant 0 : index
    %c7_650 = arith.constant 7 : index
    %c0_651 = arith.constant 0 : index
    %c0_652 = arith.constant 0 : index
    %476 = vector.load %arg7[%c0_649, %c7_650, %c0_651, %c0_652] : memref<1x16x17x4xbf16, #tpu.memory_space<vmem>>, vector<1x1x16x4xbf16>
    %477 = vector.shape_cast %476 : vector<1x1x16x4xbf16> to vector<16x4xbf16>
    %c0_653 = arith.constant 0 : index
    %c7_654 = arith.constant 7 : index
    %c1_655 = arith.constant 1 : index
    %c0_656 = arith.constant 0 : index
    %478 = vector.load %arg6[%c0_653, %c7_654, %c1_655, %c0_656] : memref<1x16x17x4xbf16, #tpu.memory_space<vmem>>, vector<1x1x16x4xbf16>
    %479 = vector.shape_cast %478 : vector<1x1x16x4xbf16> to vector<16x4xbf16>
    %c0_657 = arith.constant 0 : index
    %c7_658 = arith.constant 7 : index
    %c1_659 = arith.constant 1 : index
    %c0_660 = arith.constant 0 : index
    %480 = vector.load %arg7[%c0_657, %c7_658, %c1_659, %c0_660] : memref<1x16x17x4xbf16, #tpu.memory_space<vmem>>, vector<1x1x16x4xbf16>
    %481 = vector.shape_cast %480 : vector<1x1x16x4xbf16> to vector<16x4xbf16>
    %482 = tpu.concatenate %475, %477, %479, %481 in 1 : vector<16x4xbf16>, vector<16x4xbf16>, vector<16x4xbf16>, vector<16x4xbf16> -> vector<16x16xbf16>
    %c2_661 = arith.constant 2 : index
    %c0_662 = arith.constant 0 : index
    %c0_663 = arith.constant 0 : index
    %483 = vector.load %arg10[%c2_661, %c0_662, %c0_663] : memref<4x16x8xbf16, #tpu.memory_space<vmem>>, vector<1x16x8xbf16>
    %484 = vector.shape_cast %483 : vector<1x16x8xbf16> to vector<16x8xbf16>
    %cst_664 = arith.constant dense<0.000000e+00> : vector<16x8xf32>
    %485 = tpu.matmul %482, %484, %cst_664 {dimension_numbers = #tpu.dot_dimension_numbers<[1], [0], [0], [1], [0, 0, 1, 1], [], []>} : vector<16x16xbf16>, vector<16x8xbf16>, vector<16x8xf32> -> vector<16x8xf32>
    %486 = arith.addf %473, %485 : vector<16x8xf32>
    %c0_665 = arith.constant 0 : index
    %c7_666 = arith.constant 7 : index
    %c0_667 = arith.constant 0 : index
    %c0_668 = arith.constant 0 : index
    %487 = vector.load %arg8[%c0_665, %c7_666, %c0_667, %c0_668] : memref<1x16x17x4xbf16, #tpu.memory_space<vmem>>, vector<1x1x16x4xbf16>
    %488 = vector.shape_cast %487 : vector<1x1x16x4xbf16> to vector<16x4xbf16>
    %c0_669 = arith.constant 0 : index
    %c7_670 = arith.constant 7 : index
    %c0_671 = arith.constant 0 : index
    %c0_672 = arith.constant 0 : index
    %489 = vector.load %arg9[%c0_669, %c7_670, %c0_671, %c0_672] : memref<1x16x17x4xbf16, #tpu.memory_space<vmem>>, vector<1x1x16x4xbf16>
    %490 = vector.shape_cast %489 : vector<1x1x16x4xbf16> to vector<16x4xbf16>
    %c0_673 = arith.constant 0 : index
    %c7_674 = arith.constant 7 : index
    %c1_675 = arith.constant 1 : index
    %c0_676 = arith.constant 0 : index
    %491 = vector.load %arg8[%c0_673, %c7_674, %c1_675, %c0_676] : memref<1x16x17x4xbf16, #tpu.memory_space<vmem>>, vector<1x1x16x4xbf16>
    %492 = vector.shape_cast %491 : vector<1x1x16x4xbf16> to vector<16x4xbf16>
    %c0_677 = arith.constant 0 : index
    %c7_678 = arith.constant 7 : index
    %c1_679 = arith.constant 1 : index
    %c0_680 = arith.constant 0 : index
    %493 = vector.load %arg9[%c0_677, %c7_678, %c1_679, %c0_680] : memref<1x16x17x4xbf16, #tpu.memory_space<vmem>>, vector<1x1x16x4xbf16>
    %494 = vector.shape_cast %493 : vector<1x1x16x4xbf16> to vector<16x4xbf16>
    %495 = tpu.concatenate %488, %490, %492, %494 in 1 : vector<16x4xbf16>, vector<16x4xbf16>, vector<16x4xbf16>, vector<16x4xbf16> -> vector<16x16xbf16>
    %c3_681 = arith.constant 3 : index
    %c0_682 = arith.constant 0 : index
    %c0_683 = arith.constant 0 : index
    %496 = vector.load %arg10[%c3_681, %c0_682, %c0_683] : memref<4x16x8xbf16, #tpu.memory_space<vmem>>, vector<1x16x8xbf16>
    %497 = vector.shape_cast %496 : vector<1x16x8xbf16> to vector<16x8xbf16>
    %cst_684 = arith.constant dense<0.000000e+00> : vector<16x8xf32>
    %498 = tpu.matmul %495, %497, %cst_684 {dimension_numbers = #tpu.dot_dimension_numbers<[1], [0], [0], [1], [0, 0, 1, 1], [], []>} : vector<16x16xbf16>, vector<16x8xbf16>, vector<16x8xf32> -> vector<16x8xf32>
    %499 = arith.addf %486, %498 : vector<16x8xf32>
    %500 = arith.mulf %499, %2 : vector<16x8xf32>
    %501 = arith.addf %500, %5 : vector<16x8xf32>
    %cst_685 = arith.constant 0.000000e+00 : f32
    %502 = vector.broadcast %cst_685 : f32 to vector<16x8xf32>
    %503 = arith.cmpf oge, %501, %502 : vector<16x8xf32>
    %cst_686 = arith.constant 2.000000e-01 : f32
    %504 = vector.broadcast %cst_686 : f32 to vector<16x8xf32>
    %505 = arith.mulf %504, %501 : vector<16x8xf32>
    %506 = arith.select %503, %501, %505 : vector<16x8xi1>, vector<16x8xf32>
    %c0_687 = arith.constant 0 : index
    %c7_688 = arith.constant 7 : index
    %c0_689 = arith.constant 0 : index
    %c0_690 = arith.constant 0 : index
    %507 = vector.load %arg13[%c0_687, %c7_688, %c0_689, %c0_690] : memref<1x16x16x8xf32, #tpu.memory_space<vmem>>, vector<1x1x16x8xf32>
    %508 = vector.shape_cast %507 : vector<1x1x16x8xf32> to vector<16x8xf32>
    %509 = vector.shape_cast %506 : vector<16x8xf32> to vector<1x1x16x8xf32>
    tpu.vector_store %arg13[%c0_687, %c7_688, %c0_689, %c0_690], %509 {strides = array<i32>} : memref<1x16x16x8xf32, #tpu.memory_space<vmem>>, vector<1x1x16x8xf32>,
    %cst_691 = arith.constant 0.000000e+00 : f32
    %510 = vector.broadcast %cst_691 : f32 to vector<16x8xf32>
    %c0_692 = arith.constant 0 : index
    %c8 = arith.constant 8 : index
    %c0_693 = arith.constant 0 : index
    %c0_694 = arith.constant 0 : index
    %511 = vector.load %arg2[%c0_692, %c8, %c0_693, %c0_694] : memref<1x16x17x4xbf16, #tpu.memory_space<vmem>>, vector<1x1x16x4xbf16>
    %512 = vector.shape_cast %511 : vector<1x1x16x4xbf16> to vector<16x4xbf16>
    %c0_695 = arith.constant 0 : index
    %c8_696 = arith.constant 8 : index
    %c0_697 = arith.constant 0 : index
    %c0_698 = arith.constant 0 : index
    %513 = vector.load %arg3[%c0_695, %c8_696, %c0_697, %c0_698] : memref<1x16x17x4xbf16, #tpu.memory_space<vmem>>, vector<1x1x16x4xbf16>
    %514 = vector.shape_cast %513 : vector<1x1x16x4xbf16> to vector<16x4xbf16>
    %c0_699 = arith.constant 0 : index
    %c8_700 = arith.constant 8 : index
    %c1_701 = arith.constant 1 : index
    %c0_702 = arith.constant 0 : index
    %515 = vector.load %arg2[%c0_699, %c8_700, %c1_701, %c0_702] : memref<1x16x17x4xbf16, #tpu.memory_space<vmem>>, vector<1x1x16x4xbf16>
    %516 = vector.shape_cast %515 : vector<1x1x16x4xbf16> to vector<16x4xbf16>
    %c0_703 = arith.constant 0 : index
    %c8_704 = arith.constant 8 : index
    %c1_705 = arith.constant 1 : index
    %c0_706 = arith.constant 0 : index
    %517 = vector.load %arg3[%c0_703, %c8_704, %c1_705, %c0_706] : memref<1x16x17x4xbf16, #tpu.memory_space<vmem>>, vector<1x1x16x4xbf16>
    %518 = vector.shape_cast %517 : vector<1x1x16x4xbf16> to vector<16x4xbf16>
    %519 = tpu.concatenate %512, %514, %516, %518 in 1 : vector<16x4xbf16>, vector<16x4xbf16>, vector<16x4xbf16>, vector<16x4xbf16> -> vector<16x16xbf16>
    %c0_707 = arith.constant 0 : index
    %c0_708 = arith.constant 0 : index
    %c0_709 = arith.constant 0 : index
    %520 = vector.load %arg10[%c0_707, %c0_708, %c0_709] : memref<4x16x8xbf16, #tpu.memory_space<vmem>>, vector<1x16x8xbf16>
    %521 = vector.shape_cast %520 : vector<1x16x8xbf16> to vector<16x8xbf16>
    %cst_710 = arith.constant dense<0.000000e+00> : vector<16x8xf32>
    %522 = tpu.matmul %519, %521, %cst_710 {dimension_numbers = #tpu.dot_dimension_numbers<[1], [0], [0], [1], [0, 0, 1, 1], [], []>} : vector<16x16xbf16>, vector<16x8xbf16>, vector<16x8xf32> -> vector<16x8xf32>
    %523 = arith.addf %510, %522 : vector<16x8xf32>
    %c0_711 = arith.constant 0 : index
    %c8_712 = arith.constant 8 : index
    %c0_713 = arith.constant 0 : index
    %c0_714 = arith.constant 0 : index
    %524 = vector.load %arg4[%c0_711, %c8_712, %c0_713, %c0_714] : memref<1x16x17x4xbf16, #tpu.memory_space<vmem>>, vector<1x1x16x4xbf16>
    %525 = vector.shape_cast %524 : vector<1x1x16x4xbf16> to vector<16x4xbf16>
    %c0_715 = arith.constant 0 : index
    %c8_716 = arith.constant 8 : index
    %c0_717 = arith.constant 0 : index
    %c0_718 = arith.constant 0 : index
    %526 = vector.load %arg5[%c0_715, %c8_716, %c0_717, %c0_718] : memref<1x16x17x4xbf16, #tpu.memory_space<vmem>>, vector<1x1x16x4xbf16>
    %527 = vector.shape_cast %526 : vector<1x1x16x4xbf16> to vector<16x4xbf16>
    %c0_719 = arith.constant 0 : index
    %c8_720 = arith.constant 8 : index
    %c1_721 = arith.constant 1 : index
    %c0_722 = arith.constant 0 : index
    %528 = vector.load %arg4[%c0_719, %c8_720, %c1_721, %c0_722] : memref<1x16x17x4xbf16, #tpu.memory_space<vmem>>, vector<1x1x16x4xbf16>
    %529 = vector.shape_cast %528 : vector<1x1x16x4xbf16> to vector<16x4xbf16>
    %c0_723 = arith.constant 0 : index
    %c8_724 = arith.constant 8 : index
    %c1_725 = arith.constant 1 : index
    %c0_726 = arith.constant 0 : index
    %530 = vector.load %arg5[%c0_723, %c8_724, %c1_725, %c0_726] : memref<1x16x17x4xbf16, #tpu.memory_space<vmem>>, vector<1x1x16x4xbf16>
    %531 = vector.shape_cast %530 : vector<1x1x16x4xbf16> to vector<16x4xbf16>
    %532 = tpu.concatenate %525, %527, %529, %531 in 1 : vector<16x4xbf16>, vector<16x4xbf16>, vector<16x4xbf16>, vector<16x4xbf16> -> vector<16x16xbf16>
    %c1_727 = arith.constant 1 : index
    %c0_728 = arith.constant 0 : index
    %c0_729 = arith.constant 0 : index
    %533 = vector.load %arg10[%c1_727, %c0_728, %c0_729] : memref<4x16x8xbf16, #tpu.memory_space<vmem>>, vector<1x16x8xbf16>
    %534 = vector.shape_cast %533 : vector<1x16x8xbf16> to vector<16x8xbf16>
    %cst_730 = arith.constant dense<0.000000e+00> : vector<16x8xf32>
    %535 = tpu.matmul %532, %534, %cst_730 {dimension_numbers = #tpu.dot_dimension_numbers<[1], [0], [0], [1], [0, 0, 1, 1], [], []>} : vector<16x16xbf16>, vector<16x8xbf16>, vector<16x8xf32> -> vector<16x8xf32>
    %536 = arith.addf %523, %535 : vector<16x8xf32>
    %c0_731 = arith.constant 0 : index
    %c8_732 = arith.constant 8 : index
    %c0_733 = arith.constant 0 : index
    %c0_734 = arith.constant 0 : index
    %537 = vector.load %arg6[%c0_731, %c8_732, %c0_733, %c0_734] : memref<1x16x17x4xbf16, #tpu.memory_space<vmem>>, vector<1x1x16x4xbf16>
    %538 = vector.shape_cast %537 : vector<1x1x16x4xbf16> to vector<16x4xbf16>
    %c0_735 = arith.constant 0 : index
    %c8_736 = arith.constant 8 : index
    %c0_737 = arith.constant 0 : index
    %c0_738 = arith.constant 0 : index
    %539 = vector.load %arg7[%c0_735, %c8_736, %c0_737, %c0_738] : memref<1x16x17x4xbf16, #tpu.memory_space<vmem>>, vector<1x1x16x4xbf16>
    %540 = vector.shape_cast %539 : vector<1x1x16x4xbf16> to vector<16x4xbf16>
    %c0_739 = arith.constant 0 : index
    %c8_740 = arith.constant 8 : index
    %c1_741 = arith.constant 1 : index
    %c0_742 = arith.constant 0 : index
    %541 = vector.load %arg6[%c0_739, %c8_740, %c1_741, %c0_742] : memref<1x16x17x4xbf16, #tpu.memory_space<vmem>>, vector<1x1x16x4xbf16>
    %542 = vector.shape_cast %541 : vector<1x1x16x4xbf16> to vector<16x4xbf16>
    %c0_743 = arith.constant 0 : index
    %c8_744 = arith.constant 8 : index
    %c1_745 = arith.constant 1 : index
    %c0_746 = arith.constant 0 : index
    %543 = vector.load %arg7[%c0_743, %c8_744, %c1_745, %c0_746] : memref<1x16x17x4xbf16, #tpu.memory_space<vmem>>, vector<1x1x16x4xbf16>
    %544 = vector.shape_cast %543 : vector<1x1x16x4xbf16> to vector<16x4xbf16>
    %545 = tpu.concatenate %538, %540, %542, %544 in 1 : vector<16x4xbf16>, vector<16x4xbf16>, vector<16x4xbf16>, vector<16x4xbf16> -> vector<16x16xbf16>
    %c2_747 = arith.constant 2 : index
    %c0_748 = arith.constant 0 : index
    %c0_749 = arith.constant 0 : index
    %546 = vector.load %arg10[%c2_747, %c0_748, %c0_749] : memref<4x16x8xbf16, #tpu.memory_space<vmem>>, vector<1x16x8xbf16>
    %547 = vector.shape_cast %546 : vector<1x16x8xbf16> to vector<16x8xbf16>
    %cst_750 = arith.constant dense<0.000000e+00> : vector<16x8xf32>
    %548 = tpu.matmul %545, %547, %cst_750 {dimension_numbers = #tpu.dot_dimension_numbers<[1], [0], [0], [1], [0, 0, 1, 1], [], []>} : vector<16x16xbf16>, vector<16x8xbf16>, vector<16x8xf32> -> vector<16x8xf32>
    %549 = arith.addf %536, %548 : vector<16x8xf32>
    %c0_751 = arith.constant 0 : index
    %c8_752 = arith.constant 8 : index
    %c0_753 = arith.constant 0 : index
    %c0_754 = arith.constant 0 : index
    %550 = vector.load %arg8[%c0_751, %c8_752, %c0_753, %c0_754] : memref<1x16x17x4xbf16, #tpu.memory_space<vmem>>, vector<1x1x16x4xbf16>
    %551 = vector.shape_cast %550 : vector<1x1x16x4xbf16> to vector<16x4xbf16>
    %c0_755 = arith.constant 0 : index
    %c8_756 = arith.constant 8 : index
    %c0_757 = arith.constant 0 : index
    %c0_758 = arith.constant 0 : index
    %552 = vector.load %arg9[%c0_755, %c8_756, %c0_757, %c0_758] : memref<1x16x17x4xbf16, #tpu.memory_space<vmem>>, vector<1x1x16x4xbf16>
    %553 = vector.shape_cast %552 : vector<1x1x16x4xbf16> to vector<16x4xbf16>
    %c0_759 = arith.constant 0 : index
    %c8_760 = arith.constant 8 : index
    %c1_761 = arith.constant 1 : index
    %c0_762 = arith.constant 0 : index
    %554 = vector.load %arg8[%c0_759, %c8_760, %c1_761, %c0_762] : memref<1x16x17x4xbf16, #tpu.memory_space<vmem>>, vector<1x1x16x4xbf16>
    %555 = vector.shape_cast %554 : vector<1x1x16x4xbf16> to vector<16x4xbf16>
    %c0_763 = arith.constant 0 : index
    %c8_764 = arith.constant 8 : index
    %c1_765 = arith.constant 1 : index
    %c0_766 = arith.constant 0 : index
    %556 = vector.load %arg9[%c0_763, %c8_764, %c1_765, %c0_766] : memref<1x16x17x4xbf16, #tpu.memory_space<vmem>>, vector<1x1x16x4xbf16>
    %557 = vector.shape_cast %556 : vector<1x1x16x4xbf16> to vector<16x4xbf16>
    %558 = tpu.concatenate %551, %553, %555, %557 in 1 : vector<16x4xbf16>, vector<16x4xbf16>, vector<16x4xbf16>, vector<16x4xbf16> -> vector<16x16xbf16>
    %c3_767 = arith.constant 3 : index
    %c0_768 = arith.constant 0 : index
    %c0_769 = arith.constant 0 : index
    %559 = vector.load %arg10[%c3_767, %c0_768, %c0_769] : memref<4x16x8xbf16, #tpu.memory_space<vmem>>, vector<1x16x8xbf16>
    %560 = vector.shape_cast %559 : vector<1x16x8xbf16> to vector<16x8xbf16>
    %cst_770 = arith.constant dense<0.000000e+00> : vector<16x8xf32>
    %561 = tpu.matmul %558, %560, %cst_770 {dimension_numbers = #tpu.dot_dimension_numbers<[1], [0], [0], [1], [0, 0, 1, 1], [], []>} : vector<16x16xbf16>, vector<16x8xbf16>, vector<16x8xf32> -> vector<16x8xf32>
    %562 = arith.addf %549, %561 : vector<16x8xf32>
    %563 = arith.mulf %562, %2 : vector<16x8xf32>
    %564 = arith.addf %563, %5 : vector<16x8xf32>
    %cst_771 = arith.constant 0.000000e+00 : f32
    %565 = vector.broadcast %cst_771 : f32 to vector<16x8xf32>
    %566 = arith.cmpf oge, %564, %565 : vector<16x8xf32>
    %cst_772 = arith.constant 2.000000e-01 : f32
    %567 = vector.broadcast %cst_772 : f32 to vector<16x8xf32>
    %568 = arith.mulf %567, %564 : vector<16x8xf32>
    %569 = arith.select %566, %564, %568 : vector<16x8xi1>, vector<16x8xf32>
    %c0_773 = arith.constant 0 : index
    %c8_774 = arith.constant 8 : index
    %c0_775 = arith.constant 0 : index
    %c0_776 = arith.constant 0 : index
    %570 = vector.load %arg13[%c0_773, %c8_774, %c0_775, %c0_776] : memref<1x16x16x8xf32, #tpu.memory_space<vmem>>, vector<1x1x16x8xf32>
    %571 = vector.shape_cast %570 : vector<1x1x16x8xf32> to vector<16x8xf32>
    %572 = vector.shape_cast %569 : vector<16x8xf32> to vector<1x1x16x8xf32>
    tpu.vector_store %arg13[%c0_773, %c8_774, %c0_775, %c0_776], %572 {strides = array<i32>} : memref<1x16x16x8xf32, #tpu.memory_space<vmem>>, vector<1x1x16x8xf32>,
    %cst_777 = arith.constant 0.000000e+00 : f32
    %573 = vector.broadcast %cst_777 : f32 to vector<16x8xf32>
    %c0_778 = arith.constant 0 : index
    %c9 = arith.constant 9 : index
    %c0_779 = arith.constant 0 : index
    %c0_780 = arith.constant 0 : index
    %574 = vector.load %arg2[%c0_778, %c9, %c0_779, %c0_780] : memref<1x16x17x4xbf16, #tpu.memory_space<vmem>>, vector<1x1x16x4xbf16>
    %575 = vector.shape_cast %574 : vector<1x1x16x4xbf16> to vector<16x4xbf16>
    %c0_781 = arith.constant 0 : index
    %c9_782 = arith.constant 9 : index
    %c0_783 = arith.constant 0 : index
    %c0_784 = arith.constant 0 : index
    %576 = vector.load %arg3[%c0_781, %c9_782, %c0_783, %c0_784] : memref<1x16x17x4xbf16, #tpu.memory_space<vmem>>, vector<1x1x16x4xbf16>
    %577 = vector.shape_cast %576 : vector<1x1x16x4xbf16> to vector<16x4xbf16>
    %c0_785 = arith.constant 0 : index
    %c9_786 = arith.constant 9 : index
    %c1_787 = arith.constant 1 : index
    %c0_788 = arith.constant 0 : index
    %578 = vector.load %arg2[%c0_785, %c9_786, %c1_787, %c0_788] : memref<1x16x17x4xbf16, #tpu.memory_space<vmem>>, vector<1x1x16x4xbf16>
    %579 = vector.shape_cast %578 : vector<1x1x16x4xbf16> to vector<16x4xbf16>
    %c0_789 = arith.constant 0 : index
    %c9_790 = arith.constant 9 : index
    %c1_791 = arith.constant 1 : index
    %c0_792 = arith.constant 0 : index
    %580 = vector.load %arg3[%c0_789, %c9_790, %c1_791, %c0_792] : memref<1x16x17x4xbf16, #tpu.memory_space<vmem>>, vector<1x1x16x4xbf16>
    %581 = vector.shape_cast %580 : vector<1x1x16x4xbf16> to vector<16x4xbf16>
    %582 = tpu.concatenate %575, %577, %579, %581 in 1 : vector<16x4xbf16>, vector<16x4xbf16>, vector<16x4xbf16>, vector<16x4xbf16> -> vector<16x16xbf16>
    %c0_793 = arith.constant 0 : index
    %c0_794 = arith.constant 0 : index
    %c0_795 = arith.constant 0 : index
    %583 = vector.load %arg10[%c0_793, %c0_794, %c0_795] : memref<4x16x8xbf16, #tpu.memory_space<vmem>>, vector<1x16x8xbf16>
    %584 = vector.shape_cast %583 : vector<1x16x8xbf16> to vector<16x8xbf16>
    %cst_796 = arith.constant dense<0.000000e+00> : vector<16x8xf32>
    %585 = tpu.matmul %582, %584, %cst_796 {dimension_numbers = #tpu.dot_dimension_numbers<[1], [0], [0], [1], [0, 0, 1, 1], [], []>} : vector<16x16xbf16>, vector<16x8xbf16>, vector<16x8xf32> -> vector<16x8xf32>
    %586 = arith.addf %573, %585 : vector<16x8xf32>
    %c0_797 = arith.constant 0 : index
    %c9_798 = arith.constant 9 : index
    %c0_799 = arith.constant 0 : index
    %c0_800 = arith.constant 0 : index
    %587 = vector.load %arg4[%c0_797, %c9_798, %c0_799, %c0_800] : memref<1x16x17x4xbf16, #tpu.memory_space<vmem>>, vector<1x1x16x4xbf16>
    %588 = vector.shape_cast %587 : vector<1x1x16x4xbf16> to vector<16x4xbf16>
    %c0_801 = arith.constant 0 : index
    %c9_802 = arith.constant 9 : index
    %c0_803 = arith.constant 0 : index
    %c0_804 = arith.constant 0 : index
    %589 = vector.load %arg5[%c0_801, %c9_802, %c0_803, %c0_804] : memref<1x16x17x4xbf16, #tpu.memory_space<vmem>>, vector<1x1x16x4xbf16>
    %590 = vector.shape_cast %589 : vector<1x1x16x4xbf16> to vector<16x4xbf16>
    %c0_805 = arith.constant 0 : index
    %c9_806 = arith.constant 9 : index
    %c1_807 = arith.constant 1 : index
    %c0_808 = arith.constant 0 : index
    %591 = vector.load %arg4[%c0_805, %c9_806, %c1_807, %c0_808] : memref<1x16x17x4xbf16, #tpu.memory_space<vmem>>, vector<1x1x16x4xbf16>
    %592 = vector.shape_cast %591 : vector<1x1x16x4xbf16> to vector<16x4xbf16>
    %c0_809 = arith.constant 0 : index
    %c9_810 = arith.constant 9 : index
    %c1_811 = arith.constant 1 : index
    %c0_812 = arith.constant 0 : index
    %593 = vector.load %arg5[%c0_809, %c9_810, %c1_811, %c0_812] : memref<1x16x17x4xbf16, #tpu.memory_space<vmem>>, vector<1x1x16x4xbf16>
    %594 = vector.shape_cast %593 : vector<1x1x16x4xbf16> to vector<16x4xbf16>
    %595 = tpu.concatenate %588, %590, %592, %594 in 1 : vector<16x4xbf16>, vector<16x4xbf16>, vector<16x4xbf16>, vector<16x4xbf16> -> vector<16x16xbf16>
    %c1_813 = arith.constant 1 : index
    %c0_814 = arith.constant 0 : index
    %c0_815 = arith.constant 0 : index
    %596 = vector.load %arg10[%c1_813, %c0_814, %c0_815] : memref<4x16x8xbf16, #tpu.memory_space<vmem>>, vector<1x16x8xbf16>
    %597 = vector.shape_cast %596 : vector<1x16x8xbf16> to vector<16x8xbf16>
    %cst_816 = arith.constant dense<0.000000e+00> : vector<16x8xf32>
    %598 = tpu.matmul %595, %597, %cst_816 {dimension_numbers = #tpu.dot_dimension_numbers<[1], [0], [0], [1], [0, 0, 1, 1], [], []>} : vector<16x16xbf16>, vector<16x8xbf16>, vector<16x8xf32> -> vector<16x8xf32>
    %599 = arith.addf %586, %598 : vector<16x8xf32>
    %c0_817 = arith.constant 0 : index
    %c9_818 = arith.constant 9 : index
    %c0_819 = arith.constant 0 : index
    %c0_820 = arith.constant 0 : index
    %600 = vector.load %arg6[%c0_817, %c9_818, %c0_819, %c0_820] : memref<1x16x17x4xbf16, #tpu.memory_space<vmem>>, vector<1x1x16x4xbf16>
    %601 = vector.shape_cast %600 : vector<1x1x16x4xbf16> to vector<16x4xbf16>
    %c0_821 = arith.constant 0 : index
    %c9_822 = arith.constant 9 : index
    %c0_823 = arith.constant 0 : index
    %c0_824 = arith.constant 0 : index
    %602 = vector.load %arg7[%c0_821, %c9_822, %c0_823, %c0_824] : memref<1x16x17x4xbf16, #tpu.memory_space<vmem>>, vector<1x1x16x4xbf16>
    %603 = vector.shape_cast %602 : vector<1x1x16x4xbf16> to vector<16x4xbf16>
    %c0_825 = arith.constant 0 : index
    %c9_826 = arith.constant 9 : index
    %c1_827 = arith.constant 1 : index
    %c0_828 = arith.constant 0 : index
    %604 = vector.load %arg6[%c0_825, %c9_826, %c1_827, %c0_828] : memref<1x16x17x4xbf16, #tpu.memory_space<vmem>>, vector<1x1x16x4xbf16>
    %605 = vector.shape_cast %604 : vector<1x1x16x4xbf16> to vector<16x4xbf16>
    %c0_829 = arith.constant 0 : index
    %c9_830 = arith.constant 9 : index
    %c1_831 = arith.constant 1 : index
    %c0_832 = arith.constant 0 : index
    %606 = vector.load %arg7[%c0_829, %c9_830, %c1_831, %c0_832] : memref<1x16x17x4xbf16, #tpu.memory_space<vmem>>, vector<1x1x16x4xbf16>
    %607 = vector.shape_cast %606 : vector<1x1x16x4xbf16> to vector<16x4xbf16>
    %608 = tpu.concatenate %601, %603, %605, %607 in 1 : vector<16x4xbf16>, vector<16x4xbf16>, vector<16x4xbf16>, vector<16x4xbf16> -> vector<16x16xbf16>
    %c2_833 = arith.constant 2 : index
    %c0_834 = arith.constant 0 : index
    %c0_835 = arith.constant 0 : index
    %609 = vector.load %arg10[%c2_833, %c0_834, %c0_835] : memref<4x16x8xbf16, #tpu.memory_space<vmem>>, vector<1x16x8xbf16>
    %610 = vector.shape_cast %609 : vector<1x16x8xbf16> to vector<16x8xbf16>
    %cst_836 = arith.constant dense<0.000000e+00> : vector<16x8xf32>
    %611 = tpu.matmul %608, %610, %cst_836 {dimension_numbers = #tpu.dot_dimension_numbers<[1], [0], [0], [1], [0, 0, 1, 1], [], []>} : vector<16x16xbf16>, vector<16x8xbf16>, vector<16x8xf32> -> vector<16x8xf32>
    %612 = arith.addf %599, %611 : vector<16x8xf32>
    %c0_837 = arith.constant 0 : index
    %c9_838 = arith.constant 9 : index
    %c0_839 = arith.constant 0 : index
    %c0_840 = arith.constant 0 : index
    %613 = vector.load %arg8[%c0_837, %c9_838, %c0_839, %c0_840] : memref<1x16x17x4xbf16, #tpu.memory_space<vmem>>, vector<1x1x16x4xbf16>
    %614 = vector.shape_cast %613 : vector<1x1x16x4xbf16> to vector<16x4xbf16>
    %c0_841 = arith.constant 0 : index
    %c9_842 = arith.constant 9 : index
    %c0_843 = arith.constant 0 : index
    %c0_844 = arith.constant 0 : index
    %615 = vector.load %arg9[%c0_841, %c9_842, %c0_843, %c0_844] : memref<1x16x17x4xbf16, #tpu.memory_space<vmem>>, vector<1x1x16x4xbf16>
    %616 = vector.shape_cast %615 : vector<1x1x16x4xbf16> to vector<16x4xbf16>
    %c0_845 = arith.constant 0 : index
    %c9_846 = arith.constant 9 : index
    %c1_847 = arith.constant 1 : index
    %c0_848 = arith.constant 0 : index
    %617 = vector.load %arg8[%c0_845, %c9_846, %c1_847, %c0_848] : memref<1x16x17x4xbf16, #tpu.memory_space<vmem>>, vector<1x1x16x4xbf16>
    %618 = vector.shape_cast %617 : vector<1x1x16x4xbf16> to vector<16x4xbf16>
    %c0_849 = arith.constant 0 : index
    %c9_850 = arith.constant 9 : index
    %c1_851 = arith.constant 1 : index
    %c0_852 = arith.constant 0 : index
    %619 = vector.load %arg9[%c0_849, %c9_850, %c1_851, %c0_852] : memref<1x16x17x4xbf16, #tpu.memory_space<vmem>>, vector<1x1x16x4xbf16>
    %620 = vector.shape_cast %619 : vector<1x1x16x4xbf16> to vector<16x4xbf16>
    %621 = tpu.concatenate %614, %616, %618, %620 in 1 : vector<16x4xbf16>, vector<16x4xbf16>, vector<16x4xbf16>, vector<16x4xbf16> -> vector<16x16xbf16>
    %c3_853 = arith.constant 3 : index
    %c0_854 = arith.constant 0 : index
    %c0_855 = arith.constant 0 : index
    %622 = vector.load %arg10[%c3_853, %c0_854, %c0_855] : memref<4x16x8xbf16, #tpu.memory_space<vmem>>, vector<1x16x8xbf16>
    %623 = vector.shape_cast %622 : vector<1x16x8xbf16> to vector<16x8xbf16>
    %cst_856 = arith.constant dense<0.000000e+00> : vector<16x8xf32>
    %624 = tpu.matmul %621, %623, %cst_856 {dimension_numbers = #tpu.dot_dimension_numbers<[1], [0], [0], [1], [0, 0, 1, 1], [], []>} : vector<16x16xbf16>, vector<16x8xbf16>, vector<16x8xf32> -> vector<16x8xf32>
    %625 = arith.addf %612, %624 : vector<16x8xf32>
    %626 = arith.mulf %625, %2 : vector<16x8xf32>
    %627 = arith.addf %626, %5 : vector<16x8xf32>
    %cst_857 = arith.constant 0.000000e+00 : f32
    %628 = vector.broadcast %cst_857 : f32 to vector<16x8xf32>
    %629 = arith.cmpf oge, %627, %628 : vector<16x8xf32>
    %cst_858 = arith.constant 2.000000e-01 : f32
    %630 = vector.broadcast %cst_858 : f32 to vector<16x8xf32>
    %631 = arith.mulf %630, %627 : vector<16x8xf32>
    %632 = arith.select %629, %627, %631 : vector<16x8xi1>, vector<16x8xf32>
    %c0_859 = arith.constant 0 : index
    %c9_860 = arith.constant 9 : index
    %c0_861 = arith.constant 0 : index
    %c0_862 = arith.constant 0 : index
    %633 = vector.load %arg13[%c0_859, %c9_860, %c0_861, %c0_862] : memref<1x16x16x8xf32, #tpu.memory_space<vmem>>, vector<1x1x16x8xf32>
    %634 = vector.shape_cast %633 : vector<1x1x16x8xf32> to vector<16x8xf32>
    %635 = vector.shape_cast %632 : vector<16x8xf32> to vector<1x1x16x8xf32>
    tpu.vector_store %arg13[%c0_859, %c9_860, %c0_861, %c0_862], %635 {strides = array<i32>} : memref<1x16x16x8xf32, #tpu.memory_space<vmem>>, vector<1x1x16x8xf32>,
    %cst_863 = arith.constant 0.000000e+00 : f32
    %636 = vector.broadcast %cst_863 : f32 to vector<16x8xf32>
    %c0_864 = arith.constant 0 : index
    %c10 = arith.constant 10 : index
    %c0_865 = arith.constant 0 : index
    %c0_866 = arith.constant 0 : index
    %637 = vector.load %arg2[%c0_864, %c10, %c0_865, %c0_866] : memref<1x16x17x4xbf16, #tpu.memory_space<vmem>>, vector<1x1x16x4xbf16>
    %638 = vector.shape_cast %637 : vector<1x1x16x4xbf16> to vector<16x4xbf16>
    %c0_867 = arith.constant 0 : index
    %c10_868 = arith.constant 10 : index
    %c0_869 = arith.constant 0 : index
    %c0_870 = arith.constant 0 : index
    %639 = vector.load %arg3[%c0_867, %c10_868, %c0_869, %c0_870] : memref<1x16x17x4xbf16, #tpu.memory_space<vmem>>, vector<1x1x16x4xbf16>
    %640 = vector.shape_cast %639 : vector<1x1x16x4xbf16> to vector<16x4xbf16>
    %c0_871 = arith.constant 0 : index
    %c10_872 = arith.constant 10 : index
    %c1_873 = arith.constant 1 : index
    %c0_874 = arith.constant 0 : index
    %641 = vector.load %arg2[%c0_871, %c10_872, %c1_873, %c0_874] : memref<1x16x17x4xbf16, #tpu.memory_space<vmem>>, vector<1x1x16x4xbf16>
    %642 = vector.shape_cast %641 : vector<1x1x16x4xbf16> to vector<16x4xbf16>
    %c0_875 = arith.constant 0 : index
    %c10_876 = arith.constant 10 : index
    %c1_877 = arith.constant 1 : index
    %c0_878 = arith.constant 0 : index
    %643 = vector.load %arg3[%c0_875, %c10_876, %c1_877, %c0_878] : memref<1x16x17x4xbf16, #tpu.memory_space<vmem>>, vector<1x1x16x4xbf16>
    %644 = vector.shape_cast %643 : vector<1x1x16x4xbf16> to vector<16x4xbf16>
    %645 = tpu.concatenate %638, %640, %642, %644 in 1 : vector<16x4xbf16>, vector<16x4xbf16>, vector<16x4xbf16>, vector<16x4xbf16> -> vector<16x16xbf16>
    %c0_879 = arith.constant 0 : index
    %c0_880 = arith.constant 0 : index
    %c0_881 = arith.constant 0 : index
    %646 = vector.load %arg10[%c0_879, %c0_880, %c0_881] : memref<4x16x8xbf16, #tpu.memory_space<vmem>>, vector<1x16x8xbf16>
    %647 = vector.shape_cast %646 : vector<1x16x8xbf16> to vector<16x8xbf16>
    %cst_882 = arith.constant dense<0.000000e+00> : vector<16x8xf32>
    %648 = tpu.matmul %645, %647, %cst_882 {dimension_numbers = #tpu.dot_dimension_numbers<[1], [0], [0], [1], [0, 0, 1, 1], [], []>} : vector<16x16xbf16>, vector<16x8xbf16>, vector<16x8xf32> -> vector<16x8xf32>
    %649 = arith.addf %636, %648 : vector<16x8xf32>
    %c0_883 = arith.constant 0 : index
    %c10_884 = arith.constant 10 : index
    %c0_885 = arith.constant 0 : index
    %c0_886 = arith.constant 0 : index
    %650 = vector.load %arg4[%c0_883, %c10_884, %c0_885, %c0_886] : memref<1x16x17x4xbf16, #tpu.memory_space<vmem>>, vector<1x1x16x4xbf16>
    %651 = vector.shape_cast %650 : vector<1x1x16x4xbf16> to vector<16x4xbf16>
    %c0_887 = arith.constant 0 : index
    %c10_888 = arith.constant 10 : index
    %c0_889 = arith.constant 0 : index
    %c0_890 = arith.constant 0 : index
    %652 = vector.load %arg5[%c0_887, %c10_888, %c0_889, %c0_890] : memref<1x16x17x4xbf16, #tpu.memory_space<vmem>>, vector<1x1x16x4xbf16>
    %653 = vector.shape_cast %652 : vector<1x1x16x4xbf16> to vector<16x4xbf16>
    %c0_891 = arith.constant 0 : index
    %c10_892 = arith.constant 10 : index
    %c1_893 = arith.constant 1 : index
    %c0_894 = arith.constant 0 : index
    %654 = vector.load %arg4[%c0_891, %c10_892, %c1_893, %c0_894] : memref<1x16x17x4xbf16, #tpu.memory_space<vmem>>, vector<1x1x16x4xbf16>
    %655 = vector.shape_cast %654 : vector<1x1x16x4xbf16> to vector<16x4xbf16>
    %c0_895 = arith.constant 0 : index
    %c10_896 = arith.constant 10 : index
    %c1_897 = arith.constant 1 : index
    %c0_898 = arith.constant 0 : index
    %656 = vector.load %arg5[%c0_895, %c10_896, %c1_897, %c0_898] : memref<1x16x17x4xbf16, #tpu.memory_space<vmem>>, vector<1x1x16x4xbf16>
    %657 = vector.shape_cast %656 : vector<1x1x16x4xbf16> to vector<16x4xbf16>
    %658 = tpu.concatenate %651, %653, %655, %657 in 1 : vector<16x4xbf16>, vector<16x4xbf16>, vector<16x4xbf16>, vector<16x4xbf16> -> vector<16x16xbf16>
    %c1_899 = arith.constant 1 : index
    %c0_900 = arith.constant 0 : index
    %c0_901 = arith.constant 0 : index
    %659 = vector.load %arg10[%c1_899, %c0_900, %c0_901] : memref<4x16x8xbf16, #tpu.memory_space<vmem>>, vector<1x16x8xbf16>
    %660 = vector.shape_cast %659 : vector<1x16x8xbf16> to vector<16x8xbf16>
    %cst_902 = arith.constant dense<0.000000e+00> : vector<16x8xf32>
    %661 = tpu.matmul %658, %660, %cst_902 {dimension_numbers = #tpu.dot_dimension_numbers<[1], [0], [0], [1], [0, 0, 1, 1], [], []>} : vector<16x16xbf16>, vector<16x8xbf16>, vector<16x8xf32> -> vector<16x8xf32>
    %662 = arith.addf %649, %661 : vector<16x8xf32>
    %c0_903 = arith.constant 0 : index
    %c10_904 = arith.constant 10 : index
    %c0_905 = arith.constant 0 : index
    %c0_906 = arith.constant 0 : index
    %663 = vector.load %arg6[%c0_903, %c10_904, %c0_905, %c0_906] : memref<1x16x17x4xbf16, #tpu.memory_space<vmem>>, vector<1x1x16x4xbf16>
    %664 = vector.shape_cast %663 : vector<1x1x16x4xbf16> to vector<16x4xbf16>
    %c0_907 = arith.constant 0 : index
    %c10_908 = arith.constant 10 : index
    %c0_909 = arith.constant 0 : index
    %c0_910 = arith.constant 0 : index
    %665 = vector.load %arg7[%c0_907, %c10_908, %c0_909, %c0_910] : memref<1x16x17x4xbf16, #tpu.memory_space<vmem>>, vector<1x1x16x4xbf16>
    %666 = vector.shape_cast %665 : vector<1x1x16x4xbf16> to vector<16x4xbf16>
    %c0_911 = arith.constant 0 : index
    %c10_912 = arith.constant 10 : index
    %c1_913 = arith.constant 1 : index
    %c0_914 = arith.constant 0 : index
    %667 = vector.load %arg6[%c0_911, %c10_912, %c1_913, %c0_914] : memref<1x16x17x4xbf16, #tpu.memory_space<vmem>>, vector<1x1x16x4xbf16>
    %668 = vector.shape_cast %667 : vector<1x1x16x4xbf16> to vector<16x4xbf16>
    %c0_915 = arith.constant 0 : index
    %c10_916 = arith.constant 10 : index
    %c1_917 = arith.constant 1 : index
    %c0_918 = arith.constant 0 : index
    %669 = vector.load %arg7[%c0_915, %c10_916, %c1_917, %c0_918] : memref<1x16x17x4xbf16, #tpu.memory_space<vmem>>, vector<1x1x16x4xbf16>
    %670 = vector.shape_cast %669 : vector<1x1x16x4xbf16> to vector<16x4xbf16>
    %671 = tpu.concatenate %664, %666, %668, %670 in 1 : vector<16x4xbf16>, vector<16x4xbf16>, vector<16x4xbf16>, vector<16x4xbf16> -> vector<16x16xbf16>
    %c2_919 = arith.constant 2 : index
    %c0_920 = arith.constant 0 : index
    %c0_921 = arith.constant 0 : index
    %672 = vector.load %arg10[%c2_919, %c0_920, %c0_921] : memref<4x16x8xbf16, #tpu.memory_space<vmem>>, vector<1x16x8xbf16>
    %673 = vector.shape_cast %672 : vector<1x16x8xbf16> to vector<16x8xbf16>
    %cst_922 = arith.constant dense<0.000000e+00> : vector<16x8xf32>
    %674 = tpu.matmul %671, %673, %cst_922 {dimension_numbers = #tpu.dot_dimension_numbers<[1], [0], [0], [1], [0, 0, 1, 1], [], []>} : vector<16x16xbf16>, vector<16x8xbf16>, vector<16x8xf32> -> vector<16x8xf32>
    %675 = arith.addf %662, %674 : vector<16x8xf32>
    %c0_923 = arith.constant 0 : index
    %c10_924 = arith.constant 10 : index
    %c0_925 = arith.constant 0 : index
    %c0_926 = arith.constant 0 : index
    %676 = vector.load %arg8[%c0_923, %c10_924, %c0_925, %c0_926] : memref<1x16x17x4xbf16, #tpu.memory_space<vmem>>, vector<1x1x16x4xbf16>
    %677 = vector.shape_cast %676 : vector<1x1x16x4xbf16> to vector<16x4xbf16>
    %c0_927 = arith.constant 0 : index
    %c10_928 = arith.constant 10 : index
    %c0_929 = arith.constant 0 : index
    %c0_930 = arith.constant 0 : index
    %678 = vector.load %arg9[%c0_927, %c10_928, %c0_929, %c0_930] : memref<1x16x17x4xbf16, #tpu.memory_space<vmem>>, vector<1x1x16x4xbf16>
    %679 = vector.shape_cast %678 : vector<1x1x16x4xbf16> to vector<16x4xbf16>
    %c0_931 = arith.constant 0 : index
    %c10_932 = arith.constant 10 : index
    %c1_933 = arith.constant 1 : index
    %c0_934 = arith.constant 0 : index
    %680 = vector.load %arg8[%c0_931, %c10_932, %c1_933, %c0_934] : memref<1x16x17x4xbf16, #tpu.memory_space<vmem>>, vector<1x1x16x4xbf16>
    %681 = vector.shape_cast %680 : vector<1x1x16x4xbf16> to vector<16x4xbf16>
    %c0_935 = arith.constant 0 : index
    %c10_936 = arith.constant 10 : index
    %c1_937 = arith.constant 1 : index
    %c0_938 = arith.constant 0 : index
    %682 = vector.load %arg9[%c0_935, %c10_936, %c1_937, %c0_938] : memref<1x16x17x4xbf16, #tpu.memory_space<vmem>>, vector<1x1x16x4xbf16>
    %683 = vector.shape_cast %682 : vector<1x1x16x4xbf16> to vector<16x4xbf16>
    %684 = tpu.concatenate %677, %679, %681, %683 in 1 : vector<16x4xbf16>, vector<16x4xbf16>, vector<16x4xbf16>, vector<16x4xbf16> -> vector<16x16xbf16>
    %c3_939 = arith.constant 3 : index
    %c0_940 = arith.constant 0 : index
    %c0_941 = arith.constant 0 : index
    %685 = vector.load %arg10[%c3_939, %c0_940, %c0_941] : memref<4x16x8xbf16, #tpu.memory_space<vmem>>, vector<1x16x8xbf16>
    %686 = vector.shape_cast %685 : vector<1x16x8xbf16> to vector<16x8xbf16>
    %cst_942 = arith.constant dense<0.000000e+00> : vector<16x8xf32>
    %687 = tpu.matmul %684, %686, %cst_942 {dimension_numbers = #tpu.dot_dimension_numbers<[1], [0], [0], [1], [0, 0, 1, 1], [], []>} : vector<16x16xbf16>, vector<16x8xbf16>, vector<16x8xf32> -> vector<16x8xf32>
    %688 = arith.addf %675, %687 : vector<16x8xf32>
    %689 = arith.mulf %688, %2 : vector<16x8xf32>
    %690 = arith.addf %689, %5 : vector<16x8xf32>
    %cst_943 = arith.constant 0.000000e+00 : f32
    %691 = vector.broadcast %cst_943 : f32 to vector<16x8xf32>
    %692 = arith.cmpf oge, %690, %691 : vector<16x8xf32>
    %cst_944 = arith.constant 2.000000e-01 : f32
    %693 = vector.broadcast %cst_944 : f32 to vector<16x8xf32>
    %694 = arith.mulf %693, %690 : vector<16x8xf32>
    %695 = arith.select %692, %690, %694 : vector<16x8xi1>, vector<16x8xf32>
    %c0_945 = arith.constant 0 : index
    %c10_946 = arith.constant 10 : index
    %c0_947 = arith.constant 0 : index
    %c0_948 = arith.constant 0 : index
    %696 = vector.load %arg13[%c0_945, %c10_946, %c0_947, %c0_948] : memref<1x16x16x8xf32, #tpu.memory_space<vmem>>, vector<1x1x16x8xf32>
    %697 = vector.shape_cast %696 : vector<1x1x16x8xf32> to vector<16x8xf32>
    %698 = vector.shape_cast %695 : vector<16x8xf32> to vector<1x1x16x8xf32>
    tpu.vector_store %arg13[%c0_945, %c10_946, %c0_947, %c0_948], %698 {strides = array<i32>} : memref<1x16x16x8xf32, #tpu.memory_space<vmem>>, vector<1x1x16x8xf32>,
    %cst_949 = arith.constant 0.000000e+00 : f32
    %699 = vector.broadcast %cst_949 : f32 to vector<16x8xf32>
    %c0_950 = arith.constant 0 : index
    %c11 = arith.constant 11 : index
    %c0_951 = arith.constant 0 : index
    %c0_952 = arith.constant 0 : index
    %700 = vector.load %arg2[%c0_950, %c11, %c0_951, %c0_952] : memref<1x16x17x4xbf16, #tpu.memory_space<vmem>>, vector<1x1x16x4xbf16>
    %701 = vector.shape_cast %700 : vector<1x1x16x4xbf16> to vector<16x4xbf16>
    %c0_953 = arith.constant 0 : index
    %c11_954 = arith.constant 11 : index
    %c0_955 = arith.constant 0 : index
    %c0_956 = arith.constant 0 : index
    %702 = vector.load %arg3[%c0_953, %c11_954, %c0_955, %c0_956] : memref<1x16x17x4xbf16, #tpu.memory_space<vmem>>, vector<1x1x16x4xbf16>
    %703 = vector.shape_cast %702 : vector<1x1x16x4xbf16> to vector<16x4xbf16>
    %c0_957 = arith.constant 0 : index
    %c11_958 = arith.constant 11 : index
    %c1_959 = arith.constant 1 : index
    %c0_960 = arith.constant 0 : index
    %704 = vector.load %arg2[%c0_957, %c11_958, %c1_959, %c0_960] : memref<1x16x17x4xbf16, #tpu.memory_space<vmem>>, vector<1x1x16x4xbf16>
    %705 = vector.shape_cast %704 : vector<1x1x16x4xbf16> to vector<16x4xbf16>
    %c0_961 = arith.constant 0 : index
    %c11_962 = arith.constant 11 : index
    %c1_963 = arith.constant 1 : index
    %c0_964 = arith.constant 0 : index
    %706 = vector.load %arg3[%c0_961, %c11_962, %c1_963, %c0_964] : memref<1x16x17x4xbf16, #tpu.memory_space<vmem>>, vector<1x1x16x4xbf16>
    %707 = vector.shape_cast %706 : vector<1x1x16x4xbf16> to vector<16x4xbf16>
    %708 = tpu.concatenate %701, %703, %705, %707 in 1 : vector<16x4xbf16>, vector<16x4xbf16>, vector<16x4xbf16>, vector<16x4xbf16> -> vector<16x16xbf16>
    %c0_965 = arith.constant 0 : index
    %c0_966 = arith.constant 0 : index
    %c0_967 = arith.constant 0 : index
    %709 = vector.load %arg10[%c0_965, %c0_966, %c0_967] : memref<4x16x8xbf16, #tpu.memory_space<vmem>>, vector<1x16x8xbf16>
    %710 = vector.shape_cast %709 : vector<1x16x8xbf16> to vector<16x8xbf16>
    %cst_968 = arith.constant dense<0.000000e+00> : vector<16x8xf32>
    %711 = tpu.matmul %708, %710, %cst_968 {dimension_numbers = #tpu.dot_dimension_numbers<[1], [0], [0], [1], [0, 0, 1, 1], [], []>} : vector<16x16xbf16>, vector<16x8xbf16>, vector<16x8xf32> -> vector<16x8xf32>
    %712 = arith.addf %699, %711 : vector<16x8xf32>
    %c0_969 = arith.constant 0 : index
    %c11_970 = arith.constant 11 : index
    %c0_971 = arith.constant 0 : index
    %c0_972 = arith.constant 0 : index
    %713 = vector.load %arg4[%c0_969, %c11_970, %c0_971, %c0_972] : memref<1x16x17x4xbf16, #tpu.memory_space<vmem>>, vector<1x1x16x4xbf16>
    %714 = vector.shape_cast %713 : vector<1x1x16x4xbf16> to vector<16x4xbf16>
    %c0_973 = arith.constant 0 : index
    %c11_974 = arith.constant 11 : index
    %c0_975 = arith.constant 0 : index
    %c0_976 = arith.constant 0 : index
    %715 = vector.load %arg5[%c0_973, %c11_974, %c0_975, %c0_976] : memref<1x16x17x4xbf16, #tpu.memory_space<vmem>>, vector<1x1x16x4xbf16>
    %716 = vector.shape_cast %715 : vector<1x1x16x4xbf16> to vector<16x4xbf16>
    %c0_977 = arith.constant 0 : index
    %c11_978 = arith.constant 11 : index
    %c1_979 = arith.constant 1 : index
    %c0_980 = arith.constant 0 : index
    %717 = vector.load %arg4[%c0_977, %c11_978, %c1_979, %c0_980] : memref<1x16x17x4xbf16, #tpu.memory_space<vmem>>, vector<1x1x16x4xbf16>
    %718 = vector.shape_cast %717 : vector<1x1x16x4xbf16> to vector<16x4xbf16>
    %c0_981 = arith.constant 0 : index
    %c11_982 = arith.constant 11 : index
    %c1_983 = arith.constant 1 : index
    %c0_984 = arith.constant 0 : index
    %719 = vector.load %arg5[%c0_981, %c11_982, %c1_983, %c0_984] : memref<1x16x17x4xbf16, #tpu.memory_space<vmem>>, vector<1x1x16x4xbf16>
    %720 = vector.shape_cast %719 : vector<1x1x16x4xbf16> to vector<16x4xbf16>
    %721 = tpu.concatenate %714, %716, %718, %720 in 1 : vector<16x4xbf16>, vector<16x4xbf16>, vector<16x4xbf16>, vector<16x4xbf16> -> vector<16x16xbf16>
    %c1_985 = arith.constant 1 : index
    %c0_986 = arith.constant 0 : index
    %c0_987 = arith.constant 0 : index
    %722 = vector.load %arg10[%c1_985, %c0_986, %c0_987] : memref<4x16x8xbf16, #tpu.memory_space<vmem>>, vector<1x16x8xbf16>
    %723 = vector.shape_cast %722 : vector<1x16x8xbf16> to vector<16x8xbf16>
    %cst_988 = arith.constant dense<0.000000e+00> : vector<16x8xf32>
    %724 = tpu.matmul %721, %723, %cst_988 {dimension_numbers = #tpu.dot_dimension_numbers<[1], [0], [0], [1], [0, 0, 1, 1], [], []>} : vector<16x16xbf16>, vector<16x8xbf16>, vector<16x8xf32> -> vector<16x8xf32>
    %725 = arith.addf %712, %724 : vector<16x8xf32>
    %c0_989 = arith.constant 0 : index
    %c11_990 = arith.constant 11 : index
    %c0_991 = arith.constant 0 : index
    %c0_992 = arith.constant 0 : index
    %726 = vector.load %arg6[%c0_989, %c11_990, %c0_991, %c0_992] : memref<1x16x17x4xbf16, #tpu.memory_space<vmem>>, vector<1x1x16x4xbf16>
    %727 = vector.shape_cast %726 : vector<1x1x16x4xbf16> to vector<16x4xbf16>
    %c0_993 = arith.constant 0 : index
    %c11_994 = arith.constant 11 : index
    %c0_995 = arith.constant 0 : index
    %c0_996 = arith.constant 0 : index
    %728 = vector.load %arg7[%c0_993, %c11_994, %c0_995, %c0_996] : memref<1x16x17x4xbf16, #tpu.memory_space<vmem>>, vector<1x1x16x4xbf16>
    %729 = vector.shape_cast %728 : vector<1x1x16x4xbf16> to vector<16x4xbf16>
    %c0_997 = arith.constant 0 : index
    %c11_998 = arith.constant 11 : index
    %c1_999 = arith.constant 1 : index
    %c0_1000 = arith.constant 0 : index
    %730 = vector.load %arg6[%c0_997, %c11_998, %c1_999, %c0_1000] : memref<1x16x17x4xbf16, #tpu.memory_space<vmem>>, vector<1x1x16x4xbf16>
    %731 = vector.shape_cast %730 : vector<1x1x16x4xbf16> to vector<16x4xbf16>
    %c0_1001 = arith.constant 0 : index
    %c11_1002 = arith.constant 11 : index
    %c1_1003 = arith.constant 1 : index
    %c0_1004 = arith.constant 0 : index
    %732 = vector.load %arg7[%c0_1001, %c11_1002, %c1_1003, %c0_1004] : memref<1x16x17x4xbf16, #tpu.memory_space<vmem>>, vector<1x1x16x4xbf16>
    %733 = vector.shape_cast %732 : vector<1x1x16x4xbf16> to vector<16x4xbf16>
    %734 = tpu.concatenate %727, %729, %731, %733 in 1 : vector<16x4xbf16>, vector<16x4xbf16>, vector<16x4xbf16>, vector<16x4xbf16> -> vector<16x16xbf16>
    %c2_1005 = arith.constant 2 : index
    %c0_1006 = arith.constant 0 : index
    %c0_1007 = arith.constant 0 : index
    %735 = vector.load %arg10[%c2_1005, %c0_1006, %c0_1007] : memref<4x16x8xbf16, #tpu.memory_space<vmem>>, vector<1x16x8xbf16>
    %736 = vector.shape_cast %735 : vector<1x16x8xbf16> to vector<16x8xbf16>
    %cst_1008 = arith.constant dense<0.000000e+00> : vector<16x8xf32>
    %737 = tpu.matmul %734, %736, %cst_1008 {dimension_numbers = #tpu.dot_dimension_numbers<[1], [0], [0], [1], [0, 0, 1, 1], [], []>} : vector<16x16xbf16>, vector<16x8xbf16>, vector<16x8xf32> -> vector<16x8xf32>
    %738 = arith.addf %725, %737 : vector<16x8xf32>
    %c0_1009 = arith.constant 0 : index
    %c11_1010 = arith.constant 11 : index
    %c0_1011 = arith.constant 0 : index
    %c0_1012 = arith.constant 0 : index
    %739 = vector.load %arg8[%c0_1009, %c11_1010, %c0_1011, %c0_1012] : memref<1x16x17x4xbf16, #tpu.memory_space<vmem>>, vector<1x1x16x4xbf16>
    %740 = vector.shape_cast %739 : vector<1x1x16x4xbf16> to vector<16x4xbf16>
    %c0_1013 = arith.constant 0 : index
    %c11_1014 = arith.constant 11 : index
    %c0_1015 = arith.constant 0 : index
    %c0_1016 = arith.constant 0 : index
    %741 = vector.load %arg9[%c0_1013, %c11_1014, %c0_1015, %c0_1016] : memref<1x16x17x4xbf16, #tpu.memory_space<vmem>>, vector<1x1x16x4xbf16>
    %742 = vector.shape_cast %741 : vector<1x1x16x4xbf16> to vector<16x4xbf16>
    %c0_1017 = arith.constant 0 : index
    %c11_1018 = arith.constant 11 : index
    %c1_1019 = arith.constant 1 : index
    %c0_1020 = arith.constant 0 : index
    %743 = vector.load %arg8[%c0_1017, %c11_1018, %c1_1019, %c0_1020] : memref<1x16x17x4xbf16, #tpu.memory_space<vmem>>, vector<1x1x16x4xbf16>
    %744 = vector.shape_cast %743 : vector<1x1x16x4xbf16> to vector<16x4xbf16>
    %c0_1021 = arith.constant 0 : index
    %c11_1022 = arith.constant 11 : index
    %c1_1023 = arith.constant 1 : index
    %c0_1024 = arith.constant 0 : index
    %745 = vector.load %arg9[%c0_1021, %c11_1022, %c1_1023, %c0_1024] : memref<1x16x17x4xbf16, #tpu.memory_space<vmem>>, vector<1x1x16x4xbf16>
    %746 = vector.shape_cast %745 : vector<1x1x16x4xbf16> to vector<16x4xbf16>
    %747 = tpu.concatenate %740, %742, %744, %746 in 1 : vector<16x4xbf16>, vector<16x4xbf16>, vector<16x4xbf16>, vector<16x4xbf16> -> vector<16x16xbf16>
    %c3_1025 = arith.constant 3 : index
    %c0_1026 = arith.constant 0 : index
    %c0_1027 = arith.constant 0 : index
    %748 = vector.load %arg10[%c3_1025, %c0_1026, %c0_1027] : memref<4x16x8xbf16, #tpu.memory_space<vmem>>, vector<1x16x8xbf16>
    %749 = vector.shape_cast %748 : vector<1x16x8xbf16> to vector<16x8xbf16>
    %cst_1028 = arith.constant dense<0.000000e+00> : vector<16x8xf32>
    %750 = tpu.matmul %747, %749, %cst_1028 {dimension_numbers = #tpu.dot_dimension_numbers<[1], [0], [0], [1], [0, 0, 1, 1], [], []>} : vector<16x16xbf16>, vector<16x8xbf16>, vector<16x8xf32> -> vector<16x8xf32>
    %751 = arith.addf %738, %750 : vector<16x8xf32>
    %752 = arith.mulf %751, %2 : vector<16x8xf32>
    %753 = arith.addf %752, %5 : vector<16x8xf32>
    %cst_1029 = arith.constant 0.000000e+00 : f32
    %754 = vector.broadcast %cst_1029 : f32 to vector<16x8xf32>
    %755 = arith.cmpf oge, %753, %754 : vector<16x8xf32>
    %cst_1030 = arith.constant 2.000000e-01 : f32
    %756 = vector.broadcast %cst_1030 : f32 to vector<16x8xf32>
    %757 = arith.mulf %756, %753 : vector<16x8xf32>
    %758 = arith.select %755, %753, %757 : vector<16x8xi1>, vector<16x8xf32>
    %c0_1031 = arith.constant 0 : index
    %c11_1032 = arith.constant 11 : index
    %c0_1033 = arith.constant 0 : index
    %c0_1034 = arith.constant 0 : index
    %759 = vector.load %arg13[%c0_1031, %c11_1032, %c0_1033, %c0_1034] : memref<1x16x16x8xf32, #tpu.memory_space<vmem>>, vector<1x1x16x8xf32>
    %760 = vector.shape_cast %759 : vector<1x1x16x8xf32> to vector<16x8xf32>
    %761 = vector.shape_cast %758 : vector<16x8xf32> to vector<1x1x16x8xf32>
    tpu.vector_store %arg13[%c0_1031, %c11_1032, %c0_1033, %c0_1034], %761 {strides = array<i32>} : memref<1x16x16x8xf32, #tpu.memory_space<vmem>>, vector<1x1x16x8xf32>,
    %cst_1035 = arith.constant 0.000000e+00 : f32
    %762 = vector.broadcast %cst_1035 : f32 to vector<16x8xf32>
    %c0_1036 = arith.constant 0 : index
    %c12 = arith.constant 12 : index
    %c0_1037 = arith.constant 0 : index
    %c0_1038 = arith.constant 0 : index
    %763 = vector.load %arg2[%c0_1036, %c12, %c0_1037, %c0_1038] : memref<1x16x17x4xbf16, #tpu.memory_space<vmem>>, vector<1x1x16x4xbf16>
    %764 = vector.shape_cast %763 : vector<1x1x16x4xbf16> to vector<16x4xbf16>
    %c0_1039 = arith.constant 0 : index
    %c12_1040 = arith.constant 12 : index
    %c0_1041 = arith.constant 0 : index
    %c0_1042 = arith.constant 0 : index
    %765 = vector.load %arg3[%c0_1039, %c12_1040, %c0_1041, %c0_1042] : memref<1x16x17x4xbf16, #tpu.memory_space<vmem>>, vector<1x1x16x4xbf16>
    %766 = vector.shape_cast %765 : vector<1x1x16x4xbf16> to vector<16x4xbf16>
    %c0_1043 = arith.constant 0 : index
    %c12_1044 = arith.constant 12 : index
    %c1_1045 = arith.constant 1 : index
    %c0_1046 = arith.constant 0 : index
    %767 = vector.load %arg2[%c0_1043, %c12_1044, %c1_1045, %c0_1046] : memref<1x16x17x4xbf16, #tpu.memory_space<vmem>>, vector<1x1x16x4xbf16>
    %768 = vector.shape_cast %767 : vector<1x1x16x4xbf16> to vector<16x4xbf16>
    %c0_1047 = arith.constant 0 : index
    %c12_1048 = arith.constant 12 : index
    %c1_1049 = arith.constant 1 : index
    %c0_1050 = arith.constant 0 : index
    %769 = vector.load %arg3[%c0_1047, %c12_1048, %c1_1049, %c0_1050] : memref<1x16x17x4xbf16, #tpu.memory_space<vmem>>, vector<1x1x16x4xbf16>
    %770 = vector.shape_cast %769 : vector<1x1x16x4xbf16> to vector<16x4xbf16>
    %771 = tpu.concatenate %764, %766, %768, %770 in 1 : vector<16x4xbf16>, vector<16x4xbf16>, vector<16x4xbf16>, vector<16x4xbf16> -> vector<16x16xbf16>
    %c0_1051 = arith.constant 0 : index
    %c0_1052 = arith.constant 0 : index
    %c0_1053 = arith.constant 0 : index
    %772 = vector.load %arg10[%c0_1051, %c0_1052, %c0_1053] : memref<4x16x8xbf16, #tpu.memory_space<vmem>>, vector<1x16x8xbf16>
    %773 = vector.shape_cast %772 : vector<1x16x8xbf16> to vector<16x8xbf16>
    %cst_1054 = arith.constant dense<0.000000e+00> : vector<16x8xf32>
    %774 = tpu.matmul %771, %773, %cst_1054 {dimension_numbers = #tpu.dot_dimension_numbers<[1], [0], [0], [1], [0, 0, 1, 1], [], []>} : vector<16x16xbf16>, vector<16x8xbf16>, vector<16x8xf32> -> vector<16x8xf32>
    %775 = arith.addf %762, %774 : vector<16x8xf32>
    %c0_1055 = arith.constant 0 : index
    %c12_1056 = arith.constant 12 : index
    %c0_1057 = arith.constant 0 : index
    %c0_1058 = arith.constant 0 : index
    %776 = vector.load %arg4[%c0_1055, %c12_1056, %c0_1057, %c0_1058] : memref<1x16x17x4xbf16, #tpu.memory_space<vmem>>, vector<1x1x16x4xbf16>
    %777 = vector.shape_cast %776 : vector<1x1x16x4xbf16> to vector<16x4xbf16>
    %c0_1059 = arith.constant 0 : index
    %c12_1060 = arith.constant 12 : index
    %c0_1061 = arith.constant 0 : index
    %c0_1062 = arith.constant 0 : index
    %778 = vector.load %arg5[%c0_1059, %c12_1060, %c0_1061, %c0_1062] : memref<1x16x17x4xbf16, #tpu.memory_space<vmem>>, vector<1x1x16x4xbf16>
    %779 = vector.shape_cast %778 : vector<1x1x16x4xbf16> to vector<16x4xbf16>
    %c0_1063 = arith.constant 0 : index
    %c12_1064 = arith.constant 12 : index
    %c1_1065 = arith.constant 1 : index
    %c0_1066 = arith.constant 0 : index
    %780 = vector.load %arg4[%c0_1063, %c12_1064, %c1_1065, %c0_1066] : memref<1x16x17x4xbf16, #tpu.memory_space<vmem>>, vector<1x1x16x4xbf16>
    %781 = vector.shape_cast %780 : vector<1x1x16x4xbf16> to vector<16x4xbf16>
    %c0_1067 = arith.constant 0 : index
    %c12_1068 = arith.constant 12 : index
    %c1_1069 = arith.constant 1 : index
    %c0_1070 = arith.constant 0 : index
    %782 = vector.load %arg5[%c0_1067, %c12_1068, %c1_1069, %c0_1070] : memref<1x16x17x4xbf16, #tpu.memory_space<vmem>>, vector<1x1x16x4xbf16>
    %783 = vector.shape_cast %782 : vector<1x1x16x4xbf16> to vector<16x4xbf16>
    %784 = tpu.concatenate %777, %779, %781, %783 in 1 : vector<16x4xbf16>, vector<16x4xbf16>, vector<16x4xbf16>, vector<16x4xbf16> -> vector<16x16xbf16>
    %c1_1071 = arith.constant 1 : index
    %c0_1072 = arith.constant 0 : index
    %c0_1073 = arith.constant 0 : index
    %785 = vector.load %arg10[%c1_1071, %c0_1072, %c0_1073] : memref<4x16x8xbf16, #tpu.memory_space<vmem>>, vector<1x16x8xbf16>
    %786 = vector.shape_cast %785 : vector<1x16x8xbf16> to vector<16x8xbf16>
    %cst_1074 = arith.constant dense<0.000000e+00> : vector<16x8xf32>
    %787 = tpu.matmul %784, %786, %cst_1074 {dimension_numbers = #tpu.dot_dimension_numbers<[1], [0], [0], [1], [0, 0, 1, 1], [], []>} : vector<16x16xbf16>, vector<16x8xbf16>, vector<16x8xf32> -> vector<16x8xf32>
    %788 = arith.addf %775, %787 : vector<16x8xf32>
    %c0_1075 = arith.constant 0 : index
    %c12_1076 = arith.constant 12 : index
    %c0_1077 = arith.constant 0 : index
    %c0_1078 = arith.constant 0 : index
    %789 = vector.load %arg6[%c0_1075, %c12_1076, %c0_1077, %c0_1078] : memref<1x16x17x4xbf16, #tpu.memory_space<vmem>>, vector<1x1x16x4xbf16>
    %790 = vector.shape_cast %789 : vector<1x1x16x4xbf16> to vector<16x4xbf16>
    %c0_1079 = arith.constant 0 : index
    %c12_1080 = arith.constant 12 : index
    %c0_1081 = arith.constant 0 : index
    %c0_1082 = arith.constant 0 : index
    %791 = vector.load %arg7[%c0_1079, %c12_1080, %c0_1081, %c0_1082] : memref<1x16x17x4xbf16, #tpu.memory_space<vmem>>, vector<1x1x16x4xbf16>
    %792 = vector.shape_cast %791 : vector<1x1x16x4xbf16> to vector<16x4xbf16>
    %c0_1083 = arith.constant 0 : index
    %c12_1084 = arith.constant 12 : index
    %c1_1085 = arith.constant 1 : index
    %c0_1086 = arith.constant 0 : index
    %793 = vector.load %arg6[%c0_1083, %c12_1084, %c1_1085, %c0_1086] : memref<1x16x17x4xbf16, #tpu.memory_space<vmem>>, vector<1x1x16x4xbf16>
    %794 = vector.shape_cast %793 : vector<1x1x16x4xbf16> to vector<16x4xbf16>
    %c0_1087 = arith.constant 0 : index
    %c12_1088 = arith.constant 12 : index
    %c1_1089 = arith.constant 1 : index
    %c0_1090 = arith.constant 0 : index
    %795 = vector.load %arg7[%c0_1087, %c12_1088, %c1_1089, %c0_1090] : memref<1x16x17x4xbf16, #tpu.memory_space<vmem>>, vector<1x1x16x4xbf16>
    %796 = vector.shape_cast %795 : vector<1x1x16x4xbf16> to vector<16x4xbf16>
    %797 = tpu.concatenate %790, %792, %794, %796 in 1 : vector<16x4xbf16>, vector<16x4xbf16>, vector<16x4xbf16>, vector<16x4xbf16> -> vector<16x16xbf16>
    %c2_1091 = arith.constant 2 : index
    %c0_1092 = arith.constant 0 : index
    %c0_1093 = arith.constant 0 : index
    %798 = vector.load %arg10[%c2_1091, %c0_1092, %c0_1093] : memref<4x16x8xbf16, #tpu.memory_space<vmem>>, vector<1x16x8xbf16>
    %799 = vector.shape_cast %798 : vector<1x16x8xbf16> to vector<16x8xbf16>
    %cst_1094 = arith.constant dense<0.000000e+00> : vector<16x8xf32>
    %800 = tpu.matmul %797, %799, %cst_1094 {dimension_numbers = #tpu.dot_dimension_numbers<[1], [0], [0], [1], [0, 0, 1, 1], [], []>} : vector<16x16xbf16>, vector<16x8xbf16>, vector<16x8xf32> -> vector<16x8xf32>
    %801 = arith.addf %788, %800 : vector<16x8xf32>
    %c0_1095 = arith.constant 0 : index
    %c12_1096 = arith.constant 12 : index
    %c0_1097 = arith.constant 0 : index
    %c0_1098 = arith.constant 0 : index
    %802 = vector.load %arg8[%c0_1095, %c12_1096, %c0_1097, %c0_1098] : memref<1x16x17x4xbf16, #tpu.memory_space<vmem>>, vector<1x1x16x4xbf16>
    %803 = vector.shape_cast %802 : vector<1x1x16x4xbf16> to vector<16x4xbf16>
    %c0_1099 = arith.constant 0 : index
    %c12_1100 = arith.constant 12 : index
    %c0_1101 = arith.constant 0 : index
    %c0_1102 = arith.constant 0 : index
    %804 = vector.load %arg9[%c0_1099, %c12_1100, %c0_1101, %c0_1102] : memref<1x16x17x4xbf16, #tpu.memory_space<vmem>>, vector<1x1x16x4xbf16>
    %805 = vector.shape_cast %804 : vector<1x1x16x4xbf16> to vector<16x4xbf16>
    %c0_1103 = arith.constant 0 : index
    %c12_1104 = arith.constant 12 : index
    %c1_1105 = arith.constant 1 : index
    %c0_1106 = arith.constant 0 : index
    %806 = vector.load %arg8[%c0_1103, %c12_1104, %c1_1105, %c0_1106] : memref<1x16x17x4xbf16, #tpu.memory_space<vmem>>, vector<1x1x16x4xbf16>
    %807 = vector.shape_cast %806 : vector<1x1x16x4xbf16> to vector<16x4xbf16>
    %c0_1107 = arith.constant 0 : index
    %c12_1108 = arith.constant 12 : index
    %c1_1109 = arith.constant 1 : index
    %c0_1110 = arith.constant 0 : index
    %808 = vector.load %arg9[%c0_1107, %c12_1108, %c1_1109, %c0_1110] : memref<1x16x17x4xbf16, #tpu.memory_space<vmem>>, vector<1x1x16x4xbf16>
    %809 = vector.shape_cast %808 : vector<1x1x16x4xbf16> to vector<16x4xbf16>
    %810 = tpu.concatenate %803, %805, %807, %809 in 1 : vector<16x4xbf16>, vector<16x4xbf16>, vector<16x4xbf16>, vector<16x4xbf16> -> vector<16x16xbf16>
    %c3_1111 = arith.constant 3 : index
    %c0_1112 = arith.constant 0 : index
    %c0_1113 = arith.constant 0 : index
    %811 = vector.load %arg10[%c3_1111, %c0_1112, %c0_1113] : memref<4x16x8xbf16, #tpu.memory_space<vmem>>, vector<1x16x8xbf16>
    %812 = vector.shape_cast %811 : vector<1x16x8xbf16> to vector<16x8xbf16>
    %cst_1114 = arith.constant dense<0.000000e+00> : vector<16x8xf32>
    %813 = tpu.matmul %810, %812, %cst_1114 {dimension_numbers = #tpu.dot_dimension_numbers<[1], [0], [0], [1], [0, 0, 1, 1], [], []>} : vector<16x16xbf16>, vector<16x8xbf16>, vector<16x8xf32> -> vector<16x8xf32>
    %814 = arith.addf %801, %813 : vector<16x8xf32>
    %815 = arith.mulf %814, %2 : vector<16x8xf32>
    %816 = arith.addf %815, %5 : vector<16x8xf32>
    %cst_1115 = arith.constant 0.000000e+00 : f32
    %817 = vector.broadcast %cst_1115 : f32 to vector<16x8xf32>
    %818 = arith.cmpf oge, %816, %817 : vector<16x8xf32>
    %cst_1116 = arith.constant 2.000000e-01 : f32
    %819 = vector.broadcast %cst_1116 : f32 to vector<16x8xf32>
    %820 = arith.mulf %819, %816 : vector<16x8xf32>
    %821 = arith.select %818, %816, %820 : vector<16x8xi1>, vector<16x8xf32>
    %c0_1117 = arith.constant 0 : index
    %c12_1118 = arith.constant 12 : index
    %c0_1119 = arith.constant 0 : index
    %c0_1120 = arith.constant 0 : index
    %822 = vector.load %arg13[%c0_1117, %c12_1118, %c0_1119, %c0_1120] : memref<1x16x16x8xf32, #tpu.memory_space<vmem>>, vector<1x1x16x8xf32>
    %823 = vector.shape_cast %822 : vector<1x1x16x8xf32> to vector<16x8xf32>
    %824 = vector.shape_cast %821 : vector<16x8xf32> to vector<1x1x16x8xf32>
    tpu.vector_store %arg13[%c0_1117, %c12_1118, %c0_1119, %c0_1120], %824 {strides = array<i32>} : memref<1x16x16x8xf32, #tpu.memory_space<vmem>>, vector<1x1x16x8xf32>,
    %cst_1121 = arith.constant 0.000000e+00 : f32
    %825 = vector.broadcast %cst_1121 : f32 to vector<16x8xf32>
    %c0_1122 = arith.constant 0 : index
    %c13 = arith.constant 13 : index
    %c0_1123 = arith.constant 0 : index
    %c0_1124 = arith.constant 0 : index
    %826 = vector.load %arg2[%c0_1122, %c13, %c0_1123, %c0_1124] : memref<1x16x17x4xbf16, #tpu.memory_space<vmem>>, vector<1x1x16x4xbf16>
    %827 = vector.shape_cast %826 : vector<1x1x16x4xbf16> to vector<16x4xbf16>
    %c0_1125 = arith.constant 0 : index
    %c13_1126 = arith.constant 13 : index
    %c0_1127 = arith.constant 0 : index
    %c0_1128 = arith.constant 0 : index
    %828 = vector.load %arg3[%c0_1125, %c13_1126, %c0_1127, %c0_1128] : memref<1x16x17x4xbf16, #tpu.memory_space<vmem>>, vector<1x1x16x4xbf16>
    %829 = vector.shape_cast %828 : vector<1x1x16x4xbf16> to vector<16x4xbf16>
    %c0_1129 = arith.constant 0 : index
    %c13_1130 = arith.constant 13 : index
    %c1_1131 = arith.constant 1 : index
    %c0_1132 = arith.constant 0 : index
    %830 = vector.load %arg2[%c0_1129, %c13_1130, %c1_1131, %c0_1132] : memref<1x16x17x4xbf16, #tpu.memory_space<vmem>>, vector<1x1x16x4xbf16>
    %831 = vector.shape_cast %830 : vector<1x1x16x4xbf16> to vector<16x4xbf16>
    %c0_1133 = arith.constant 0 : index
    %c13_1134 = arith.constant 13 : index
    %c1_1135 = arith.constant 1 : index
    %c0_1136 = arith.constant 0 : index
    %832 = vector.load %arg3[%c0_1133, %c13_1134, %c1_1135, %c0_1136] : memref<1x16x17x4xbf16, #tpu.memory_space<vmem>>, vector<1x1x16x4xbf16>
    %833 = vector.shape_cast %832 : vector<1x1x16x4xbf16> to vector<16x4xbf16>
    %834 = tpu.concatenate %827, %829, %831, %833 in 1 : vector<16x4xbf16>, vector<16x4xbf16>, vector<16x4xbf16>, vector<16x4xbf16> -> vector<16x16xbf16>
    %c0_1137 = arith.constant 0 : index
    %c0_1138 = arith.constant 0 : index
    %c0_1139 = arith.constant 0 : index
    %835 = vector.load %arg10[%c0_1137, %c0_1138, %c0_1139] : memref<4x16x8xbf16, #tpu.memory_space<vmem>>, vector<1x16x8xbf16>
    %836 = vector.shape_cast %835 : vector<1x16x8xbf16> to vector<16x8xbf16>
    %cst_1140 = arith.constant dense<0.000000e+00> : vector<16x8xf32>
    %837 = tpu.matmul %834, %836, %cst_1140 {dimension_numbers = #tpu.dot_dimension_numbers<[1], [0], [0], [1], [0, 0, 1, 1], [], []>} : vector<16x16xbf16>, vector<16x8xbf16>, vector<16x8xf32> -> vector<16x8xf32>
    %838 = arith.addf %825, %837 : vector<16x8xf32>
    %c0_1141 = arith.constant 0 : index
    %c13_1142 = arith.constant 13 : index
    %c0_1143 = arith.constant 0 : index
    %c0_1144 = arith.constant 0 : index
    %839 = vector.load %arg4[%c0_1141, %c13_1142, %c0_1143, %c0_1144] : memref<1x16x17x4xbf16, #tpu.memory_space<vmem>>, vector<1x1x16x4xbf16>
    %840 = vector.shape_cast %839 : vector<1x1x16x4xbf16> to vector<16x4xbf16>
    %c0_1145 = arith.constant 0 : index
    %c13_1146 = arith.constant 13 : index
    %c0_1147 = arith.constant 0 : index
    %c0_1148 = arith.constant 0 : index
    %841 = vector.load %arg5[%c0_1145, %c13_1146, %c0_1147, %c0_1148] : memref<1x16x17x4xbf16, #tpu.memory_space<vmem>>, vector<1x1x16x4xbf16>
    %842 = vector.shape_cast %841 : vector<1x1x16x4xbf16> to vector<16x4xbf16>
    %c0_1149 = arith.constant 0 : index
    %c13_1150 = arith.constant 13 : index
    %c1_1151 = arith.constant 1 : index
    %c0_1152 = arith.constant 0 : index
    %843 = vector.load %arg4[%c0_1149, %c13_1150, %c1_1151, %c0_1152] : memref<1x16x17x4xbf16, #tpu.memory_space<vmem>>, vector<1x1x16x4xbf16>
    %844 = vector.shape_cast %843 : vector<1x1x16x4xbf16> to vector<16x4xbf16>
    %c0_1153 = arith.constant 0 : index
    %c13_1154 = arith.constant 13 : index
    %c1_1155 = arith.constant 1 : index
    %c0_1156 = arith.constant 0 : index
    %845 = vector.load %arg5[%c0_1153, %c13_1154, %c1_1155, %c0_1156] : memref<1x16x17x4xbf16, #tpu.memory_space<vmem>>, vector<1x1x16x4xbf16>
    %846 = vector.shape_cast %845 : vector<1x1x16x4xbf16> to vector<16x4xbf16>
    %847 = tpu.concatenate %840, %842, %844, %846 in 1 : vector<16x4xbf16>, vector<16x4xbf16>, vector<16x4xbf16>, vector<16x4xbf16> -> vector<16x16xbf16>
    %c1_1157 = arith.constant 1 : index
    %c0_1158 = arith.constant 0 : index
    %c0_1159 = arith.constant 0 : index
    %848 = vector.load %arg10[%c1_1157, %c0_1158, %c0_1159] : memref<4x16x8xbf16, #tpu.memory_space<vmem>>, vector<1x16x8xbf16>
    %849 = vector.shape_cast %848 : vector<1x16x8xbf16> to vector<16x8xbf16>
    %cst_1160 = arith.constant dense<0.000000e+00> : vector<16x8xf32>
    %850 = tpu.matmul %847, %849, %cst_1160 {dimension_numbers = #tpu.dot_dimension_numbers<[1], [0], [0], [1], [0, 0, 1, 1], [], []>} : vector<16x16xbf16>, vector<16x8xbf16>, vector<16x8xf32> -> vector<16x8xf32>
    %851 = arith.addf %838, %850 : vector<16x8xf32>
    %c0_1161 = arith.constant 0 : index
    %c13_1162 = arith.constant 13 : index
    %c0_1163 = arith.constant 0 : index
    %c0_1164 = arith.constant 0 : index
    %852 = vector.load %arg6[%c0_1161, %c13_1162, %c0_1163, %c0_1164] : memref<1x16x17x4xbf16, #tpu.memory_space<vmem>>, vector<1x1x16x4xbf16>
    %853 = vector.shape_cast %852 : vector<1x1x16x4xbf16> to vector<16x4xbf16>
    %c0_1165 = arith.constant 0 : index
    %c13_1166 = arith.constant 13 : index
    %c0_1167 = arith.constant 0 : index
    %c0_1168 = arith.constant 0 : index
    %854 = vector.load %arg7[%c0_1165, %c13_1166, %c0_1167, %c0_1168] : memref<1x16x17x4xbf16, #tpu.memory_space<vmem>>, vector<1x1x16x4xbf16>
    %855 = vector.shape_cast %854 : vector<1x1x16x4xbf16> to vector<16x4xbf16>
    %c0_1169 = arith.constant 0 : index
    %c13_1170 = arith.constant 13 : index
    %c1_1171 = arith.constant 1 : index
    %c0_1172 = arith.constant 0 : index
    %856 = vector.load %arg6[%c0_1169, %c13_1170, %c1_1171, %c0_1172] : memref<1x16x17x4xbf16, #tpu.memory_space<vmem>>, vector<1x1x16x4xbf16>
    %857 = vector.shape_cast %856 : vector<1x1x16x4xbf16> to vector<16x4xbf16>
    %c0_1173 = arith.constant 0 : index
    %c13_1174 = arith.constant 13 : index
    %c1_1175 = arith.constant 1 : index
    %c0_1176 = arith.constant 0 : index
    %858 = vector.load %arg7[%c0_1173, %c13_1174, %c1_1175, %c0_1176] : memref<1x16x17x4xbf16, #tpu.memory_space<vmem>>, vector<1x1x16x4xbf16>
    %859 = vector.shape_cast %858 : vector<1x1x16x4xbf16> to vector<16x4xbf16>
    %860 = tpu.concatenate %853, %855, %857, %859 in 1 : vector<16x4xbf16>, vector<16x4xbf16>, vector<16x4xbf16>, vector<16x4xbf16> -> vector<16x16xbf16>
    %c2_1177 = arith.constant 2 : index
    %c0_1178 = arith.constant 0 : index
    %c0_1179 = arith.constant 0 : index
    %861 = vector.load %arg10[%c2_1177, %c0_1178, %c0_1179] : memref<4x16x8xbf16, #tpu.memory_space<vmem>>, vector<1x16x8xbf16>
    %862 = vector.shape_cast %861 : vector<1x16x8xbf16> to vector<16x8xbf16>
    %cst_1180 = arith.constant dense<0.000000e+00> : vector<16x8xf32>
    %863 = tpu.matmul %860, %862, %cst_1180 {dimension_numbers = #tpu.dot_dimension_numbers<[1], [0], [0], [1], [0, 0, 1, 1], [], []>} : vector<16x16xbf16>, vector<16x8xbf16>, vector<16x8xf32> -> vector<16x8xf32>
    %864 = arith.addf %851, %863 : vector<16x8xf32>
    %c0_1181 = arith.constant 0 : index
    %c13_1182 = arith.constant 13 : index
    %c0_1183 = arith.constant 0 : index
    %c0_1184 = arith.constant 0 : index
    %865 = vector.load %arg8[%c0_1181, %c13_1182, %c0_1183, %c0_1184] : memref<1x16x17x4xbf16, #tpu.memory_space<vmem>>, vector<1x1x16x4xbf16>
    %866 = vector.shape_cast %865 : vector<1x1x16x4xbf16> to vector<16x4xbf16>
    %c0_1185 = arith.constant 0 : index
    %c13_1186 = arith.constant 13 : index
    %c0_1187 = arith.constant 0 : index
    %c0_1188 = arith.constant 0 : index
    %867 = vector.load %arg9[%c0_1185, %c13_1186, %c0_1187, %c0_1188] : memref<1x16x17x4xbf16, #tpu.memory_space<vmem>>, vector<1x1x16x4xbf16>
    %868 = vector.shape_cast %867 : vector<1x1x16x4xbf16> to vector<16x4xbf16>
    %c0_1189 = arith.constant 0 : index
    %c13_1190 = arith.constant 13 : index
    %c1_1191 = arith.constant 1 : index
    %c0_1192 = arith.constant 0 : index
    %869 = vector.load %arg8[%c0_1189, %c13_1190, %c1_1191, %c0_1192] : memref<1x16x17x4xbf16, #tpu.memory_space<vmem>>, vector<1x1x16x4xbf16>
    %870 = vector.shape_cast %869 : vector<1x1x16x4xbf16> to vector<16x4xbf16>
    %c0_1193 = arith.constant 0 : index
    %c13_1194 = arith.constant 13 : index
    %c1_1195 = arith.constant 1 : index
    %c0_1196 = arith.constant 0 : index
    %871 = vector.load %arg9[%c0_1193, %c13_1194, %c1_1195, %c0_1196] : memref<1x16x17x4xbf16, #tpu.memory_space<vmem>>, vector<1x1x16x4xbf16>
    %872 = vector.shape_cast %871 : vector<1x1x16x4xbf16> to vector<16x4xbf16>
    %873 = tpu.concatenate %866, %868, %870, %872 in 1 : vector<16x4xbf16>, vector<16x4xbf16>, vector<16x4xbf16>, vector<16x4xbf16> -> vector<16x16xbf16>
    %c3_1197 = arith.constant 3 : index
    %c0_1198 = arith.constant 0 : index
    %c0_1199 = arith.constant 0 : index
    %874 = vector.load %arg10[%c3_1197, %c0_1198, %c0_1199] : memref<4x16x8xbf16, #tpu.memory_space<vmem>>, vector<1x16x8xbf16>
    %875 = vector.shape_cast %874 : vector<1x16x8xbf16> to vector<16x8xbf16>
    %cst_1200 = arith.constant dense<0.000000e+00> : vector<16x8xf32>
    %876 = tpu.matmul %873, %875, %cst_1200 {dimension_numbers = #tpu.dot_dimension_numbers<[1], [0], [0], [1], [0, 0, 1, 1], [], []>} : vector<16x16xbf16>, vector<16x8xbf16>, vector<16x8xf32> -> vector<16x8xf32>
    %877 = arith.addf %864, %876 : vector<16x8xf32>
    %878 = arith.mulf %877, %2 : vector<16x8xf32>
    %879 = arith.addf %878, %5 : vector<16x8xf32>
    %cst_1201 = arith.constant 0.000000e+00 : f32
    %880 = vector.broadcast %cst_1201 : f32 to vector<16x8xf32>
    %881 = arith.cmpf oge, %879, %880 : vector<16x8xf32>
    %cst_1202 = arith.constant 2.000000e-01 : f32
    %882 = vector.broadcast %cst_1202 : f32 to vector<16x8xf32>
    %883 = arith.mulf %882, %879 : vector<16x8xf32>
    %884 = arith.select %881, %879, %883 : vector<16x8xi1>, vector<16x8xf32>
    %c0_1203 = arith.constant 0 : index
    %c13_1204 = arith.constant 13 : index
    %c0_1205 = arith.constant 0 : index
    %c0_1206 = arith.constant 0 : index
    %885 = vector.load %arg13[%c0_1203, %c13_1204, %c0_1205, %c0_1206] : memref<1x16x16x8xf32, #tpu.memory_space<vmem>>, vector<1x1x16x8xf32>
    %886 = vector.shape_cast %885 : vector<1x1x16x8xf32> to vector<16x8xf32>
    %887 = vector.shape_cast %884 : vector<16x8xf32> to vector<1x1x16x8xf32>
    tpu.vector_store %arg13[%c0_1203, %c13_1204, %c0_1205, %c0_1206], %887 {strides = array<i32>} : memref<1x16x16x8xf32, #tpu.memory_space<vmem>>, vector<1x1x16x8xf32>,
    %cst_1207 = arith.constant 0.000000e+00 : f32
    %888 = vector.broadcast %cst_1207 : f32 to vector<16x8xf32>
    %c0_1208 = arith.constant 0 : index
    %c14 = arith.constant 14 : index
    %c0_1209 = arith.constant 0 : index
    %c0_1210 = arith.constant 0 : index
    %889 = vector.load %arg2[%c0_1208, %c14, %c0_1209, %c0_1210] : memref<1x16x17x4xbf16, #tpu.memory_space<vmem>>, vector<1x1x16x4xbf16>
    %890 = vector.shape_cast %889 : vector<1x1x16x4xbf16> to vector<16x4xbf16>
    %c0_1211 = arith.constant 0 : index
    %c14_1212 = arith.constant 14 : index
    %c0_1213 = arith.constant 0 : index
    %c0_1214 = arith.constant 0 : index
    %891 = vector.load %arg3[%c0_1211, %c14_1212, %c0_1213, %c0_1214] : memref<1x16x17x4xbf16, #tpu.memory_space<vmem>>, vector<1x1x16x4xbf16>
    %892 = vector.shape_cast %891 : vector<1x1x16x4xbf16> to vector<16x4xbf16>
    %c0_1215 = arith.constant 0 : index
    %c14_1216 = arith.constant 14 : index
    %c1_1217 = arith.constant 1 : index
    %c0_1218 = arith.constant 0 : index
    %893 = vector.load %arg2[%c0_1215, %c14_1216, %c1_1217, %c0_1218] : memref<1x16x17x4xbf16, #tpu.memory_space<vmem>>, vector<1x1x16x4xbf16>
    %894 = vector.shape_cast %893 : vector<1x1x16x4xbf16> to vector<16x4xbf16>
    %c0_1219 = arith.constant 0 : index
    %c14_1220 = arith.constant 14 : index
    %c1_1221 = arith.constant 1 : index
    %c0_1222 = arith.constant 0 : index
    %895 = vector.load %arg3[%c0_1219, %c14_1220, %c1_1221, %c0_1222] : memref<1x16x17x4xbf16, #tpu.memory_space<vmem>>, vector<1x1x16x4xbf16>
    %896 = vector.shape_cast %895 : vector<1x1x16x4xbf16> to vector<16x4xbf16>
    %897 = tpu.concatenate %890, %892, %894, %896 in 1 : vector<16x4xbf16>, vector<16x4xbf16>, vector<16x4xbf16>, vector<16x4xbf16> -> vector<16x16xbf16>
    %c0_1223 = arith.constant 0 : index
    %c0_1224 = arith.constant 0 : index
    %c0_1225 = arith.constant 0 : index
    %898 = vector.load %arg10[%c0_1223, %c0_1224, %c0_1225] : memref<4x16x8xbf16, #tpu.memory_space<vmem>>, vector<1x16x8xbf16>
    %899 = vector.shape_cast %898 : vector<1x16x8xbf16> to vector<16x8xbf16>
    %cst_1226 = arith.constant dense<0.000000e+00> : vector<16x8xf32>
    %900 = tpu.matmul %897, %899, %cst_1226 {dimension_numbers = #tpu.dot_dimension_numbers<[1], [0], [0], [1], [0, 0, 1, 1], [], []>} : vector<16x16xbf16>, vector<16x8xbf16>, vector<16x8xf32> -> vector<16x8xf32>
    %901 = arith.addf %888, %900 : vector<16x8xf32>
    %c0_1227 = arith.constant 0 : index
    %c14_1228 = arith.constant 14 : index
    %c0_1229 = arith.constant 0 : index
    %c0_1230 = arith.constant 0 : index
    %902 = vector.load %arg4[%c0_1227, %c14_1228, %c0_1229, %c0_1230] : memref<1x16x17x4xbf16, #tpu.memory_space<vmem>>, vector<1x1x16x4xbf16>
    %903 = vector.shape_cast %902 : vector<1x1x16x4xbf16> to vector<16x4xbf16>
    %c0_1231 = arith.constant 0 : index
    %c14_1232 = arith.constant 14 : index
    %c0_1233 = arith.constant 0 : index
    %c0_1234 = arith.constant 0 : index
    %904 = vector.load %arg5[%c0_1231, %c14_1232, %c0_1233, %c0_1234] : memref<1x16x17x4xbf16, #tpu.memory_space<vmem>>, vector<1x1x16x4xbf16>
    %905 = vector.shape_cast %904 : vector<1x1x16x4xbf16> to vector<16x4xbf16>
    %c0_1235 = arith.constant 0 : index
    %c14_1236 = arith.constant 14 : index
    %c1_1237 = arith.constant 1 : index
    %c0_1238 = arith.constant 0 : index
    %906 = vector.load %arg4[%c0_1235, %c14_1236, %c1_1237, %c0_1238] : memref<1x16x17x4xbf16, #tpu.memory_space<vmem>>, vector<1x1x16x4xbf16>
    %907 = vector.shape_cast %906 : vector<1x1x16x4xbf16> to vector<16x4xbf16>
    %c0_1239 = arith.constant 0 : index
    %c14_1240 = arith.constant 14 : index
    %c1_1241 = arith.constant 1 : index
    %c0_1242 = arith.constant 0 : index
    %908 = vector.load %arg5[%c0_1239, %c14_1240, %c1_1241, %c0_1242] : memref<1x16x17x4xbf16, #tpu.memory_space<vmem>>, vector<1x1x16x4xbf16>
    %909 = vector.shape_cast %908 : vector<1x1x16x4xbf16> to vector<16x4xbf16>
    %910 = tpu.concatenate %903, %905, %907, %909 in 1 : vector<16x4xbf16>, vector<16x4xbf16>, vector<16x4xbf16>, vector<16x4xbf16> -> vector<16x16xbf16>
    %c1_1243 = arith.constant 1 : index
    %c0_1244 = arith.constant 0 : index
    %c0_1245 = arith.constant 0 : index
    %911 = vector.load %arg10[%c1_1243, %c0_1244, %c0_1245] : memref<4x16x8xbf16, #tpu.memory_space<vmem>>, vector<1x16x8xbf16>
    %912 = vector.shape_cast %911 : vector<1x16x8xbf16> to vector<16x8xbf16>
    %cst_1246 = arith.constant dense<0.000000e+00> : vector<16x8xf32>
    %913 = tpu.matmul %910, %912, %cst_1246 {dimension_numbers = #tpu.dot_dimension_numbers<[1], [0], [0], [1], [0, 0, 1, 1], [], []>} : vector<16x16xbf16>, vector<16x8xbf16>, vector<16x8xf32> -> vector<16x8xf32>
    %914 = arith.addf %901, %913 : vector<16x8xf32>
    %c0_1247 = arith.constant 0 : index
    %c14_1248 = arith.constant 14 : index
    %c0_1249 = arith.constant 0 : index
    %c0_1250 = arith.constant 0 : index
    %915 = vector.load %arg6[%c0_1247, %c14_1248, %c0_1249, %c0_1250] : memref<1x16x17x4xbf16, #tpu.memory_space<vmem>>, vector<1x1x16x4xbf16>
    %916 = vector.shape_cast %915 : vector<1x1x16x4xbf16> to vector<16x4xbf16>
    %c0_1251 = arith.constant 0 : index
    %c14_1252 = arith.constant 14 : index
    %c0_1253 = arith.constant 0 : index
    %c0_1254 = arith.constant 0 : index
    %917 = vector.load %arg7[%c0_1251, %c14_1252, %c0_1253, %c0_1254] : memref<1x16x17x4xbf16, #tpu.memory_space<vmem>>, vector<1x1x16x4xbf16>
    %918 = vector.shape_cast %917 : vector<1x1x16x4xbf16> to vector<16x4xbf16>
    %c0_1255 = arith.constant 0 : index
    %c14_1256 = arith.constant 14 : index
    %c1_1257 = arith.constant 1 : index
    %c0_1258 = arith.constant 0 : index
    %919 = vector.load %arg6[%c0_1255, %c14_1256, %c1_1257, %c0_1258] : memref<1x16x17x4xbf16, #tpu.memory_space<vmem>>, vector<1x1x16x4xbf16>
    %920 = vector.shape_cast %919 : vector<1x1x16x4xbf16> to vector<16x4xbf16>
    %c0_1259 = arith.constant 0 : index
    %c14_1260 = arith.constant 14 : index
    %c1_1261 = arith.constant 1 : index
    %c0_1262 = arith.constant 0 : index
    %921 = vector.load %arg7[%c0_1259, %c14_1260, %c1_1261, %c0_1262] : memref<1x16x17x4xbf16, #tpu.memory_space<vmem>>, vector<1x1x16x4xbf16>
    %922 = vector.shape_cast %921 : vector<1x1x16x4xbf16> to vector<16x4xbf16>
    %923 = tpu.concatenate %916, %918, %920, %922 in 1 : vector<16x4xbf16>, vector<16x4xbf16>, vector<16x4xbf16>, vector<16x4xbf16> -> vector<16x16xbf16>
    %c2_1263 = arith.constant 2 : index
    %c0_1264 = arith.constant 0 : index
    %c0_1265 = arith.constant 0 : index
    %924 = vector.load %arg10[%c2_1263, %c0_1264, %c0_1265] : memref<4x16x8xbf16, #tpu.memory_space<vmem>>, vector<1x16x8xbf16>
    %925 = vector.shape_cast %924 : vector<1x16x8xbf16> to vector<16x8xbf16>
    %cst_1266 = arith.constant dense<0.000000e+00> : vector<16x8xf32>
    %926 = tpu.matmul %923, %925, %cst_1266 {dimension_numbers = #tpu.dot_dimension_numbers<[1], [0], [0], [1], [0, 0, 1, 1], [], []>} : vector<16x16xbf16>, vector<16x8xbf16>, vector<16x8xf32> -> vector<16x8xf32>
    %927 = arith.addf %914, %926 : vector<16x8xf32>
    %c0_1267 = arith.constant 0 : index
    %c14_1268 = arith.constant 14 : index
    %c0_1269 = arith.constant 0 : index
    %c0_1270 = arith.constant 0 : index
    %928 = vector.load %arg8[%c0_1267, %c14_1268, %c0_1269, %c0_1270] : memref<1x16x17x4xbf16, #tpu.memory_space<vmem>>, vector<1x1x16x4xbf16>
    %929 = vector.shape_cast %928 : vector<1x1x16x4xbf16> to vector<16x4xbf16>
    %c0_1271 = arith.constant 0 : index
    %c14_1272 = arith.constant 14 : index
    %c0_1273 = arith.constant 0 : index
    %c0_1274 = arith.constant 0 : index
    %930 = vector.load %arg9[%c0_1271, %c14_1272, %c0_1273, %c0_1274] : memref<1x16x17x4xbf16, #tpu.memory_space<vmem>>, vector<1x1x16x4xbf16>
    %931 = vector.shape_cast %930 : vector<1x1x16x4xbf16> to vector<16x4xbf16>
    %c0_1275 = arith.constant 0 : index
    %c14_1276 = arith.constant 14 : index
    %c1_1277 = arith.constant 1 : index
    %c0_1278 = arith.constant 0 : index
    %932 = vector.load %arg8[%c0_1275, %c14_1276, %c1_1277, %c0_1278] : memref<1x16x17x4xbf16, #tpu.memory_space<vmem>>, vector<1x1x16x4xbf16>
    %933 = vector.shape_cast %932 : vector<1x1x16x4xbf16> to vector<16x4xbf16>
    %c0_1279 = arith.constant 0 : index
    %c14_1280 = arith.constant 14 : index
    %c1_1281 = arith.constant 1 : index
    %c0_1282 = arith.constant 0 : index
    %934 = vector.load %arg9[%c0_1279, %c14_1280, %c1_1281, %c0_1282] : memref<1x16x17x4xbf16, #tpu.memory_space<vmem>>, vector<1x1x16x4xbf16>
    %935 = vector.shape_cast %934 : vector<1x1x16x4xbf16> to vector<16x4xbf16>
    %936 = tpu.concatenate %929, %931, %933, %935 in 1 : vector<16x4xbf16>, vector<16x4xbf16>, vector<16x4xbf16>, vector<16x4xbf16> -> vector<16x16xbf16>
    %c3_1283 = arith.constant 3 : index
    %c0_1284 = arith.constant 0 : index
    %c0_1285 = arith.constant 0 : index
    %937 = vector.load %arg10[%c3_1283, %c0_1284, %c0_1285] : memref<4x16x8xbf16, #tpu.memory_space<vmem>>, vector<1x16x8xbf16>
    %938 = vector.shape_cast %937 : vector<1x16x8xbf16> to vector<16x8xbf16>
    %cst_1286 = arith.constant dense<0.000000e+00> : vector<16x8xf32>
    %939 = tpu.matmul %936, %938, %cst_1286 {dimension_numbers = #tpu.dot_dimension_numbers<[1], [0], [0], [1], [0, 0, 1, 1], [], []>} : vector<16x16xbf16>, vector<16x8xbf16>, vector<16x8xf32> -> vector<16x8xf32>
    %940 = arith.addf %927, %939 : vector<16x8xf32>
    %941 = arith.mulf %940, %2 : vector<16x8xf32>
    %942 = arith.addf %941, %5 : vector<16x8xf32>
    %cst_1287 = arith.constant 0.000000e+00 : f32
    %943 = vector.broadcast %cst_1287 : f32 to vector<16x8xf32>
    %944 = arith.cmpf oge, %942, %943 : vector<16x8xf32>
    %cst_1288 = arith.constant 2.000000e-01 : f32
    %945 = vector.broadcast %cst_1288 : f32 to vector<16x8xf32>
    %946 = arith.mulf %945, %942 : vector<16x8xf32>
    %947 = arith.select %944, %942, %946 : vector<16x8xi1>, vector<16x8xf32>
    %c0_1289 = arith.constant 0 : index
    %c14_1290 = arith.constant 14 : index
    %c0_1291 = arith.constant 0 : index
    %c0_1292 = arith.constant 0 : index
    %948 = vector.load %arg13[%c0_1289, %c14_1290, %c0_1291, %c0_1292] : memref<1x16x16x8xf32, #tpu.memory_space<vmem>>, vector<1x1x16x8xf32>
    %949 = vector.shape_cast %948 : vector<1x1x16x8xf32> to vector<16x8xf32>
    %950 = vector.shape_cast %947 : vector<16x8xf32> to vector<1x1x16x8xf32>
    tpu.vector_store %arg13[%c0_1289, %c14_1290, %c0_1291, %c0_1292], %950 {strides = array<i32>} : memref<1x16x16x8xf32, #tpu.memory_space<vmem>>, vector<1x1x16x8xf32>,
    %cst_1293 = arith.constant 0.000000e+00 : f32
    %951 = vector.broadcast %cst_1293 : f32 to vector<16x8xf32>
    %c0_1294 = arith.constant 0 : index
    %c15 = arith.constant 15 : index
    %c0_1295 = arith.constant 0 : index
    %c0_1296 = arith.constant 0 : index
    %952 = vector.load %arg2[%c0_1294, %c15, %c0_1295, %c0_1296] : memref<1x16x17x4xbf16, #tpu.memory_space<vmem>>, vector<1x1x16x4xbf16>
    %953 = vector.shape_cast %952 : vector<1x1x16x4xbf16> to vector<16x4xbf16>
    %c0_1297 = arith.constant 0 : index
    %c15_1298 = arith.constant 15 : index
    %c0_1299 = arith.constant 0 : index
    %c0_1300 = arith.constant 0 : index
    %954 = vector.load %arg3[%c0_1297, %c15_1298, %c0_1299, %c0_1300] : memref<1x16x17x4xbf16, #tpu.memory_space<vmem>>, vector<1x1x16x4xbf16>
    %955 = vector.shape_cast %954 : vector<1x1x16x4xbf16> to vector<16x4xbf16>
    %c0_1301 = arith.constant 0 : index
    %c15_1302 = arith.constant 15 : index
    %c1_1303 = arith.constant 1 : index
    %c0_1304 = arith.constant 0 : index
    %956 = vector.load %arg2[%c0_1301, %c15_1302, %c1_1303, %c0_1304] : memref<1x16x17x4xbf16, #tpu.memory_space<vmem>>, vector<1x1x16x4xbf16>
    %957 = vector.shape_cast %956 : vector<1x1x16x4xbf16> to vector<16x4xbf16>
    %c0_1305 = arith.constant 0 : index
    %c15_1306 = arith.constant 15 : index
    %c1_1307 = arith.constant 1 : index
    %c0_1308 = arith.constant 0 : index
    %958 = vector.load %arg3[%c0_1305, %c15_1306, %c1_1307, %c0_1308] : memref<1x16x17x4xbf16, #tpu.memory_space<vmem>>, vector<1x1x16x4xbf16>
    %959 = vector.shape_cast %958 : vector<1x1x16x4xbf16> to vector<16x4xbf16>
    %960 = tpu.concatenate %953, %955, %957, %959 in 1 : vector<16x4xbf16>, vector<16x4xbf16>, vector<16x4xbf16>, vector<16x4xbf16> -> vector<16x16xbf16>
    %c0_1309 = arith.constant 0 : index
    %c0_1310 = arith.constant 0 : index
    %c0_1311 = arith.constant 0 : index
    %961 = vector.load %arg10[%c0_1309, %c0_1310, %c0_1311] : memref<4x16x8xbf16, #tpu.memory_space<vmem>>, vector<1x16x8xbf16>
    %962 = vector.shape_cast %961 : vector<1x16x8xbf16> to vector<16x8xbf16>
    %cst_1312 = arith.constant dense<0.000000e+00> : vector<16x8xf32>
    %963 = tpu.matmul %960, %962, %cst_1312 {dimension_numbers = #tpu.dot_dimension_numbers<[1], [0], [0], [1], [0, 0, 1, 1], [], []>} : vector<16x16xbf16>, vector<16x8xbf16>, vector<16x8xf32> -> vector<16x8xf32>
    %964 = arith.addf %951, %963 : vector<16x8xf32>
    %c0_1313 = arith.constant 0 : index
    %c15_1314 = arith.constant 15 : index
    %c0_1315 = arith.constant 0 : index
    %c0_1316 = arith.constant 0 : index
    %965 = vector.load %arg4[%c0_1313, %c15_1314, %c0_1315, %c0_1316] : memref<1x16x17x4xbf16, #tpu.memory_space<vmem>>, vector<1x1x16x4xbf16>
    %966 = vector.shape_cast %965 : vector<1x1x16x4xbf16> to vector<16x4xbf16>
    %c0_1317 = arith.constant 0 : index
    %c15_1318 = arith.constant 15 : index
    %c0_1319 = arith.constant 0 : index
    %c0_1320 = arith.constant 0 : index
    %967 = vector.load %arg5[%c0_1317, %c15_1318, %c0_1319, %c0_1320] : memref<1x16x17x4xbf16, #tpu.memory_space<vmem>>, vector<1x1x16x4xbf16>
    %968 = vector.shape_cast %967 : vector<1x1x16x4xbf16> to vector<16x4xbf16>
    %c0_1321 = arith.constant 0 : index
    %c15_1322 = arith.constant 15 : index
    %c1_1323 = arith.constant 1 : index
    %c0_1324 = arith.constant 0 : index
    %969 = vector.load %arg4[%c0_1321, %c15_1322, %c1_1323, %c0_1324] : memref<1x16x17x4xbf16, #tpu.memory_space<vmem>>, vector<1x1x16x4xbf16>
    %970 = vector.shape_cast %969 : vector<1x1x16x4xbf16> to vector<16x4xbf16>
    %c0_1325 = arith.constant 0 : index
    %c15_1326 = arith.constant 15 : index
    %c1_1327 = arith.constant 1 : index
    %c0_1328 = arith.constant 0 : index
    %971 = vector.load %arg5[%c0_1325, %c15_1326, %c1_1327, %c0_1328] : memref<1x16x17x4xbf16, #tpu.memory_space<vmem>>, vector<1x1x16x4xbf16>
    %972 = vector.shape_cast %971 : vector<1x1x16x4xbf16> to vector<16x4xbf16>
    %973 = tpu.concatenate %966, %968, %970, %972 in 1 : vector<16x4xbf16>, vector<16x4xbf16>, vector<16x4xbf16>, vector<16x4xbf16> -> vector<16x16xbf16>
    %c1_1329 = arith.constant 1 : index
    %c0_1330 = arith.constant 0 : index
    %c0_1331 = arith.constant 0 : index
    %974 = vector.load %arg10[%c1_1329, %c0_1330, %c0_1331] : memref<4x16x8xbf16, #tpu.memory_space<vmem>>, vector<1x16x8xbf16>
    %975 = vector.shape_cast %974 : vector<1x16x8xbf16> to vector<16x8xbf16>
    %cst_1332 = arith.constant dense<0.000000e+00> : vector<16x8xf32>
    %976 = tpu.matmul %973, %975, %cst_1332 {dimension_numbers = #tpu.dot_dimension_numbers<[1], [0], [0], [1], [0, 0, 1, 1], [], []>} : vector<16x16xbf16>, vector<16x8xbf16>, vector<16x8xf32> -> vector<16x8xf32>
    %977 = arith.addf %964, %976 : vector<16x8xf32>
    %c0_1333 = arith.constant 0 : index
    %c15_1334 = arith.constant 15 : index
    %c0_1335 = arith.constant 0 : index
    %c0_1336 = arith.constant 0 : index
    %978 = vector.load %arg6[%c0_1333, %c15_1334, %c0_1335, %c0_1336] : memref<1x16x17x4xbf16, #tpu.memory_space<vmem>>, vector<1x1x16x4xbf16>
    %979 = vector.shape_cast %978 : vector<1x1x16x4xbf16> to vector<16x4xbf16>
    %c0_1337 = arith.constant 0 : index
    %c15_1338 = arith.constant 15 : index
    %c0_1339 = arith.constant 0 : index
    %c0_1340 = arith.constant 0 : index
    %980 = vector.load %arg7[%c0_1337, %c15_1338, %c0_1339, %c0_1340] : memref<1x16x17x4xbf16, #tpu.memory_space<vmem>>, vector<1x1x16x4xbf16>
    %981 = vector.shape_cast %980 : vector<1x1x16x4xbf16> to vector<16x4xbf16>
    %c0_1341 = arith.constant 0 : index
    %c15_1342 = arith.constant 15 : index
    %c1_1343 = arith.constant 1 : index
    %c0_1344 = arith.constant 0 : index
    %982 = vector.load %arg6[%c0_1341, %c15_1342, %c1_1343, %c0_1344] : memref<1x16x17x4xbf16, #tpu.memory_space<vmem>>, vector<1x1x16x4xbf16>
    %983 = vector.shape_cast %982 : vector<1x1x16x4xbf16> to vector<16x4xbf16>
    %c0_1345 = arith.constant 0 : index
    %c15_1346 = arith.constant 15 : index
    %c1_1347 = arith.constant 1 : index
    %c0_1348 = arith.constant 0 : index
    %984 = vector.load %arg7[%c0_1345, %c15_1346, %c1_1347, %c0_1348] : memref<1x16x17x4xbf16, #tpu.memory_space<vmem>>, vector<1x1x16x4xbf16>
    %985 = vector.shape_cast %984 : vector<1x1x16x4xbf16> to vector<16x4xbf16>
    %986 = tpu.concatenate %979, %981, %983, %985 in 1 : vector<16x4xbf16>, vector<16x4xbf16>, vector<16x4xbf16>, vector<16x4xbf16> -> vector<16x16xbf16>
    %c2_1349 = arith.constant 2 : index
    %c0_1350 = arith.constant 0 : index
    %c0_1351 = arith.constant 0 : index
    %987 = vector.load %arg10[%c2_1349, %c0_1350, %c0_1351] : memref<4x16x8xbf16, #tpu.memory_space<vmem>>, vector<1x16x8xbf16>
    %988 = vector.shape_cast %987 : vector<1x16x8xbf16> to vector<16x8xbf16>
    %cst_1352 = arith.constant dense<0.000000e+00> : vector<16x8xf32>
    %989 = tpu.matmul %986, %988, %cst_1352 {dimension_numbers = #tpu.dot_dimension_numbers<[1], [0], [0], [1], [0, 0, 1, 1], [], []>} : vector<16x16xbf16>, vector<16x8xbf16>, vector<16x8xf32> -> vector<16x8xf32>
    %990 = arith.addf %977, %989 : vector<16x8xf32>
    %c0_1353 = arith.constant 0 : index
    %c15_1354 = arith.constant 15 : index
    %c0_1355 = arith.constant 0 : index
    %c0_1356 = arith.constant 0 : index
    %991 = vector.load %arg8[%c0_1353, %c15_1354, %c0_1355, %c0_1356] : memref<1x16x17x4xbf16, #tpu.memory_space<vmem>>, vector<1x1x16x4xbf16>
    %992 = vector.shape_cast %991 : vector<1x1x16x4xbf16> to vector<16x4xbf16>
    %c0_1357 = arith.constant 0 : index
    %c15_1358 = arith.constant 15 : index
    %c0_1359 = arith.constant 0 : index
    %c0_1360 = arith.constant 0 : index
    %993 = vector.load %arg9[%c0_1357, %c15_1358, %c0_1359, %c0_1360] : memref<1x16x17x4xbf16, #tpu.memory_space<vmem>>, vector<1x1x16x4xbf16>
    %994 = vector.shape_cast %993 : vector<1x1x16x4xbf16> to vector<16x4xbf16>
    %c0_1361 = arith.constant 0 : index
    %c15_1362 = arith.constant 15 : index
    %c1_1363 = arith.constant 1 : index
    %c0_1364 = arith.constant 0 : index
    %995 = vector.load %arg8[%c0_1361, %c15_1362, %c1_1363, %c0_1364] : memref<1x16x17x4xbf16, #tpu.memory_space<vmem>>, vector<1x1x16x4xbf16>
    %996 = vector.shape_cast %995 : vector<1x1x16x4xbf16> to vector<16x4xbf16>
    %c0_1365 = arith.constant 0 : index
    %c15_1366 = arith.constant 15 : index
    %c1_1367 = arith.constant 1 : index
    %c0_1368 = arith.constant 0 : index
    %997 = vector.load %arg9[%c0_1365, %c15_1366, %c1_1367, %c0_1368] : memref<1x16x17x4xbf16, #tpu.memory_space<vmem>>, vector<1x1x16x4xbf16>
    %998 = vector.shape_cast %997 : vector<1x1x16x4xbf16> to vector<16x4xbf16>
    %999 = tpu.concatenate %992, %994, %996, %998 in 1 : vector<16x4xbf16>, vector<16x4xbf16>, vector<16x4xbf16>, vector<16x4xbf16> -> vector<16x16xbf16>
    %c3_1369 = arith.constant 3 : index
    %c0_1370 = arith.constant 0 : index
    %c0_1371 = arith.constant 0 : index
    %1000 = vector.load %arg10[%c3_1369, %c0_1370, %c0_1371] : memref<4x16x8xbf16, #tpu.memory_space<vmem>>, vector<1x16x8xbf16>
    %1001 = vector.shape_cast %1000 : vector<1x16x8xbf16> to vector<16x8xbf16>
    %cst_1372 = arith.constant dense<0.000000e+00> : vector<16x8xf32>
    %1002 = tpu.matmul %999, %1001, %cst_1372 {dimension_numbers = #tpu.dot_dimension_numbers<[1], [0], [0], [1], [0, 0, 1, 1], [], []>} : vector<16x16xbf16>, vector<16x8xbf16>, vector<16x8xf32> -> vector<16x8xf32>
    %1003 = arith.addf %990, %1002 : vector<16x8xf32>
    %1004 = arith.mulf %1003, %2 : vector<16x8xf32>
    %1005 = arith.addf %1004, %5 : vector<16x8xf32>
    %cst_1373 = arith.constant 0.000000e+00 : f32
    %1006 = vector.broadcast %cst_1373 : f32 to vector<16x8xf32>
    %1007 = arith.cmpf oge, %1005, %1006 : vector<16x8xf32>
    %cst_1374 = arith.constant 2.000000e-01 : f32
    %1008 = vector.broadcast %cst_1374 : f32 to vector<16x8xf32>
    %1009 = arith.mulf %1008, %1005 : vector<16x8xf32>
    %1010 = arith.select %1007, %1005, %1009 : vector<16x8xi1>, vector<16x8xf32>
    %c0_1375 = arith.constant 0 : index
    %c15_1376 = arith.constant 15 : index
    %c0_1377 = arith.constant 0 : index
    %c0_1378 = arith.constant 0 : index
    %1011 = vector.load %arg13[%c0_1375, %c15_1376, %c0_1377, %c0_1378] : memref<1x16x16x8xf32, #tpu.memory_space<vmem>>, vector<1x1x16x8xf32>
    %1012 = vector.shape_cast %1011 : vector<1x1x16x8xf32> to vector<16x8xf32>
    %1013 = vector.shape_cast %1010 : vector<16x8xf32> to vector<1x1x16x8xf32>
    tpu.vector_store %arg13[%c0_1375, %c15_1376, %c0_1377, %c0_1378], %1013 {strides = array<i32>} : memref<1x16x16x8xf32, #tpu.memory_space<vmem>>, vector<1x1x16x8xf32>,
    return
  }
  func.func @transform_0(%arg0: i32, %arg1: i32) -> (i32, i32, i32, i32) {
    %c0_i32 = arith.constant 0 : i32
    %c0_i32_0 = arith.constant 0 : i32
    %c0_i32_1 = arith.constant 0 : i32
    return %arg0, %arg1, %c0_i32, %c0_i32_0 : i32, i32, i32, i32
  }
  func.func @transform_1(%arg0: i32, %arg1: i32) -> (i32, i32, i32, i32) {
    %c0_i32 = arith.constant 0 : i32
    %c0_i32_0 = arith.constant 0 : i32
    %c0_i32_1 = arith.constant 0 : i32
    return %arg0, %arg1, %c0_i32, %c0_i32_0 : i32, i32, i32, i32
  }
  func.func @transform_2(%arg0: i32, %arg1: i32) -> (i32, i32, i32, i32) {
    %c0_i32 = arith.constant 0 : i32
    %c0_i32_0 = arith.constant 0 : i32
    %c0_i32_1 = arith.constant 0 : i32
    return %arg0, %arg1, %c0_i32, %c0_i32_0 : i32, i32, i32, i32
  }
  func.func @transform_3(%arg0: i32, %arg1: i32) -> (i32, i32, i32, i32) {
    %c0_i32 = arith.constant 0 : i32
    %c0_i32_0 = arith.constant 0 : i32
    %c0_i32_1 = arith.constant 0 : i32
    return %arg0, %arg1, %c0_i32, %c0_i32_0 : i32, i32, i32, i32
  }
  func.func @transform_4(%arg0: i32, %arg1: i32) -> (i32, i32, i32, i32) {
    %c0_i32 = arith.constant 0 : i32
    %c0_i32_0 = arith.constant 0 : i32
    %c0_i32_1 = arith.constant 0 : i32
    return %arg0, %arg1, %c0_i32, %c0_i32_0 : i32, i32, i32, i32
  }
  func.func @transform_5(%arg0: i32, %arg1: i32) -> (i32, i32, i32, i32) {
    %c0_i32 = arith.constant 0 : i32
    %c0_i32_0 = arith.constant 0 : i32
    %c0_i32_1 = arith.constant 0 : i32
    return %arg0, %arg1, %c0_i32, %c0_i32_0 : i32, i32, i32, i32
  }
  func.func @transform_6(%arg0: i32, %arg1: i32) -> (i32, i32, i32, i32) {
    %c0_i32 = arith.constant 0 : i32
    %c0_i32_0 = arith.constant 0 : i32
    %c0_i32_1 = arith.constant 0 : i32
    return %arg0, %arg1, %c0_i32, %c0_i32_0 : i32, i32, i32, i32
  }
  func.func @transform_7(%arg0: i32, %arg1: i32) -> (i32, i32, i32, i32) {
    %c0_i32 = arith.constant 0 : i32
    %c0_i32_0 = arith.constant 0 : i32
    %c0_i32_1 = arith.constant 0 : i32
    return %arg0, %arg1, %c0_i32, %c0_i32_0 : i32, i32, i32, i32
  }
  func.func @transform_8(%arg0: i32, %arg1: i32) -> (i32, i32, i32) {
    %c0_i32 = arith.constant 0 : i32
    %c0_i32_0 = arith.constant 0 : i32
    %c0_i32_1 = arith.constant 0 : i32
    %c0_i32_2 = arith.constant 0 : i32
    return %c0_i32, %c0_i32_0, %c0_i32_1 : i32, i32, i32
  }
  func.func @transform_9(%arg0: i32, %arg1: i32) -> (i32, i32) {
    %c0_i32 = arith.constant 0 : i32
    %c0_i32_0 = arith.constant 0 : i32
    %c0_i32_1 = arith.constant 0 : i32
    return %c0_i32, %c0_i32_0 : i32, i32
  }
  func.func @transform_10(%arg0: i32, %arg1: i32) -> (i32, i32) {
    %c0_i32 = arith.constant 0 : i32
    %c0_i32_0 = arith.constant 0 : i32
    %c0_i32_1 = arith.constant 0 : i32
    return %c0_i32, %c0_i32_0 : i32, i32
  }
  func.func @transform_11(%arg0: i32, %arg1: i32) -> (i32, i32, i32, i32) {
    %c0_i32 = arith.constant 0 : i32
    %c0_i32_0 = arith.constant 0 : i32
    %c0_i32_1 = arith.constant 0 : i32
    return %arg0, %arg1, %c0_i32, %c0_i32_0 : i32, i32, i32, i32
  }
}

</mosaic_0001>

<llo_original>
// kernel: tpu_custom_call.1
$region0: #{tpu_custom_call.1}
  #allocation0 [shape = 'u32[]', space=smem, size = 0x4, offset = 0x4, fixed_abs, tag = 'smem constant byte address 0x4 - core index']
  #allocation1 [shape = 'u32[144,128]{1,0:T(1,128)}', space=vmem, size = 0x12000, scoped, tag = 'internal scratch']
  %s0 = inlined_call_operand.vmem [shape: bf16[2,16,17,4], index: 0, kind: input, shape index: {}]
  %s1 = inlined_call_operand.vmem [shape: bf16[2,16,17,4], index: 1, kind: input, shape index: {}]
  %s2 = inlined_call_operand.vmem [shape: bf16[2,16,17,4], index: 2, kind: input, shape index: {}]
  %s3 = inlined_call_operand.vmem [shape: bf16[2,16,17,4], index: 3, kind: input, shape index: {}]
  %s4 = inlined_call_operand.vmem [shape: bf16[2,16,17,4], index: 4, kind: input, shape index: {}]
  %s5 = inlined_call_operand.vmem [shape: bf16[2,16,17,4], index: 5, kind: input, shape index: {}]
  %s6 = inlined_call_operand.vmem [shape: bf16[2,16,17,4], index: 6, kind: input, shape index: {}]
  %s7 = inlined_call_operand.vmem [shape: bf16[2,16,17,4], index: 7, kind: input, shape index: {}]
  %s8 = inlined_call_operand.vmem [shape: bf16[4,16,8], index: 8, kind: input, shape index: {}]
  %s9 = inlined_call_operand.vmem [shape: f32[1,8], index: 9, kind: input, shape index: {}]
  %s10 = inlined_call_operand.vmem [shape: f32[1,8], index: 10, kind: input, shape index: {}]
  %s11 = inlined_call_operand.vmem [shape: f32[2,16,16,8], index: 11, kind: output, shape index: {}]
  %s12 = sld [smem:[#allocation0]]
  $region77: #{tpu_custom_call.1} parent=0
    _
  %s14 = ssub.s32 1, %s12
  %s15 = scalar_select 0, %s14, %s12
  loop: start=0, step=1, limit=4
  $region2: #{tpu_custom_call.1} parent=0 // loop_pre_header
    _
  $region3: #{tpu_custom_call.1} parent=0 // loop_header
    %s17 = sphi 0, %s21
    %p18 = scmp.ge.s32.totalorder %s17, 4
    %s24 = sphi 0, %s36
    %s25 = sphi 0, %s32
    %s26 = sphi 0, %s24
    %s27 = sphi 0, %s25
    %s28 = sphi 0, %s26
    %s29 = sphi 0, %s27
    %s41 = sphi 0, %s43
    %s44 = sphi 0, %s41
    %s45 = sphi 0, %s44
    %s61 = sphi 0, %s45
    %s69 = sphi 0, %s71
    %s72 = sphi 0, %s69
    %s73 = sphi 0, %s72
    %s89 = sphi 0, %s73
    %s97 = sphi 0, %s99
    %s100 = sphi 0, %s97
    %s101 = sphi 0, %s100
    %s117 = sphi 0, %s101
    %s125 = sphi 0, %s127
    %s128 = sphi 0, %s125
    %s129 = sphi 0, %s128
    %s145 = sphi 0, %s129
    %s153 = sphi 0, %s155
    %s156 = sphi 0, %s153
    %s157 = sphi 0, %s156
    %s173 = sphi 0, %s157
    %s181 = sphi 0, %s183
    %s184 = sphi 0, %s181
    %s185 = sphi 0, %s184
    %s201 = sphi 0, %s185
    %s209 = sphi 0, %s211
    %s212 = sphi 0, %s209
    %s213 = sphi 0, %s212
    %s229 = sphi 0, %s213
    %s237 = sphi 0, %s239
    %s240 = sphi 0, %s237
    %s241 = sphi 0, %s240
    %s257 = sphi 0, %s241
    %s261 = sphi 0, %s261
    %s263 = sphi 0, %s261
    %s264 = sphi 0, %s263
    %s278 = sphi 0, %s264
    %s282 = sphi 0, %s282
    %s284 = sphi 0, %s282
    %s285 = sphi 0, %s284
    %s299 = sphi 0, %s285
    %s303 = sphi 0, %s303
    %s305 = sphi 0, %s303
    %s306 = sphi 0, %s305
    %s320 = sphi 0, %s306
    %s328 = sphi 0, %s330
    %s331 = sphi 0, %s328
    %s332 = sphi 0, %s331
    %s348 = sphi 0, %s332
  $region4: #{tpu_custom_call.1} parent=0 // loop_header_branch
    %20 = sbr.rel (%p18) target = $region8
  $region5: #{tpu_custom_call.1} parent=0 // loop_body
    %s22 = ssub.s32 %s17, 1
    %s23 = ssub.s32 %s17, 2
    %s30 = sadd.s32 1, %s25
    %p31 = scmp.ge.s32.totalorder %s30, 1
    %s32 = scalar_select %p31, 0, %s30
    %s33 = sadd.s32 1, %s24
    %s34 = scalar_select %p31, %s33, %s24
    %p35 = scmp.ge.s32.totalorder %s34, 2
    %s36 = scalar_select %p35, 0, %s34
    %s37 = ssub.s32 %s24, %s36
    %s38 = ssub.s32 %s25, %s32
    %s39 = sor.u32 %s37, %s38
    %p40 = scmp.eq.s32.totalorder %s39, 0
    %s42 = sadd.s32 %s41, 1
    %s43 = scalar_select %p40, %s41, %s42
    %p46 = pneg %p40
    %p47 = scmp.eq.s32.totalorder %s17, 1
    %p48 = por %p46, %p47
    %p49 = scmp.ne.s32.totalorder %s41, %s44
    %p50 = scmp.eq.s32.totalorder %s17, 0
    %p51 = por %p49, %p50
    %p52 = scmp.ne.s32.totalorder %s41, %s44
    %p53 = scmp.eq.s32.totalorder %s22, 1
    %p54 = por %p52, %p53
    %p55 = scmp.ne.s32.totalorder %s44, %s45
    %p56 = scmp.eq.s32.totalorder %s22, 0
    %p57 = por %p55, %p56
    %p58 = scmp.ne.s32.totalorder %s44, %s45
    %p59 = scmp.eq.s32.totalorder %s23, 1
    %p60 = por %p58, %p59
    %p62 = scmp.ne.s32.totalorder %s45, %s61
    %p63 = scmp.eq.s32.totalorder %s23, 0
    %p64 = por %p62, %p63
    %s65 = ssub.s32 %s24, %s36
    %s66 = ssub.s32 %s25, %s32
    %s67 = sor.u32 %s65, %s66
    %p68 = scmp.eq.s32.totalorder %s67, 0
    %s70 = sadd.s32 %s69, 1
    %s71 = scalar_select %p68, %s69, %s70
    %p74 = pneg %p68
    %p75 = scmp.eq.s32.totalorder %s17, 1
    %p76 = por %p74, %p75
    %p77 = scmp.ne.s32.totalorder %s69, %s72
    %p78 = scmp.eq.s32.totalorder %s17, 0
    %p79 = por %p77, %p78
    %p80 = scmp.ne.s32.totalorder %s69, %s72
    %p81 = scmp.eq.s32.totalorder %s22, 1
    %p82 = por %p80, %p81
    %p83 = scmp.ne.s32.totalorder %s72, %s73
    %p84 = scmp.eq.s32.totalorder %s22, 0
    %p85 = por %p83, %p84
    %p86 = scmp.ne.s32.totalorder %s72, %s73
    %p87 = scmp.eq.s32.totalorder %s23, 1
    %p88 = por %p86, %p87
    %p90 = scmp.ne.s32.totalorder %s73, %s89
    %p91 = scmp.eq.s32.totalorder %s23, 0
    %p92 = por %p90, %p91
    %s93 = ssub.s32 %s24, %s36
    %s94 = ssub.s32 %s25, %s32
    %s95 = sor.u32 %s93, %s94
    %p96 = scmp.eq.s32.totalorder %s95, 0
    %s98 = sadd.s32 %s97, 1
    %s99 = scalar_select %p96, %s97, %s98
    %p102 = pneg %p96
    %p103 = scmp.eq.s32.totalorder %s17, 1
    %p104 = por %p102, %p103
    %p105 = scmp.ne.s32.totalorder %s97, %s100
    %p106 = scmp.eq.s32.totalorder %s17, 0
    %p107 = por %p105, %p106
    %p108 = scmp.ne.s32.totalorder %s97, %s100
    %p109 = scmp.eq.s32.totalorder %s22, 1
    %p110 = por %p108, %p109
    %p111 = scmp.ne.s32.totalorder %s100, %s101
    %p112 = scmp.eq.s32.totalorder %s22, 0
    %p113 = por %p111, %p112
    %p114 = scmp.ne.s32.totalorder %s100, %s101
    %p115 = scmp.eq.s32.totalorder %s23, 1
    %p116 = por %p114, %p115
    %p118 = scmp.ne.s32.totalorder %s101, %s117
    %p119 = scmp.eq.s32.totalorder %s23, 0
    %p120 = por %p118, %p119
    %s121 = ssub.s32 %s24, %s36
    %s122 = ssub.s32 %s25, %s32
    %s123 = sor.u32 %s121, %s122
    %p124 = scmp.eq.s32.totalorder %s123, 0
    %s126 = sadd.s32 %s125, 1
    %s127 = scalar_select %p124, %s125, %s126
    %p130 = pneg %p124
    %p131 = scmp.eq.s32.totalorder %s17, 1
    %p132 = por %p130, %p131
    %p133 = scmp.ne.s32.totalorder %s125, %s128
    %p134 = scmp.eq.s32.totalorder %s17, 0
    %p135 = por %p133, %p134
    %p136 = scmp.ne.s32.totalorder %s125, %s128
    %p137 = scmp.eq.s32.totalorder %s22, 1
    %p138 = por %p136, %p137
    %p139 = scmp.ne.s32.totalorder %s128, %s129
    %p140 = scmp.eq.s32.totalorder %s22, 0
    %p141 = por %p139, %p140
    %p142 = scmp.ne.s32.totalorder %s128, %s129
    %p143 = scmp.eq.s32.totalorder %s23, 1
    %p144 = por %p142, %p143
    %p146 = scmp.ne.s32.totalorder %s129, %s145
    %p147 = scmp.eq.s32.totalorder %s23, 0
    %p148 = por %p146, %p147
    %s149 = ssub.s32 %s24, %s36
    %s150 = ssub.s32 %s25, %s32
    %s151 = sor.u32 %s149, %s150
    %p152 = scmp.eq.s32.totalorder %s151, 0
    %s154 = sadd.s32 %s153, 1
    %s155 = scalar_select %p152, %s153, %s154
    %p158 = pneg %p152
    %p159 = scmp.eq.s32.totalorder %s17, 1
    %p160 = por %p158, %p159
    %p161 = scmp.ne.s32.totalorder %s153, %s156
    %p162 = scmp.eq.s32.totalorder %s17, 0
    %p163 = por %p161, %p162
    %p164 = scmp.ne.s32.totalorder %s153, %s156
    %p165 = scmp.eq.s32.totalorder %s22, 1
    %p166 = por %p164, %p165
    %p167 = scmp.ne.s32.totalorder %s156, %s157
    %p168 = scmp.eq.s32.totalorder %s22, 0
    %p169 = por %p167, %p168
    %p170 = scmp.ne.s32.totalorder %s156, %s157
    %p171 = scmp.eq.s32.totalorder %s23, 1
    %p172 = por %p170, %p171
    %p174 = scmp.ne.s32.totalorder %s157, %s173
    %p175 = scmp.eq.s32.totalorder %s23, 0
    %p176 = por %p174, %p175
    %s177 = ssub.s32 %s24, %s36
    %s178 = ssub.s32 %s25, %s32
    %s179 = sor.u32 %s177, %s178
    %p180 = scmp.eq.s32.totalorder %s179, 0
    %s182 = sadd.s32 %s181, 1
    %s183 = scalar_select %p180, %s181, %s182
    %p186 = pneg %p180
    %p187 = scmp.eq.s32.totalorder %s17, 1
    %p188 = por %p186, %p187
    %p189 = scmp.ne.s32.totalorder %s181, %s184
    %p190 = scmp.eq.s32.totalorder %s17, 0
    %p191 = por %p189, %p190
    %p192 = scmp.ne.s32.totalorder %s181, %s184
    %p193 = scmp.eq.s32.totalorder %s22, 1
    %p194 = por %p192, %p193
    %p195 = scmp.ne.s32.totalorder %s184, %s185
    %p196 = scmp.eq.s32.totalorder %s22, 0
    %p197 = por %p195, %p196
    %p198 = scmp.ne.s32.totalorder %s184, %s185
    %p199 = scmp.eq.s32.totalorder %s23, 1
    %p200 = por %p198, %p199
    %p202 = scmp.ne.s32.totalorder %s185, %s201
    %p203 = scmp.eq.s32.totalorder %s23, 0
    %p204 = por %p202, %p203
    %s205 = ssub.s32 %s24, %s36
    %s206 = ssub.s32 %s25, %s32
    %s207 = sor.u32 %s205, %s206
    %p208 = scmp.eq.s32.totalorder %s207, 0
    %s210 = sadd.s32 %s209, 1
    %s211 = scalar_select %p208, %s209, %s210
    %p214 = pneg %p208
    %p215 = scmp.eq.s32.totalorder %s17, 1
    %p216 = por %p214, %p215
    %p217 = scmp.ne.s32.totalorder %s209, %s212
    %p218 = scmp.eq.s32.totalorder %s17, 0
    %p219 = por %p217, %p218
    %p220 = scmp.ne.s32.totalorder %s209, %s212
    %p221 = scmp.eq.s32.totalorder %s22, 1
    %p222 = por %p220, %p221
    %p223 = scmp.ne.s32.totalorder %s212, %s213
    %p224 = scmp.eq.s32.totalorder %s22, 0
    %p225 = por %p223, %p224
    %p226 = scmp.ne.s32.totalorder %s212, %s213
    %p227 = scmp.eq.s32.totalorder %s23, 1
    %p228 = por %p226, %p227
    %p230 = scmp.ne.s32.totalorder %s213, %s229
    %p231 = scmp.eq.s32.totalorder %s23, 0
    %p232 = por %p230, %p231
    %s233 = ssub.s32 %s24, %s36
    %s234 = ssub.s32 %s25, %s32
    %s235 = sor.u32 %s233, %s234
    %p236 = scmp.eq.s32.totalorder %s235, 0
    %s238 = sadd.s32 %s237, 1
    %s239 = scalar_select %p236, %s237, %s238
    %p242 = pneg %p236
    %p243 = scmp.eq.s32.totalorder %s17, 1
    %p244 = por %p242, %p243
    %p245 = scmp.ne.s32.totalorder %s237, %s240
    %p246 = scmp.eq.s32.totalorder %s17, 0
    %p247 = por %p245, %p246
    %p248 = scmp.ne.s32.totalorder %s237, %s240
    %p249 = scmp.eq.s32.totalorder %s22, 1
    %p250 = por %p248, %p249
    %p251 = scmp.ne.s32.totalorder %s240, %s241
    %p252 = scmp.eq.s32.totalorder %s22, 0
    %p253 = por %p251, %p252
    %p254 = scmp.ne.s32.totalorder %s240, %s241
    %p255 = scmp.eq.s32.totalorder %s23, 1
    %p256 = por %p254, %p255
    %p258 = scmp.ne.s32.totalorder %s241, %s257
    %p259 = scmp.eq.s32.totalorder %s23, 0
    %p260 = por %p258, %p259
    %s262 = sadd.s32 %s261, 1
    %p265 = scmp.eq.s32.totalorder %s17, 1
    %p266 = scmp.ne.s32.totalorder %s261, %s263
    %p267 = scmp.eq.s32.totalorder %s17, 0
    %p268 = por %p266, %p267
    %p269 = scmp.ne.s32.totalorder %s261, %s263
    %p270 = scmp.eq.s32.totalorder %s22, 1
    %p271 = por %p269, %p270
    %p272 = scmp.ne.s32.totalorder %s263, %s264
    %p273 = scmp.eq.s32.totalorder %s22, 0
    %p274 = por %p272, %p273
    %p275 = scmp.ne.s32.totalorder %s263, %s264
    %p276 = scmp.eq.s32.totalorder %s23, 1
    %p277 = por %p275, %p276
    %p279 = scmp.ne.s32.totalorder %s264, %s278
    %p280 = scmp.eq.s32.totalorder %s23, 0
    %p281 = por %p279, %p280
    %s283 = sadd.s32 %s282, 1
    %p286 = scmp.eq.s32.totalorder %s17, 1
    %p287 = scmp.ne.s32.totalorder %s282, %s284
    %p288 = scmp.eq.s32.totalorder %s17, 0
    %p289 = por %p287, %p288
    %p290 = scmp.ne.s32.totalorder %s282, %s284
    %p291 = scmp.eq.s32.totalorder %s22, 1
    %p292 = por %p290, %p291
    %p293 = scmp.ne.s32.totalorder %s284, %s285
    %p294 = scmp.eq.s32.totalorder %s22, 0
    %p295 = por %p293, %p294
    %p296 = scmp.ne.s32.totalorder %s284, %s285
    %p297 = scmp.eq.s32.totalorder %s23, 1
    %p298 = por %p296, %p297
    %p300 = scmp.ne.s32.totalorder %s285, %s299
    %p301 = scmp.eq.s32.totalorder %s23, 0
    %p302 = por %p300, %p301
    %s304 = sadd.s32 %s303, 1
    %p307 = scmp.eq.s32.totalorder %s17, 1
    %p308 = scmp.ne.s32.totalorder %s303, %s305
    %p309 = scmp.eq.s32.totalorder %s17, 0
    %p310 = por %p308, %p309
    %p311 = scmp.ne.s32.totalorder %s303, %s305
    %p312 = scmp.eq.s32.totalorder %s22, 1
    %p313 = por %p311, %p312
    %p314 = scmp.ne.s32.totalorder %s305, %s306
    %p315 = scmp.eq.s32.totalorder %s22, 0
    %p316 = por %p314, %p315
    %p317 = scmp.ne.s32.totalorder %s305, %s306
    %p318 = scmp.eq.s32.totalorder %s23, 1
    %p319 = por %p317, %p318
    %p321 = scmp.ne.s32.totalorder %s306, %s320
    %p322 = scmp.eq.s32.totalorder %s23, 0
    %p323 = por %p321, %p322
    %s324 = ssub.s32 %s24, %s36
    %s325 = ssub.s32 %s25, %s32
    %s326 = sor.u32 %s324, %s325
    %p327 = scmp.eq.s32.totalorder %s326, 0
    %s329 = sadd.s32 %s328, 1
    %s330 = scalar_select %p327, %s328, %s329
    %p333 = pneg %p327
    %p334 = scmp.eq.s32.totalorder %s17, 1
    %p335 = por %p333, %p334
    %p336 = scmp.ne.s32.totalorder %s328, %s331
    %p337 = scmp.eq.s32.totalorder %s17, 0
    %p338 = por %p336, %p337
    %p339 = scmp.ne.s32.totalorder %s328, %s331
    %p340 = scmp.eq.s32.totalorder %s22, 1
    %p341 = por %p339, %p340
    %p342 = scmp.ne.s32.totalorder %s331, %s332
    %p343 = scmp.eq.s32.totalorder %s22, 0
    %p344 = por %p342, %p343
    %p345 = scmp.ne.s32.totalorder %s331, %s332
    %p346 = scmp.eq.s32.totalorder %s23, 1
    %p347 = por %p345, %p346
    %p349 = scmp.ne.s32.totalorder %s332, %s348
    %p350 = scmp.eq.s32.totalorder %s23, 0
    %p351 = por %p349, %p350
    %p352 = scmp.le.s32.totalorder 1, %s17
    %p353 = scmp.lt.s32.totalorder %s17, 3
    %p354 = pnand %p352, %p353
    %p355 = pneg %p354
    // Predicated region
    $region9: #{tpu_custom_call.1} parent=5 // pred_check
      _
    $region10: #{tpu_custom_call.1} parent=5 // pred_check_branch
      %357 = sbr.rel (%p354) target = $region12
    $region11: #{tpu_custom_call.1} parent=5 // pred_region
      %s358 = ssub.s32 %s17, 1
      // Predicated region
      $region13: #{tpu_custom_call.1} parent=11 // pred_check
        %p359 = pneg %p274
      $region14: #{tpu_custom_call.1} parent=11 // pred_check_branch
        %361 = sbr.rel (%p359) target = $region16
      $region15: #{tpu_custom_call.1} parent=11 // pred_region
        _
      $region16: #{tpu_custom_call.1} parent=11 // pred_fallthru
        _
      // Predicated region
      $region17: #{tpu_custom_call.1} parent=11 // pred_check
        %p362 = pneg %p295
      $region18: #{tpu_custom_call.1} parent=11 // pred_check_branch
        %364 = sbr.rel (%p362) target = $region20
      $region19: #{tpu_custom_call.1} parent=11 // pred_region
        _
      $region20: #{tpu_custom_call.1} parent=11 // pred_fallthru
        _
      // Predicated region
      $region21: #{tpu_custom_call.1} parent=11 // pred_check
        %p365 = pneg %p316
      $region22: #{tpu_custom_call.1} parent=11 // pred_check_branch
        %367 = sbr.rel (%p365) target = $region24
      $region23: #{tpu_custom_call.1} parent=11 // pred_region
        _
      $region24: #{tpu_custom_call.1} parent=11 // pred_fallthru
        _
    $region12: #{tpu_custom_call.1} parent=5 // pred_fallthru
      _
    %p368 = scmp.lt.s32.totalorder %s17, 2
    // Predicated region
    $region25: #{tpu_custom_call.1} parent=5 // pred_check
      %p369 = pneg %p368
    $region26: #{tpu_custom_call.1} parent=5 // pred_check_branch
      %371 = sbr.rel (%p369) target = $region28
    $region27: #{tpu_custom_call.1} parent=5 // pred_region
      // Predicated region
      $region29: #{tpu_custom_call.1} parent=27 // pred_check
        %p372 = pneg %p51
      $region30: #{tpu_custom_call.1} parent=27 // pred_check_branch
        %374 = sbr.rel (%p372) target = $region32
      $region31: #{tpu_custom_call.1} parent=27 // pred_region
        %s375 = smul.u32 16, %s25
        %p376 = scmp.lt.s32.totalorder %s24, 1
        %s377 = scalar_select %p376, %s24, 1
        %p378 = scmp.lt.s32.totalorder %s375, 15
        %s379 = scalar_select %p378, %s375, 15
        %s380 = smul.addr %s379, 3
        %s381 = smul.addr %s377, 48
        %s382 = sadd.s32 %s380, %s381
        %s383 = smul.addr %s382, 4
        %s384 = scalar_lea.vmem %s0, %s383
        %s385 = smul.u32 16, %s25
      $region32: #{tpu_custom_call.1} parent=27 // pred_fallthru
        _
      // Predicated region
      $region33: #{tpu_custom_call.1} parent=27 // pred_check
        %p386 = pneg %p79
      $region34: #{tpu_custom_call.1} parent=27 // pred_check_branch
        %388 = sbr.rel (%p386) target = $region36
      $region35: #{tpu_custom_call.1} parent=27 // pred_region
        %s389 = smul.u32 16, %s25
        %p390 = scmp.lt.s32.totalorder %s24, 1
        %s391 = scalar_select %p390, %s24, 1
        %p392 = scmp.lt.s32.totalorder %s389, 15
        %s393 = scalar_select %p392, %s389, 15
        %s394 = smul.addr %s393, 3
        %s395 = smul.addr %s391, 48
        %s396 = sadd.s32 %s394, %s395
        %s397 = smul.addr %s396, 4
        %s398 = scalar_lea.vmem %s1, %s397
        %s399 = smul.u32 16, %s25
      $region36: #{tpu_custom_call.1} parent=27 // pred_fallthru
        _
      // Predicated region
      $region37: #{tpu_custom_call.1} parent=27 // pred_check
        %p400 = pneg %p107
      $region38: #{tpu_custom_call.1} parent=27 // pred_check_branch
        %402 = sbr.rel (%p400) target = $region40
      $region39: #{tpu_custom_call.1} parent=27 // pred_region
        %s403 = smul.u32 16, %s25
        %p404 = scmp.lt.s32.totalorder %s24, 1
        %s405 = scalar_select %p404, %s24, 1
        %p406 = scmp.lt.s32.totalorder %s403, 15
        %s407 = scalar_select %p406, %s403, 15
        %s408 = smul.addr %s407, 3
        %s409 = smul.addr %s405, 48
        %s410 = sadd.s32 %s408, %s409
        %s411 = smul.addr %s410, 4
        %s412 = scalar_lea.vmem %s2, %s411
        %s413 = smul.u32 16, %s25
      $region40: #{tpu_custom_call.1} parent=27 // pred_fallthru
        _
      // Predicated region
      $region41: #{tpu_custom_call.1} parent=27 // pred_check
        %p414 = pneg %p135
      $region42: #{tpu_custom_call.1} parent=27 // pred_check_branch
        %416 = sbr.rel (%p414) target = $region44
      $region43: #{tpu_custom_call.1} parent=27 // pred_region
        %s417 = smul.u32 16, %s25
        %p418 = scmp.lt.s32.totalorder %s24, 1
        %s419 = scalar_select %p418, %s24, 1
        %p420 = scmp.lt.s32.totalorder %s417, 15
        %s421 = scalar_select %p420, %s417, 15
        %s422 = smul.addr %s421, 3
        %s423 = smul.addr %s419, 48
        %s424 = sadd.s32 %s422, %s423
        %s425 = smul.addr %s424, 4
        %s426 = scalar_lea.vmem %s3, %s425
        %s427 = smul.u32 16, %s25
      $region44: #{tpu_custom_call.1} parent=27 // pred_fallthru
        _
      // Predicated region
      $region45: #{tpu_custom_call.1} parent=27 // pred_check
        %p428 = pneg %p163
      $region46: #{tpu_custom_call.1} parent=27 // pred_check_branch
        %430 = sbr.rel (%p428) target = $region48
      $region47: #{tpu_custom_call.1} parent=27 // pred_region
        %s431 = smul.u32 16, %s25
        %p432 = scmp.lt.s32.totalorder %s24, 1
        %s433 = scalar_select %p432, %s24, 1
        %p434 = scmp.lt.s32.totalorder %s431, 15
        %s435 = scalar_select %p434, %s431, 15
        %s436 = smul.addr %s435, 3
        %s437 = smul.addr %s433, 48
        %s438 = sadd.s32 %s436, %s437
        %s439 = smul.addr %s438, 4
        %s440 = scalar_lea.vmem %s4, %s439
        %s441 = smul.u32 16, %s25
      $region48: #{tpu_custom_call.1} parent=27 // pred_fallthru
        _
      // Predicated region
      $region49: #{tpu_custom_call.1} parent=27 // pred_check
        %p442 = pneg %p191
      $region50: #{tpu_custom_call.1} parent=27 // pred_check_branch
        %444 = sbr.rel (%p442) target = $region52
      $region51: #{tpu_custom_call.1} parent=27 // pred_region
        %s445 = smul.u32 16, %s25
        %p446 = scmp.lt.s32.totalorder %s24, 1
        %s447 = scalar_select %p446, %s24, 1
        %p448 = scmp.lt.s32.totalorder %s445, 15
        %s449 = scalar_select %p448, %s445, 15
        %s450 = smul.addr %s449, 3
        %s451 = smul.addr %s447, 48
        %s452 = sadd.s32 %s450, %s451
        %s453 = smul.addr %s452, 4
        %s454 = scalar_lea.vmem %s5, %s453
        %s455 = smul.u32 16, %s25
      $region52: #{tpu_custom_call.1} parent=27 // pred_fallthru
        _
      // Predicated region
      $region53: #{tpu_custom_call.1} parent=27 // pred_check
        %p456 = pneg %p219
      $region54: #{tpu_custom_call.1} parent=27 // pred_check_branch
        %458 = sbr.rel (%p456) target = $region56
      $region55: #{tpu_custom_call.1} parent=27 // pred_region
        %s459 = smul.u32 16, %s25
        %p460 = scmp.lt.s32.totalorder %s24, 1
        %s461 = scalar_select %p460, %s24, 1
        %p462 = scmp.lt.s32.totalorder %s459, 15
        %s463 = scalar_select %p462, %s459, 15
        %s464 = smul.addr %s463, 3
        %s465 = smul.addr %s461, 48
        %s466 = sadd.s32 %s464, %s465
        %s467 = smul.addr %s466, 4
        %s468 = scalar_lea.vmem %s6, %s467
        %s469 = smul.u32 16, %s25
      $region56: #{tpu_custom_call.1} parent=27 // pred_fallthru
        _
      // Predicated region
      $region57: #{tpu_custom_call.1} parent=27 // pred_check
        %p470 = pneg %p247
      $region58: #{tpu_custom_call.1} parent=27 // pred_check_branch
        %472 = sbr.rel (%p470) target = $region60
      $region59: #{tpu_custom_call.1} parent=27 // pred_region
        %s473 = smul.u32 16, %s25
        %p474 = scmp.lt.s32.totalorder %s24, 1
        %s475 = scalar_select %p474, %s24, 1
        %p476 = scmp.lt.s32.totalorder %s473, 15
        %s477 = scalar_select %p476, %s473, 15
        %s478 = smul.addr %s477, 3
        %s479 = smul.addr %s475, 48
        %s480 = sadd.s32 %s478, %s479
        %s481 = smul.addr %s480, 4
        %s482 = scalar_lea.vmem %s7, %s481
        %s483 = smul.u32 16, %s25
      $region60: #{tpu_custom_call.1} parent=27 // pred_fallthru
        _
    $region28: #{tpu_custom_call.1} parent=5 // pred_fallthru
      _
    %p484 = scmp.le.s32.totalorder 1, %s17
    %p485 = scmp.lt.s32.totalorder %s17, 3
    %p486 = pnand %p484, %p485
    %p487 = pneg %p486
    // Predicated region
    $region61: #{tpu_custom_call.1} parent=5 // pred_check
      _
    $region62: #{tpu_custom_call.1} parent=5 // pred_check_branch
      %489 = sbr.rel (%p486) target = $region64
    $region63: #{tpu_custom_call.1} parent=5 // pred_region
      %s490 = ssub.s32 %s17, 1
      %s491 = smul.u32 16, %s27
      %p492 = scmp.lt.s32.totalorder %s26, 1
      %s493 = scalar_select %p492, %s26, 1
      %p494 = scmp.lt.s32.totalorder %s491, 15
      %s495 = scalar_select %p494, %s491, 15
      %s496 = smul.addr %s495, 3
      %s497 = smul.addr %s493, 48
      %s498 = sadd.s32 %s496, %s497
      %s499 = smul.addr %s498, 4
      %s500 = scalar_lea.vmem %s0, %s499
      %p501 = pneg %p57
      %p502 = pneg %p54
      %s503 = smul.u32 16, %s27
      %p504 = scmp.lt.s32.totalorder %s26, 1
      %s505 = scalar_select %p504, %s26, 1
      %p506 = scmp.lt.s32.totalorder %s503, 15
      %s507 = scalar_select %p506, %s503, 15
      %s508 = smul.addr %s507, 3
      %s509 = smul.addr %s505, 48
      %s510 = sadd.s32 %s508, %s509
      %s511 = smul.addr %s510, 4
      %s512 = scalar_lea.vmem %s1, %s511
      %p513 = pneg %p85
      %p514 = pneg %p82
      %s515 = smul.u32 16, %s27
      %p516 = scmp.lt.s32.totalorder %s26, 1
      %s517 = scalar_select %p516, %s26, 1
      %p518 = scmp.lt.s32.totalorder %s515, 15
      %s519 = scalar_select %p518, %s515, 15
      %s520 = smul.addr %s519, 3
      %s521 = smul.addr %s517, 48
      %s522 = sadd.s32 %s520, %s521
      %s523 = smul.addr %s522, 4
      %s524 = scalar_lea.vmem %s2, %s523
      %p525 = pneg %p113
      %p526 = pneg %p110
      %s527 = smul.u32 16, %s27
      %p528 = scmp.lt.s32.totalorder %s26, 1
      %s529 = scalar_select %p528, %s26, 1
      %p530 = scmp.lt.s32.totalorder %s527, 15
      %s531 = scalar_select %p530, %s527, 15
      %s532 = smul.addr %s531, 3
      %s533 = smul.addr %s529, 48
      %s534 = sadd.s32 %s532, %s533
      %s535 = smul.addr %s534, 4
      %s536 = scalar_lea.vmem %s3, %s535
      %p537 = pneg %p141
      %p538 = pneg %p138
      %s539 = smul.u32 16, %s27
      %p540 = scmp.lt.s32.totalorder %s26, 1
      %s541 = scalar_select %p540, %s26, 1
      %p542 = scmp.lt.s32.totalorder %s539, 15
      %s543 = scalar_select %p542, %s539, 15
      %s544 = smul.addr %s543, 3
      %s545 = smul.addr %s541, 48
      %s546 = sadd.s32 %s544, %s545
      %s547 = smul.addr %s546, 4
      %s548 = scalar_lea.vmem %s4, %s547
      %p549 = pneg %p169
      %p550 = pneg %p166
      %s551 = smul.u32 16, %s27
      %p552 = scmp.lt.s32.totalorder %s26, 1
      %s553 = scalar_select %p552, %s26, 1
      %p554 = scmp.lt.s32.totalorder %s551, 15
      %s555 = scalar_select %p554, %s551, 15
      %s556 = smul.addr %s555, 3
      %s557 = smul.addr %s553, 48
      %s558 = sadd.s32 %s556, %s557
      %s559 = smul.addr %s558, 4
      %s560 = scalar_lea.vmem %s5, %s559
      %p561 = pneg %p197
      %p562 = pneg %p194
      %s563 = smul.u32 16, %s27
      %p564 = scmp.lt.s32.totalorder %s26, 1
      %s565 = scalar_select %p564, %s26, 1
      %p566 = scmp.lt.s32.totalorder %s563, 15
      %s567 = scalar_select %p566, %s563, 15
      %s568 = smul.addr %s567, 3
      %s569 = smul.addr %s565, 48
      %s570 = sadd.s32 %s568, %s569
      %s571 = smul.addr %s570, 4
      %s572 = scalar_lea.vmem %s6, %s571
      %p573 = pneg %p225
      %p574 = pneg %p222
      %s575 = smul.u32 16, %s27
      %p576 = scmp.lt.s32.totalorder %s26, 1
      %s577 = scalar_select %p576, %s26, 1
      %p578 = scmp.lt.s32.totalorder %s575, 15
      %s579 = scalar_select %p578, %s575, 15
      %s580 = smul.addr %s579, 3
      %s581 = smul.addr %s577, 48
      %s582 = sadd.s32 %s580, %s581
      %s583 = smul.addr %s582, 4
      %s584 = scalar_lea.vmem %s7, %s583
      %p585 = pneg %p253
      %p586 = pneg %p250
      %p587 = pneg %p274
      %p588 = pneg %p271
      %p589 = pneg %p295
      %p590 = pneg %p292
      %p591 = pneg %p316
      %p592 = pneg %p313
      %p593 = pneg %p344
      %p594 = pneg %p341
      %s595 = smul.u32 16, %s27
      %p596 = scmp.lt.s32.totalorder %s26, 1
      %s597 = scalar_select %p596, %s26, 1
      %p598 = scmp.lt.s32.totalorder %s595, 15
      %s599 = scalar_select %p598, %s595, 15
      %s600 = smul.addr %s599, 2
      %s601 = smul.addr %s597, 32
      %s602 = sadd.s32 %s600, %s601
      %s603 = smul.addr %s602, 8
      %s604 = scalar_lea.vmem %s11, %s603
      %s605 = smul.u32 16, %s27
      %p606 = scmp.lt.s32.totalorder %s26, 1
      %s607 = scalar_select %p606, %s26, 1
      %p608 = scmp.lt.s32.totalorder %s605, 15
      %s609 = scalar_select %p608, %s605, 15
      %s610 = smul.addr %s609, 3
      %s611 = smul.addr %s607, 48
      %s612 = sadd.s32 %s610, %s611
      %s613 = smul.addr %s612, 4
      %s614 = scalar_lea.vmem %s0, %s613
      %s615 = smul.u32 16, %s27
      %s616 = smul.u32 16, %s27
      %p617 = scmp.lt.s32.totalorder %s26, 1
      %s618 = scalar_select %p617, %s26, 1
      %p619 = scmp.lt.s32.totalorder %s616, 15
      %s620 = scalar_select %p619, %s616, 15
      %s621 = smul.addr %s620, 3
      %s622 = smul.addr %s618, 48
      %s623 = sadd.s32 %s621, %s622
      %s624 = smul.addr %s623, 4
      %s625 = scalar_lea.vmem %s1, %s624
      %s626 = smul.u32 16, %s27
      %s627 = smul.u32 16, %s27
      %p628 = scmp.lt.s32.totalorder %s26, 1
      %s629 = scalar_select %p628, %s26, 1
      %p630 = scmp.lt.s32.totalorder %s627, 15
      %s631 = scalar_select %p630, %s627, 15
      %s632 = smul.addr %s631, 3
      %s633 = smul.addr %s629, 48
      %s634 = sadd.s32 %s632, %s633
      %s635 = smul.addr %s634, 4
      %s636 = scalar_lea.vmem %s2, %s635
      %s637 = smul.u32 16, %s27
      %s638 = smul.u32 16, %s27
      %p639 = scmp.lt.s32.totalorder %s26, 1
      %s640 = scalar_select %p639, %s26, 1
      %p641 = scmp.lt.s32.totalorder %s638, 15
      %s642 = scalar_select %p641, %s638, 15
      %s643 = smul.addr %s642, 3
      %s644 = smul.addr %s640, 48
      %s645 = sadd.s32 %s643, %s644
      %s646 = smul.addr %s645, 4
      %s647 = scalar_lea.vmem %s3, %s646
      %s648 = smul.u32 16, %s27
      %s649 = smul.u32 16, %s27
      %p650 = scmp.lt.s32.totalorder %s26, 1
      %s651 = scalar_select %p650, %s26, 1
      %p652 = scmp.lt.s32.totalorder %s649, 15
      %s653 = scalar_select %p652, %s649, 15
      %s654 = smul.addr %s653, 3
      %s655 = smul.addr %s651, 48
      %s656 = sadd.s32 %s654, %s655
      %s657 = smul.addr %s656, 4
      %s658 = scalar_lea.vmem %s4, %s657
      %s659 = smul.u32 16, %s27
      %s660 = smul.u32 16, %s27
      %p661 = scmp.lt.s32.totalorder %s26, 1
      %s662 = scalar_select %p661, %s26, 1
      %p663 = scmp.lt.s32.totalorder %s660, 15
      %s664 = scalar_select %p663, %s660, 15
      %s665 = smul.addr %s664, 3
      %s666 = smul.addr %s662, 48
      %s667 = sadd.s32 %s665, %s666
      %s668 = smul.addr %s667, 4
      %s669 = scalar_lea.vmem %s5, %s668
      %s670 = smul.u32 16, %s27
      %s671 = smul.u32 16, %s27
      %p672 = scmp.lt.s32.totalorder %s26, 1
      %s673 = scalar_select %p672, %s26, 1
      %p674 = scmp.lt.s32.totalorder %s671, 15
      %s675 = scalar_select %p674, %s671, 15
      %s676 = smul.addr %s675, 3
      %s677 = smul.addr %s673, 48
      %s678 = sadd.s32 %s676, %s677
      %s679 = smul.addr %s678, 4
      %s680 = scalar_lea.vmem %s6, %s679
      %s681 = smul.u32 16, %s27
      %s682 = smul.u32 16, %s27
      %p683 = scmp.lt.s32.totalorder %s26, 1
      %s684 = scalar_select %p683, %s26, 1
      %p685 = scmp.lt.s32.totalorder %s682, 15
      %s686 = scalar_select %p685, %s682, 15
      %s687 = smul.addr %s686, 3
      %s688 = smul.addr %s684, 48
      %s689 = sadd.s32 %s687, %s688
      %s690 = smul.addr %s689, 4
      %s691 = scalar_lea.vmem %s7, %s690
      %s692 = smul.u32 16, %s27
      %s693 = smul.u32 16, %s27
      %p694 = scmp.lt.s32.totalorder %s26, 1
      %s695 = scalar_select %p694, %s26, 1
      %p696 = scmp.lt.s32.totalorder %s693, 15
      %s697 = scalar_select %p696, %s693, 15
      %s698 = smul.addr %s697, 2
      %s699 = smul.addr %s695, 32
      %s700 = sadd.s32 %s698, %s699
      %s701 = smul.addr %s700, 8
      %s702 = scalar_lea.vmem %s11, %s701
      %s703 = smul.u32 16, %s27
      %v705 = vld [vmem:[%s9] sm:$0x1]
      %v707 = vlaneseq
      %v708 = vshrl.u32 %v707, 7
      %v709 = vsub.s32 0, %v708
      %v710 = vrot.slane %v705, %v709
      %v712 = vld [vmem:[%s10] sm:$0x1]
      %v714 = vlaneseq
      %v715 = vshrl.u32 %v714, 7
      %v716 = vsub.s32 0, %v715
      %v717 = vrot.slane %v712, %v716
      %v719 = vld [vmem:[%s614] sm:$0xf]
      %v720 = vld [vmem:[%s614 + $0x4] sm:$0xf]
      %v721 = vld [vmem:[%s625] sm:$0xf]
      %v722 = vld [vmem:[%s625 + $0x4] sm:$0xf]
      %v723 = vld [vmem:[%s614 + $0x8] sm:$0x1]
      %v724 = vld [vmem:[%s625 + $0x8] sm:$0x1]
      %v727 = vunpack.c.l.b16 %v719
      %v728 = vunpack.c.l.b16 %v720
      %v729 = vpack.c.b16 %v728, %v727
      %v732 = vunpack.c.l.b16 %v721
      %v733 = vunpack.c.l.b16 %v722
      %v734 = vpack.c.b16 %v733, %v732
      %735 = vrot.lane.b32.xlu0 %v734, 4
      %v736 = vpop.permute.xlu0 %735
      %v738 = vunpack.c.l.b16 %v723
      %v739 = vpack.c.b16 %v738, %v738
      %vm740 = vsmask.f32 7424
      %v742 = vshrl.u32 %v729, 16
      %v744 = vshll.u32 %v729, 16
      %v746 = vrot.slane %v744, 1
      %v747 = vor.u32 %v742, %v746
      %v749 = vshll.u32 %v739, 16
      %v751 = vrot.slane %v749, 1
      %v752 = vsel %vm740, %v747, %v751
      %753 = vrot.lane.b32.xlu0 %v752, 8
      %v754 = vpop.permute.xlu0 %753
      %v756 = vunpack.c.l.b16 %v724
      %v757 = vpack.c.b16 %v756, %v756
      %v759 = vshrl.u32 %v734, 16
      %v761 = vshll.u32 %v734, 16
      %v763 = vrot.slane %v761, 1
      %v764 = vor.u32 %v759, %v763
      %v766 = vshll.u32 %v757, 16
      %v768 = vrot.slane %v766, 1
      %v769 = vsel %vm740, %v764, %v768
      %770 = vrot.lane.b32.xlu0 %v769, 12
      %v771 = vpop.permute.xlu0 %770
      %vm772 = vcmask 31744
      %v774 = vsel %vm772, %v729, %v736
      %vm775 = vcmask 64512
      %v777 = vsel %vm775, %v774, %v754
      %vm778 = vcmask 97280
      %v780 = vsel %vm778, %v777, %v771
      %v781 = vld [vmem:[%s8] sm:$0xf]
      %v782 = vld [vmem:[%s8 + $0x4] sm:$0xf]
      %v783 = vld [vmem:[%s636] sm:$0xf]
      %v784 = vld [vmem:[%s636 + $0x4] sm:$0xf]
      %v785 = vld [vmem:[%s647] sm:$0xf]
      %v786 = vld [vmem:[%s647 + $0x4] sm:$0xf]
      %v787 = vld [vmem:[%s636 + $0x8] sm:$0x1]
      %v788 = vld [vmem:[%s647 + $0x8] sm:$0x1]
      %v791 = vunpack.c.l.b16 %v783
      %v792 = vunpack.c.l.b16 %v784
      %v793 = vpack.c.b16 %v792, %v791
      %v796 = vunpack.c.l.b16 %v785
      %v797 = vunpack.c.l.b16 %v786
      %v798 = vpack.c.b16 %v797, %v796
      %799 = vrot.lane.b32.xlu0 %v798, 4
      %v800 = vpop.permute.xlu0 %799
      %v802 = vunpack.c.l.b16 %v787
      %v803 = vpack.c.b16 %v802, %v802
      %v805 = vshrl.u32 %v793, 16
      %v807 = vshll.u32 %v793, 16
      %v809 = vrot.slane %v807, 1
      %v810 = vor.u32 %v805, %v809
      %v812 = vshll.u32 %v803, 16
      %v814 = vrot.slane %v812, 1
      %v815 = vsel %vm740, %v810, %v814
      %816 = vrot.lane.b32.xlu0 %v815, 8
      %v817 = vpop.permute.xlu0 %816
      %v819 = vunpack.c.l.b16 %v788
      %v820 = vpack.c.b16 %v819, %v819
      %v822 = vshrl.u32 %v798, 16
      %v824 = vshll.u32 %v798, 16
      %v826 = vrot.slane %v824, 1
      %v827 = vor.u32 %v822, %v826
      %v829 = vshll.u32 %v820, 16
      %v831 = vrot.slane %v829, 1
      %v832 = vsel %vm740, %v827, %v831
      %833 = vrot.lane.b32.xlu0 %v832, 12
      %v834 = vpop.permute.xlu0 %833
      %v836 = vsel %vm772, %v793, %v800
      %v838 = vsel %vm775, %v836, %v817
      %v840 = vsel %vm778, %v838, %v834
      %s841 = scalar_lea.vmem %s8, 8
      %v842 = vld [vmem:[%s841] sm:$0xf]
      %v843 = vld [vmem:[%s841 + $0x4] sm:$0xf]
      %v846 = vunpack.c.l.b16 %v842
      %v847 = vunpack.c.l.b16 %v843
      %v848 = vpack.c.b16 %v847, %v846
      %vm850 = vcmask 130048
      %v851 = vsel %vm850, %v840, 0
      %853 = vmatprep.subr.bf16.mxu0 0
      %854 = vmatpush1.bf16.msra.mxu0 0
      %855 = vmatprep.subr.bf16.mxu0 0
      %856 = vmatpush1.bf16.msra.mxu0 0
      %857 = vmatprep.subr.bf16.mxu0 0
      %858 = vmatpush1.bf16.msra.mxu0 0
      %859 = vmatprep.subr.bf16.mxu0 0
      %860 = vmatpush1.bf16.msra.mxu0 0
      %861 = vmatprep.subr.bf16.mxu0 0
      %862 = vmatpush1.bf16.msra.mxu0 0
      %863 = vmatprep.subr.bf16.mxu0 0
      %864 = vmatpush1.bf16.msra.mxu0 0
      %865 = vmatprep.subr.bf16.mxu0 0
      %866 = vmatpush1.bf16.msra.mxu0 0
      %867 = vmatprep.subr.bf16.mxu0 0
      %868 = vmatpush1.bf16.msra.mxu0 %v848
      %869 = vmatprep.subr.bf16.mxu0 0
      %870 = vmatpush2.bf16.msra.mxu0 0
      %871 = vmatprep.subr.bf16.mxu0 0
      %872 = vmatpush2.bf16.msra.mxu0 0
      %873 = vmatprep.subr.bf16.mxu0 0
      %874 = vmatpush2.bf16.msra.mxu0 0
      %875 = vmatprep.subr.bf16.mxu0 0
      %876 = vmatpush2.bf16.msra.mxu0 0
      %877 = vmatprep.subr.bf16.mxu0 0
      %878 = vmatpush2.bf16.msra.mxu0 0
      %879 = vmatprep.subr.bf16.mxu0 0
      %880 = vmatpush2.bf16.msra.mxu0 0
      %881 = vmatprep.subr.bf16.mxu0 0
      %882 = vmatpush2.bf16.msra.mxu0 0
      %883 = vmatprep.subr.bf16.mxu0 0
      %884 = vmatpush2.bf16.msra.mxu0 0
      %885 = vmatprep.mubr.bf16.mxu0 0
      %886 = vmatmul.mubr.bf16.gmra.mxu0 %v851
      %v887 = vpop.f32.mrf.mxu0
      %v888 = vadd.f32 0.0, %v887
      %v889 = vpop.f32.mrf.mxu0
      %v890 = vpop.f32.mrf.mxu0
      %v891 = vadd.f32 0.0, %v890
      %v892 = vpop.f32.mrf.mxu0
      %893 = vdwg.mxu0
      %v896 = vunpack.c.l.b16 %v781
      %v897 = vunpack.c.l.b16 %v782
      %v898 = vpack.c.b16 %v897, %v896
      %v900 = vsel %vm850, %v780, 0
      %902 = vmatprep.subr.bf16.mxu0 0
      %903 = vmatpush1.bf16.msra.mxu0 0
      %904 = vmatprep.subr.bf16.mxu0 0
      %905 = vmatpush1.bf16.msra.mxu0 0
      %906 = vmatprep.subr.bf16.mxu0 0
      %907 = vmatpush1.bf16.msra.mxu0 0
      %908 = vmatprep.subr.bf16.mxu0 0
      %909 = vmatpush1.bf16.msra.mxu0 0
      %910 = vmatprep.subr.bf16.mxu0 0
      %911 = vmatpush1.bf16.msra.mxu0 0
      %912 = vmatprep.subr.bf16.mxu0 0
      %913 = vmatpush1.bf16.msra.mxu0 0
      %914 = vmatprep.subr.bf16.mxu0 0
      %915 = vmatpush1.bf16.msra.mxu0 0
      %916 = vmatprep.subr.bf16.mxu0 0
      %917 = vmatpush1.bf16.msra.mxu0 %v898
      %918 = vmatprep.subr.bf16.mxu0 0
      %919 = vmatpush2.bf16.msra.mxu0 0
      %920 = vmatprep.subr.bf16.mxu0 0
      %921 = vmatpush2.bf16.msra.mxu0 0
      %922 = vmatprep.subr.bf16.mxu0 0
      %923 = vmatpush2.bf16.msra.mxu0 0
      %924 = vmatprep.subr.bf16.mxu0 0
      %925 = vmatpush2.bf16.msra.mxu0 0
      %926 = vmatprep.subr.bf16.mxu0 0
      %927 = vmatpush2.bf16.msra.mxu0 0
      %928 = vmatprep.subr.bf16.mxu0 0
      %929 = vmatpush2.bf16.msra.mxu0 0
      %930 = vmatprep.subr.bf16.mxu0 0
      %931 = vmatpush2.bf16.msra.mxu0 0
      %932 = vmatprep.subr.bf16.mxu0 0
      %933 = vmatpush2.bf16.msra.mxu0 0
      %934 = vmatprep.mubr.bf16.mxu0 0
      %935 = vmatmul.mubr.bf16.gmra.mxu0 %v900
      %v936 = vpop.f32.mrf.mxu0
      %v937 = vadd.f32 %v888, %v936
      %v938 = vpop.f32.mrf.mxu0
      %v939 = vpop.f32.mrf.mxu0
      %v940 = vadd.f32 %v891, %v939
      %v941 = vpop.f32.mrf.mxu0
      %942 = vdwg.mxu0
      %v943 = vld [vmem:[%s658] sm:$0xf]
      %v944 = vld [vmem:[%s658 + $0x4] sm:$0xf]
      %v945 = vld [vmem:[%s669] sm:$0xf]
      %v946 = vld [vmem:[%s669 + $0x4] sm:$0xf]
      %v947 = vld [vmem:[%s658 + $0x8] sm:$0x1]
      %v948 = vld [vmem:[%s669 + $0x8] sm:$0x1]
      %v951 = vunpack.c.l.b16 %v943
      %v952 = vunpack.c.l.b16 %v944
      %v953 = vpack.c.b16 %v952, %v951
      %v956 = vunpack.c.l.b16 %v945
      %v957 = vunpack.c.l.b16 %v946
      %v958 = vpack.c.b16 %v957, %v956
      %959 = vrot.lane.b32.xlu0 %v958, 4
      %v960 = vpop.permute.xlu0 %959
      %v962 = vunpack.c.l.b16 %v947
      %v963 = vpack.c.b16 %v962, %v962
      %v965 = vshrl.u32 %v953, 16
      %v967 = vshll.u32 %v953, 16
      %v969 = vrot.slane %v967, 1
      %v970 = vor.u32 %v965, %v969
      %v972 = vshll.u32 %v963, 16
      %v974 = vrot.slane %v972, 1
      %v975 = vsel %vm740, %v970, %v974
      %976 = vrot.lane.b32.xlu0 %v975, 8
      %v977 = vpop.permute.xlu0 %976
      %v979 = vunpack.c.l.b16 %v948
      %v980 = vpack.c.b16 %v979, %v979
      %v982 = vshrl.u32 %v958, 16
      %v984 = vshll.u32 %v958, 16
      %v986 = vrot.slane %v984, 1
      %v987 = vor.u32 %v982, %v986
      %v989 = vshll.u32 %v980, 16
      %v991 = vrot.slane %v989, 1
      %v992 = vsel %vm740, %v987, %v991
      %993 = vrot.lane.b32.xlu0 %v992, 12
      %v994 = vpop.permute.xlu0 %993
      %v996 = vsel %vm772, %v953, %v960
      %v998 = vsel %vm775, %v996, %v977
      %v1000 = vsel %vm778, %v998, %v994
      %s1001 = scalar_lea.vmem %s8, 16
      %v1002 = vld [vmem:[%s1001] sm:$0xf]
      %v1003 = vld [vmem:[%s1001 + $0x4] sm:$0xf]
      %v1006 = vunpack.c.l.b16 %v1002
      %v1007 = vunpack.c.l.b16 %v1003
      %v1008 = vpack.c.b16 %v1007, %v1006
      %v1010 = vsel %vm850, %v1000, 0
      %1012 = vmatprep.subr.bf16.mxu0 0
      %1013 = vmatpush1.bf16.msra.mxu0 0
      %1014 = vmatprep.subr.bf16.mxu0 0
      %1015 = vmatpush1.bf16.msra.mxu0 0
      %1016 = vmatprep.subr.bf16.mxu0 0
      %1017 = vmatpush1.bf16.msra.mxu0 0
      %1018 = vmatprep.subr.bf16.mxu0 0
      %1019 = vmatpush1.bf16.msra.mxu0 0
      %1020 = vmatprep.subr.bf16.mxu0 0
      %1021 = vmatpush1.bf16.msra.mxu0 0
      %1022 = vmatprep.subr.bf16.mxu0 0
      %1023 = vmatpush1.bf16.msra.mxu0 0
      %1024 = vmatprep.subr.bf16.mxu0 0
      %1025 = vmatpush1.bf16.msra.mxu0 0
      %1026 = vmatprep.subr.bf16.mxu0 0
      %1027 = vmatpush1.bf16.msra.mxu0 %v1008
      %1028 = vmatprep.subr.bf16.mxu0 0
      %1029 = vmatpush2.bf16.msra.mxu0 0
      %1030 = vmatprep.subr.bf16.mxu0 0
      %1031 = vmatpush2.bf16.msra.mxu0 0
      %1032 = vmatprep.subr.bf16.mxu0 0
      %1033 = vmatpush2.bf16.msra.mxu0 0
      %1034 = vmatprep.subr.bf16.mxu0 0
      %1035 = vmatpush2.bf16.msra.mxu0 0
      %1036 = vmatprep.subr.bf16.mxu0 0
      %1037 = vmatpush2.bf16.msra.mxu0 0
      %1038 = vmatprep.subr.bf16.mxu0 0
      %1039 = vmatpush2.bf16.msra.mxu0 0
      %1040 = vmatprep.subr.bf16.mxu0 0
      %1041 = vmatpush2.bf16.msra.mxu0 0
      %1042 = vmatprep.subr.bf16.mxu0 0
      %1043 = vmatpush2.bf16.msra.mxu0 0
      %1044 = vmatprep.mubr.bf16.mxu0 0
      %1045 = vmatmul.mubr.bf16.gmra.mxu0 %v1010
      %v1046 = vpop.f32.mrf.mxu0
      %v1047 = vadd.f32 0.0, %v1046
      %v1048 = vpop.f32.mrf.mxu0
      %v1049 = vpop.f32.mrf.mxu0
      %v1050 = vadd.f32 0.0, %v1049
      %v1051 = vpop.f32.mrf.mxu0
      %1052 = vdwg.mxu0
      %v1053 = vadd.f32 %v937, %v1047
      %v1054 = vadd.f32 %v940, %v1050
      %v1055 = vld [vmem:[%s680] sm:$0xf]
      %v1056 = vld [vmem:[%s680 + $0x4] sm:$0xf]
      %v1057 = vld [vmem:[%s691] sm:$0xf]
      %v1058 = vld [vmem:[%s691 + $0x4] sm:$0xf]
      %v1059 = vld [vmem:[%s680 + $0x8] sm:$0x1]
      %v1060 = vld [vmem:[%s691 + $0x8] sm:$0x1]
      %v1063 = vunpack.c.l.b16 %v1055
      %v1064 = vunpack.c.l.b16 %v1056
      %v1065 = vpack.c.b16 %v1064, %v1063
      %v1068 = vunpack.c.l.b16 %v1057
      %v1069 = vunpack.c.l.b16 %v1058
      %v1070 = vpack.c.b16 %v1069, %v1068
      %1071 = vrot.lane.b32.xlu0 %v1070, 4
      %v1072 = vpop.permute.xlu0 %1071
      %v1074 = vunpack.c.l.b16 %v1059
      %v1075 = vpack.c.b16 %v1074, %v1074
      %v1077 = vshrl.u32 %v1065, 16
      %v1079 = vshll.u32 %v1065, 16
      %v1081 = vrot.slane %v1079, 1
      %v1082 = vor.u32 %v1077, %v1081
      %v1084 = vshll.u32 %v1075, 16
      %v1086 = vrot.slane %v1084, 1
      %v1087 = vsel %vm740, %v1082, %v1086
      %1088 = vrot.lane.b32.xlu0 %v1087, 8
      %v1089 = vpop.permute.xlu0 %1088
      %v1091 = vunpack.c.l.b16 %v1060
      %v1092 = vpack.c.b16 %v1091, %v1091
      %v1094 = vshrl.u32 %v1070, 16
      %v1096 = vshll.u32 %v1070, 16
      %v1098 = vrot.slane %v1096, 1
      %v1099 = vor.u32 %v1094, %v1098
      %v1101 = vshll.u32 %v1092, 16
      %v1103 = vrot.slane %v1101, 1
      %v1104 = vsel %vm740, %v1099, %v1103
      %1105 = vrot.lane.b32.xlu0 %v1104, 12
      %v1106 = vpop.permute.xlu0 %1105
      %v1108 = vsel %vm772, %v1065, %v1072
      %v1110 = vsel %vm775, %v1108, %v1089
      %v1112 = vsel %vm778, %v1110, %v1106
      %s1113 = scalar_lea.vmem %s8, 24
      %v1114 = vld [vmem:[%s1113] sm:$0xf]
      %v1115 = vld [vmem:[%s1113 + $0x4] sm:$0xf]
      %v1118 = vunpack.c.l.b16 %v1114
      %v1119 = vunpack.c.l.b16 %v1115
      %v1120 = vpack.c.b16 %v1119, %v1118
      %v1122 = vsel %vm850, %v1112, 0
      %1124 = vmatprep.subr.bf16.mxu0 0
      %1125 = vmatpush1.bf16.msra.mxu0 0
      %1126 = vmatprep.subr.bf16.mxu0 0
      %1127 = vmatpush1.bf16.msra.mxu0 0
      %1128 = vmatprep.subr.bf16.mxu0 0
      %1129 = vmatpush1.bf16.msra.mxu0 0
      %1130 = vmatprep.subr.bf16.mxu0 0
      %1131 = vmatpush1.bf16.msra.mxu0 0
      %1132 = vmatprep.subr.bf16.mxu0 0
      %1133 = vmatpush1.bf16.msra.mxu0 0
      %1134 = vmatprep.subr.bf16.mxu0 0
      %1135 = vmatpush1.bf16.msra.mxu0 0
      %1136 = vmatprep.subr.bf16.mxu0 0
      %1137 = vmatpush1.bf16.msra.mxu0 0
      %1138 = vmatprep.subr.bf16.mxu0 0
      %1139 = vmatpush1.bf16.msra.mxu0 %v1120
      %1140 = vmatprep.subr.bf16.mxu0 0
      %1141 = vmatpush2.bf16.msra.mxu0 0
      %1142 = vmatprep.subr.bf16.mxu0 0
      %1143 = vmatpush2.bf16.msra.mxu0 0
      %1144 = vmatprep.subr.bf16.mxu0 0
      %1145 = vmatpush2.bf16.msra.mxu0 0
      %1146 = vmatprep.subr.bf16.mxu0 0
      %1147 = vmatpush2.bf16.msra.mxu0 0
      %1148 = vmatprep.subr.bf16.mxu0 0
      %1149 = vmatpush2.bf16.msra.mxu0 0
      %1150 = vmatprep.subr.bf16.mxu0 0
      %1151 = vmatpush2.bf16.msra.mxu0 0
      %1152 = vmatprep.subr.bf16.mxu0 0
      %1153 = vmatpush2.bf16.msra.mxu0 0
      %1154 = vmatprep.subr.bf16.mxu0 0
      %1155 = vmatpush2.bf16.msra.mxu0 0
      %1156 = vmatprep.mubr.bf16.mxu0 0
      %1157 = vmatmul.mubr.bf16.gmra.mxu0 %v1122
      %v1158 = vpop.f32.mrf.mxu0
      %v1159 = vadd.f32 0.0, %v1158
      %v1160 = vpop.f32.mrf.mxu0
      %v1161 = vpop.f32.mrf.mxu0
      %v1162 = vadd.f32 0.0, %v1161
      %v1163 = vpop.f32.mrf.mxu0
      %1164 = vdwg.mxu0
      %v1165 = vadd.f32 %v1053, %v1159
      %v1166 = vadd.f32 %v1054, %v1162
      %v1167 = vmul.f32 %v1165, %v710
      %v1168 = vmul.f32 %v1166, %v710
      %v1169 = vadd.f32 %v1167, %v717
      %v1170 = vadd.f32 %v1168, %v717
      %vm1171 = vcmp.ge.f32.partialorder %v1169, 0.0
      %vm1172 = vcmp.ge.f32.partialorder %v1170, 0.0
      %v1173 = vmul.f32 %v1169, 0.2
      %v1174 = vmul.f32 %v1170, 0.2
      %v1175 = vsel %vm1171, %v1169, %v1173
      %v1176 = vsel %vm1172, %v1170, %v1174
      %1177 = vst.msk [vmem:[%s702] sm:$0xff] %vm775, %v1175
      %1178 = vst.msk [vmem:[%s702 + $0x8] sm:$0xff] %vm775, %v1176
      %s1179 = scalar_lea.vmem %s614, 12
      %v1180 = vld [vmem:[%s1179] sm:$0xf]
      %v1181 = vld [vmem:[%s1179 + $0x4] sm:$0xf]
      %s1182 = scalar_lea.vmem %s625, 12
      %v1183 = vld [vmem:[%s1182] sm:$0xf]
      %v1184 = vld [vmem:[%s1182 + $0x4] sm:$0xf]
      %v1185 = vld [vmem:[%s1179 + $0x8] sm:$0x1]
      %v1186 = vld [vmem:[%s1182 + $0x8] sm:$0x1]
      %v1189 = vunpack.c.l.b16 %v1180
      %v1190 = vunpack.c.l.b16 %v1181
      %v1191 = vpack.c.b16 %v1190, %v1189
      %v1194 = vunpack.c.l.b16 %v1183
      %v1195 = vunpack.c.l.b16 %v1184
      %v1196 = vpack.c.b16 %v1195, %v1194
      %1197 = vrot.lane.b32.xlu0 %v1196, 4
      %v1198 = vpop.permute.xlu0 %1197
      %v1200 = vunpack.c.l.b16 %v1185
      %v1201 = vpack.c.b16 %v1200, %v1200
      %v1203 = vshrl.u32 %v1191, 16
      %v1205 = vshll.u32 %v1191, 16
      %v1207 = vrot.slane %v1205, 1
      %v1208 = vor.u32 %v1203, %v1207
      %v1210 = vshll.u32 %v1201, 16
      %v1212 = vrot.slane %v1210, 1
      %v1213 = vsel %vm740, %v1208, %v1212
      %1214 = vrot.lane.b32.xlu0 %v1213, 8
      %v1215 = vpop.permute.xlu0 %1214
      %v1217 = vunpack.c.l.b16 %v1186
      %v1218 = vpack.c.b16 %v1217, %v1217
      %v1220 = vshrl.u32 %v1196, 16
      %v1222 = vshll.u32 %v1196, 16
      %v1224 = vrot.slane %v1222, 1
      %v1225 = vor.u32 %v1220, %v1224
      %v1227 = vshll.u32 %v1218, 16
      %v1229 = vrot.slane %v1227, 1
      %v1230 = vsel %vm740, %v1225, %v1229
      %1231 = vrot.lane.b32.xlu0 %v1230, 12
      %v1232 = vpop.permute.xlu0 %1231
      %v1234 = vsel %vm772, %v1191, %v1198
      %v1236 = vsel %vm775, %v1234, %v1215
      %v1238 = vsel %vm778, %v1236, %v1232
      %v1239 = vld [vmem:[%s8] sm:$0xf]
      %v1240 = vld [vmem:[%s8 + $0x4] sm:$0xf]
      %s1241 = scalar_lea.vmem %s636, 12
      %v1242 = vld [vmem:[%s1241] sm:$0xf]
      %v1243 = vld [vmem:[%s1241 + $0x4] sm:$0xf]
      %s1244 = scalar_lea.vmem %s647, 12
      %v1245 = vld [vmem:[%s1244] sm:$0xf]
      %v1246 = vld [vmem:[%s1244 + $0x4] sm:$0xf]
      %v1247 = vld [vmem:[%s1241 + $0x8] sm:$0x1]
      %v1248 = vld [vmem:[%s1244 + $0x8] sm:$0x1]
      %v1251 = vunpack.c.l.b16 %v1242
      %v1252 = vunpack.c.l.b16 %v1243
      %v1253 = vpack.c.b16 %v1252, %v1251
      %v1256 = vunpack.c.l.b16 %v1245
      %v1257 = vunpack.c.l.b16 %v1246
      %v1258 = vpack.c.b16 %v1257, %v1256
      %1259 = vrot.lane.b32.xlu0 %v1258, 4
      %v1260 = vpop.permute.xlu0 %1259
      %v1262 = vunpack.c.l.b16 %v1247
      %v1263 = vpack.c.b16 %v1262, %v1262
      %v1265 = vshrl.u32 %v1253, 16
      %v1267 = vshll.u32 %v1253, 16
      %v1269 = vrot.slane %v1267, 1
      %v1270 = vor.u32 %v1265, %v1269
      %v1272 = vshll.u32 %v1263, 16
      %v1274 = vrot.slane %v1272, 1
      %v1275 = vsel %vm740, %v1270, %v1274
      %1276 = vrot.lane.b32.xlu0 %v1275, 8
      %v1277 = vpop.permute.xlu0 %1276
      %v1279 = vunpack.c.l.b16 %v1248
      %v1280 = vpack.c.b16 %v1279, %v1279
      %v1282 = vshrl.u32 %v1258, 16
      %v1284 = vshll.u32 %v1258, 16
      %v1286 = vrot.slane %v1284, 1
      %v1287 = vor.u32 %v1282, %v1286
      %v1289 = vshll.u32 %v1280, 16
      %v1291 = vrot.slane %v1289, 1
      %v1292 = vsel %vm740, %v1287, %v1291
      %1293 = vrot.lane.b32.xlu0 %v1292, 12
      %v1294 = vpop.permute.xlu0 %1293
      %v1296 = vsel %vm772, %v1253, %v1260
      %v1298 = vsel %vm775, %v1296, %v1277
      %v1300 = vsel %vm778, %v1298, %v1294
      %v1301 = vld [vmem:[%s841] sm:$0xf]
      %v1302 = vld [vmem:[%s841 + $0x4] sm:$0xf]
      %v1305 = vunpack.c.l.b16 %v1301
      %v1306 = vunpack.c.l.b16 %v1302
      %v1307 = vpack.c.b16 %v1306, %v1305
      %v1309 = vsel %vm850, %v1300, 0
      %1311 = vmatprep.subr.bf16.mxu0 0
      %1312 = vmatpush1.bf16.msra.mxu0 0
      %1313 = vmatprep.subr.bf16.mxu0 0
      %1314 = vmatpush1.bf16.msra.mxu0 0
      %1315 = vmatprep.subr.bf16.mxu0 0
      %1316 = vmatpush1.bf16.msra.mxu0 0
      %1317 = vmatprep.subr.bf16.mxu0 0
      %1318 = vmatpush1.bf16.msra.mxu0 0
      %1319 = vmatprep.subr.bf16.mxu0 0
      %1320 = vmatpush1.bf16.msra.mxu0 0
      %1321 = vmatprep.subr.bf16.mxu0 0
      %1322 = vmatpush1.bf16.msra.mxu0 0
      %1323 = vmatprep.subr.bf16.mxu0 0
      %1324 = vmatpush1.bf16.msra.mxu0 0
      %1325 = vmatprep.subr.bf16.mxu0 0
      %1326 = vmatpush1.bf16.msra.mxu0 %v1307
      %1327 = vmatprep.subr.bf16.mxu0 0
      %1328 = vmatpush2.bf16.msra.mxu0 0
      %1329 = vmatprep.subr.bf16.mxu0 0
      %1330 = vmatpush2.bf16.msra.mxu0 0
      %1331 = vmatprep.subr.bf16.mxu0 0
      %1332 = vmatpush2.bf16.msra.mxu0 0
      %1333 = vmatprep.subr.bf16.mxu0 0
      %1334 = vmatpush2.bf16.msra.mxu0 0
      %1335 = vmatprep.subr.bf16.mxu0 0
      %1336 = vmatpush2.bf16.msra.mxu0 0
      %1337 = vmatprep.subr.bf16.mxu0 0
      %1338 = vmatpush2.bf16.msra.mxu0 0
      %1339 = vmatprep.subr.bf16.mxu0 0
      %1340 = vmatpush2.bf16.msra.mxu0 0
      %1341 = vmatprep.subr.bf16.mxu0 0
      %1342 = vmatpush2.bf16.msra.mxu0 0
      %1343 = vmatprep.mubr.bf16.mxu0 0
      %1344 = vmatmul.mubr.bf16.gmra.mxu0 %v1309
      %v1345 = vpop.f32.mrf.mxu0
      %v1346 = vadd.f32 0.0, %v1345
      %v1347 = vpop.f32.mrf.mxu0
      %v1348 = vpop.f32.mrf.mxu0
      %v1349 = vadd.f32 0.0, %v1348
      %v1350 = vpop.f32.mrf.mxu0
      %1351 = vdwg.mxu0
      %v1354 = vunpack.c.l.b16 %v1239
      %v1355 = vunpack.c.l.b16 %v1240
      %v1356 = vpack.c.b16 %v1355, %v1354
      %v1358 = vsel %vm850, %v1238, 0
      %1360 = vmatprep.subr.bf16.mxu0 0
      %1361 = vmatpush1.bf16.msra.mxu0 0
      %1362 = vmatprep.subr.bf16.mxu0 0
      %1363 = vmatpush1.bf16.msra.mxu0 0
      %1364 = vmatprep.subr.bf16.mxu0 0
      %1365 = vmatpush1.bf16.msra.mxu0 0
      %1366 = vmatprep.subr.bf16.mxu0 0
      %1367 = vmatpush1.bf16.msra.mxu0 0
      %1368 = vmatprep.subr.bf16.mxu0 0
      %1369 = vmatpush1.bf16.msra.mxu0 0
      %1370 = vmatprep.subr.bf16.mxu0 0
      %1371 = vmatpush1.bf16.msra.mxu0 0
      %1372 = vmatprep.subr.bf16.mxu0 0
      %1373 = vmatpush1.bf16.msra.mxu0 0
      %1374 = vmatprep.subr.bf16.mxu0 0
      %1375 = vmatpush1.bf16.msra.mxu0 %v1356
      %1376 = vmatprep.subr.bf16.mxu0 0
      %1377 = vmatpush2.bf16.msra.mxu0 0
      %1378 = vmatprep.subr.bf16.mxu0 0
      %1379 = vmatpush2.bf16.msra.mxu0 0
      %1380 = vmatprep.subr.bf16.mxu0 0
      %1381 = vmatpush2.bf16.msra.mxu0 0
      %1382 = vmatprep.subr.bf16.mxu0 0
      %1383 = vmatpush2.bf16.msra.mxu0 0
      %1384 = vmatprep.subr.bf16.mxu0 0
      %1385 = vmatpush2.bf16.msra.mxu0 0
      %1386 = vmatprep.subr.bf16.mxu0 0
      %1387 = vmatpush2.bf16.msra.mxu0 0
      %1388 = vmatprep.subr.bf16.mxu0 0
      %1389 = vmatpush2.bf16.msra.mxu0 0
      %1390 = vmatprep.subr.bf16.mxu0 0
      %1391 = vmatpush2.bf16.msra.mxu0 0
      %1392 = vmatprep.mubr.bf16.mxu0 0
      %1393 = vmatmul.mubr.bf16.gmra.mxu0 %v1358
      %v1394 = vpop.f32.mrf.mxu0
      %v1395 = vadd.f32 %v1346, %v1394
      %v1396 = vpop.f32.mrf.mxu0
      %v1397 = vpop.f32.mrf.mxu0
      %v1398 = vadd.f32 %v1349, %v1397
      %v1399 = vpop.f32.mrf.mxu0
      %1400 = vdwg.mxu0
      %s1401 = scalar_lea.vmem %s658, 12
      %v1402 = vld [vmem:[%s1401] sm:$0xf]
      %v1403 = vld [vmem:[%s1401 + $0x4] sm:$0xf]
      %s1404 = scalar_lea.vmem %s669, 12
      %v1405 = vld [vmem:[%s1404] sm:$0xf]
      %v1406 = vld [vmem:[%s1404 + $0x4] sm:$0xf]
      %v1407 = vld [vmem:[%s1401 + $0x8] sm:$0x1]
      %v1408 = vld [vmem:[%s1404 + $0x8] sm:$0x1]
      %v1411 = vunpack.c.l.b16 %v1402
      %v1412 = vunpack.c.l.b16 %v1403
      %v1413 = vpack.c.b16 %v1412, %v1411
      %v1416 = vunpack.c.l.b16 %v1405
      %v1417 = vunpack.c.l.b16 %v1406
      %v1418 = vpack.c.b16 %v1417, %v1416
      %1419 = vrot.lane.b32.xlu0 %v1418, 4
      %v1420 = vpop.permute.xlu0 %1419
      %v1422 = vunpack.c.l.b16 %v1407
      %v1423 = vpack.c.b16 %v1422, %v1422
      %v1425 = vshrl.u32 %v1413, 16
      %v1427 = vshll.u32 %v1413, 16
      %v1429 = vrot.slane %v1427, 1
      %v1430 = vor.u32 %v1425, %v1429
      %v1432 = vshll.u32 %v1423, 16
      %v1434 = vrot.slane %v1432, 1
      %v1435 = vsel %vm740, %v1430, %v1434
      %1436 = vrot.lane.b32.xlu0 %v1435, 8
      %v1437 = vpop.permute.xlu0 %1436
      %v1439 = vunpack.c.l.b16 %v1408
      %v1440 = vpack.c.b16 %v1439, %v1439
      %v1442 = vshrl.u32 %v1418, 16
      %v1444 = vshll.u32 %v1418, 16
      %v1446 = vrot.slane %v1444, 1
      %v1447 = vor.u32 %v1442, %v1446
      %v1449 = vshll.u32 %v1440, 16
      %v1451 = vrot.slane %v1449, 1
      %v1452 = vsel %vm740, %v1447, %v1451
      %1453 = vrot.lane.b32.xlu0 %v1452, 12
      %v1454 = vpop.permute.xlu0 %1453
      %v1456 = vsel %vm772, %v1413, %v1420
      %v1458 = vsel %vm775, %v1456, %v1437
      %v1460 = vsel %vm778, %v1458, %v1454
      %v1461 = vld [vmem:[%s1001] sm:$0xf]
      %v1462 = vld [vmem:[%s1001 + $0x4] sm:$0xf]
      %v1465 = vunpack.c.l.b16 %v1461
      %v1466 = vunpack.c.l.b16 %v1462
      %v1467 = vpack.c.b16 %v1466, %v1465
      %v1469 = vsel %vm850, %v1460, 0
      %1471 = vmatprep.subr.bf16.mxu0 0
      %1472 = vmatpush1.bf16.msra.mxu0 0
      %1473 = vmatprep.subr.bf16.mxu0 0
      %1474 = vmatpush1.bf16.msra.mxu0 0
      %1475 = vmatprep.subr.bf16.mxu0 0
      %1476 = vmatpush1.bf16.msra.mxu0 0
      %1477 = vmatprep.subr.bf16.mxu0 0
      %1478 = vmatpush1.bf16.msra.mxu0 0
      %1479 = vmatprep.subr.bf16.mxu0 0
      %1480 = vmatpush1.bf16.msra.mxu0 0
      %1481 = vmatprep.subr.bf16.mxu0 0
      %1482 = vmatpush1.bf16.msra.mxu0 0
      %1483 = vmatprep.subr.bf16.mxu0 0
      %1484 = vmatpush1.bf16.msra.mxu0 0
      %1485 = vmatprep.subr.bf16.mxu0 0
      %1486 = vmatpush1.bf16.msra.mxu0 %v1467
      %1487 = vmatprep.subr.bf16.mxu0 0
      %1488 = vmatpush2.bf16.msra.mxu0 0
      %1489 = vmatprep.subr.bf16.mxu0 0
      %1490 = vmatpush2.bf16.msra.mxu0 0
      %1491 = vmatprep.subr.bf16.mxu0 0
      %1492 = vmatpush2.bf16.msra.mxu0 0
      %1493 = vmatprep.subr.bf16.mxu0 0
      %1494 = vmatpush2.bf16.msra.mxu0 0
      %1495 = vmatprep.subr.bf16.mxu0 0
      %1496 = vmatpush2.bf16.msra.mxu0 0
      %1497 = vmatprep.subr.bf16.mxu0 0
      %1498 = vmatpush2.bf16.msra.mxu0 0
      %1499 = vmatprep.subr.bf16.mxu0 0
      %1500 = vmatpush2.bf16.msra.mxu0 0
      %1501 = vmatprep.subr.bf16.mxu0 0
      %1502 = vmatpush2.bf16.msra.mxu0 0
      %1503 = vmatprep.mubr.bf16.mxu0 0
      %1504 = vmatmul.mubr.bf16.gmra.mxu0 %v1469
      %v1505 = vpop.f32.mrf.mxu0
      %v1506 = vadd.f32 0.0, %v1505
      %v1507 = vpop.f32.mrf.mxu0
      %v1508 = vpop.f32.mrf.mxu0
      %v1509 = vadd.f32 0.0, %v1508
      %v1510 = vpop.f32.mrf.mxu0
      %1511 = vdwg.mxu0
      %v1512 = vadd.f32 %v1395, %v1506
      %v1513 = vadd.f32 %v1398, %v1509
      %s1514 = scalar_lea.vmem %s680, 12
      %v1515 = vld [vmem:[%s1514] sm:$0xf]
      %v1516 = vld [vmem:[%s1514 + $0x4] sm:$0xf]
      %s1517 = scalar_lea.vmem %s691, 12
      %v1518 = vld [vmem:[%s1517] sm:$0xf]
      %v1519 = vld [vmem:[%s1517 + $0x4] sm:$0xf]
      %v1520 = vld [vmem:[%s1514 + $0x8] sm:$0x1]
      %v1521 = vld [vmem:[%s1517 + $0x8] sm:$0x1]
      %v1524 = vunpack.c.l.b16 %v1515
      %v1525 = vunpack.c.l.b16 %v1516
      %v1526 = vpack.c.b16 %v1525, %v1524
      %v1529 = vunpack.c.l.b16 %v1518
      %v1530 = vunpack.c.l.b16 %v1519
      %v1531 = vpack.c.b16 %v1530, %v1529
      %1532 = vrot.lane.b32.xlu0 %v1531, 4
      %v1533 = vpop.permute.xlu0 %1532
      %v1535 = vunpack.c.l.b16 %v1520
      %v1536 = vpack.c.b16 %v1535, %v1535
      %v1538 = vshrl.u32 %v1526, 16
      %v1540 = vshll.u32 %v1526, 16
      %v1542 = vrot.slane %v1540, 1
      %v1543 = vor.u32 %v1538, %v1542
      %v1545 = vshll.u32 %v1536, 16
      %v1547 = vrot.slane %v1545, 1
      %v1548 = vsel %vm740, %v1543, %v1547
      %1549 = vrot.lane.b32.xlu0 %v1548, 8
      %v1550 = vpop.permute.xlu0 %1549
      %v1552 = vunpack.c.l.b16 %v1521
      %v1553 = vpack.c.b16 %v1552, %v1552
      %v1555 = vshrl.u32 %v1531, 16
      %v1557 = vshll.u32 %v1531, 16
      %v1559 = vrot.slane %v1557, 1
      %v1560 = vor.u32 %v1555, %v1559
      %v1562 = vshll.u32 %v1553, 16
      %v1564 = vrot.slane %v1562, 1
      %v1565 = vsel %vm740, %v1560, %v1564
      %1566 = vrot.lane.b32.xlu0 %v1565, 12
      %v1567 = vpop.permute.xlu0 %1566
      %v1569 = vsel %vm772, %v1526, %v1533
      %v1571 = vsel %vm775, %v1569, %v1550
      %v1573 = vsel %vm778, %v1571, %v1567
      %v1574 = vld [vmem:[%s1113] sm:$0xf]
      %v1575 = vld [vmem:[%s1113 + $0x4] sm:$0xf]
      %v1578 = vunpack.c.l.b16 %v1574
      %v1579 = vunpack.c.l.b16 %v1575
      %v1580 = vpack.c.b16 %v1579, %v1578
      %v1582 = vsel %vm850, %v1573, 0
      %1584 = vmatprep.subr.bf16.mxu0 0
      %1585 = vmatpush1.bf16.msra.mxu0 0
      %1586 = vmatprep.subr.bf16.mxu0 0
      %1587 = vmatpush1.bf16.msra.mxu0 0
      %1588 = vmatprep.subr.bf16.mxu0 0
      %1589 = vmatpush1.bf16.msra.mxu0 0
      %1590 = vmatprep.subr.bf16.mxu0 0
      %1591 = vmatpush1.bf16.msra.mxu0 0
      %1592 = vmatprep.subr.bf16.mxu0 0
      %1593 = vmatpush1.bf16.msra.mxu0 0
      %1594 = vmatprep.subr.bf16.mxu0 0
      %1595 = vmatpush1.bf16.msra.mxu0 0
      %1596 = vmatprep.subr.bf16.mxu0 0
      %1597 = vmatpush1.bf16.msra.mxu0 0
      %1598 = vmatprep.subr.bf16.mxu0 0
      %1599 = vmatpush1.bf16.msra.mxu0 %v1580
      %1600 = vmatprep.subr.bf16.mxu0 0
      %1601 = vmatpush2.bf16.msra.mxu0 0
      %1602 = vmatprep.subr.bf16.mxu0 0
      %1603 = vmatpush2.bf16.msra.mxu0 0
      %1604 = vmatprep.subr.bf16.mxu0 0
      %1605 = vmatpush2.bf16.msra.mxu0 0
      %1606 = vmatprep.subr.bf16.mxu0 0
      %1607 = vmatpush2.bf16.msra.mxu0 0
      %1608 = vmatprep.subr.bf16.mxu0 0
      %1609 = vmatpush2.bf16.msra.mxu0 0
      %1610 = vmatprep.subr.bf16.mxu0 0
      %1611 = vmatpush2.bf16.msra.mxu0 0
      %1612 = vmatprep.subr.bf16.mxu0 0
      %1613 = vmatpush2.bf16.msra.mxu0 0
      %1614 = vmatprep.subr.bf16.mxu0 0
      %1615 = vmatpush2.bf16.msra.mxu0 0
      %1616 = vmatprep.mubr.bf16.mxu0 0
      %1617 = vmatmul.mubr.bf16.gmra.mxu0 %v1582
      %v1618 = vpop.f32.mrf.mxu0
      %v1619 = vadd.f32 0.0, %v1618
      %v1620 = vpop.f32.mrf.mxu0
      %v1621 = vpop.f32.mrf.mxu0
      %v1622 = vadd.f32 0.0, %v1621
      %v1623 = vpop.f32.mrf.mxu0
      %1624 = vdwg.mxu0
      %v1625 = vadd.f32 %v1512, %v1619
      %v1626 = vadd.f32 %v1513, %v1622
      %v1627 = vmul.f32 %v1625, %v710
      %v1628 = vmul.f32 %v1626, %v710
      %v1629 = vadd.f32 %v1627, %v717
      %v1630 = vadd.f32 %v1628, %v717
      %vm1631 = vcmp.ge.f32.partialorder %v1629, 0.0
      %vm1632 = vcmp.ge.f32.partialorder %v1630, 0.0
      %v1633 = vmul.f32 %v1629, 0.2
      %v1634 = vmul.f32 %v1630, 0.2
      %v1635 = vsel %vm1631, %v1629, %v1633
      %v1636 = vsel %vm1632, %v1630, %v1634
      %s1637 = scalar_lea.vmem %s702, 16
      %1638 = vst.msk [vmem:[%s1637] sm:$0xff] %vm775, %v1635
      %1639 = vst.msk [vmem:[%s1637 + $0x8] sm:$0xff] %vm775, %v1636
      %s1640 = scalar_lea.vmem %s614, 24
      %v1641 = vld [vmem:[%s1640] sm:$0xf]
      %v1642 = vld [vmem:[%s1640 + $0x4] sm:$0xf]
      %s1643 = scalar_lea.vmem %s625, 24
      %v1644 = vld [vmem:[%s1643] sm:$0xf]
      %v1645 = vld [vmem:[%s1643 + $0x4] sm:$0xf]
      %v1646 = vld [vmem:[%s1640 + $0x8] sm:$0x1]
      %v1647 = vld [vmem:[%s1643 + $0x8] sm:$0x1]
      %v1650 = vunpack.c.l.b16 %v1641
      %v1651 = vunpack.c.l.b16 %v1642
      %v1652 = vpack.c.b16 %v1651, %v1650
      %v1655 = vunpack.c.l.b16 %v1644
      %v1656 = vunpack.c.l.b16 %v1645
      %v1657 = vpack.c.b16 %v1656, %v1655
      %1658 = vrot.lane.b32.xlu0 %v1657, 4
      %v1659 = vpop.permute.xlu0 %1658
      %v1661 = vunpack.c.l.b16 %v1646
      %v1662 = vpack.c.b16 %v1661, %v1661
      %v1664 = vshrl.u32 %v1652, 16
      %v1666 = vshll.u32 %v1652, 16
      %v1668 = vrot.slane %v1666, 1
      %v1669 = vor.u32 %v1664, %v1668
      %v1671 = vshll.u32 %v1662, 16
      %v1673 = vrot.slane %v1671, 1
      %v1674 = vsel %vm740, %v1669, %v1673
      %1675 = vrot.lane.b32.xlu0 %v1674, 8
      %v1676 = vpop.permute.xlu0 %1675
      %v1678 = vunpack.c.l.b16 %v1647
      %v1679 = vpack.c.b16 %v1678, %v1678
      %v1681 = vshrl.u32 %v1657, 16
      %v1683 = vshll.u32 %v1657, 16
      %v1685 = vrot.slane %v1683, 1
      %v1686 = vor.u32 %v1681, %v1685
      %v1688 = vshll.u32 %v1679, 16
      %v1690 = vrot.slane %v1688, 1
      %v1691 = vsel %vm740, %v1686, %v1690
      %1692 = vrot.lane.b32.xlu0 %v1691, 12
      %v1693 = vpop.permute.xlu0 %1692
      %v1695 = vsel %vm772, %v1652, %v1659
      %v1697 = vsel %vm775, %v1695, %v1676
      %v1699 = vsel %vm778, %v1697, %v1693
      %v1700 = vld [vmem:[%s8] sm:$0xf]
      %v1701 = vld [vmem:[%s8 + $0x4] sm:$0xf]
      %s1702 = scalar_lea.vmem %s636, 24
      %v1703 = vld [vmem:[%s1702] sm:$0xf]
      %v1704 = vld [vmem:[%s1702 + $0x4] sm:$0xf]
      %s1705 = scalar_lea.vmem %s647, 24
      %v1706 = vld [vmem:[%s1705] sm:$0xf]
      %v1707 = vld [vmem:[%s1705 + $0x4] sm:$0xf]
      %v1708 = vld [vmem:[%s1702 + $0x8] sm:$0x1]
      %v1709 = vld [vmem:[%s1705 + $0x8] sm:$0x1]
      %v1712 = vunpack.c.l.b16 %v1703
      %v1713 = vunpack.c.l.b16 %v1704
      %v1714 = vpack.c.b16 %v1713, %v1712
      %v1717 = vunpack.c.l.b16 %v1706
      %v1718 = vunpack.c.l.b16 %v1707
      %v1719 = vpack.c.b16 %v1718, %v1717
      %1720 = vrot.lane.b32.xlu0 %v1719, 4
      %v1721 = vpop.permute.xlu0 %1720
      %v1723 = vunpack.c.l.b16 %v1708
      %v1724 = vpack.c.b16 %v1723, %v1723
      %v1726 = vshrl.u32 %v1714, 16
      %v1728 = vshll.u32 %v1714, 16
      %v1730 = vrot.slane %v1728, 1
      %v1731 = vor.u32 %v1726, %v1730
      %v1733 = vshll.u32 %v1724, 16
      %v1735 = vrot.slane %v1733, 1
      %v1736 = vsel %vm740, %v1731, %v1735
      %1737 = vrot.lane.b32.xlu0 %v1736, 8
      %v1738 = vpop.permute.xlu0 %1737
      %v1740 = vunpack.c.l.b16 %v1709
      %v1741 = vpack.c.b16 %v1740, %v1740
      %v1743 = vshrl.u32 %v1719, 16
      %v1745 = vshll.u32 %v1719, 16
      %v1747 = vrot.slane %v1745, 1
      %v1748 = vor.u32 %v1743, %v1747
      %v1750 = vshll.u32 %v1741, 16
      %v1752 = vrot.slane %v1750, 1
      %v1753 = vsel %vm740, %v1748, %v1752
      %1754 = vrot.lane.b32.xlu0 %v1753, 12
      %v1755 = vpop.permute.xlu0 %1754
      %v1757 = vsel %vm772, %v1714, %v1721
      %v1759 = vsel %vm775, %v1757, %v1738
      %v1761 = vsel %vm778, %v1759, %v1755
      %v1762 = vld [vmem:[%s841] sm:$0xf]
      %v1763 = vld [vmem:[%s841 + $0x4] sm:$0xf]
      %v1766 = vunpack.c.l.b16 %v1762
      %v1767 = vunpack.c.l.b16 %v1763
      %v1768 = vpack.c.b16 %v1767, %v1766
      %v1770 = vsel %vm850, %v1761, 0
      %1772 = vmatprep.subr.bf16.mxu0 0
      %1773 = vmatpush1.bf16.msra.mxu0 0
      %1774 = vmatprep.subr.bf16.mxu0 0
      %1775 = vmatpush1.bf16.msra.mxu0 0
      %1776 = vmatprep.subr.bf16.mxu0 0
      %1777 = vmatpush1.bf16.msra.mxu0 0
      %1778 = vmatprep.subr.bf16.mxu0 0
      %1779 = vmatpush1.bf16.msra.mxu0 0
      %1780 = vmatprep.subr.bf16.mxu0 0
      %1781 = vmatpush1.bf16.msra.mxu0 0
      %1782 = vmatprep.subr.bf16.mxu0 0
      %1783 = vmatpush1.bf16.msra.mxu0 0
      %1784 = vmatprep.subr.bf16.mxu0 0
      %1785 = vmatpush1.bf16.msra.mxu0 0
      %1786 = vmatprep.subr.bf16.mxu0 0
      %1787 = vmatpush1.bf16.msra.mxu0 %v1768
      %1788 = vmatprep.subr.bf16.mxu0 0
      %1789 = vmatpush2.bf16.msra.mxu0 0
      %1790 = vmatprep.subr.bf16.mxu0 0
      %1791 = vmatpush2.bf16.msra.mxu0 0
      %1792 = vmatprep.subr.bf16.mxu0 0
      %1793 = vmatpush2.bf16.msra.mxu0 0
      %1794 = vmatprep.subr.bf16.mxu0 0
      %1795 = vmatpush2.bf16.msra.mxu0 0
      %1796 = vmatprep.subr.bf16.mxu0 0
      %1797 = vmatpush2.bf16.msra.mxu0 0
      %1798 = vmatprep.subr.bf16.mxu0 0
      %1799 = vmatpush2.bf16.msra.mxu0 0
      %1800 = vmatprep.subr.bf16.mxu0 0
      %1801 = vmatpush2.bf16.msra.mxu0 0
      %1802 = vmatprep.subr.bf16.mxu0 0
      %1803 = vmatpush2.bf16.msra.mxu0 0
      %1804 = vmatprep.mubr.bf16.mxu0 0
      %1805 = vmatmul.mubr.bf16.gmra.mxu0 %v1770
      %v1806 = vpop.f32.mrf.mxu0
      %v1807 = vadd.f32 0.0, %v1806
      %v1808 = vpop.f32.mrf.mxu0
      %v1809 = vpop.f32.mrf.mxu0
      %v1810 = vadd.f32 0.0, %v1809
      %v1811 = vpop.f32.mrf.mxu0
      %1812 = vdwg.mxu0
      %v1815 = vunpack.c.l.b16 %v1700
      %v1816 = vunpack.c.l.b16 %v1701
      %v1817 = vpack.c.b16 %v1816, %v1815
      %v1819 = vsel %vm850, %v1699, 0
      %1821 = vmatprep.subr.bf16.mxu0 0
      %1822 = vmatpush1.bf16.msra.mxu0 0
      %1823 = vmatprep.subr.bf16.mxu0 0
      %1824 = vmatpush1.bf16.msra.mxu0 0
      %1825 = vmatprep.subr.bf16.mxu0 0
      %1826 = vmatpush1.bf16.msra.mxu0 0
      %1827 = vmatprep.subr.bf16.mxu0 0
      %1828 = vmatpush1.bf16.msra.mxu0 0
      %1829 = vmatprep.subr.bf16.mxu0 0
      %1830 = vmatpush1.bf16.msra.mxu0 0
      %1831 = vmatprep.subr.bf16.mxu0 0
      %1832 = vmatpush1.bf16.msra.mxu0 0
      %1833 = vmatprep.subr.bf16.mxu0 0
      %1834 = vmatpush1.bf16.msra.mxu0 0
      %1835 = vmatprep.subr.bf16.mxu0 0
      %1836 = vmatpush1.bf16.msra.mxu0 %v1817
      %1837 = vmatprep.subr.bf16.mxu0 0
      %1838 = vmatpush2.bf16.msra.mxu0 0
      %1839 = vmatprep.subr.bf16.mxu0 0
      %1840 = vmatpush2.bf16.msra.mxu0 0
      %1841 = vmatprep.subr.bf16.mxu0 0
      %1842 = vmatpush2.bf16.msra.mxu0 0
      %1843 = vmatprep.subr.bf16.mxu0 0
      %1844 = vmatpush2.bf16.msra.mxu0 0
      %1845 = vmatprep.subr.bf16.mxu0 0
      %1846 = vmatpush2.bf16.msra.mxu0 0
      %1847 = vmatprep.subr.bf16.mxu0 0
      %1848 = vmatpush2.bf16.msra.mxu0 0
      %1849 = vmatprep.subr.bf16.mxu0 0
      %1850 = vmatpush2.bf16.msra.mxu0 0
      %1851 = vmatprep.subr.bf16.mxu0 0
      %1852 = vmatpush2.bf16.msra.mxu0 0
      %1853 = vmatprep.mubr.bf16.mxu0 0
      %1854 = vmatmul.mubr.bf16.gmra.mxu0 %v1819
      %v1855 = vpop.f32.mrf.mxu0
      %v1856 = vadd.f32 %v1807, %v1855
      %v1857 = vpop.f32.mrf.mxu0
      %v1858 = vpop.f32.mrf.mxu0
      %v1859 = vadd.f32 %v1810, %v1858
      %v1860 = vpop.f32.mrf.mxu0
      %1861 = vdwg.mxu0
      %s1862 = scalar_lea.vmem %s658, 24
      %v1863 = vld [vmem:[%s1862] sm:$0xf]
      %v1864 = vld [vmem:[%s1862 + $0x4] sm:$0xf]
      %s1865 = scalar_lea.vmem %s669, 24
      %v1866 = vld [vmem:[%s1865] sm:$0xf]
      %v1867 = vld [vmem:[%s1865 + $0x4] sm:$0xf]
      %v1868 = vld [vmem:[%s1862 + $0x8] sm:$0x1]
      %v1869 = vld [vmem:[%s1865 + $0x8] sm:$0x1]
      %v1872 = vunpack.c.l.b16 %v1863
      %v1873 = vunpack.c.l.b16 %v1864
      %v1874 = vpack.c.b16 %v1873, %v1872
      %v1877 = vunpack.c.l.b16 %v1866
      %v1878 = vunpack.c.l.b16 %v1867
      %v1879 = vpack.c.b16 %v1878, %v1877
      %1880 = vrot.lane.b32.xlu0 %v1879, 4
      %v1881 = vpop.permute.xlu0 %1880
      %v1883 = vunpack.c.l.b16 %v1868
      %v1884 = vpack.c.b16 %v1883, %v1883
      %v1886 = vshrl.u32 %v1874, 16
      %v1888 = vshll.u32 %v1874, 16
      %v1890 = vrot.slane %v1888, 1
      %v1891 = vor.u32 %v1886, %v1890
      %v1893 = vshll.u32 %v1884, 16
      %v1895 = vrot.slane %v1893, 1
      %v1896 = vsel %vm740, %v1891, %v1895
      %1897 = vrot.lane.b32.xlu0 %v1896, 8
      %v1898 = vpop.permute.xlu0 %1897
      %v1900 = vunpack.c.l.b16 %v1869
      %v1901 = vpack.c.b16 %v1900, %v1900
      %v1903 = vshrl.u32 %v1879, 16
      %v1905 = vshll.u32 %v1879, 16
      %v1907 = vrot.slane %v1905, 1
      %v1908 = vor.u32 %v1903, %v1907
      %v1910 = vshll.u32 %v1901, 16
      %v1912 = vrot.slane %v1910, 1
      %v1913 = vsel %vm740, %v1908, %v1912
      %1914 = vrot.lane.b32.xlu0 %v1913, 12
      %v1915 = vpop.permute.xlu0 %1914
      %v1917 = vsel %vm772, %v1874, %v1881
      %v1919 = vsel %vm775, %v1917, %v1898
      %v1921 = vsel %vm778, %v1919, %v1915
      %v1922 = vld [vmem:[%s1001] sm:$0xf]
      %v1923 = vld [vmem:[%s1001 + $0x4] sm:$0xf]
      %v1926 = vunpack.c.l.b16 %v1922
      %v1927 = vunpack.c.l.b16 %v1923
      %v1928 = vpack.c.b16 %v1927, %v1926
      %v1930 = vsel %vm850, %v1921, 0
      %1932 = vmatprep.subr.bf16.mxu0 0
      %1933 = vmatpush1.bf16.msra.mxu0 0
      %1934 = vmatprep.subr.bf16.mxu0 0
      %1935 = vmatpush1.bf16.msra.mxu0 0
      %1936 = vmatprep.subr.bf16.mxu0 0
      %1937 = vmatpush1.bf16.msra.mxu0 0
      %1938 = vmatprep.subr.bf16.mxu0 0
      %1939 = vmatpush1.bf16.msra.mxu0 0
      %1940 = vmatprep.subr.bf16.mxu0 0
      %1941 = vmatpush1.bf16.msra.mxu0 0
      %1942 = vmatprep.subr.bf16.mxu0 0
      %1943 = vmatpush1.bf16.msra.mxu0 0
      %1944 = vmatprep.subr.bf16.mxu0 0
      %1945 = vmatpush1.bf16.msra.mxu0 0
      %1946 = vmatprep.subr.bf16.mxu0 0
      %1947 = vmatpush1.bf16.msra.mxu0 %v1928
      %1948 = vmatprep.subr.bf16.mxu0 0
      %1949 = vmatpush2.bf16.msra.mxu0 0
      %1950 = vmatprep.subr.bf16.mxu0 0
      %1951 = vmatpush2.bf16.msra.mxu0 0
      %1952 = vmatprep.subr.bf16.mxu0 0
      %1953 = vmatpush2.bf16.msra.mxu0 0
      %1954 = vmatprep.subr.bf16.mxu0 0
      %1955 = vmatpush2.bf16.msra.mxu0 0
      %1956 = vmatprep.subr.bf16.mxu0 0
      %1957 = vmatpush2.bf16.msra.mxu0 0
      %1958 = vmatprep.subr.bf16.mxu0 0
      %1959 = vmatpush2.bf16.msra.mxu0 0
      %1960 = vmatprep.subr.bf16.mxu0 0
      %1961 = vmatpush2.bf16.msra.mxu0 0
      %1962 = vmatprep.subr.bf16.mxu0 0
      %1963 = vmatpush2.bf16.msra.mxu0 0
      %1964 = vmatprep.mubr.bf16.mxu0 0
      %1965 = vmatmul.mubr.bf16.gmra.mxu0 %v1930
      %v1966 = vpop.f32.mrf.mxu0
      %v1967 = vadd.f32 0.0, %v1966
      %v1968 = vpop.f32.mrf.mxu0
      %v1969 = vpop.f32.mrf.mxu0
      %v1970 = vadd.f32 0.0, %v1969
      %v1971 = vpop.f32.mrf.mxu0
      %1972 = vdwg.mxu0
      %v1973 = vadd.f32 %v1856, %v1967
      %v1974 = vadd.f32 %v1859, %v1970
      %s1975 = scalar_lea.vmem %s680, 24
      %v1976 = vld [vmem:[%s1975] sm:$0xf]
      %v1977 = vld [vmem:[%s1975 + $0x4] sm:$0xf]
      %s1978 = scalar_lea.vmem %s691, 24
      %v1979 = vld [vmem:[%s1978] sm:$0xf]
      %v1980 = vld [vmem:[%s1978 + $0x4] sm:$0xf]
      %v1981 = vld [vmem:[%s1975 + $0x8] sm:$0x1]
      %v1982 = vld [vmem:[%s1978 + $0x8] sm:$0x1]
      %v1985 = vunpack.c.l.b16 %v1976
      %v1986 = vunpack.c.l.b16 %v1977
      %v1987 = vpack.c.b16 %v1986, %v1985
      %v1990 = vunpack.c.l.b16 %v1979
      %v1991 = vunpack.c.l.b16 %v1980
      %v1992 = vpack.c.b16 %v1991, %v1990
      %1993 = vrot.lane.b32.xlu0 %v1992, 4
      %v1994 = vpop.permute.xlu0 %1993
      %v1996 = vunpack.c.l.b16 %v1981
      %v1997 = vpack.c.b16 %v1996, %v1996
      %v1999 = vshrl.u32 %v1987, 16
      %v2001 = vshll.u32 %v1987, 16
      %v2003 = vrot.slane %v2001, 1
      %v2004 = vor.u32 %v1999, %v2003
      %v2006 = vshll.u32 %v1997, 16
      %v2008 = vrot.slane %v2006, 1
      %v2009 = vsel %vm740, %v2004, %v2008
      %2010 = vrot.lane.b32.xlu0 %v2009, 8
      %v2011 = vpop.permute.xlu0 %2010
      %v2013 = vunpack.c.l.b16 %v1982
      %v2014 = vpack.c.b16 %v2013, %v2013
      %v2016 = vshrl.u32 %v1992, 16
      %v2018 = vshll.u32 %v1992, 16
      %v2020 = vrot.slane %v2018, 1
      %v2021 = vor.u32 %v2016, %v2020
      %v2023 = vshll.u32 %v2014, 16
      %v2025 = vrot.slane %v2023, 1
      %v2026 = vsel %vm740, %v2021, %v2025
      %2027 = vrot.lane.b32.xlu0 %v2026, 12
      %v2028 = vpop.permute.xlu0 %2027
      %v2030 = vsel %vm772, %v1987, %v1994
      %v2032 = vsel %vm775, %v2030, %v2011
      %v2034 = vsel %vm778, %v2032, %v2028
      %v2035 = vld [vmem:[%s1113] sm:$0xf]
      %v2036 = vld [vmem:[%s1113 + $0x4] sm:$0xf]
      %v2039 = vunpack.c.l.b16 %v2035
      %v2040 = vunpack.c.l.b16 %v2036
      %v2041 = vpack.c.b16 %v2040, %v2039
      %v2043 = vsel %vm850, %v2034, 0
      %2045 = vmatprep.subr.bf16.mxu0 0
      %2046 = vmatpush1.bf16.msra.mxu0 0
      %2047 = vmatprep.subr.bf16.mxu0 0
      %2048 = vmatpush1.bf16.msra.mxu0 0
      %2049 = vmatprep.subr.bf16.mxu0 0
      %2050 = vmatpush1.bf16.msra.mxu0 0
      %2051 = vmatprep.subr.bf16.mxu0 0
      %2052 = vmatpush1.bf16.msra.mxu0 0
      %2053 = vmatprep.subr.bf16.mxu0 0
      %2054 = vmatpush1.bf16.msra.mxu0 0
      %2055 = vmatprep.subr.bf16.mxu0 0
      %2056 = vmatpush1.bf16.msra.mxu0 0
      %2057 = vmatprep.subr.bf16.mxu0 0
      %2058 = vmatpush1.bf16.msra.mxu0 0
      %2059 = vmatprep.subr.bf16.mxu0 0
      %2060 = vmatpush1.bf16.msra.mxu0 %v2041
      %2061 = vmatprep.subr.bf16.mxu0 0
      %2062 = vmatpush2.bf16.msra.mxu0 0
      %2063 = vmatprep.subr.bf16.mxu0 0
      %2064 = vmatpush2.bf16.msra.mxu0 0
      %2065 = vmatprep.subr.bf16.mxu0 0
      %2066 = vmatpush2.bf16.msra.mxu0 0
      %2067 = vmatprep.subr.bf16.mxu0 0
      %2068 = vmatpush2.bf16.msra.mxu0 0
      %2069 = vmatprep.subr.bf16.mxu0 0
      %2070 = vmatpush2.bf16.msra.mxu0 0
      %2071 = vmatprep.subr.bf16.mxu0 0
      %2072 = vmatpush2.bf16.msra.mxu0 0
      %2073 = vmatprep.subr.bf16.mxu0 0
      %2074 = vmatpush2.bf16.msra.mxu0 0
      %2075 = vmatprep.subr.bf16.mxu0 0
      %2076 = vmatpush2.bf16.msra.mxu0 0
      %2077 = vmatprep.mubr.bf16.mxu0 0
      %2078 = vmatmul.mubr.bf16.gmra.mxu0 %v2043
      %v2079 = vpop.f32.mrf.mxu0
      %v2080 = vadd.f32 0.0, %v2079
      %v2081 = vpop.f32.mrf.mxu0
      %v2082 = vpop.f32.mrf.mxu0
      %v2083 = vadd.f32 0.0, %v2082
      %v2084 = vpop.f32.mrf.mxu0
      %2085 = vdwg.mxu0
      %v2086 = vadd.f32 %v1973, %v2080
      %v2087 = vadd.f32 %v1974, %v2083
      %v2088 = vmul.f32 %v2086, %v710
      %v2089 = vmul.f32 %v2087, %v710
      %v2090 = vadd.f32 %v2088, %v717
      %v2091 = vadd.f32 %v2089, %v717
      %vm2092 = vcmp.ge.f32.partialorder %v2090, 0.0
      %vm2093 = vcmp.ge.f32.partialorder %v2091, 0.0
      %v2094 = vmul.f32 %v2090, 0.2
      %v2095 = vmul.f32 %v2091, 0.2
      %v2096 = vsel %vm2092, %v2090, %v2094
      %v2097 = vsel %vm2093, %v2091, %v2095
      %s2098 = scalar_lea.vmem %s702, 32
      %2099 = vst.msk [vmem:[%s2098] sm:$0xff] %vm775, %v2096
      %2100 = vst.msk [vmem:[%s2098 + $0x8] sm:$0xff] %vm775, %v2097
      %s2101 = scalar_lea.vmem %s614, 36
      %v2102 = vld [vmem:[%s2101] sm:$0xf]
      %v2103 = vld [vmem:[%s2101 + $0x4] sm:$0xf]
      %s2104 = scalar_lea.vmem %s625, 36
      %v2105 = vld [vmem:[%s2104] sm:$0xf]
      %v2106 = vld [vmem:[%s2104 + $0x4] sm:$0xf]
      %v2107 = vld [vmem:[%s2101 + $0x8] sm:$0x1]
      %v2108 = vld [vmem:[%s2104 + $0x8] sm:$0x1]
      %v2111 = vunpack.c.l.b16 %v2102
      %v2112 = vunpack.c.l.b16 %v2103
      %v2113 = vpack.c.b16 %v2112, %v2111
      %v2116 = vunpack.c.l.b16 %v2105
      %v2117 = vunpack.c.l.b16 %v2106
      %v2118 = vpack.c.b16 %v2117, %v2116
      %2119 = vrot.lane.b32.xlu0 %v2118, 4
      %v2120 = vpop.permute.xlu0 %2119
      %v2122 = vunpack.c.l.b16 %v2107
      %v2123 = vpack.c.b16 %v2122, %v2122
      %v2125 = vshrl.u32 %v2113, 16
      %v2127 = vshll.u32 %v2113, 16
      %v2129 = vrot.slane %v2127, 1
      %v2130 = vor.u32 %v2125, %v2129
      %v2132 = vshll.u32 %v2123, 16
      %v2134 = vrot.slane %v2132, 1
      %v2135 = vsel %vm740, %v2130, %v2134
      %2136 = vrot.lane.b32.xlu0 %v2135, 8
      %v2137 = vpop.permute.xlu0 %2136
      %v2139 = vunpack.c.l.b16 %v2108
      %v2140 = vpack.c.b16 %v2139, %v2139
      %v2142 = vshrl.u32 %v2118, 16
      %v2144 = vshll.u32 %v2118, 16
      %v2146 = vrot.slane %v2144, 1
      %v2147 = vor.u32 %v2142, %v2146
      %v2149 = vshll.u32 %v2140, 16
      %v2151 = vrot.slane %v2149, 1
      %v2152 = vsel %vm740, %v2147, %v2151
      %2153 = vrot.lane.b32.xlu0 %v2152, 12
      %v2154 = vpop.permute.xlu0 %2153
      %v2156 = vsel %vm772, %v2113, %v2120
      %v2158 = vsel %vm775, %v2156, %v2137
      %v2160 = vsel %vm778, %v2158, %v2154
      %v2161 = vld [vmem:[%s8] sm:$0xf]
      %v2162 = vld [vmem:[%s8 + $0x4] sm:$0xf]
      %s2163 = scalar_lea.vmem %s636, 36
      %v2164 = vld [vmem:[%s2163] sm:$0xf]
      %v2165 = vld [vmem:[%s2163 + $0x4] sm:$0xf]
      %s2166 = scalar_lea.vmem %s647, 36
      %v2167 = vld [vmem:[%s2166] sm:$0xf]
      %v2168 = vld [vmem:[%s2166 + $0x4] sm:$0xf]
      %v2169 = vld [vmem:[%s2163 + $0x8] sm:$0x1]
      %v2170 = vld [vmem:[%s2166 + $0x8] sm:$0x1]
      %v2173 = vunpack.c.l.b16 %v2164
      %v2174 = vunpack.c.l.b16 %v2165
      %v2175 = vpack.c.b16 %v2174, %v2173
      %v2178 = vunpack.c.l.b16 %v2167
      %v2179 = vunpack.c.l.b16 %v2168
      %v2180 = vpack.c.b16 %v2179, %v2178
      %2181 = vrot.lane.b32.xlu0 %v2180, 4
      %v2182 = vpop.permute.xlu0 %2181
      %v2184 = vunpack.c.l.b16 %v2169
      %v2185 = vpack.c.b16 %v2184, %v2184
      %v2187 = vshrl.u32 %v2175, 16
      %v2189 = vshll.u32 %v2175, 16
      %v2191 = vrot.slane %v2189, 1
      %v2192 = vor.u32 %v2187, %v2191
      %v2194 = vshll.u32 %v2185, 16
      %v2196 = vrot.slane %v2194, 1
      %v2197 = vsel %vm740, %v2192, %v2196
      %2198 = vrot.lane.b32.xlu0 %v2197, 8
      %v2199 = vpop.permute.xlu0 %2198
      %v2201 = vunpack.c.l.b16 %v2170
      %v2202 = vpack.c.b16 %v2201, %v2201
      %v2204 = vshrl.u32 %v2180, 16
      %v2206 = vshll.u32 %v2180, 16
      %v2208 = vrot.slane %v2206, 1
      %v2209 = vor.u32 %v2204, %v2208
      %v2211 = vshll.u32 %v2202, 16
      %v2213 = vrot.slane %v2211, 1
      %v2214 = vsel %vm740, %v2209, %v2213
      %2215 = vrot.lane.b32.xlu0 %v2214, 12
      %v2216 = vpop.permute.xlu0 %2215
      %v2218 = vsel %vm772, %v2175, %v2182
      %v2220 = vsel %vm775, %v2218, %v2199
      %v2222 = vsel %vm778, %v2220, %v2216
      %v2223 = vld [vmem:[%s841] sm:$0xf]
      %v2224 = vld [vmem:[%s841 + $0x4] sm:$0xf]
      %v2227 = vunpack.c.l.b16 %v2223
      %v2228 = vunpack.c.l.b16 %v2224
      %v2229 = vpack.c.b16 %v2228, %v2227
      %v2231 = vsel %vm850, %v2222, 0
      %2233 = vmatprep.subr.bf16.mxu0 0
      %2234 = vmatpush1.bf16.msra.mxu0 0
      %2235 = vmatprep.subr.bf16.mxu0 0
      %2236 = vmatpush1.bf16.msra.mxu0 0
      %2237 = vmatprep.subr.bf16.mxu0 0
      %2238 = vmatpush1.bf16.msra.mxu0 0
      %2239 = vmatprep.subr.bf16.mxu0 0
      %2240 = vmatpush1.bf16.msra.mxu0 0
      %2241 = vmatprep.subr.bf16.mxu0 0
      %2242 = vmatpush1.bf16.msra.mxu0 0
      %2243 = vmatprep.subr.bf16.mxu0 0
      %2244 = vmatpush1.bf16.msra.mxu0 0
      %2245 = vmatprep.subr.bf16.mxu0 0
      %2246 = vmatpush1.bf16.msra.mxu0 0
      %2247 = vmatprep.subr.bf16.mxu0 0
      %2248 = vmatpush1.bf16.msra.mxu0 %v2229
      %2249 = vmatprep.subr.bf16.mxu0 0
      %2250 = vmatpush2.bf16.msra.mxu0 0
      %2251 = vmatprep.subr.bf16.mxu0 0
      %2252 = vmatpush2.bf16.msra.mxu0 0
      %2253 = vmatprep.subr.bf16.mxu0 0
      %2254 = vmatpush2.bf16.msra.mxu0 0
      %2255 = vmatprep.subr.bf16.mxu0 0
      %2256 = vmatpush2.bf16.msra.mxu0 0
      %2257 = vmatprep.subr.bf16.mxu0 0
      %2258 = vmatpush2.bf16.msra.mxu0 0
      %2259 = vmatprep.subr.bf16.mxu0 0
      %2260 = vmatpush2.bf16.msra.mxu0 0
      %2261 = vmatprep.subr.bf16.mxu0 0
      %2262 = vmatpush2.bf16.msra.mxu0 0
      %2263 = vmatprep.subr.bf16.mxu0 0
      %2264 = vmatpush2.bf16.msra.mxu0 0
      %2265 = vmatprep.mubr.bf16.mxu0 0
      %2266 = vmatmul.mubr.bf16.gmra.mxu0 %v2231
      %v2267 = vpop.f32.mrf.mxu0
      %v2268 = vadd.f32 0.0, %v2267
      %v2269 = vpop.f32.mrf.mxu0
      %v2270 = vpop.f32.mrf.mxu0
      %v2271 = vadd.f32 0.0, %v2270
      %v2272 = vpop.f32.mrf.mxu0
      %2273 = vdwg.mxu0
      %v2276 = vunpack.c.l.b16 %v2161
      %v2277 = vunpack.c.l.b16 %v2162
      %v2278 = vpack.c.b16 %v2277, %v2276
      %v2280 = vsel %vm850, %v2160, 0
      %2282 = vmatprep.subr.bf16.mxu0 0
      %2283 = vmatpush1.bf16.msra.mxu0 0
      %2284 = vmatprep.subr.bf16.mxu0 0
      %2285 = vmatpush1.bf16.msra.mxu0 0
      %2286 = vmatprep.subr.bf16.mxu0 0
      %2287 = vmatpush1.bf16.msra.mxu0 0
      %2288 = vmatprep.subr.bf16.mxu0 0
      %2289 = vmatpush1.bf16.msra.mxu0 0
      %2290 = vmatprep.subr.bf16.mxu0 0
      %2291 = vmatpush1.bf16.msra.mxu0 0
      %2292 = vmatprep.subr.bf16.mxu0 0
      %2293 = vmatpush1.bf16.msra.mxu0 0
      %2294 = vmatprep.subr.bf16.mxu0 0
      %2295 = vmatpush1.bf16.msra.mxu0 0
      %2296 = vmatprep.subr.bf16.mxu0 0
      %2297 = vmatpush1.bf16.msra.mxu0 %v2278
      %2298 = vmatprep.subr.bf16.mxu0 0
      %2299 = vmatpush2.bf16.msra.mxu0 0
      %2300 = vmatprep.subr.bf16.mxu0 0
      %2301 = vmatpush2.bf16.msra.mxu0 0
      %2302 = vmatprep.subr.bf16.mxu0 0
      %2303 = vmatpush2.bf16.msra.mxu0 0
      %2304 = vmatprep.subr.bf16.mxu0 0
      %2305 = vmatpush2.bf16.msra.mxu0 0
      %2306 = vmatprep.subr.bf16.mxu0 0
      %2307 = vmatpush2.bf16.msra.mxu0 0
      %2308 = vmatprep.subr.bf16.mxu0 0
      %2309 = vmatpush2.bf16.msra.mxu0 0
      %2310 = vmatprep.subr.bf16.mxu0 0
      %2311 = vmatpush2.bf16.msra.mxu0 0
      %2312 = vmatprep.subr.bf16.mxu0 0
      %2313 = vmatpush2.bf16.msra.mxu0 0
      %2314 = vmatprep.mubr.bf16.mxu0 0
      %2315 = vmatmul.mubr.bf16.gmra.mxu0 %v2280
      %v2316 = vpop.f32.mrf.mxu0
      %v2317 = vadd.f32 %v2268, %v2316
      %v2318 = vpop.f32.mrf.mxu0
      %v2319 = vpop.f32.mrf.mxu0
      %v2320 = vadd.f32 %v2271, %v2319
      %v2321 = vpop.f32.mrf.mxu0
      %2322 = vdwg.mxu0
      %s2323 = scalar_lea.vmem %s658, 36
      %v2324 = vld [vmem:[%s2323] sm:$0xf]
      %v2325 = vld [vmem:[%s2323 + $0x4] sm:$0xf]
      %s2326 = scalar_lea.vmem %s669, 36
      %v2327 = vld [vmem:[%s2326] sm:$0xf]
      %v2328 = vld [vmem:[%s2326 + $0x4] sm:$0xf]
      %v2329 = vld [vmem:[%s2323 + $0x8] sm:$0x1]
      %v2330 = vld [vmem:[%s2326 + $0x8] sm:$0x1]
      %v2333 = vunpack.c.l.b16 %v2324
      %v2334 = vunpack.c.l.b16 %v2325
      %v2335 = vpack.c.b16 %v2334, %v2333
      %v2338 = vunpack.c.l.b16 %v2327
      %v2339 = vunpack.c.l.b16 %v2328
      %v2340 = vpack.c.b16 %v2339, %v2338
      %2341 = vrot.lane.b32.xlu0 %v2340, 4
      %v2342 = vpop.permute.xlu0 %2341
      %v2344 = vunpack.c.l.b16 %v2329
      %v2345 = vpack.c.b16 %v2344, %v2344
      %v2347 = vshrl.u32 %v2335, 16
      %v2349 = vshll.u32 %v2335, 16
      %v2351 = vrot.slane %v2349, 1
      %v2352 = vor.u32 %v2347, %v2351
      %v2354 = vshll.u32 %v2345, 16
      %v2356 = vrot.slane %v2354, 1
      %v2357 = vsel %vm740, %v2352, %v2356
      %2358 = vrot.lane.b32.xlu0 %v2357, 8
      %v2359 = vpop.permute.xlu0 %2358
      %v2361 = vunpack.c.l.b16 %v2330
      %v2362 = vpack.c.b16 %v2361, %v2361
      %v2364 = vshrl.u32 %v2340, 16
      %v2366 = vshll.u32 %v2340, 16
      %v2368 = vrot.slane %v2366, 1
      %v2369 = vor.u32 %v2364, %v2368
      %v2371 = vshll.u32 %v2362, 16
      %v2373 = vrot.slane %v2371, 1
      %v2374 = vsel %vm740, %v2369, %v2373
      %2375 = vrot.lane.b32.xlu0 %v2374, 12
      %v2376 = vpop.permute.xlu0 %2375
      %v2378 = vsel %vm772, %v2335, %v2342
      %v2380 = vsel %vm775, %v2378, %v2359
      %v2382 = vsel %vm778, %v2380, %v2376
      %v2383 = vld [vmem:[%s1001] sm:$0xf]
      %v2384 = vld [vmem:[%s1001 + $0x4] sm:$0xf]
      %v2387 = vunpack.c.l.b16 %v2383
      %v2388 = vunpack.c.l.b16 %v2384
      %v2389 = vpack.c.b16 %v2388, %v2387
      %v2391 = vsel %vm850, %v2382, 0
      %2393 = vmatprep.subr.bf16.mxu0 0
      %2394 = vmatpush1.bf16.msra.mxu0 0
      %2395 = vmatprep.subr.bf16.mxu0 0
      %2396 = vmatpush1.bf16.msra.mxu0 0
      %2397 = vmatprep.subr.bf16.mxu0 0
      %2398 = vmatpush1.bf16.msra.mxu0 0
      %2399 = vmatprep.subr.bf16.mxu0 0
      %2400 = vmatpush1.bf16.msra.mxu0 0
      %2401 = vmatprep.subr.bf16.mxu0 0
      %2402 = vmatpush1.bf16.msra.mxu0 0
      %2403 = vmatprep.subr.bf16.mxu0 0
      %2404 = vmatpush1.bf16.msra.mxu0 0
      %2405 = vmatprep.subr.bf16.mxu0 0
      %2406 = vmatpush1.bf16.msra.mxu0 0
      %2407 = vmatprep.subr.bf16.mxu0 0
      %2408 = vmatpush1.bf16.msra.mxu0 %v2389
      %2409 = vmatprep.subr.bf16.mxu0 0
      %2410 = vmatpush2.bf16.msra.mxu0 0
      %2411 = vmatprep.subr.bf16.mxu0 0
      %2412 = vmatpush2.bf16.msra.mxu0 0
      %2413 = vmatprep.subr.bf16.mxu0 0
      %2414 = vmatpush2.bf16.msra.mxu0 0
      %2415 = vmatprep.subr.bf16.mxu0 0
      %2416 = vmatpush2.bf16.msra.mxu0 0
      %2417 = vmatprep.subr.bf16.mxu0 0
      %2418 = vmatpush2.bf16.msra.mxu0 0
      %2419 = vmatprep.subr.bf16.mxu0 0
      %2420 = vmatpush2.bf16.msra.mxu0 0
      %2421 = vmatprep.subr.bf16.mxu0 0
      %2422 = vmatpush2.bf16.msra.mxu0 0
      %2423 = vmatprep.subr.bf16.mxu0 0
      %2424 = vmatpush2.bf16.msra.mxu0 0
      %2425 = vmatprep.mubr.bf16.mxu0 0
      %2426 = vmatmul.mubr.bf16.gmra.mxu0 %v2391
      %v2427 = vpop.f32.mrf.mxu0
      %v2428 = vadd.f32 0.0, %v2427
      %v2429 = vpop.f32.mrf.mxu0
      %v2430 = vpop.f32.mrf.mxu0
      %v2431 = vadd.f32 0.0, %v2430
      %v2432 = vpop.f32.mrf.mxu0
      %2433 = vdwg.mxu0
      %v2434 = vadd.f32 %v2317, %v2428
      %v2435 = vadd.f32 %v2320, %v2431
      %s2436 = scalar_lea.vmem %s680, 36
      %v2437 = vld [vmem:[%s2436] sm:$0xf]
      %v2438 = vld [vmem:[%s2436 + $0x4] sm:$0xf]
      %s2439 = scalar_lea.vmem %s691, 36
      %v2440 = vld [vmem:[%s2439] sm:$0xf]
      %v2441 = vld [vmem:[%s2439 + $0x4] sm:$0xf]
      %v2442 = vld [vmem:[%s2436 + $0x8] sm:$0x1]
      %v2443 = vld [vmem:[%s2439 + $0x8] sm:$0x1]
      %v2446 = vunpack.c.l.b16 %v2437
      %v2447 = vunpack.c.l.b16 %v2438
      %v2448 = vpack.c.b16 %v2447, %v2446
      %v2451 = vunpack.c.l.b16 %v2440
      %v2452 = vunpack.c.l.b16 %v2441
      %v2453 = vpack.c.b16 %v2452, %v2451
      %2454 = vrot.lane.b32.xlu0 %v2453, 4
      %v2455 = vpop.permute.xlu0 %2454
      %v2457 = vunpack.c.l.b16 %v2442
      %v2458 = vpack.c.b16 %v2457, %v2457
      %v2460 = vshrl.u32 %v2448, 16
      %v2462 = vshll.u32 %v2448, 16
      %v2464 = vrot.slane %v2462, 1
      %v2465 = vor.u32 %v2460, %v2464
      %v2467 = vshll.u32 %v2458, 16
      %v2469 = vrot.slane %v2467, 1
      %v2470 = vsel %vm740, %v2465, %v2469
      %2471 = vrot.lane.b32.xlu0 %v2470, 8
      %v2472 = vpop.permute.xlu0 %2471
      %v2474 = vunpack.c.l.b16 %v2443
      %v2475 = vpack.c.b16 %v2474, %v2474
      %v2477 = vshrl.u32 %v2453, 16
      %v2479 = vshll.u32 %v2453, 16
      %v2481 = vrot.slane %v2479, 1
      %v2482 = vor.u32 %v2477, %v2481
      %v2484 = vshll.u32 %v2475, 16
      %v2486 = vrot.slane %v2484, 1
      %v2487 = vsel %vm740, %v2482, %v2486
      %2488 = vrot.lane.b32.xlu0 %v2487, 12
      %v2489 = vpop.permute.xlu0 %2488
      %v2491 = vsel %vm772, %v2448, %v2455
      %v2493 = vsel %vm775, %v2491, %v2472
      %v2495 = vsel %vm778, %v2493, %v2489
      %v2496 = vld [vmem:[%s1113] sm:$0xf]
      %v2497 = vld [vmem:[%s1113 + $0x4] sm:$0xf]
      %v2500 = vunpack.c.l.b16 %v2496
      %v2501 = vunpack.c.l.b16 %v2497
      %v2502 = vpack.c.b16 %v2501, %v2500
      %v2504 = vsel %vm850, %v2495, 0
      %2506 = vmatprep.subr.bf16.mxu0 0
      %2507 = vmatpush1.bf16.msra.mxu0 0
      %2508 = vmatprep.subr.bf16.mxu0 0
      %2509 = vmatpush1.bf16.msra.mxu0 0
      %2510 = vmatprep.subr.bf16.mxu0 0
      %2511 = vmatpush1.bf16.msra.mxu0 0
      %2512 = vmatprep.subr.bf16.mxu0 0
      %2513 = vmatpush1.bf16.msra.mxu0 0
      %2514 = vmatprep.subr.bf16.mxu0 0
      %2515 = vmatpush1.bf16.msra.mxu0 0
      %2516 = vmatprep.subr.bf16.mxu0 0
      %2517 = vmatpush1.bf16.msra.mxu0 0
      %2518 = vmatprep.subr.bf16.mxu0 0
      %2519 = vmatpush1.bf16.msra.mxu0 0
      %2520 = vmatprep.subr.bf16.mxu0 0
      %2521 = vmatpush1.bf16.msra.mxu0 %v2502
      %2522 = vmatprep.subr.bf16.mxu0 0
      %2523 = vmatpush2.bf16.msra.mxu0 0
      %2524 = vmatprep.subr.bf16.mxu0 0
      %2525 = vmatpush2.bf16.msra.mxu0 0
      %2526 = vmatprep.subr.bf16.mxu0 0
      %2527 = vmatpush2.bf16.msra.mxu0 0
      %2528 = vmatprep.subr.bf16.mxu0 0
      %2529 = vmatpush2.bf16.msra.mxu0 0
      %2530 = vmatprep.subr.bf16.mxu0 0
      %2531 = vmatpush2.bf16.msra.mxu0 0
      %2532 = vmatprep.subr.bf16.mxu0 0
      %2533 = vmatpush2.bf16.msra.mxu0 0
      %2534 = vmatprep.subr.bf16.mxu0 0
      %2535 = vmatpush2.bf16.msra.mxu0 0
      %2536 = vmatprep.subr.bf16.mxu0 0
      %2537 = vmatpush2.bf16.msra.mxu0 0
      %2538 = vmatprep.mubr.bf16.mxu0 0
      %2539 = vmatmul.mubr.bf16.gmra.mxu0 %v2504
      %v2540 = vpop.f32.mrf.mxu0
      %v2541 = vadd.f32 0.0, %v2540
      %v2542 = vpop.f32.mrf.mxu0
      %v2543 = vpop.f32.mrf.mxu0
      %v2544 = vadd.f32 0.0, %v2543
      %v2545 = vpop.f32.mrf.mxu0
      %2546 = vdwg.mxu0
      %v2547 = vadd.f32 %v2434, %v2541
      %v2548 = vadd.f32 %v2435, %v2544
      %v2549 = vmul.f32 %v2547, %v710
      %v2550 = vmul.f32 %v2548, %v710
      %v2551 = vadd.f32 %v2549, %v717
      %v2552 = vadd.f32 %v2550, %v717
      %vm2553 = vcmp.ge.f32.partialorder %v2551, 0.0
      %vm2554 = vcmp.ge.f32.partialorder %v2552, 0.0
      %v2555 = vmul.f32 %v2551, 0.2
      %v2556 = vmul.f32 %v2552, 0.2
      %v2557 = vsel %vm2553, %v2551, %v2555
      %v2558 = vsel %vm2554, %v2552, %v2556
      %s2559 = scalar_lea.vmem %s702, 48
      %2560 = vst.msk [vmem:[%s2559] sm:$0xff] %vm775, %v2557
      %2561 = vst.msk [vmem:[%s2559 + $0x8] sm:$0xff] %vm775, %v2558
      %s2562 = scalar_lea.vmem %s614, 48
      %v2563 = vld [vmem:[%s2562] sm:$0xf]
      %v2564 = vld [vmem:[%s2562 + $0x4] sm:$0xf]
      %s2565 = scalar_lea.vmem %s625, 48
      %v2566 = vld [vmem:[%s2565] sm:$0xf]
      %v2567 = vld [vmem:[%s2565 + $0x4] sm:$0xf]
      %v2568 = vld [vmem:[%s2562 + $0x8] sm:$0x1]
      %v2569 = vld [vmem:[%s2565 + $0x8] sm:$0x1]
      %v2572 = vunpack.c.l.b16 %v2563
      %v2573 = vunpack.c.l.b16 %v2564
      %v2574 = vpack.c.b16 %v2573, %v2572
      %v2577 = vunpack.c.l.b16 %v2566
      %v2578 = vunpack.c.l.b16 %v2567
      %v2579 = vpack.c.b16 %v2578, %v2577
      %2580 = vrot.lane.b32.xlu0 %v2579, 4
      %v2581 = vpop.permute.xlu0 %2580
      %v2583 = vunpack.c.l.b16 %v2568
      %v2584 = vpack.c.b16 %v2583, %v2583
      %v2586 = vshrl.u32 %v2574, 16
      %v2588 = vshll.u32 %v2574, 16
      %v2590 = vrot.slane %v2588, 1
      %v2591 = vor.u32 %v2586, %v2590
      %v2593 = vshll.u32 %v2584, 16
      %v2595 = vrot.slane %v2593, 1
      %v2596 = vsel %vm740, %v2591, %v2595
      %2597 = vrot.lane.b32.xlu0 %v2596, 8
      %v2598 = vpop.permute.xlu0 %2597
      %v2600 = vunpack.c.l.b16 %v2569
      %v2601 = vpack.c.b16 %v2600, %v2600
      %v2603 = vshrl.u32 %v2579, 16
      %v2605 = vshll.u32 %v2579, 16
      %v2607 = vrot.slane %v2605, 1
      %v2608 = vor.u32 %v2603, %v2607
      %v2610 = vshll.u32 %v2601, 16
      %v2612 = vrot.slane %v2610, 1
      %v2613 = vsel %vm740, %v2608, %v2612
      %2614 = vrot.lane.b32.xlu0 %v2613, 12
      %v2615 = vpop.permute.xlu0 %2614
      %v2617 = vsel %vm772, %v2574, %v2581
      %v2619 = vsel %vm775, %v2617, %v2598
      %v2621 = vsel %vm778, %v2619, %v2615
      %v2622 = vld [vmem:[%s8] sm:$0xf]
      %v2623 = vld [vmem:[%s8 + $0x4] sm:$0xf]
      %s2624 = scalar_lea.vmem %s636, 48
      %v2625 = vld [vmem:[%s2624] sm:$0xf]
      %v2626 = vld [vmem:[%s2624 + $0x4] sm:$0xf]
      %s2627 = scalar_lea.vmem %s647, 48
      %v2628 = vld [vmem:[%s2627] sm:$0xf]
      %v2629 = vld [vmem:[%s2627 + $0x4] sm:$0xf]
      %v2630 = vld [vmem:[%s2624 + $0x8] sm:$0x1]
      %v2631 = vld [vmem:[%s2627 + $0x8] sm:$0x1]
      %v2634 = vunpack.c.l.b16 %v2625
      %v2635 = vunpack.c.l.b16 %v2626
      %v2636 = vpack.c.b16 %v2635, %v2634
      %v2639 = vunpack.c.l.b16 %v2628
      %v2640 = vunpack.c.l.b16 %v2629
      %v2641 = vpack.c.b16 %v2640, %v2639
      %2642 = vrot.lane.b32.xlu0 %v2641, 4
      %v2643 = vpop.permute.xlu0 %2642
      %v2645 = vunpack.c.l.b16 %v2630
      %v2646 = vpack.c.b16 %v2645, %v2645
      %v2648 = vshrl.u32 %v2636, 16
      %v2650 = vshll.u32 %v2636, 16
      %v2652 = vrot.slane %v2650, 1
      %v2653 = vor.u32 %v2648, %v2652
      %v2655 = vshll.u32 %v2646, 16
      %v2657 = vrot.slane %v2655, 1
      %v2658 = vsel %vm740, %v2653, %v2657
      %2659 = vrot.lane.b32.xlu0 %v2658, 8
      %v2660 = vpop.permute.xlu0 %2659
      %v2662 = vunpack.c.l.b16 %v2631
      %v2663 = vpack.c.b16 %v2662, %v2662
      %v2665 = vshrl.u32 %v2641, 16
      %v2667 = vshll.u32 %v2641, 16
      %v2669 = vrot.slane %v2667, 1
      %v2670 = vor.u32 %v2665, %v2669
      %v2672 = vshll.u32 %v2663, 16
      %v2674 = vrot.slane %v2672, 1
      %v2675 = vsel %vm740, %v2670, %v2674
      %2676 = vrot.lane.b32.xlu0 %v2675, 12
      %v2677 = vpop.permute.xlu0 %2676
      %v2679 = vsel %vm772, %v2636, %v2643
      %v2681 = vsel %vm775, %v2679, %v2660
      %v2683 = vsel %vm778, %v2681, %v2677
      %v2684 = vld [vmem:[%s841] sm:$0xf]
      %v2685 = vld [vmem:[%s841 + $0x4] sm:$0xf]
      %v2688 = vunpack.c.l.b16 %v2684
      %v2689 = vunpack.c.l.b16 %v2685
      %v2690 = vpack.c.b16 %v2689, %v2688
      %v2692 = vsel %vm850, %v2683, 0
      %2694 = vmatprep.subr.bf16.mxu0 0
      %2695 = vmatpush1.bf16.msra.mxu0 0
      %2696 = vmatprep.subr.bf16.mxu0 0
      %2697 = vmatpush1.bf16.msra.mxu0 0
      %2698 = vmatprep.subr.bf16.mxu0 0
      %2699 = vmatpush1.bf16.msra.mxu0 0
      %2700 = vmatprep.subr.bf16.mxu0 0
      %2701 = vmatpush1.bf16.msra.mxu0 0
      %2702 = vmatprep.subr.bf16.mxu0 0
      %2703 = vmatpush1.bf16.msra.mxu0 0
      %2704 = vmatprep.subr.bf16.mxu0 0
      %2705 = vmatpush1.bf16.msra.mxu0 0
      %2706 = vmatprep.subr.bf16.mxu0 0
      %2707 = vmatpush1.bf16.msra.mxu0 0
      %2708 = vmatprep.subr.bf16.mxu0 0
      %2709 = vmatpush1.bf16.msra.mxu0 %v2690
      %2710 = vmatprep.subr.bf16.mxu0 0
      %2711 = vmatpush2.bf16.msra.mxu0 0
      %2712 = vmatprep.subr.bf16.mxu0 0
      %2713 = vmatpush2.bf16.msra.mxu0 0
      %2714 = vmatprep.subr.bf16.mxu0 0
      %2715 = vmatpush2.bf16.msra.mxu0 0
      %2716 = vmatprep.subr.bf16.mxu0 0
      %2717 = vmatpush2.bf16.msra.mxu0 0
      %2718 = vmatprep.subr.bf16.mxu0 0
      %2719 = vmatpush2.bf16.msra.mxu0 0
      %2720 = vmatprep.subr.bf16.mxu0 0
      %2721 = vmatpush2.bf16.msra.mxu0 0
      %2722 = vmatprep.subr.bf16.mxu0 0
      %2723 = vmatpush2.bf16.msra.mxu0 0
      %2724 = vmatprep.subr.bf16.mxu0 0
      %2725 = vmatpush2.bf16.msra.mxu0 0
      %2726 = vmatprep.mubr.bf16.mxu0 0
      %2727 = vmatmul.mubr.bf16.gmra.mxu0 %v2692
      %v2728 = vpop.f32.mrf.mxu0
      %v2729 = vadd.f32 0.0, %v2728
      %v2730 = vpop.f32.mrf.mxu0
      %v2731 = vpop.f32.mrf.mxu0
      %v2732 = vadd.f32 0.0, %v2731
      %v2733 = vpop.f32.mrf.mxu0
      %2734 = vdwg.mxu0
      %v2737 = vunpack.c.l.b16 %v2622
      %v2738 = vunpack.c.l.b16 %v2623
      %v2739 = vpack.c.b16 %v2738, %v2737
      %v2741 = vsel %vm850, %v2621, 0
      %2743 = vmatprep.subr.bf16.mxu0 0
      %2744 = vmatpush1.bf16.msra.mxu0 0
      %2745 = vmatprep.subr.bf16.mxu0 0
      %2746 = vmatpush1.bf16.msra.mxu0 0
      %2747 = vmatprep.subr.bf16.mxu0 0
      %2748 = vmatpush1.bf16.msra.mxu0 0
      %2749 = vmatprep.subr.bf16.mxu0 0
      %2750 = vmatpush1.bf16.msra.mxu0 0
      %2751 = vmatprep.subr.bf16.mxu0 0
      %2752 = vmatpush1.bf16.msra.mxu0 0
      %2753 = vmatprep.subr.bf16.mxu0 0
      %2754 = vmatpush1.bf16.msra.mxu0 0
      %2755 = vmatprep.subr.bf16.mxu0 0
      %2756 = vmatpush1.bf16.msra.mxu0 0
      %2757 = vmatprep.subr.bf16.mxu0 0
      %2758 = vmatpush1.bf16.msra.mxu0 %v2739
      %2759 = vmatprep.subr.bf16.mxu0 0
      %2760 = vmatpush2.bf16.msra.mxu0 0
      %2761 = vmatprep.subr.bf16.mxu0 0
      %2762 = vmatpush2.bf16.msra.mxu0 0
      %2763 = vmatprep.subr.bf16.mxu0 0
      %2764 = vmatpush2.bf16.msra.mxu0 0
      %2765 = vmatprep.subr.bf16.mxu0 0
      %2766 = vmatpush2.bf16.msra.mxu0 0
      %2767 = vmatprep.subr.bf16.mxu0 0
      %2768 = vmatpush2.bf16.msra.mxu0 0
      %2769 = vmatprep.subr.bf16.mxu0 0
      %2770 = vmatpush2.bf16.msra.mxu0 0
      %2771 = vmatprep.subr.bf16.mxu0 0
      %2772 = vmatpush2.bf16.msra.mxu0 0
      %2773 = vmatprep.subr.bf16.mxu0 0
      %2774 = vmatpush2.bf16.msra.mxu0 0
      %2775 = vmatprep.mubr.bf16.mxu0 0
      %2776 = vmatmul.mubr.bf16.gmra.mxu0 %v2741
      %v2777 = vpop.f32.mrf.mxu0
      %v2778 = vadd.f32 %v2729, %v2777
      %v2779 = vpop.f32.mrf.mxu0
      %v2780 = vpop.f32.mrf.mxu0
      %v2781 = vadd.f32 %v2732, %v2780
      %v2782 = vpop.f32.mrf.mxu0
      %2783 = vdwg.mxu0
      %s2784 = scalar_lea.vmem %s658, 48
      %v2785 = vld [vmem:[%s2784] sm:$0xf]
      %v2786 = vld [vmem:[%s2784 + $0x4] sm:$0xf]
      %s2787 = scalar_lea.vmem %s669, 48
      %v2788 = vld [vmem:[%s2787] sm:$0xf]
      %v2789 = vld [vmem:[%s2787 + $0x4] sm:$0xf]
      %v2790 = vld [vmem:[%s2784 + $0x8] sm:$0x1]
      %v2791 = vld [vmem:[%s2787 + $0x8] sm:$0x1]
      %v2794 = vunpack.c.l.b16 %v2785
      %v2795 = vunpack.c.l.b16 %v2786
      %v2796 = vpack.c.b16 %v2795, %v2794
      %v2799 = vunpack.c.l.b16 %v2788
      %v2800 = vunpack.c.l.b16 %v2789
      %v2801 = vpack.c.b16 %v2800, %v2799
      %2802 = vrot.lane.b32.xlu0 %v2801, 4
      %v2803 = vpop.permute.xlu0 %2802
      %v2805 = vunpack.c.l.b16 %v2790
      %v2806 = vpack.c.b16 %v2805, %v2805
      %v2808 = vshrl.u32 %v2796, 16
      %v2810 = vshll.u32 %v2796, 16
      %v2812 = vrot.slane %v2810, 1
      %v2813 = vor.u32 %v2808, %v2812
      %v2815 = vshll.u32 %v2806, 16
      %v2817 = vrot.slane %v2815, 1
      %v2818 = vsel %vm740, %v2813, %v2817
      %2819 = vrot.lane.b32.xlu0 %v2818, 8
      %v2820 = vpop.permute.xlu0 %2819
      %v2822 = vunpack.c.l.b16 %v2791
      %v2823 = vpack.c.b16 %v2822, %v2822
      %v2825 = vshrl.u32 %v2801, 16
      %v2827 = vshll.u32 %v2801, 16
      %v2829 = vrot.slane %v2827, 1
      %v2830 = vor.u32 %v2825, %v2829
      %v2832 = vshll.u32 %v2823, 16
      %v2834 = vrot.slane %v2832, 1
      %v2835 = vsel %vm740, %v2830, %v2834
      %2836 = vrot.lane.b32.xlu0 %v2835, 12
      %v2837 = vpop.permute.xlu0 %2836
      %v2839 = vsel %vm772, %v2796, %v2803
      %v2841 = vsel %vm775, %v2839, %v2820
      %v2843 = vsel %vm778, %v2841, %v2837
      %v2844 = vld [vmem:[%s1001] sm:$0xf]
      %v2845 = vld [vmem:[%s1001 + $0x4] sm:$0xf]
      %v2848 = vunpack.c.l.b16 %v2844
      %v2849 = vunpack.c.l.b16 %v2845
      %v2850 = vpack.c.b16 %v2849, %v2848
      %v2852 = vsel %vm850, %v2843, 0
      %2854 = vmatprep.subr.bf16.mxu0 0
      %2855 = vmatpush1.bf16.msra.mxu0 0
      %2856 = vmatprep.subr.bf16.mxu0 0
      %2857 = vmatpush1.bf16.msra.mxu0 0
      %2858 = vmatprep.subr.bf16.mxu0 0
      %2859 = vmatpush1.bf16.msra.mxu0 0
      %2860 = vmatprep.subr.bf16.mxu0 0
      %2861 = vmatpush1.bf16.msra.mxu0 0
      %2862 = vmatprep.subr.bf16.mxu0 0
      %2863 = vmatpush1.bf16.msra.mxu0 0
      %2864 = vmatprep.subr.bf16.mxu0 0
      %2865 = vmatpush1.bf16.msra.mxu0 0
      %2866 = vmatprep.subr.bf16.mxu0 0
      %2867 = vmatpush1.bf16.msra.mxu0 0
      %2868 = vmatprep.subr.bf16.mxu0 0
      %2869 = vmatpush1.bf16.msra.mxu0 %v2850
      %2870 = vmatprep.subr.bf16.mxu0 0
      %2871 = vmatpush2.bf16.msra.mxu0 0
      %2872 = vmatprep.subr.bf16.mxu0 0
      %2873 = vmatpush2.bf16.msra.mxu0 0
      %2874 = vmatprep.subr.bf16.mxu0 0
      %2875 = vmatpush2.bf16.msra.mxu0 0
      %2876 = vmatprep.subr.bf16.mxu0 0
      %2877 = vmatpush2.bf16.msra.mxu0 0
      %2878 = vmatprep.subr.bf16.mxu0 0
      %2879 = vmatpush2.bf16.msra.mxu0 0
      %2880 = vmatprep.subr.bf16.mxu0 0
      %2881 = vmatpush2.bf16.msra.mxu0 0
      %2882 = vmatprep.subr.bf16.mxu0 0
      %2883 = vmatpush2.bf16.msra.mxu0 0
      %2884 = vmatprep.subr.bf16.mxu0 0
      %2885 = vmatpush2.bf16.msra.mxu0 0
      %2886 = vmatprep.mubr.bf16.mxu0 0
      %2887 = vmatmul.mubr.bf16.gmra.mxu0 %v2852
      %v2888 = vpop.f32.mrf.mxu0
      %v2889 = vadd.f32 0.0, %v2888
      %v2890 = vpop.f32.mrf.mxu0
      %v2891 = vpop.f32.mrf.mxu0
      %v2892 = vadd.f32 0.0, %v2891
      %v2893 = vpop.f32.mrf.mxu0
      %2894 = vdwg.mxu0
      %v2895 = vadd.f32 %v2778, %v2889
      %v2896 = vadd.f32 %v2781, %v2892
      %s2897 = scalar_lea.vmem %s680, 48
      %v2898 = vld [vmem:[%s2897] sm:$0xf]
      %v2899 = vld [vmem:[%s2897 + $0x4] sm:$0xf]
      %s2900 = scalar_lea.vmem %s691, 48
      %v2901 = vld [vmem:[%s2900] sm:$0xf]
      %v2902 = vld [vmem:[%s2900 + $0x4] sm:$0xf]
      %v2903 = vld [vmem:[%s2897 + $0x8] sm:$0x1]
      %v2904 = vld [vmem:[%s2900 + $0x8] sm:$0x1]
      %v2907 = vunpack.c.l.b16 %v2898
      %v2908 = vunpack.c.l.b16 %v2899
      %v2909 = vpack.c.b16 %v2908, %v2907
      %v2912 = vunpack.c.l.b16 %v2901
      %v2913 = vunpack.c.l.b16 %v2902
      %v2914 = vpack.c.b16 %v2913, %v2912
      %2915 = vrot.lane.b32.xlu0 %v2914, 4
      %v2916 = vpop.permute.xlu0 %2915
      %v2918 = vunpack.c.l.b16 %v2903
      %v2919 = vpack.c.b16 %v2918, %v2918
      %v2921 = vshrl.u32 %v2909, 16
      %v2923 = vshll.u32 %v2909, 16
      %v2925 = vrot.slane %v2923, 1
      %v2926 = vor.u32 %v2921, %v2925
      %v2928 = vshll.u32 %v2919, 16
      %v2930 = vrot.slane %v2928, 1
      %v2931 = vsel %vm740, %v2926, %v2930
      %2932 = vrot.lane.b32.xlu0 %v2931, 8
      %v2933 = vpop.permute.xlu0 %2932
      %v2935 = vunpack.c.l.b16 %v2904
      %v2936 = vpack.c.b16 %v2935, %v2935
      %v2938 = vshrl.u32 %v2914, 16
      %v2940 = vshll.u32 %v2914, 16
      %v2942 = vrot.slane %v2940, 1
      %v2943 = vor.u32 %v2938, %v2942
      %v2945 = vshll.u32 %v2936, 16
      %v2947 = vrot.slane %v2945, 1
      %v2948 = vsel %vm740, %v2943, %v2947
      %2949 = vrot.lane.b32.xlu0 %v2948, 12
      %v2950 = vpop.permute.xlu0 %2949
      %v2952 = vsel %vm772, %v2909, %v2916
      %v2954 = vsel %vm775, %v2952, %v2933
      %v2956 = vsel %vm778, %v2954, %v2950
      %v2957 = vld [vmem:[%s1113] sm:$0xf]
      %v2958 = vld [vmem:[%s1113 + $0x4] sm:$0xf]
      %v2961 = vunpack.c.l.b16 %v2957
      %v2962 = vunpack.c.l.b16 %v2958
      %v2963 = vpack.c.b16 %v2962, %v2961
      %v2965 = vsel %vm850, %v2956, 0
      %2967 = vmatprep.subr.bf16.mxu0 0
      %2968 = vmatpush1.bf16.msra.mxu0 0
      %2969 = vmatprep.subr.bf16.mxu0 0
      %2970 = vmatpush1.bf16.msra.mxu0 0
      %2971 = vmatprep.subr.bf16.mxu0 0
      %2972 = vmatpush1.bf16.msra.mxu0 0
      %2973 = vmatprep.subr.bf16.mxu0 0
      %2974 = vmatpush1.bf16.msra.mxu0 0
      %2975 = vmatprep.subr.bf16.mxu0 0
      %2976 = vmatpush1.bf16.msra.mxu0 0
      %2977 = vmatprep.subr.bf16.mxu0 0
      %2978 = vmatpush1.bf16.msra.mxu0 0
      %2979 = vmatprep.subr.bf16.mxu0 0
      %2980 = vmatpush1.bf16.msra.mxu0 0
      %2981 = vmatprep.subr.bf16.mxu0 0
      %2982 = vmatpush1.bf16.msra.mxu0 %v2963
      %2983 = vmatprep.subr.bf16.mxu0 0
      %2984 = vmatpush2.bf16.msra.mxu0 0
      %2985 = vmatprep.subr.bf16.mxu0 0
      %2986 = vmatpush2.bf16.msra.mxu0 0
      %2987 = vmatprep.subr.bf16.mxu0 0
      %2988 = vmatpush2.bf16.msra.mxu0 0
      %2989 = vmatprep.subr.bf16.mxu0 0
      %2990 = vmatpush2.bf16.msra.mxu0 0
      %2991 = vmatprep.subr.bf16.mxu0 0
      %2992 = vmatpush2.bf16.msra.mxu0 0
      %2993 = vmatprep.subr.bf16.mxu0 0
      %2994 = vmatpush2.bf16.msra.mxu0 0
      %2995 = vmatprep.subr.bf16.mxu0 0
      %2996 = vmatpush2.bf16.msra.mxu0 0
      %2997 = vmatprep.subr.bf16.mxu0 0
      %2998 = vmatpush2.bf16.msra.mxu0 0
      %2999 = vmatprep.mubr.bf16.mxu0 0
      %3000 = vmatmul.mubr.bf16.gmra.mxu0 %v2965
      %v3001 = vpop.f32.mrf.mxu0
      %v3002 = vadd.f32 0.0, %v3001
      %v3003 = vpop.f32.mrf.mxu0
      %v3004 = vpop.f32.mrf.mxu0
      %v3005 = vadd.f32 0.0, %v3004
      %v3006 = vpop.f32.mrf.mxu0
      %3007 = vdwg.mxu0
      %v3008 = vadd.f32 %v2895, %v3002
      %v3009 = vadd.f32 %v2896, %v3005
      %v3010 = vmul.f32 %v3008, %v710
      %v3011 = vmul.f32 %v3009, %v710
      %v3012 = vadd.f32 %v3010, %v717
      %v3013 = vadd.f32 %v3011, %v717
      %vm3014 = vcmp.ge.f32.partialorder %v3012, 0.0
      %vm3015 = vcmp.ge.f32.partialorder %v3013, 0.0
      %v3016 = vmul.f32 %v3012, 0.2
      %v3017 = vmul.f32 %v3013, 0.2
      %v3018 = vsel %vm3014, %v3012, %v3016
      %v3019 = vsel %vm3015, %v3013, %v3017
      %s3020 = scalar_lea.vmem %s702, 64
      %3021 = vst.msk [vmem:[%s3020] sm:$0xff] %vm775, %v3018
      %3022 = vst.msk [vmem:[%s3020 + $0x8] sm:$0xff] %vm775, %v3019
      %s3023 = scalar_lea.vmem %s614, 60
      %v3024 = vld [vmem:[%s3023] sm:$0xf]
      %v3025 = vld [vmem:[%s3023 + $0x4] sm:$0xf]
      %s3026 = scalar_lea.vmem %s625, 60
      %v3027 = vld [vmem:[%s3026] sm:$0xf]
      %v3028 = vld [vmem:[%s3026 + $0x4] sm:$0xf]
      %v3029 = vld [vmem:[%s3023 + $0x8] sm:$0x1]
      %v3030 = vld [vmem:[%s3026 + $0x8] sm:$0x1]
      %v3033 = vunpack.c.l.b16 %v3024
      %v3034 = vunpack.c.l.b16 %v3025
      %v3035 = vpack.c.b16 %v3034, %v3033
      %v3038 = vunpack.c.l.b16 %v3027
      %v3039 = vunpack.c.l.b16 %v3028
      %v3040 = vpack.c.b16 %v3039, %v3038
      %3041 = vrot.lane.b32.xlu0 %v3040, 4
      %v3042 = vpop.permute.xlu0 %3041
      %v3044 = vunpack.c.l.b16 %v3029
      %v3045 = vpack.c.b16 %v3044, %v3044
      %v3047 = vshrl.u32 %v3035, 16
      %v3049 = vshll.u32 %v3035, 16
      %v3051 = vrot.slane %v3049, 1
      %v3052 = vor.u32 %v3047, %v3051
      %v3054 = vshll.u32 %v3045, 16
      %v3056 = vrot.slane %v3054, 1
      %v3057 = vsel %vm740, %v3052, %v3056
      %3058 = vrot.lane.b32.xlu0 %v3057, 8
      %v3059 = vpop.permute.xlu0 %3058
      %v3061 = vunpack.c.l.b16 %v3030
      %v3062 = vpack.c.b16 %v3061, %v3061
      %v3064 = vshrl.u32 %v3040, 16
      %v3066 = vshll.u32 %v3040, 16
      %v3068 = vrot.slane %v3066, 1
      %v3069 = vor.u32 %v3064, %v3068
      %v3071 = vshll.u32 %v3062, 16
      %v3073 = vrot.slane %v3071, 1
      %v3074 = vsel %vm740, %v3069, %v3073
      %3075 = vrot.lane.b32.xlu0 %v3074, 12
      %v3076 = vpop.permute.xlu0 %3075
      %v3078 = vsel %vm772, %v3035, %v3042
      %v3080 = vsel %vm775, %v3078, %v3059
      %v3082 = vsel %vm778, %v3080, %v3076
      %v3083 = vld [vmem:[%s8] sm:$0xf]
      %v3084 = vld [vmem:[%s8 + $0x4] sm:$0xf]
      %s3085 = scalar_lea.vmem %s636, 60
      %v3086 = vld [vmem:[%s3085] sm:$0xf]
      %v3087 = vld [vmem:[%s3085 + $0x4] sm:$0xf]
      %s3088 = scalar_lea.vmem %s647, 60
      %v3089 = vld [vmem:[%s3088] sm:$0xf]
      %v3090 = vld [vmem:[%s3088 + $0x4] sm:$0xf]
      %v3091 = vld [vmem:[%s3085 + $0x8] sm:$0x1]
      %v3092 = vld [vmem:[%s3088 + $0x8] sm:$0x1]
      %v3095 = vunpack.c.l.b16 %v3086
      %v3096 = vunpack.c.l.b16 %v3087
      %v3097 = vpack.c.b16 %v3096, %v3095
      %v3100 = vunpack.c.l.b16 %v3089
      %v3101 = vunpack.c.l.b16 %v3090
      %v3102 = vpack.c.b16 %v3101, %v3100
      %3103 = vrot.lane.b32.xlu0 %v3102, 4
      %v3104 = vpop.permute.xlu0 %3103
      %v3106 = vunpack.c.l.b16 %v3091
      %v3107 = vpack.c.b16 %v3106, %v3106
      %v3109 = vshrl.u32 %v3097, 16
      %v3111 = vshll.u32 %v3097, 16
      %v3113 = vrot.slane %v3111, 1
      %v3114 = vor.u32 %v3109, %v3113
      %v3116 = vshll.u32 %v3107, 16
      %v3118 = vrot.slane %v3116, 1
      %v3119 = vsel %vm740, %v3114, %v3118
      %3120 = vrot.lane.b32.xlu0 %v3119, 8
      %v3121 = vpop.permute.xlu0 %3120
      %v3123 = vunpack.c.l.b16 %v3092
      %v3124 = vpack.c.b16 %v3123, %v3123
      %v3126 = vshrl.u32 %v3102, 16
      %v3128 = vshll.u32 %v3102, 16
      %v3130 = vrot.slane %v3128, 1
      %v3131 = vor.u32 %v3126, %v3130
      %v3133 = vshll.u32 %v3124, 16
      %v3135 = vrot.slane %v3133, 1
      %v3136 = vsel %vm740, %v3131, %v3135
      %3137 = vrot.lane.b32.xlu0 %v3136, 12
      %v3138 = vpop.permute.xlu0 %3137
      %v3140 = vsel %vm772, %v3097, %v3104
      %v3142 = vsel %vm775, %v3140, %v3121
      %v3144 = vsel %vm778, %v3142, %v3138
      %v3145 = vld [vmem:[%s841] sm:$0xf]
      %v3146 = vld [vmem:[%s841 + $0x4] sm:$0xf]
      %v3149 = vunpack.c.l.b16 %v3145
      %v3150 = vunpack.c.l.b16 %v3146
      %v3151 = vpack.c.b16 %v3150, %v3149
      %v3153 = vsel %vm850, %v3144, 0
      %3155 = vmatprep.subr.bf16.mxu0 0
      %3156 = vmatpush1.bf16.msra.mxu0 0
      %3157 = vmatprep.subr.bf16.mxu0 0
      %3158 = vmatpush1.bf16.msra.mxu0 0
      %3159 = vmatprep.subr.bf16.mxu0 0
      %3160 = vmatpush1.bf16.msra.mxu0 0
      %3161 = vmatprep.subr.bf16.mxu0 0
      %3162 = vmatpush1.bf16.msra.mxu0 0
      %3163 = vmatprep.subr.bf16.mxu0 0
      %3164 = vmatpush1.bf16.msra.mxu0 0
      %3165 = vmatprep.subr.bf16.mxu0 0
      %3166 = vmatpush1.bf16.msra.mxu0 0
      %3167 = vmatprep.subr.bf16.mxu0 0
      %3168 = vmatpush1.bf16.msra.mxu0 0
      %3169 = vmatprep.subr.bf16.mxu0 0
      %3170 = vmatpush1.bf16.msra.mxu0 %v3151
      %3171 = vmatprep.subr.bf16.mxu0 0
      %3172 = vmatpush2.bf16.msra.mxu0 0
      %3173 = vmatprep.subr.bf16.mxu0 0
      %3174 = vmatpush2.bf16.msra.mxu0 0
      %3175 = vmatprep.subr.bf16.mxu0 0
      %3176 = vmatpush2.bf16.msra.mxu0 0
      %3177 = vmatprep.subr.bf16.mxu0 0
      %3178 = vmatpush2.bf16.msra.mxu0 0
      %3179 = vmatprep.subr.bf16.mxu0 0
      %3180 = vmatpush2.bf16.msra.mxu0 0
      %3181 = vmatprep.subr.bf16.mxu0 0
      %3182 = vmatpush2.bf16.msra.mxu0 0
      %3183 = vmatprep.subr.bf16.mxu0 0
      %3184 = vmatpush2.bf16.msra.mxu0 0
      %3185 = vmatprep.subr.bf16.mxu0 0
      %3186 = vmatpush2.bf16.msra.mxu0 0
      %3187 = vmatprep.mubr.bf16.mxu0 0
      %3188 = vmatmul.mubr.bf16.gmra.mxu0 %v3153
      %v3189 = vpop.f32.mrf.mxu0
      %v3190 = vadd.f32 0.0, %v3189
      %v3191 = vpop.f32.mrf.mxu0
      %v3192 = vpop.f32.mrf.mxu0
      %v3193 = vadd.f32 0.0, %v3192
      %v3194 = vpop.f32.mrf.mxu0
      %3195 = vdwg.mxu0
      %v3198 = vunpack.c.l.b16 %v3083
      %v3199 = vunpack.c.l.b16 %v3084
      %v3200 = vpack.c.b16 %v3199, %v3198
      %v3202 = vsel %vm850, %v3082, 0
      %3204 = vmatprep.subr.bf16.mxu0 0
      %3205 = vmatpush1.bf16.msra.mxu0 0
      %3206 = vmatprep.subr.bf16.mxu0 0
      %3207 = vmatpush1.bf16.msra.mxu0 0
      %3208 = vmatprep.subr.bf16.mxu0 0
      %3209 = vmatpush1.bf16.msra.mxu0 0
      %3210 = vmatprep.subr.bf16.mxu0 0
      %3211 = vmatpush1.bf16.msra.mxu0 0
      %3212 = vmatprep.subr.bf16.mxu0 0
      %3213 = vmatpush1.bf16.msra.mxu0 0
      %3214 = vmatprep.subr.bf16.mxu0 0
      %3215 = vmatpush1.bf16.msra.mxu0 0
      %3216 = vmatprep.subr.bf16.mxu0 0
      %3217 = vmatpush1.bf16.msra.mxu0 0
      %3218 = vmatprep.subr.bf16.mxu0 0
      %3219 = vmatpush1.bf16.msra.mxu0 %v3200
      %3220 = vmatprep.subr.bf16.mxu0 0
      %3221 = vmatpush2.bf16.msra.mxu0 0
      %3222 = vmatprep.subr.bf16.mxu0 0
      %3223 = vmatpush2.bf16.msra.mxu0 0
      %3224 = vmatprep.subr.bf16.mxu0 0
      %3225 = vmatpush2.bf16.msra.mxu0 0
      %3226 = vmatprep.subr.bf16.mxu0 0
      %3227 = vmatpush2.bf16.msra.mxu0 0
      %3228 = vmatprep.subr.bf16.mxu0 0
      %3229 = vmatpush2.bf16.msra.mxu0 0
      %3230 = vmatprep.subr.bf16.mxu0 0
      %3231 = vmatpush2.bf16.msra.mxu0 0
      %3232 = vmatprep.subr.bf16.mxu0 0
      %3233 = vmatpush2.bf16.msra.mxu0 0
      %3234 = vmatprep.subr.bf16.mxu0 0
      %3235 = vmatpush2.bf16.msra.mxu0 0
      %3236 = vmatprep.mubr.bf16.mxu0 0
      %3237 = vmatmul.mubr.bf16.gmra.mxu0 %v3202
      %v3238 = vpop.f32.mrf.mxu0
      %v3239 = vadd.f32 %v3190, %v3238
      %v3240 = vpop.f32.mrf.mxu0
      %v3241 = vpop.f32.mrf.mxu0
      %v3242 = vadd.f32 %v3193, %v3241
      %v3243 = vpop.f32.mrf.mxu0
      %3244 = vdwg.mxu0
      %s3245 = scalar_lea.vmem %s658, 60
      %v3246 = vld [vmem:[%s3245] sm:$0xf]
      %v3247 = vld [vmem:[%s3245 + $0x4] sm:$0xf]
      %s3248 = scalar_lea.vmem %s669, 60
      %v3249 = vld [vmem:[%s3248] sm:$0xf]
      %v3250 = vld [vmem:[%s3248 + $0x4] sm:$0xf]
      %v3251 = vld [vmem:[%s3245 + $0x8] sm:$0x1]
      %v3252 = vld [vmem:[%s3248 + $0x8] sm:$0x1]
      %v3255 = vunpack.c.l.b16 %v3246
      %v3256 = vunpack.c.l.b16 %v3247
      %v3257 = vpack.c.b16 %v3256, %v3255
      %v3260 = vunpack.c.l.b16 %v3249
      %v3261 = vunpack.c.l.b16 %v3250
      %v3262 = vpack.c.b16 %v3261, %v3260
      %3263 = vrot.lane.b32.xlu0 %v3262, 4
      %v3264 = vpop.permute.xlu0 %3263
      %v3266 = vunpack.c.l.b16 %v3251
      %v3267 = vpack.c.b16 %v3266, %v3266
      %v3269 = vshrl.u32 %v3257, 16
      %v3271 = vshll.u32 %v3257, 16
      %v3273 = vrot.slane %v3271, 1
      %v3274 = vor.u32 %v3269, %v3273
      %v3276 = vshll.u32 %v3267, 16
      %v3278 = vrot.slane %v3276, 1
      %v3279 = vsel %vm740, %v3274, %v3278
      %3280 = vrot.lane.b32.xlu0 %v3279, 8
      %v3281 = vpop.permute.xlu0 %3280
      %v3283 = vunpack.c.l.b16 %v3252
      %v3284 = vpack.c.b16 %v3283, %v3283
      %v3286 = vshrl.u32 %v3262, 16
      %v3288 = vshll.u32 %v3262, 16
      %v3290 = vrot.slane %v3288, 1
      %v3291 = vor.u32 %v3286, %v3290
      %v3293 = vshll.u32 %v3284, 16
      %v3295 = vrot.slane %v3293, 1
      %v3296 = vsel %vm740, %v3291, %v3295
      %3297 = vrot.lane.b32.xlu0 %v3296, 12
      %v3298 = vpop.permute.xlu0 %3297
      %v3300 = vsel %vm772, %v3257, %v3264
      %v3302 = vsel %vm775, %v3300, %v3281
      %v3304 = vsel %vm778, %v3302, %v3298
      %v3305 = vld [vmem:[%s1001] sm:$0xf]
      %v3306 = vld [vmem:[%s1001 + $0x4] sm:$0xf]
      %v3309 = vunpack.c.l.b16 %v3305
      %v3310 = vunpack.c.l.b16 %v3306
      %v3311 = vpack.c.b16 %v3310, %v3309
      %v3313 = vsel %vm850, %v3304, 0
      %3315 = vmatprep.subr.bf16.mxu0 0
      %3316 = vmatpush1.bf16.msra.mxu0 0
      %3317 = vmatprep.subr.bf16.mxu0 0
      %3318 = vmatpush1.bf16.msra.mxu0 0
      %3319 = vmatprep.subr.bf16.mxu0 0
      %3320 = vmatpush1.bf16.msra.mxu0 0
      %3321 = vmatprep.subr.bf16.mxu0 0
      %3322 = vmatpush1.bf16.msra.mxu0 0
      %3323 = vmatprep.subr.bf16.mxu0 0
      %3324 = vmatpush1.bf16.msra.mxu0 0
      %3325 = vmatprep.subr.bf16.mxu0 0
      %3326 = vmatpush1.bf16.msra.mxu0 0
      %3327 = vmatprep.subr.bf16.mxu0 0
      %3328 = vmatpush1.bf16.msra.mxu0 0
      %3329 = vmatprep.subr.bf16.mxu0 0
      %3330 = vmatpush1.bf16.msra.mxu0 %v3311
      %3331 = vmatprep.subr.bf16.mxu0 0
      %3332 = vmatpush2.bf16.msra.mxu0 0
      %3333 = vmatprep.subr.bf16.mxu0 0
      %3334 = vmatpush2.bf16.msra.mxu0 0
      %3335 = vmatprep.subr.bf16.mxu0 0
      %3336 = vmatpush2.bf16.msra.mxu0 0
      %3337 = vmatprep.subr.bf16.mxu0 0
      %3338 = vmatpush2.bf16.msra.mxu0 0
      %3339 = vmatprep.subr.bf16.mxu0 0
      %3340 = vmatpush2.bf16.msra.mxu0 0
      %3341 = vmatprep.subr.bf16.mxu0 0
      %3342 = vmatpush2.bf16.msra.mxu0 0
      %3343 = vmatprep.subr.bf16.mxu0 0
      %3344 = vmatpush2.bf16.msra.mxu0 0
      %3345 = vmatprep.subr.bf16.mxu0 0
      %3346 = vmatpush2.bf16.msra.mxu0 0
      %3347 = vmatprep.mubr.bf16.mxu0 0
      %3348 = vmatmul.mubr.bf16.gmra.mxu0 %v3313
      %v3349 = vpop.f32.mrf.mxu0
      %v3350 = vadd.f32 0.0, %v3349
      %v3351 = vpop.f32.mrf.mxu0
      %v3352 = vpop.f32.mrf.mxu0
      %v3353 = vadd.f32 0.0, %v3352
      %v3354 = vpop.f32.mrf.mxu0
      %3355 = vdwg.mxu0
      %v3356 = vadd.f32 %v3239, %v3350
      %v3357 = vadd.f32 %v3242, %v3353
      %s3358 = scalar_lea.vmem %s680, 60
      %v3359 = vld [vmem:[%s3358] sm:$0xf]
      %v3360 = vld [vmem:[%s3358 + $0x4] sm:$0xf]
      %s3361 = scalar_lea.vmem %s691, 60
      %v3362 = vld [vmem:[%s3361] sm:$0xf]
      %v3363 = vld [vmem:[%s3361 + $0x4] sm:$0xf]
      %v3364 = vld [vmem:[%s3358 + $0x8] sm:$0x1]
      %v3365 = vld [vmem:[%s3361 + $0x8] sm:$0x1]
      %v3368 = vunpack.c.l.b16 %v3359
      %v3369 = vunpack.c.l.b16 %v3360
      %v3370 = vpack.c.b16 %v3369, %v3368
      %v3373 = vunpack.c.l.b16 %v3362
      %v3374 = vunpack.c.l.b16 %v3363
      %v3375 = vpack.c.b16 %v3374, %v3373
      %3376 = vrot.lane.b32.xlu0 %v3375, 4
      %v3377 = vpop.permute.xlu0 %3376
      %v3379 = vunpack.c.l.b16 %v3364
      %v3380 = vpack.c.b16 %v3379, %v3379
      %v3382 = vshrl.u32 %v3370, 16
      %v3384 = vshll.u32 %v3370, 16
      %v3386 = vrot.slane %v3384, 1
      %v3387 = vor.u32 %v3382, %v3386
      %v3389 = vshll.u32 %v3380, 16
      %v3391 = vrot.slane %v3389, 1
      %v3392 = vsel %vm740, %v3387, %v3391
      %3393 = vrot.lane.b32.xlu0 %v3392, 8
      %v3394 = vpop.permute.xlu0 %3393
      %v3396 = vunpack.c.l.b16 %v3365
      %v3397 = vpack.c.b16 %v3396, %v3396
      %v3399 = vshrl.u32 %v3375, 16
      %v3401 = vshll.u32 %v3375, 16
      %v3403 = vrot.slane %v3401, 1
      %v3404 = vor.u32 %v3399, %v3403
      %v3406 = vshll.u32 %v3397, 16
      %v3408 = vrot.slane %v3406, 1
      %v3409 = vsel %vm740, %v3404, %v3408
      %3410 = vrot.lane.b32.xlu0 %v3409, 12
      %v3411 = vpop.permute.xlu0 %3410
      %v3413 = vsel %vm772, %v3370, %v3377
      %v3415 = vsel %vm775, %v3413, %v3394
      %v3417 = vsel %vm778, %v3415, %v3411
      %v3418 = vld [vmem:[%s1113] sm:$0xf]
      %v3419 = vld [vmem:[%s1113 + $0x4] sm:$0xf]
      %v3422 = vunpack.c.l.b16 %v3418
      %v3423 = vunpack.c.l.b16 %v3419
      %v3424 = vpack.c.b16 %v3423, %v3422
      %v3426 = vsel %vm850, %v3417, 0
      %3428 = vmatprep.subr.bf16.mxu0 0
      %3429 = vmatpush1.bf16.msra.mxu0 0
      %3430 = vmatprep.subr.bf16.mxu0 0
      %3431 = vmatpush1.bf16.msra.mxu0 0
      %3432 = vmatprep.subr.bf16.mxu0 0
      %3433 = vmatpush1.bf16.msra.mxu0 0
      %3434 = vmatprep.subr.bf16.mxu0 0
      %3435 = vmatpush1.bf16.msra.mxu0 0
      %3436 = vmatprep.subr.bf16.mxu0 0
      %3437 = vmatpush1.bf16.msra.mxu0 0
      %3438 = vmatprep.subr.bf16.mxu0 0
      %3439 = vmatpush1.bf16.msra.mxu0 0
      %3440 = vmatprep.subr.bf16.mxu0 0
      %3441 = vmatpush1.bf16.msra.mxu0 0
      %3442 = vmatprep.subr.bf16.mxu0 0
      %3443 = vmatpush1.bf16.msra.mxu0 %v3424
      %3444 = vmatprep.subr.bf16.mxu0 0
      %3445 = vmatpush2.bf16.msra.mxu0 0
      %3446 = vmatprep.subr.bf16.mxu0 0
      %3447 = vmatpush2.bf16.msra.mxu0 0
      %3448 = vmatprep.subr.bf16.mxu0 0
      %3449 = vmatpush2.bf16.msra.mxu0 0
      %3450 = vmatprep.subr.bf16.mxu0 0
      %3451 = vmatpush2.bf16.msra.mxu0 0
      %3452 = vmatprep.subr.bf16.mxu0 0
      %3453 = vmatpush2.bf16.msra.mxu0 0
      %3454 = vmatprep.subr.bf16.mxu0 0
      %3455 = vmatpush2.bf16.msra.mxu0 0
      %3456 = vmatprep.subr.bf16.mxu0 0
      %3457 = vmatpush2.bf16.msra.mxu0 0
      %3458 = vmatprep.subr.bf16.mxu0 0
      %3459 = vmatpush2.bf16.msra.mxu0 0
      %3460 = vmatprep.mubr.bf16.mxu0 0
      %3461 = vmatmul.mubr.bf16.gmra.mxu0 %v3426
      %v3462 = vpop.f32.mrf.mxu0
      %v3463 = vadd.f32 0.0, %v3462
      %v3464 = vpop.f32.mrf.mxu0
      %v3465 = vpop.f32.mrf.mxu0
      %v3466 = vadd.f32 0.0, %v3465
      %v3467 = vpop.f32.mrf.mxu0
      %3468 = vdwg.mxu0
      %v3469 = vadd.f32 %v3356, %v3463
      %v3470 = vadd.f32 %v3357, %v3466
      %v3471 = vmul.f32 %v3469, %v710
      %v3472 = vmul.f32 %v3470, %v710
      %v3473 = vadd.f32 %v3471, %v717
      %v3474 = vadd.f32 %v3472, %v717
      %vm3475 = vcmp.ge.f32.partialorder %v3473, 0.0
      %vm3476 = vcmp.ge.f32.partialorder %v3474, 0.0
      %v3477 = vmul.f32 %v3473, 0.2
      %v3478 = vmul.f32 %v3474, 0.2
      %v3479 = vsel %vm3475, %v3473, %v3477
      %v3480 = vsel %vm3476, %v3474, %v3478
      %s3481 = scalar_lea.vmem %s702, 80
      %3482 = vst.msk [vmem:[%s3481] sm:$0xff] %vm775, %v3479
      %3483 = vst.msk [vmem:[%s3481 + $0x8] sm:$0xff] %vm775, %v3480
      %s3484 = scalar_lea.vmem %s614, 72
      %v3485 = vld [vmem:[%s3484] sm:$0xf]
      %v3486 = vld [vmem:[%s3484 + $0x4] sm:$0xf]
      %s3487 = scalar_lea.vmem %s625, 72
      %v3488 = vld [vmem:[%s3487] sm:$0xf]
      %v3489 = vld [vmem:[%s3487 + $0x4] sm:$0xf]
      %v3490 = vld [vmem:[%s3484 + $0x8] sm:$0x1]
      %v3491 = vld [vmem:[%s3487 + $0x8] sm:$0x1]
      %v3494 = vunpack.c.l.b16 %v3485
      %v3495 = vunpack.c.l.b16 %v3486
      %v3496 = vpack.c.b16 %v3495, %v3494
      %v3499 = vunpack.c.l.b16 %v3488
      %v3500 = vunpack.c.l.b16 %v3489
      %v3501 = vpack.c.b16 %v3500, %v3499
      %3502 = vrot.lane.b32.xlu0 %v3501, 4
      %v3503 = vpop.permute.xlu0 %3502
      %v3505 = vunpack.c.l.b16 %v3490
      %v3506 = vpack.c.b16 %v3505, %v3505
      %v3508 = vshrl.u32 %v3496, 16
      %v3510 = vshll.u32 %v3496, 16
      %v3512 = vrot.slane %v3510, 1
      %v3513 = vor.u32 %v3508, %v3512
      %v3515 = vshll.u32 %v3506, 16
      %v3517 = vrot.slane %v3515, 1
      %v3518 = vsel %vm740, %v3513, %v3517
      %3519 = vrot.lane.b32.xlu0 %v3518, 8
      %v3520 = vpop.permute.xlu0 %3519
      %v3522 = vunpack.c.l.b16 %v3491
      %v3523 = vpack.c.b16 %v3522, %v3522
      %v3525 = vshrl.u32 %v3501, 16
      %v3527 = vshll.u32 %v3501, 16
      %v3529 = vrot.slane %v3527, 1
      %v3530 = vor.u32 %v3525, %v3529
      %v3532 = vshll.u32 %v3523, 16
      %v3534 = vrot.slane %v3532, 1
      %v3535 = vsel %vm740, %v3530, %v3534
      %3536 = vrot.lane.b32.xlu0 %v3535, 12
      %v3537 = vpop.permute.xlu0 %3536
      %v3539 = vsel %vm772, %v3496, %v3503
      %v3541 = vsel %vm775, %v3539, %v3520
      %v3543 = vsel %vm778, %v3541, %v3537
      %v3544 = vld [vmem:[%s8] sm:$0xf]
      %v3545 = vld [vmem:[%s8 + $0x4] sm:$0xf]
      %s3546 = scalar_lea.vmem %s636, 72
      %v3547 = vld [vmem:[%s3546] sm:$0xf]
      %v3548 = vld [vmem:[%s3546 + $0x4] sm:$0xf]
      %s3549 = scalar_lea.vmem %s647, 72
      %v3550 = vld [vmem:[%s3549] sm:$0xf]
      %v3551 = vld [vmem:[%s3549 + $0x4] sm:$0xf]
      %v3552 = vld [vmem:[%s3546 + $0x8] sm:$0x1]
      %v3553 = vld [vmem:[%s3549 + $0x8] sm:$0x1]
      %v3556 = vunpack.c.l.b16 %v3547
      %v3557 = vunpack.c.l.b16 %v3548
      %v3558 = vpack.c.b16 %v3557, %v3556
      %v3561 = vunpack.c.l.b16 %v3550
      %v3562 = vunpack.c.l.b16 %v3551
      %v3563 = vpack.c.b16 %v3562, %v3561
      %3564 = vrot.lane.b32.xlu0 %v3563, 4
      %v3565 = vpop.permute.xlu0 %3564
      %v3567 = vunpack.c.l.b16 %v3552
      %v3568 = vpack.c.b16 %v3567, %v3567
      %v3570 = vshrl.u32 %v3558, 16
      %v3572 = vshll.u32 %v3558, 16
      %v3574 = vrot.slane %v3572, 1
      %v3575 = vor.u32 %v3570, %v3574
      %v3577 = vshll.u32 %v3568, 16
      %v3579 = vrot.slane %v3577, 1
      %v3580 = vsel %vm740, %v3575, %v3579
      %3581 = vrot.lane.b32.xlu0 %v3580, 8
      %v3582 = vpop.permute.xlu0 %3581
      %v3584 = vunpack.c.l.b16 %v3553
      %v3585 = vpack.c.b16 %v3584, %v3584
      %v3587 = vshrl.u32 %v3563, 16
      %v3589 = vshll.u32 %v3563, 16
      %v3591 = vrot.slane %v3589, 1
      %v3592 = vor.u32 %v3587, %v3591
      %v3594 = vshll.u32 %v3585, 16
      %v3596 = vrot.slane %v3594, 1
      %v3597 = vsel %vm740, %v3592, %v3596
      %3598 = vrot.lane.b32.xlu0 %v3597, 12
      %v3599 = vpop.permute.xlu0 %3598
      %v3601 = vsel %vm772, %v3558, %v3565
      %v3603 = vsel %vm775, %v3601, %v3582
      %v3605 = vsel %vm778, %v3603, %v3599
      %v3606 = vld [vmem:[%s841] sm:$0xf]
      %v3607 = vld [vmem:[%s841 + $0x4] sm:$0xf]
      %v3610 = vunpack.c.l.b16 %v3606
      %v3611 = vunpack.c.l.b16 %v3607
      %v3612 = vpack.c.b16 %v3611, %v3610
      %v3614 = vsel %vm850, %v3605, 0
      %3616 = vmatprep.subr.bf16.mxu0 0
      %3617 = vmatpush1.bf16.msra.mxu0 0
      %3618 = vmatprep.subr.bf16.mxu0 0
      %3619 = vmatpush1.bf16.msra.mxu0 0
      %3620 = vmatprep.subr.bf16.mxu0 0
      %3621 = vmatpush1.bf16.msra.mxu0 0
      %3622 = vmatprep.subr.bf16.mxu0 0
      %3623 = vmatpush1.bf16.msra.mxu0 0
      %3624 = vmatprep.subr.bf16.mxu0 0
      %3625 = vmatpush1.bf16.msra.mxu0 0
      %3626 = vmatprep.subr.bf16.mxu0 0
      %3627 = vmatpush1.bf16.msra.mxu0 0
      %3628 = vmatprep.subr.bf16.mxu0 0
      %3629 = vmatpush1.bf16.msra.mxu0 0
      %3630 = vmatprep.subr.bf16.mxu0 0
      %3631 = vmatpush1.bf16.msra.mxu0 %v3612
      %3632 = vmatprep.subr.bf16.mxu0 0
      %3633 = vmatpush2.bf16.msra.mxu0 0
      %3634 = vmatprep.subr.bf16.mxu0 0
      %3635 = vmatpush2.bf16.msra.mxu0 0
      %3636 = vmatprep.subr.bf16.mxu0 0
      %3637 = vmatpush2.bf16.msra.mxu0 0
      %3638 = vmatprep.subr.bf16.mxu0 0
      %3639 = vmatpush2.bf16.msra.mxu0 0
      %3640 = vmatprep.subr.bf16.mxu0 0
      %3641 = vmatpush2.bf16.msra.mxu0 0
      %3642 = vmatprep.subr.bf16.mxu0 0
      %3643 = vmatpush2.bf16.msra.mxu0 0
      %3644 = vmatprep.subr.bf16.mxu0 0
      %3645 = vmatpush2.bf16.msra.mxu0 0
      %3646 = vmatprep.subr.bf16.mxu0 0
      %3647 = vmatpush2.bf16.msra.mxu0 0
      %3648 = vmatprep.mubr.bf16.mxu0 0
      %3649 = vmatmul.mubr.bf16.gmra.mxu0 %v3614
      %v3650 = vpop.f32.mrf.mxu0
      %v3651 = vadd.f32 0.0, %v3650
      %v3652 = vpop.f32.mrf.mxu0
      %v3653 = vpop.f32.mrf.mxu0
      %v3654 = vadd.f32 0.0, %v3653
      %v3655 = vpop.f32.mrf.mxu0
      %3656 = vdwg.mxu0
      %v3659 = vunpack.c.l.b16 %v3544
      %v3660 = vunpack.c.l.b16 %v3545
      %v3661 = vpack.c.b16 %v3660, %v3659
      %v3663 = vsel %vm850, %v3543, 0
      %3665 = vmatprep.subr.bf16.mxu0 0
      %3666 = vmatpush1.bf16.msra.mxu0 0
      %3667 = vmatprep.subr.bf16.mxu0 0
      %3668 = vmatpush1.bf16.msra.mxu0 0
      %3669 = vmatprep.subr.bf16.mxu0 0
      %3670 = vmatpush1.bf16.msra.mxu0 0
      %3671 = vmatprep.subr.bf16.mxu0 0
      %3672 = vmatpush1.bf16.msra.mxu0 0
      %3673 = vmatprep.subr.bf16.mxu0 0
      %3674 = vmatpush1.bf16.msra.mxu0 0
      %3675 = vmatprep.subr.bf16.mxu0 0
      %3676 = vmatpush1.bf16.msra.mxu0 0
      %3677 = vmatprep.subr.bf16.mxu0 0
      %3678 = vmatpush1.bf16.msra.mxu0 0
      %3679 = vmatprep.subr.bf16.mxu0 0
      %3680 = vmatpush1.bf16.msra.mxu0 %v3661
      %3681 = vmatprep.subr.bf16.mxu0 0
      %3682 = vmatpush2.bf16.msra.mxu0 0
      %3683 = vmatprep.subr.bf16.mxu0 0
      %3684 = vmatpush2.bf16.msra.mxu0 0
      %3685 = vmatprep.subr.bf16.mxu0 0
      %3686 = vmatpush2.bf16.msra.mxu0 0
      %3687 = vmatprep.subr.bf16.mxu0 0
      %3688 = vmatpush2.bf16.msra.mxu0 0
      %3689 = vmatprep.subr.bf16.mxu0 0
      %3690 = vmatpush2.bf16.msra.mxu0 0
      %3691 = vmatprep.subr.bf16.mxu0 0
      %3692 = vmatpush2.bf16.msra.mxu0 0
      %3693 = vmatprep.subr.bf16.mxu0 0
      %3694 = vmatpush2.bf16.msra.mxu0 0
      %3695 = vmatprep.subr.bf16.mxu0 0
      %3696 = vmatpush2.bf16.msra.mxu0 0
      %3697 = vmatprep.mubr.bf16.mxu0 0
      %3698 = vmatmul.mubr.bf16.gmra.mxu0 %v3663
      %v3699 = vpop.f32.mrf.mxu0
      %v3700 = vadd.f32 %v3651, %v3699
      %v3701 = vpop.f32.mrf.mxu0
      %v3702 = vpop.f32.mrf.mxu0
      %v3703 = vadd.f32 %v3654, %v3702
      %v3704 = vpop.f32.mrf.mxu0
      %3705 = vdwg.mxu0
      %s3706 = scalar_lea.vmem %s658, 72
      %v3707 = vld [vmem:[%s3706] sm:$0xf]
      %v3708 = vld [vmem:[%s3706 + $0x4] sm:$0xf]
      %s3709 = scalar_lea.vmem %s669, 72
      %v3710 = vld [vmem:[%s3709] sm:$0xf]
      %v3711 = vld [vmem:[%s3709 + $0x4] sm:$0xf]
      %v3712 = vld [vmem:[%s3706 + $0x8] sm:$0x1]
      %v3713 = vld [vmem:[%s3709 + $0x8] sm:$0x1]
      %v3716 = vunpack.c.l.b16 %v3707
      %v3717 = vunpack.c.l.b16 %v3708
      %v3718 = vpack.c.b16 %v3717, %v3716
      %v3721 = vunpack.c.l.b16 %v3710
      %v3722 = vunpack.c.l.b16 %v3711
      %v3723 = vpack.c.b16 %v3722, %v3721
      %3724 = vrot.lane.b32.xlu0 %v3723, 4
      %v3725 = vpop.permute.xlu0 %3724
      %v3727 = vunpack.c.l.b16 %v3712
      %v3728 = vpack.c.b16 %v3727, %v3727
      %v3730 = vshrl.u32 %v3718, 16
      %v3732 = vshll.u32 %v3718, 16
      %v3734 = vrot.slane %v3732, 1
      %v3735 = vor.u32 %v3730, %v3734
      %v3737 = vshll.u32 %v3728, 16
      %v3739 = vrot.slane %v3737, 1
      %v3740 = vsel %vm740, %v3735, %v3739
      %3741 = vrot.lane.b32.xlu0 %v3740, 8
      %v3742 = vpop.permute.xlu0 %3741
      %v3744 = vunpack.c.l.b16 %v3713
      %v3745 = vpack.c.b16 %v3744, %v3744
      %v3747 = vshrl.u32 %v3723, 16
      %v3749 = vshll.u32 %v3723, 16
      %v3751 = vrot.slane %v3749, 1
      %v3752 = vor.u32 %v3747, %v3751
      %v3754 = vshll.u32 %v3745, 16
      %v3756 = vrot.slane %v3754, 1
      %v3757 = vsel %vm740, %v3752, %v3756
      %3758 = vrot.lane.b32.xlu0 %v3757, 12
      %v3759 = vpop.permute.xlu0 %3758
      %v3761 = vsel %vm772, %v3718, %v3725
      %v3763 = vsel %vm775, %v3761, %v3742
      %v3765 = vsel %vm778, %v3763, %v3759
      %v3766 = vld [vmem:[%s1001] sm:$0xf]
      %v3767 = vld [vmem:[%s1001 + $0x4] sm:$0xf]
      %v3770 = vunpack.c.l.b16 %v3766
      %v3771 = vunpack.c.l.b16 %v3767
      %v3772 = vpack.c.b16 %v3771, %v3770
      %v3774 = vsel %vm850, %v3765, 0
      %3776 = vmatprep.subr.bf16.mxu0 0
      %3777 = vmatpush1.bf16.msra.mxu0 0
      %3778 = vmatprep.subr.bf16.mxu0 0
      %3779 = vmatpush1.bf16.msra.mxu0 0
      %3780 = vmatprep.subr.bf16.mxu0 0
      %3781 = vmatpush1.bf16.msra.mxu0 0
      %3782 = vmatprep.subr.bf16.mxu0 0
      %3783 = vmatpush1.bf16.msra.mxu0 0
      %3784 = vmatprep.subr.bf16.mxu0 0
      %3785 = vmatpush1.bf16.msra.mxu0 0
      %3786 = vmatprep.subr.bf16.mxu0 0
      %3787 = vmatpush1.bf16.msra.mxu0 0
      %3788 = vmatprep.subr.bf16.mxu0 0
      %3789 = vmatpush1.bf16.msra.mxu0 0
      %3790 = vmatprep.subr.bf16.mxu0 0
      %3791 = vmatpush1.bf16.msra.mxu0 %v3772
      %3792 = vmatprep.subr.bf16.mxu0 0
      %3793 = vmatpush2.bf16.msra.mxu0 0
      %3794 = vmatprep.subr.bf16.mxu0 0
      %3795 = vmatpush2.bf16.msra.mxu0 0
      %3796 = vmatprep.subr.bf16.mxu0 0
      %3797 = vmatpush2.bf16.msra.mxu0 0
      %3798 = vmatprep.subr.bf16.mxu0 0
      %3799 = vmatpush2.bf16.msra.mxu0 0
      %3800 = vmatprep.subr.bf16.mxu0 0
      %3801 = vmatpush2.bf16.msra.mxu0 0
      %3802 = vmatprep.subr.bf16.mxu0 0
      %3803 = vmatpush2.bf16.msra.mxu0 0
      %3804 = vmatprep.subr.bf16.mxu0 0
      %3805 = vmatpush2.bf16.msra.mxu0 0
      %3806 = vmatprep.subr.bf16.mxu0 0
      %3807 = vmatpush2.bf16.msra.mxu0 0
      %3808 = vmatprep.mubr.bf16.mxu0 0
      %3809 = vmatmul.mubr.bf16.gmra.mxu0 %v3774
      %v3810 = vpop.f32.mrf.mxu0
      %v3811 = vadd.f32 0.0, %v3810
      %v3812 = vpop.f32.mrf.mxu0
      %v3813 = vpop.f32.mrf.mxu0
      %v3814 = vadd.f32 0.0, %v3813
      %v3815 = vpop.f32.mrf.mxu0
      %3816 = vdwg.mxu0
      %v3817 = vadd.f32 %v3700, %v3811
      %v3818 = vadd.f32 %v3703, %v3814
      %s3819 = scalar_lea.vmem %s680, 72
      %v3820 = vld [vmem:[%s3819] sm:$0xf]
      %v3821 = vld [vmem:[%s3819 + $0x4] sm:$0xf]
      %s3822 = scalar_lea.vmem %s691, 72
      %v3823 = vld [vmem:[%s3822] sm:$0xf]
      %v3824 = vld [vmem:[%s3822 + $0x4] sm:$0xf]
      %v3825 = vld [vmem:[%s3819 + $0x8] sm:$0x1]
      %v3826 = vld [vmem:[%s3822 + $0x8] sm:$0x1]
      %v3829 = vunpack.c.l.b16 %v3820
      %v3830 = vunpack.c.l.b16 %v3821
      %v3831 = vpack.c.b16 %v3830, %v3829
      %v3834 = vunpack.c.l.b16 %v3823
      %v3835 = vunpack.c.l.b16 %v3824
      %v3836 = vpack.c.b16 %v3835, %v3834
      %3837 = vrot.lane.b32.xlu0 %v3836, 4
      %v3838 = vpop.permute.xlu0 %3837
      %v3840 = vunpack.c.l.b16 %v3825
      %v3841 = vpack.c.b16 %v3840, %v3840
      %v3843 = vshrl.u32 %v3831, 16
      %v3845 = vshll.u32 %v3831, 16
      %v3847 = vrot.slane %v3845, 1
      %v3848 = vor.u32 %v3843, %v3847
      %v3850 = vshll.u32 %v3841, 16
      %v3852 = vrot.slane %v3850, 1
      %v3853 = vsel %vm740, %v3848, %v3852
      %3854 = vrot.lane.b32.xlu0 %v3853, 8
      %v3855 = vpop.permute.xlu0 %3854
      %v3857 = vunpack.c.l.b16 %v3826
      %v3858 = vpack.c.b16 %v3857, %v3857
      %v3860 = vshrl.u32 %v3836, 16
      %v3862 = vshll.u32 %v3836, 16
      %v3864 = vrot.slane %v3862, 1
      %v3865 = vor.u32 %v3860, %v3864
      %v3867 = vshll.u32 %v3858, 16
      %v3869 = vrot.slane %v3867, 1
      %v3870 = vsel %vm740, %v3865, %v3869
      %3871 = vrot.lane.b32.xlu0 %v3870, 12
      %v3872 = vpop.permute.xlu0 %3871
      %v3874 = vsel %vm772, %v3831, %v3838
      %v3876 = vsel %vm775, %v3874, %v3855
      %v3878 = vsel %vm778, %v3876, %v3872
      %v3879 = vld [vmem:[%s1113] sm:$0xf]
      %v3880 = vld [vmem:[%s1113 + $0x4] sm:$0xf]
      %v3883 = vunpack.c.l.b16 %v3879
      %v3884 = vunpack.c.l.b16 %v3880
      %v3885 = vpack.c.b16 %v3884, %v3883
      %v3887 = vsel %vm850, %v3878, 0
      %3889 = vmatprep.subr.bf16.mxu0 0
      %3890 = vmatpush1.bf16.msra.mxu0 0
      %3891 = vmatprep.subr.bf16.mxu0 0
      %3892 = vmatpush1.bf16.msra.mxu0 0
      %3893 = vmatprep.subr.bf16.mxu0 0
      %3894 = vmatpush1.bf16.msra.mxu0 0
      %3895 = vmatprep.subr.bf16.mxu0 0
      %3896 = vmatpush1.bf16.msra.mxu0 0
      %3897 = vmatprep.subr.bf16.mxu0 0
      %3898 = vmatpush1.bf16.msra.mxu0 0
      %3899 = vmatprep.subr.bf16.mxu0 0
      %3900 = vmatpush1.bf16.msra.mxu0 0
      %3901 = vmatprep.subr.bf16.mxu0 0
      %3902 = vmatpush1.bf16.msra.mxu0 0
      %3903 = vmatprep.subr.bf16.mxu0 0
      %3904 = vmatpush1.bf16.msra.mxu0 %v3885
      %3905 = vmatprep.subr.bf16.mxu0 0
      %3906 = vmatpush2.bf16.msra.mxu0 0
      %3907 = vmatprep.subr.bf16.mxu0 0
      %3908 = vmatpush2.bf16.msra.mxu0 0
      %3909 = vmatprep.subr.bf16.mxu0 0
      %3910 = vmatpush2.bf16.msra.mxu0 0
      %3911 = vmatprep.subr.bf16.mxu0 0
      %3912 = vmatpush2.bf16.msra.mxu0 0
      %3913 = vmatprep.subr.bf16.mxu0 0
      %3914 = vmatpush2.bf16.msra.mxu0 0
      %3915 = vmatprep.subr.bf16.mxu0 0
      %3916 = vmatpush2.bf16.msra.mxu0 0
      %3917 = vmatprep.subr.bf16.mxu0 0
      %3918 = vmatpush2.bf16.msra.mxu0 0
      %3919 = vmatprep.subr.bf16.mxu0 0
      %3920 = vmatpush2.bf16.msra.mxu0 0
      %3921 = vmatprep.mubr.bf16.mxu0 0
      %3922 = vmatmul.mubr.bf16.gmra.mxu0 %v3887
      %v3923 = vpop.f32.mrf.mxu0
      %v3924 = vadd.f32 0.0, %v3923
      %v3925 = vpop.f32.mrf.mxu0
      %v3926 = vpop.f32.mrf.mxu0
      %v3927 = vadd.f32 0.0, %v3926
      %v3928 = vpop.f32.mrf.mxu0
      %3929 = vdwg.mxu0
      %v3930 = vadd.f32 %v3817, %v3924
      %v3931 = vadd.f32 %v3818, %v3927
      %v3932 = vmul.f32 %v3930, %v710
      %v3933 = vmul.f32 %v3931, %v710
      %v3934 = vadd.f32 %v3932, %v717
      %v3935 = vadd.f32 %v3933, %v717
      %vm3936 = vcmp.ge.f32.partialorder %v3934, 0.0
      %vm3937 = vcmp.ge.f32.partialorder %v3935, 0.0
      %v3938 = vmul.f32 %v3934, 0.2
      %v3939 = vmul.f32 %v3935, 0.2
      %v3940 = vsel %vm3936, %v3934, %v3938
      %v3941 = vsel %vm3937, %v3935, %v3939
      %s3942 = scalar_lea.vmem %s702, 96
      %3943 = vst.msk [vmem:[%s3942] sm:$0xff] %vm775, %v3940
      %3944 = vst.msk [vmem:[%s3942 + $0x8] sm:$0xff] %vm775, %v3941
      %s3945 = scalar_lea.vmem %s614, 84
      %v3946 = vld [vmem:[%s3945] sm:$0xf]
      %v3947 = vld [vmem:[%s3945 + $0x4] sm:$0xf]
      %s3948 = scalar_lea.vmem %s625, 84
      %v3949 = vld [vmem:[%s3948] sm:$0xf]
      %v3950 = vld [vmem:[%s3948 + $0x4] sm:$0xf]
      %v3951 = vld [vmem:[%s3945 + $0x8] sm:$0x1]
      %v3952 = vld [vmem:[%s3948 + $0x8] sm:$0x1]
      %v3955 = vunpack.c.l.b16 %v3946
      %v3956 = vunpack.c.l.b16 %v3947
      %v3957 = vpack.c.b16 %v3956, %v3955
      %v3960 = vunpack.c.l.b16 %v3949
      %v3961 = vunpack.c.l.b16 %v3950
      %v3962 = vpack.c.b16 %v3961, %v3960
      %3963 = vrot.lane.b32.xlu0 %v3962, 4
      %v3964 = vpop.permute.xlu0 %3963
      %v3966 = vunpack.c.l.b16 %v3951
      %v3967 = vpack.c.b16 %v3966, %v3966
      %v3969 = vshrl.u32 %v3957, 16
      %v3971 = vshll.u32 %v3957, 16
      %v3973 = vrot.slane %v3971, 1
      %v3974 = vor.u32 %v3969, %v3973
      %v3976 = vshll.u32 %v3967, 16
      %v3978 = vrot.slane %v3976, 1
      %v3979 = vsel %vm740, %v3974, %v3978
      %3980 = vrot.lane.b32.xlu0 %v3979, 8
      %v3981 = vpop.permute.xlu0 %3980
      %v3983 = vunpack.c.l.b16 %v3952
      %v3984 = vpack.c.b16 %v3983, %v3983
      %v3986 = vshrl.u32 %v3962, 16
      %v3988 = vshll.u32 %v3962, 16
      %v3990 = vrot.slane %v3988, 1
      %v3991 = vor.u32 %v3986, %v3990
      %v3993 = vshll.u32 %v3984, 16
      %v3995 = vrot.slane %v3993, 1
      %v3996 = vsel %vm740, %v3991, %v3995
      %3997 = vrot.lane.b32.xlu0 %v3996, 12
      %v3998 = vpop.permute.xlu0 %3997
      %v4000 = vsel %vm772, %v3957, %v3964
      %v4002 = vsel %vm775, %v4000, %v3981
      %v4004 = vsel %vm778, %v4002, %v3998
      %v4005 = vld [vmem:[%s8] sm:$0xf]
      %v4006 = vld [vmem:[%s8 + $0x4] sm:$0xf]
      %s4007 = scalar_lea.vmem %s636, 84
      %v4008 = vld [vmem:[%s4007] sm:$0xf]
      %v4009 = vld [vmem:[%s4007 + $0x4] sm:$0xf]
      %s4010 = scalar_lea.vmem %s647, 84
      %v4011 = vld [vmem:[%s4010] sm:$0xf]
      %v4012 = vld [vmem:[%s4010 + $0x4] sm:$0xf]
      %v4013 = vld [vmem:[%s4007 + $0x8] sm:$0x1]
      %v4014 = vld [vmem:[%s4010 + $0x8] sm:$0x1]
      %v4017 = vunpack.c.l.b16 %v4008
      %v4018 = vunpack.c.l.b16 %v4009
      %v4019 = vpack.c.b16 %v4018, %v4017
      %v4022 = vunpack.c.l.b16 %v4011
      %v4023 = vunpack.c.l.b16 %v4012
      %v4024 = vpack.c.b16 %v4023, %v4022
      %4025 = vrot.lane.b32.xlu0 %v4024, 4
      %v4026 = vpop.permute.xlu0 %4025
      %v4028 = vunpack.c.l.b16 %v4013
      %v4029 = vpack.c.b16 %v4028, %v4028
      %v4031 = vshrl.u32 %v4019, 16
      %v4033 = vshll.u32 %v4019, 16
      %v4035 = vrot.slane %v4033, 1
      %v4036 = vor.u32 %v4031, %v4035
      %v4038 = vshll.u32 %v4029, 16
      %v4040 = vrot.slane %v4038, 1
      %v4041 = vsel %vm740, %v4036, %v4040
      %4042 = vrot.lane.b32.xlu0 %v4041, 8
      %v4043 = vpop.permute.xlu0 %4042
      %v4045 = vunpack.c.l.b16 %v4014
      %v4046 = vpack.c.b16 %v4045, %v4045
      %v4048 = vshrl.u32 %v4024, 16
      %v4050 = vshll.u32 %v4024, 16
      %v4052 = vrot.slane %v4050, 1
      %v4053 = vor.u32 %v4048, %v4052
      %v4055 = vshll.u32 %v4046, 16
      %v4057 = vrot.slane %v4055, 1
      %v4058 = vsel %vm740, %v4053, %v4057
      %4059 = vrot.lane.b32.xlu0 %v4058, 12
      %v4060 = vpop.permute.xlu0 %4059
      %v4062 = vsel %vm772, %v4019, %v4026
      %v4064 = vsel %vm775, %v4062, %v4043
      %v4066 = vsel %vm778, %v4064, %v4060
      %v4067 = vld [vmem:[%s841] sm:$0xf]
      %v4068 = vld [vmem:[%s841 + $0x4] sm:$0xf]
      %v4071 = vunpack.c.l.b16 %v4067
      %v4072 = vunpack.c.l.b16 %v4068
      %v4073 = vpack.c.b16 %v4072, %v4071
      %v4075 = vsel %vm850, %v4066, 0
      %4077 = vmatprep.subr.bf16.mxu0 0
      %4078 = vmatpush1.bf16.msra.mxu0 0
      %4079 = vmatprep.subr.bf16.mxu0 0
      %4080 = vmatpush1.bf16.msra.mxu0 0
      %4081 = vmatprep.subr.bf16.mxu0 0
      %4082 = vmatpush1.bf16.msra.mxu0 0
      %4083 = vmatprep.subr.bf16.mxu0 0
      %4084 = vmatpush1.bf16.msra.mxu0 0
      %4085 = vmatprep.subr.bf16.mxu0 0
      %4086 = vmatpush1.bf16.msra.mxu0 0
      %4087 = vmatprep.subr.bf16.mxu0 0
      %4088 = vmatpush1.bf16.msra.mxu0 0
      %4089 = vmatprep.subr.bf16.mxu0 0
      %4090 = vmatpush1.bf16.msra.mxu0 0
      %4091 = vmatprep.subr.bf16.mxu0 0
      %4092 = vmatpush1.bf16.msra.mxu0 %v4073
      %4093 = vmatprep.subr.bf16.mxu0 0
      %4094 = vmatpush2.bf16.msra.mxu0 0
      %4095 = vmatprep.subr.bf16.mxu0 0
      %4096 = vmatpush2.bf16.msra.mxu0 0
      %4097 = vmatprep.subr.bf16.mxu0 0
      %4098 = vmatpush2.bf16.msra.mxu0 0
      %4099 = vmatprep.subr.bf16.mxu0 0
      %4100 = vmatpush2.bf16.msra.mxu0 0
      %4101 = vmatprep.subr.bf16.mxu0 0
      %4102 = vmatpush2.bf16.msra.mxu0 0
      %4103 = vmatprep.subr.bf16.mxu0 0
      %4104 = vmatpush2.bf16.msra.mxu0 0
      %4105 = vmatprep.subr.bf16.mxu0 0
      %4106 = vmatpush2.bf16.msra.mxu0 0
      %4107 = vmatprep.subr.bf16.mxu0 0
      %4108 = vmatpush2.bf16.msra.mxu0 0
      %4109 = vmatprep.mubr.bf16.mxu0 0
      %4110 = vmatmul.mubr.bf16.gmra.mxu0 %v4075
      %v4111 = vpop.f32.mrf.mxu0
      %v4112 = vadd.f32 0.0, %v4111
      %v4113 = vpop.f32.mrf.mxu0
      %v4114 = vpop.f32.mrf.mxu0
      %v4115 = vadd.f32 0.0, %v4114
      %v4116 = vpop.f32.mrf.mxu0
      %4117 = vdwg.mxu0
      %v4120 = vunpack.c.l.b16 %v4005
      %v4121 = vunpack.c.l.b16 %v4006
      %v4122 = vpack.c.b16 %v4121, %v4120
      %v4124 = vsel %vm850, %v4004, 0
      %4126 = vmatprep.subr.bf16.mxu0 0
      %4127 = vmatpush1.bf16.msra.mxu0 0
      %4128 = vmatprep.subr.bf16.mxu0 0
      %4129 = vmatpush1.bf16.msra.mxu0 0
      %4130 = vmatprep.subr.bf16.mxu0 0
      %4131 = vmatpush1.bf16.msra.mxu0 0
      %4132 = vmatprep.subr.bf16.mxu0 0
      %4133 = vmatpush1.bf16.msra.mxu0 0
      %4134 = vmatprep.subr.bf16.mxu0 0
      %4135 = vmatpush1.bf16.msra.mxu0 0
      %4136 = vmatprep.subr.bf16.mxu0 0
      %4137 = vmatpush1.bf16.msra.mxu0 0
      %4138 = vmatprep.subr.bf16.mxu0 0
      %4139 = vmatpush1.bf16.msra.mxu0 0
      %4140 = vmatprep.subr.bf16.mxu0 0
      %4141 = vmatpush1.bf16.msra.mxu0 %v4122
      %4142 = vmatprep.subr.bf16.mxu0 0
      %4143 = vmatpush2.bf16.msra.mxu0 0
      %4144 = vmatprep.subr.bf16.mxu0 0
      %4145 = vmatpush2.bf16.msra.mxu0 0
      %4146 = vmatprep.subr.bf16.mxu0 0
      %4147 = vmatpush2.bf16.msra.mxu0 0
      %4148 = vmatprep.subr.bf16.mxu0 0
      %4149 = vmatpush2.bf16.msra.mxu0 0
      %4150 = vmatprep.subr.bf16.mxu0 0
      %4151 = vmatpush2.bf16.msra.mxu0 0
      %4152 = vmatprep.subr.bf16.mxu0 0
      %4153 = vmatpush2.bf16.msra.mxu0 0
      %4154 = vmatprep.subr.bf16.mxu0 0
      %4155 = vmatpush2.bf16.msra.mxu0 0
      %4156 = vmatprep.subr.bf16.mxu0 0
      %4157 = vmatpush2.bf16.msra.mxu0 0
      %4158 = vmatprep.mubr.bf16.mxu0 0
      %4159 = vmatmul.mubr.bf16.gmra.mxu0 %v4124
      %v4160 = vpop.f32.mrf.mxu0
      %v4161 = vadd.f32 %v4112, %v4160
      %v4162 = vpop.f32.mrf.mxu0
      %v4163 = vpop.f32.mrf.mxu0
      %v4164 = vadd.f32 %v4115, %v4163
      %v4165 = vpop.f32.mrf.mxu0
      %4166 = vdwg.mxu0
      %s4167 = scalar_lea.vmem %s658, 84
      %v4168 = vld [vmem:[%s4167] sm:$0xf]
      %v4169 = vld [vmem:[%s4167 + $0x4] sm:$0xf]
      %s4170 = scalar_lea.vmem %s669, 84
      %v4171 = vld [vmem:[%s4170] sm:$0xf]
      %v4172 = vld [vmem:[%s4170 + $0x4] sm:$0xf]
      %v4173 = vld [vmem:[%s4167 + $0x8] sm:$0x1]
      %v4174 = vld [vmem:[%s4170 + $0x8] sm:$0x1]
      %v4177 = vunpack.c.l.b16 %v4168
      %v4178 = vunpack.c.l.b16 %v4169
      %v4179 = vpack.c.b16 %v4178, %v4177
      %v4182 = vunpack.c.l.b16 %v4171
      %v4183 = vunpack.c.l.b16 %v4172
      %v4184 = vpack.c.b16 %v4183, %v4182
      %4185 = vrot.lane.b32.xlu0 %v4184, 4
      %v4186 = vpop.permute.xlu0 %4185
      %v4188 = vunpack.c.l.b16 %v4173
      %v4189 = vpack.c.b16 %v4188, %v4188
      %v4191 = vshrl.u32 %v4179, 16
      %v4193 = vshll.u32 %v4179, 16
      %v4195 = vrot.slane %v4193, 1
      %v4196 = vor.u32 %v4191, %v4195
      %v4198 = vshll.u32 %v4189, 16
      %v4200 = vrot.slane %v4198, 1
      %v4201 = vsel %vm740, %v4196, %v4200
      %4202 = vrot.lane.b32.xlu0 %v4201, 8
      %v4203 = vpop.permute.xlu0 %4202
      %v4205 = vunpack.c.l.b16 %v4174
      %v4206 = vpack.c.b16 %v4205, %v4205
      %v4208 = vshrl.u32 %v4184, 16
      %v4210 = vshll.u32 %v4184, 16
      %v4212 = vrot.slane %v4210, 1
      %v4213 = vor.u32 %v4208, %v4212
      %v4215 = vshll.u32 %v4206, 16
      %v4217 = vrot.slane %v4215, 1
      %v4218 = vsel %vm740, %v4213, %v4217
      %4219 = vrot.lane.b32.xlu0 %v4218, 12
      %v4220 = vpop.permute.xlu0 %4219
      %v4222 = vsel %vm772, %v4179, %v4186
      %v4224 = vsel %vm775, %v4222, %v4203
      %v4226 = vsel %vm778, %v4224, %v4220
      %v4227 = vld [vmem:[%s1001] sm:$0xf]
      %v4228 = vld [vmem:[%s1001 + $0x4] sm:$0xf]
      %v4231 = vunpack.c.l.b16 %v4227
      %v4232 = vunpack.c.l.b16 %v4228
      %v4233 = vpack.c.b16 %v4232, %v4231
      %v4235 = vsel %vm850, %v4226, 0
      %4237 = vmatprep.subr.bf16.mxu0 0
      %4238 = vmatpush1.bf16.msra.mxu0 0
      %4239 = vmatprep.subr.bf16.mxu0 0
      %4240 = vmatpush1.bf16.msra.mxu0 0
      %4241 = vmatprep.subr.bf16.mxu0 0
      %4242 = vmatpush1.bf16.msra.mxu0 0
      %4243 = vmatprep.subr.bf16.mxu0 0
      %4244 = vmatpush1.bf16.msra.mxu0 0
      %4245 = vmatprep.subr.bf16.mxu0 0
      %4246 = vmatpush1.bf16.msra.mxu0 0
      %4247 = vmatprep.subr.bf16.mxu0 0
      %4248 = vmatpush1.bf16.msra.mxu0 0
      %4249 = vmatprep.subr.bf16.mxu0 0
      %4250 = vmatpush1.bf16.msra.mxu0 0
      %4251 = vmatprep.subr.bf16.mxu0 0
      %4252 = vmatpush1.bf16.msra.mxu0 %v4233
      %4253 = vmatprep.subr.bf16.mxu0 0
      %4254 = vmatpush2.bf16.msra.mxu0 0
      %4255 = vmatprep.subr.bf16.mxu0 0
      %4256 = vmatpush2.bf16.msra.mxu0 0
      %4257 = vmatprep.subr.bf16.mxu0 0
      %4258 = vmatpush2.bf16.msra.mxu0 0
      %4259 = vmatprep.subr.bf16.mxu0 0
      %4260 = vmatpush2.bf16.msra.mxu0 0
      %4261 = vmatprep.subr.bf16.mxu0 0
      %4262 = vmatpush2.bf16.msra.mxu0 0
      %4263 = vmatprep.subr.bf16.mxu0 0
      %4264 = vmatpush2.bf16.msra.mxu0 0
      %4265 = vmatprep.subr.bf16.mxu0 0
      %4266 = vmatpush2.bf16.msra.mxu0 0
      %4267 = vmatprep.subr.bf16.mxu0 0
      %4268 = vmatpush2.bf16.msra.mxu0 0
      %4269 = vmatprep.mubr.bf16.mxu0 0
      %4270 = vmatmul.mubr.bf16.gmra.mxu0 %v4235
      %v4271 = vpop.f32.mrf.mxu0
      %v4272 = vadd.f32 0.0, %v4271
      %v4273 = vpop.f32.mrf.mxu0
      %v4274 = vpop.f32.mrf.mxu0
      %v4275 = vadd.f32 0.0, %v4274
      %v4276 = vpop.f32.mrf.mxu0
      %4277 = vdwg.mxu0
      %v4278 = vadd.f32 %v4161, %v4272
      %v4279 = vadd.f32 %v4164, %v4275
      %s4280 = scalar_lea.vmem %s680, 84
      %v4281 = vld [vmem:[%s4280] sm:$0xf]
      %v4282 = vld [vmem:[%s4280 + $0x4] sm:$0xf]
      %s4283 = scalar_lea.vmem %s691, 84
      %v4284 = vld [vmem:[%s4283] sm:$0xf]
      %v4285 = vld [vmem:[%s4283 + $0x4] sm:$0xf]
      %v4286 = vld [vmem:[%s4280 + $0x8] sm:$0x1]
      %v4287 = vld [vmem:[%s4283 + $0x8] sm:$0x1]
      %v4290 = vunpack.c.l.b16 %v4281
      %v4291 = vunpack.c.l.b16 %v4282
      %v4292 = vpack.c.b16 %v4291, %v4290
      %v4295 = vunpack.c.l.b16 %v4284
      %v4296 = vunpack.c.l.b16 %v4285
      %v4297 = vpack.c.b16 %v4296, %v4295
      %4298 = vrot.lane.b32.xlu0 %v4297, 4
      %v4299 = vpop.permute.xlu0 %4298
      %v4301 = vunpack.c.l.b16 %v4286
      %v4302 = vpack.c.b16 %v4301, %v4301
      %v4304 = vshrl.u32 %v4292, 16
      %v4306 = vshll.u32 %v4292, 16
      %v4308 = vrot.slane %v4306, 1
      %v4309 = vor.u32 %v4304, %v4308
      %v4311 = vshll.u32 %v4302, 16
      %v4313 = vrot.slane %v4311, 1
      %v4314 = vsel %vm740, %v4309, %v4313
      %4315 = vrot.lane.b32.xlu0 %v4314, 8
      %v4316 = vpop.permute.xlu0 %4315
      %v4318 = vunpack.c.l.b16 %v4287
      %v4319 = vpack.c.b16 %v4318, %v4318
      %v4321 = vshrl.u32 %v4297, 16
      %v4323 = vshll.u32 %v4297, 16
      %v4325 = vrot.slane %v4323, 1
      %v4326 = vor.u32 %v4321, %v4325
      %v4328 = vshll.u32 %v4319, 16
      %v4330 = vrot.slane %v4328, 1
      %v4331 = vsel %vm740, %v4326, %v4330
      %4332 = vrot.lane.b32.xlu0 %v4331, 12
      %v4333 = vpop.permute.xlu0 %4332
      %v4335 = vsel %vm772, %v4292, %v4299
      %v4337 = vsel %vm775, %v4335, %v4316
      %v4339 = vsel %vm778, %v4337, %v4333
      %v4340 = vld [vmem:[%s1113] sm:$0xf]
      %v4341 = vld [vmem:[%s1113 + $0x4] sm:$0xf]
      %v4344 = vunpack.c.l.b16 %v4340
      %v4345 = vunpack.c.l.b16 %v4341
      %v4346 = vpack.c.b16 %v4345, %v4344
      %v4348 = vsel %vm850, %v4339, 0
      %4350 = vmatprep.subr.bf16.mxu0 0
      %4351 = vmatpush1.bf16.msra.mxu0 0
      %4352 = vmatprep.subr.bf16.mxu0 0
      %4353 = vmatpush1.bf16.msra.mxu0 0
      %4354 = vmatprep.subr.bf16.mxu0 0
      %4355 = vmatpush1.bf16.msra.mxu0 0
      %4356 = vmatprep.subr.bf16.mxu0 0
      %4357 = vmatpush1.bf16.msra.mxu0 0
      %4358 = vmatprep.subr.bf16.mxu0 0
      %4359 = vmatpush1.bf16.msra.mxu0 0
      %4360 = vmatprep.subr.bf16.mxu0 0
      %4361 = vmatpush1.bf16.msra.mxu0 0
      %4362 = vmatprep.subr.bf16.mxu0 0
      %4363 = vmatpush1.bf16.msra.mxu0 0
      %4364 = vmatprep.subr.bf16.mxu0 0
      %4365 = vmatpush1.bf16.msra.mxu0 %v4346
      %4366 = vmatprep.subr.bf16.mxu0 0
      %4367 = vmatpush2.bf16.msra.mxu0 0
      %4368 = vmatprep.subr.bf16.mxu0 0
      %4369 = vmatpush2.bf16.msra.mxu0 0
      %4370 = vmatprep.subr.bf16.mxu0 0
      %4371 = vmatpush2.bf16.msra.mxu0 0
      %4372 = vmatprep.subr.bf16.mxu0 0
      %4373 = vmatpush2.bf16.msra.mxu0 0
      %4374 = vmatprep.subr.bf16.mxu0 0
      %4375 = vmatpush2.bf16.msra.mxu0 0
      %4376 = vmatprep.subr.bf16.mxu0 0
      %4377 = vmatpush2.bf16.msra.mxu0 0
      %4378 = vmatprep.subr.bf16.mxu0 0
      %4379 = vmatpush2.bf16.msra.mxu0 0
      %4380 = vmatprep.subr.bf16.mxu0 0
      %4381 = vmatpush2.bf16.msra.mxu0 0
      %4382 = vmatprep.mubr.bf16.mxu0 0
      %4383 = vmatmul.mubr.bf16.gmra.mxu0 %v4348
      %v4384 = vpop.f32.mrf.mxu0
      %v4385 = vadd.f32 0.0, %v4384
      %v4386 = vpop.f32.mrf.mxu0
      %v4387 = vpop.f32.mrf.mxu0
      %v4388 = vadd.f32 0.0, %v4387
      %v4389 = vpop.f32.mrf.mxu0
      %4390 = vdwg.mxu0
      %v4391 = vadd.f32 %v4278, %v4385
      %v4392 = vadd.f32 %v4279, %v4388
      %v4393 = vmul.f32 %v4391, %v710
      %v4394 = vmul.f32 %v4392, %v710
      %v4395 = vadd.f32 %v4393, %v717
      %v4396 = vadd.f32 %v4394, %v717
      %vm4397 = vcmp.ge.f32.partialorder %v4395, 0.0
      %vm4398 = vcmp.ge.f32.partialorder %v4396, 0.0
      %v4399 = vmul.f32 %v4395, 0.2
      %v4400 = vmul.f32 %v4396, 0.2
      %v4401 = vsel %vm4397, %v4395, %v4399
      %v4402 = vsel %vm4398, %v4396, %v4400
      %s4403 = scalar_lea.vmem %s702, 112
      %4404 = vst.msk [vmem:[%s4403] sm:$0xff] %vm775, %v4401
      %4405 = vst.msk [vmem:[%s4403 + $0x8] sm:$0xff] %vm775, %v4402
      %s4406 = scalar_lea.vmem %s614, 96
      %v4407 = vld [vmem:[%s4406] sm:$0xf]
      %v4408 = vld [vmem:[%s4406 + $0x4] sm:$0xf]
      %s4409 = scalar_lea.vmem %s625, 96
      %v4410 = vld [vmem:[%s4409] sm:$0xf]
      %v4411 = vld [vmem:[%s4409 + $0x4] sm:$0xf]
      %v4412 = vld [vmem:[%s4406 + $0x8] sm:$0x1]
      %v4413 = vld [vmem:[%s4409 + $0x8] sm:$0x1]
      %v4416 = vunpack.c.l.b16 %v4407
      %v4417 = vunpack.c.l.b16 %v4408
      %v4418 = vpack.c.b16 %v4417, %v4416
      %v4421 = vunpack.c.l.b16 %v4410
      %v4422 = vunpack.c.l.b16 %v4411
      %v4423 = vpack.c.b16 %v4422, %v4421
      %4424 = vrot.lane.b32.xlu0 %v4423, 4
      %v4425 = vpop.permute.xlu0 %4424
      %v4427 = vunpack.c.l.b16 %v4412
      %v4428 = vpack.c.b16 %v4427, %v4427
      %v4430 = vshrl.u32 %v4418, 16
      %v4432 = vshll.u32 %v4418, 16
      %v4434 = vrot.slane %v4432, 1
      %v4435 = vor.u32 %v4430, %v4434
      %v4437 = vshll.u32 %v4428, 16
      %v4439 = vrot.slane %v4437, 1
      %v4440 = vsel %vm740, %v4435, %v4439
      %4441 = vrot.lane.b32.xlu0 %v4440, 8
      %v4442 = vpop.permute.xlu0 %4441
      %v4444 = vunpack.c.l.b16 %v4413
      %v4445 = vpack.c.b16 %v4444, %v4444
      %v4447 = vshrl.u32 %v4423, 16
      %v4449 = vshll.u32 %v4423, 16
      %v4451 = vrot.slane %v4449, 1
      %v4452 = vor.u32 %v4447, %v4451
      %v4454 = vshll.u32 %v4445, 16
      %v4456 = vrot.slane %v4454, 1
      %v4457 = vsel %vm740, %v4452, %v4456
      %4458 = vrot.lane.b32.xlu0 %v4457, 12
      %v4459 = vpop.permute.xlu0 %4458
      %v4461 = vsel %vm772, %v4418, %v4425
      %v4463 = vsel %vm775, %v4461, %v4442
      %v4465 = vsel %vm778, %v4463, %v4459
      %v4466 = vld [vmem:[%s8] sm:$0xf]
      %v4467 = vld [vmem:[%s8 + $0x4] sm:$0xf]
      %s4468 = scalar_lea.vmem %s636, 96
      %v4469 = vld [vmem:[%s4468] sm:$0xf]
      %v4470 = vld [vmem:[%s4468 + $0x4] sm:$0xf]
      %s4471 = scalar_lea.vmem %s647, 96
      %v4472 = vld [vmem:[%s4471] sm:$0xf]
      %v4473 = vld [vmem:[%s4471 + $0x4] sm:$0xf]
      %v4474 = vld [vmem:[%s4468 + $0x8] sm:$0x1]
      %v4475 = vld [vmem:[%s4471 + $0x8] sm:$0x1]
      %v4478 = vunpack.c.l.b16 %v4469
      %v4479 = vunpack.c.l.b16 %v4470
      %v4480 = vpack.c.b16 %v4479, %v4478
      %v4483 = vunpack.c.l.b16 %v4472
      %v4484 = vunpack.c.l.b16 %v4473
      %v4485 = vpack.c.b16 %v4484, %v4483
      %4486 = vrot.lane.b32.xlu0 %v4485, 4
      %v4487 = vpop.permute.xlu0 %4486
      %v4489 = vunpack.c.l.b16 %v4474
      %v4490 = vpack.c.b16 %v4489, %v4489
      %v4492 = vshrl.u32 %v4480, 16
      %v4494 = vshll.u32 %v4480, 16
      %v4496 = vrot.slane %v4494, 1
      %v4497 = vor.u32 %v4492, %v4496
      %v4499 = vshll.u32 %v4490, 16
      %v4501 = vrot.slane %v4499, 1
      %v4502 = vsel %vm740, %v4497, %v4501
      %4503 = vrot.lane.b32.xlu0 %v4502, 8
      %v4504 = vpop.permute.xlu0 %4503
      %v4506 = vunpack.c.l.b16 %v4475
      %v4507 = vpack.c.b16 %v4506, %v4506
      %v4509 = vshrl.u32 %v4485, 16
      %v4511 = vshll.u32 %v4485, 16
      %v4513 = vrot.slane %v4511, 1
      %v4514 = vor.u32 %v4509, %v4513
      %v4516 = vshll.u32 %v4507, 16
      %v4518 = vrot.slane %v4516, 1
      %v4519 = vsel %vm740, %v4514, %v4518
      %4520 = vrot.lane.b32.xlu0 %v4519, 12
      %v4521 = vpop.permute.xlu0 %4520
      %v4523 = vsel %vm772, %v4480, %v4487
      %v4525 = vsel %vm775, %v4523, %v4504
      %v4527 = vsel %vm778, %v4525, %v4521
      %v4528 = vld [vmem:[%s841] sm:$0xf]
      %v4529 = vld [vmem:[%s841 + $0x4] sm:$0xf]
      %v4532 = vunpack.c.l.b16 %v4528
      %v4533 = vunpack.c.l.b16 %v4529
      %v4534 = vpack.c.b16 %v4533, %v4532
      %v4536 = vsel %vm850, %v4527, 0
      %4538 = vmatprep.subr.bf16.mxu0 0
      %4539 = vmatpush1.bf16.msra.mxu0 0
      %4540 = vmatprep.subr.bf16.mxu0 0
      %4541 = vmatpush1.bf16.msra.mxu0 0
      %4542 = vmatprep.subr.bf16.mxu0 0
      %4543 = vmatpush1.bf16.msra.mxu0 0
      %4544 = vmatprep.subr.bf16.mxu0 0
      %4545 = vmatpush1.bf16.msra.mxu0 0
      %4546 = vmatprep.subr.bf16.mxu0 0
      %4547 = vmatpush1.bf16.msra.mxu0 0
      %4548 = vmatprep.subr.bf16.mxu0 0
      %4549 = vmatpush1.bf16.msra.mxu0 0
      %4550 = vmatprep.subr.bf16.mxu0 0
      %4551 = vmatpush1.bf16.msra.mxu0 0
      %4552 = vmatprep.subr.bf16.mxu0 0
      %4553 = vmatpush1.bf16.msra.mxu0 %v4534
      %4554 = vmatprep.subr.bf16.mxu0 0
      %4555 = vmatpush2.bf16.msra.mxu0 0
      %4556 = vmatprep.subr.bf16.mxu0 0
      %4557 = vmatpush2.bf16.msra.mxu0 0
      %4558 = vmatprep.subr.bf16.mxu0 0
      %4559 = vmatpush2.bf16.msra.mxu0 0
      %4560 = vmatprep.subr.bf16.mxu0 0
      %4561 = vmatpush2.bf16.msra.mxu0 0
      %4562 = vmatprep.subr.bf16.mxu0 0
      %4563 = vmatpush2.bf16.msra.mxu0 0
      %4564 = vmatprep.subr.bf16.mxu0 0
      %4565 = vmatpush2.bf16.msra.mxu0 0
      %4566 = vmatprep.subr.bf16.mxu0 0
      %4567 = vmatpush2.bf16.msra.mxu0 0
      %4568 = vmatprep.subr.bf16.mxu0 0
      %4569 = vmatpush2.bf16.msra.mxu0 0
      %4570 = vmatprep.mubr.bf16.mxu0 0
      %4571 = vmatmul.mubr.bf16.gmra.mxu0 %v4536
      %v4572 = vpop.f32.mrf.mxu0
      %v4573 = vadd.f32 0.0, %v4572
      %v4574 = vpop.f32.mrf.mxu0
      %v4575 = vpop.f32.mrf.mxu0
      %v4576 = vadd.f32 0.0, %v4575
      %v4577 = vpop.f32.mrf.mxu0
      %4578 = vdwg.mxu0
      %v4581 = vunpack.c.l.b16 %v4466
      %v4582 = vunpack.c.l.b16 %v4467
      %v4583 = vpack.c.b16 %v4582, %v4581
      %v4585 = vsel %vm850, %v4465, 0
      %4587 = vmatprep.subr.bf16.mxu0 0
      %4588 = vmatpush1.bf16.msra.mxu0 0
      %4589 = vmatprep.subr.bf16.mxu0 0
      %4590 = vmatpush1.bf16.msra.mxu0 0
      %4591 = vmatprep.subr.bf16.mxu0 0
      %4592 = vmatpush1.bf16.msra.mxu0 0
      %4593 = vmatprep.subr.bf16.mxu0 0
      %4594 = vmatpush1.bf16.msra.mxu0 0
      %4595 = vmatprep.subr.bf16.mxu0 0
      %4596 = vmatpush1.bf16.msra.mxu0 0
      %4597 = vmatprep.subr.bf16.mxu0 0
      %4598 = vmatpush1.bf16.msra.mxu0 0
      %4599 = vmatprep.subr.bf16.mxu0 0
      %4600 = vmatpush1.bf16.msra.mxu0 0
      %4601 = vmatprep.subr.bf16.mxu0 0
      %4602 = vmatpush1.bf16.msra.mxu0 %v4583
      %4603 = vmatprep.subr.bf16.mxu0 0
      %4604 = vmatpush2.bf16.msra.mxu0 0
      %4605 = vmatprep.subr.bf16.mxu0 0
      %4606 = vmatpush2.bf16.msra.mxu0 0
      %4607 = vmatprep.subr.bf16.mxu0 0
      %4608 = vmatpush2.bf16.msra.mxu0 0
      %4609 = vmatprep.subr.bf16.mxu0 0
      %4610 = vmatpush2.bf16.msra.mxu0 0
      %4611 = vmatprep.subr.bf16.mxu0 0
      %4612 = vmatpush2.bf16.msra.mxu0 0
      %4613 = vmatprep.subr.bf16.mxu0 0
      %4614 = vmatpush2.bf16.msra.mxu0 0
      %4615 = vmatprep.subr.bf16.mxu0 0
      %4616 = vmatpush2.bf16.msra.mxu0 0
      %4617 = vmatprep.subr.bf16.mxu0 0
      %4618 = vmatpush2.bf16.msra.mxu0 0
      %4619 = vmatprep.mubr.bf16.mxu0 0
      %4620 = vmatmul.mubr.bf16.gmra.mxu0 %v4585
      %v4621 = vpop.f32.mrf.mxu0
      %v4622 = vadd.f32 %v4573, %v4621
      %v4623 = vpop.f32.mrf.mxu0
      %v4624 = vpop.f32.mrf.mxu0
      %v4625 = vadd.f32 %v4576, %v4624
      %v4626 = vpop.f32.mrf.mxu0
      %4627 = vdwg.mxu0
      %s4628 = scalar_lea.vmem %s658, 96
      %v4629 = vld [vmem:[%s4628] sm:$0xf]
      %v4630 = vld [vmem:[%s4628 + $0x4] sm:$0xf]
      %s4631 = scalar_lea.vmem %s669, 96
      %v4632 = vld [vmem:[%s4631] sm:$0xf]
      %v4633 = vld [vmem:[%s4631 + $0x4] sm:$0xf]
      %v4634 = vld [vmem:[%s4628 + $0x8] sm:$0x1]
      %v4635 = vld [vmem:[%s4631 + $0x8] sm:$0x1]
      %v4638 = vunpack.c.l.b16 %v4629
      %v4639 = vunpack.c.l.b16 %v4630
      %v4640 = vpack.c.b16 %v4639, %v4638
      %v4643 = vunpack.c.l.b16 %v4632
      %v4644 = vunpack.c.l.b16 %v4633
      %v4645 = vpack.c.b16 %v4644, %v4643
      %4646 = vrot.lane.b32.xlu0 %v4645, 4
      %v4647 = vpop.permute.xlu0 %4646
      %v4649 = vunpack.c.l.b16 %v4634
      %v4650 = vpack.c.b16 %v4649, %v4649
      %v4652 = vshrl.u32 %v4640, 16
      %v4654 = vshll.u32 %v4640, 16
      %v4656 = vrot.slane %v4654, 1
      %v4657 = vor.u32 %v4652, %v4656
      %v4659 = vshll.u32 %v4650, 16
      %v4661 = vrot.slane %v4659, 1
      %v4662 = vsel %vm740, %v4657, %v4661
      %4663 = vrot.lane.b32.xlu0 %v4662, 8
      %v4664 = vpop.permute.xlu0 %4663
      %v4666 = vunpack.c.l.b16 %v4635
      %v4667 = vpack.c.b16 %v4666, %v4666
      %v4669 = vshrl.u32 %v4645, 16
      %v4671 = vshll.u32 %v4645, 16
      %v4673 = vrot.slane %v4671, 1
      %v4674 = vor.u32 %v4669, %v4673
      %v4676 = vshll.u32 %v4667, 16
      %v4678 = vrot.slane %v4676, 1
      %v4679 = vsel %vm740, %v4674, %v4678
      %4680 = vrot.lane.b32.xlu0 %v4679, 12
      %v4681 = vpop.permute.xlu0 %4680
      %v4683 = vsel %vm772, %v4640, %v4647
      %v4685 = vsel %vm775, %v4683, %v4664
      %v4687 = vsel %vm778, %v4685, %v4681
      %v4688 = vld [vmem:[%s1001] sm:$0xf]
      %v4689 = vld [vmem:[%s1001 + $0x4] sm:$0xf]
      %v4692 = vunpack.c.l.b16 %v4688
      %v4693 = vunpack.c.l.b16 %v4689
      %v4694 = vpack.c.b16 %v4693, %v4692
      %v4696 = vsel %vm850, %v4687, 0
      %4698 = vmatprep.subr.bf16.mxu0 0
      %4699 = vmatpush1.bf16.msra.mxu0 0
      %4700 = vmatprep.subr.bf16.mxu0 0
      %4701 = vmatpush1.bf16.msra.mxu0 0
      %4702 = vmatprep.subr.bf16.mxu0 0
      %4703 = vmatpush1.bf16.msra.mxu0 0
      %4704 = vmatprep.subr.bf16.mxu0 0
      %4705 = vmatpush1.bf16.msra.mxu0 0
      %4706 = vmatprep.subr.bf16.mxu0 0
      %4707 = vmatpush1.bf16.msra.mxu0 0
      %4708 = vmatprep.subr.bf16.mxu0 0
      %4709 = vmatpush1.bf16.msra.mxu0 0
      %4710 = vmatprep.subr.bf16.mxu0 0
      %4711 = vmatpush1.bf16.msra.mxu0 0
      %4712 = vmatprep.subr.bf16.mxu0 0
      %4713 = vmatpush1.bf16.msra.mxu0 %v4694
      %4714 = vmatprep.subr.bf16.mxu0 0
      %4715 = vmatpush2.bf16.msra.mxu0 0
      %4716 = vmatprep.subr.bf16.mxu0 0
      %4717 = vmatpush2.bf16.msra.mxu0 0
      %4718 = vmatprep.subr.bf16.mxu0 0
      %4719 = vmatpush2.bf16.msra.mxu0 0
      %4720 = vmatprep.subr.bf16.mxu0 0
      %4721 = vmatpush2.bf16.msra.mxu0 0
      %4722 = vmatprep.subr.bf16.mxu0 0
      %4723 = vmatpush2.bf16.msra.mxu0 0
      %4724 = vmatprep.subr.bf16.mxu0 0
      %4725 = vmatpush2.bf16.msra.mxu0 0
      %4726 = vmatprep.subr.bf16.mxu0 0
      %4727 = vmatpush2.bf16.msra.mxu0 0
      %4728 = vmatprep.subr.bf16.mxu0 0
      %4729 = vmatpush2.bf16.msra.mxu0 0
      %4730 = vmatprep.mubr.bf16.mxu0 0
      %4731 = vmatmul.mubr.bf16.gmra.mxu0 %v4696
      %v4732 = vpop.f32.mrf.mxu0
      %v4733 = vadd.f32 0.0, %v4732
      %v4734 = vpop.f32.mrf.mxu0
      %v4735 = vpop.f32.mrf.mxu0
      %v4736 = vadd.f32 0.0, %v4735
      %v4737 = vpop.f32.mrf.mxu0
      %4738 = vdwg.mxu0
      %v4739 = vadd.f32 %v4622, %v4733
      %v4740 = vadd.f32 %v4625, %v4736
      %s4741 = scalar_lea.vmem %s680, 96
      %v4742 = vld [vmem:[%s4741] sm:$0xf]
      %v4743 = vld [vmem:[%s4741 + $0x4] sm:$0xf]
      %s4744 = scalar_lea.vmem %s691, 96
      %v4745 = vld [vmem:[%s4744] sm:$0xf]
      %v4746 = vld [vmem:[%s4744 + $0x4] sm:$0xf]
      %v4747 = vld [vmem:[%s4741 + $0x8] sm:$0x1]
      %v4748 = vld [vmem:[%s4744 + $0x8] sm:$0x1]
      %v4751 = vunpack.c.l.b16 %v4742
      %v4752 = vunpack.c.l.b16 %v4743
      %v4753 = vpack.c.b16 %v4752, %v4751
      %v4756 = vunpack.c.l.b16 %v4745
      %v4757 = vunpack.c.l.b16 %v4746
      %v4758 = vpack.c.b16 %v4757, %v4756
      %4759 = vrot.lane.b32.xlu0 %v4758, 4
      %v4760 = vpop.permute.xlu0 %4759
      %v4762 = vunpack.c.l.b16 %v4747
      %v4763 = vpack.c.b16 %v4762, %v4762
      %v4765 = vshrl.u32 %v4753, 16
      %v4767 = vshll.u32 %v4753, 16
      %v4769 = vrot.slane %v4767, 1
      %v4770 = vor.u32 %v4765, %v4769
      %v4772 = vshll.u32 %v4763, 16
      %v4774 = vrot.slane %v4772, 1
      %v4775 = vsel %vm740, %v4770, %v4774
      %4776 = vrot.lane.b32.xlu0 %v4775, 8
      %v4777 = vpop.permute.xlu0 %4776
      %v4779 = vunpack.c.l.b16 %v4748
      %v4780 = vpack.c.b16 %v4779, %v4779
      %v4782 = vshrl.u32 %v4758, 16
      %v4784 = vshll.u32 %v4758, 16
      %v4786 = vrot.slane %v4784, 1
      %v4787 = vor.u32 %v4782, %v4786
      %v4789 = vshll.u32 %v4780, 16
      %v4791 = vrot.slane %v4789, 1
      %v4792 = vsel %vm740, %v4787, %v4791
      %4793 = vrot.lane.b32.xlu0 %v4792, 12
      %v4794 = vpop.permute.xlu0 %4793
      %v4796 = vsel %vm772, %v4753, %v4760
      %v4798 = vsel %vm775, %v4796, %v4777
      %v4800 = vsel %vm778, %v4798, %v4794
      %v4801 = vld [vmem:[%s1113] sm:$0xf]
      %v4802 = vld [vmem:[%s1113 + $0x4] sm:$0xf]
      %v4805 = vunpack.c.l.b16 %v4801
      %v4806 = vunpack.c.l.b16 %v4802
      %v4807 = vpack.c.b16 %v4806, %v4805
      %v4809 = vsel %vm850, %v4800, 0
      %4811 = vmatprep.subr.bf16.mxu0 0
      %4812 = vmatpush1.bf16.msra.mxu0 0
      %4813 = vmatprep.subr.bf16.mxu0 0
      %4814 = vmatpush1.bf16.msra.mxu0 0
      %4815 = vmatprep.subr.bf16.mxu0 0
      %4816 = vmatpush1.bf16.msra.mxu0 0
      %4817 = vmatprep.subr.bf16.mxu0 0
      %4818 = vmatpush1.bf16.msra.mxu0 0
      %4819 = vmatprep.subr.bf16.mxu0 0
      %4820 = vmatpush1.bf16.msra.mxu0 0
      %4821 = vmatprep.subr.bf16.mxu0 0
      %4822 = vmatpush1.bf16.msra.mxu0 0
      %4823 = vmatprep.subr.bf16.mxu0 0
      %4824 = vmatpush1.bf16.msra.mxu0 0
      %4825 = vmatprep.subr.bf16.mxu0 0
      %4826 = vmatpush1.bf16.msra.mxu0 %v4807
      %4827 = vmatprep.subr.bf16.mxu0 0
      %4828 = vmatpush2.bf16.msra.mxu0 0
      %4829 = vmatprep.subr.bf16.mxu0 0
      %4830 = vmatpush2.bf16.msra.mxu0 0
      %4831 = vmatprep.subr.bf16.mxu0 0
      %4832 = vmatpush2.bf16.msra.mxu0 0
      %4833 = vmatprep.subr.bf16.mxu0 0
      %4834 = vmatpush2.bf16.msra.mxu0 0
      %4835 = vmatprep.subr.bf16.mxu0 0
      %4836 = vmatpush2.bf16.msra.mxu0 0
      %4837 = vmatprep.subr.bf16.mxu0 0
      %4838 = vmatpush2.bf16.msra.mxu0 0
      %4839 = vmatprep.subr.bf16.mxu0 0
      %4840 = vmatpush2.bf16.msra.mxu0 0
      %4841 = vmatprep.subr.bf16.mxu0 0
      %4842 = vmatpush2.bf16.msra.mxu0 0
      %4843 = vmatprep.mubr.bf16.mxu0 0
      %4844 = vmatmul.mubr.bf16.gmra.mxu0 %v4809
      %v4845 = vpop.f32.mrf.mxu0
      %v4846 = vadd.f32 0.0, %v4845
      %v4847 = vpop.f32.mrf.mxu0
      %v4848 = vpop.f32.mrf.mxu0
      %v4849 = vadd.f32 0.0, %v4848
      %v4850 = vpop.f32.mrf.mxu0
      %4851 = vdwg.mxu0
      %v4852 = vadd.f32 %v4739, %v4846
      %v4853 = vadd.f32 %v4740, %v4849
      %v4854 = vmul.f32 %v4852, %v710
      %v4855 = vmul.f32 %v4853, %v710
      %v4856 = vadd.f32 %v4854, %v717
      %v4857 = vadd.f32 %v4855, %v717
      %vm4858 = vcmp.ge.f32.partialorder %v4856, 0.0
      %vm4859 = vcmp.ge.f32.partialorder %v4857, 0.0
      %v4860 = vmul.f32 %v4856, 0.2
      %v4861 = vmul.f32 %v4857, 0.2
      %v4862 = vsel %vm4858, %v4856, %v4860
      %v4863 = vsel %vm4859, %v4857, %v4861
      %s4864 = scalar_lea.vmem %s702, 128
      %4865 = vst.msk [vmem:[%s4864] sm:$0xff] %vm775, %v4862
      %4866 = vst.msk [vmem:[%s4864 + $0x8] sm:$0xff] %vm775, %v4863
      %s4867 = scalar_lea.vmem %s614, 108
      %v4868 = vld [vmem:[%s4867] sm:$0xf]
      %v4869 = vld [vmem:[%s4867 + $0x4] sm:$0xf]
      %s4870 = scalar_lea.vmem %s625, 108
      %v4871 = vld [vmem:[%s4870] sm:$0xf]
      %v4872 = vld [vmem:[%s4870 + $0x4] sm:$0xf]
      %v4873 = vld [vmem:[%s4867 + $0x8] sm:$0x1]
      %v4874 = vld [vmem:[%s4870 + $0x8] sm:$0x1]
      %v4877 = vunpack.c.l.b16 %v4868
      %v4878 = vunpack.c.l.b16 %v4869
      %v4879 = vpack.c.b16 %v4878, %v4877
      %v4882 = vunpack.c.l.b16 %v4871
      %v4883 = vunpack.c.l.b16 %v4872
      %v4884 = vpack.c.b16 %v4883, %v4882
      %4885 = vrot.lane.b32.xlu0 %v4884, 4
      %v4886 = vpop.permute.xlu0 %4885
      %v4888 = vunpack.c.l.b16 %v4873
      %v4889 = vpack.c.b16 %v4888, %v4888
      %v4891 = vshrl.u32 %v4879, 16
      %v4893 = vshll.u32 %v4879, 16
      %v4895 = vrot.slane %v4893, 1
      %v4896 = vor.u32 %v4891, %v4895
      %v4898 = vshll.u32 %v4889, 16
      %v4900 = vrot.slane %v4898, 1
      %v4901 = vsel %vm740, %v4896, %v4900
      %4902 = vrot.lane.b32.xlu0 %v4901, 8
      %v4903 = vpop.permute.xlu0 %4902
      %v4905 = vunpack.c.l.b16 %v4874
      %v4906 = vpack.c.b16 %v4905, %v4905
      %v4908 = vshrl.u32 %v4884, 16
      %v4910 = vshll.u32 %v4884, 16
      %v4912 = vrot.slane %v4910, 1
      %v4913 = vor.u32 %v4908, %v4912
      %v4915 = vshll.u32 %v4906, 16
      %v4917 = vrot.slane %v4915, 1
      %v4918 = vsel %vm740, %v4913, %v4917
      %4919 = vrot.lane.b32.xlu0 %v4918, 12
      %v4920 = vpop.permute.xlu0 %4919
      %v4922 = vsel %vm772, %v4879, %v4886
      %v4924 = vsel %vm775, %v4922, %v4903
      %v4926 = vsel %vm778, %v4924, %v4920
      %v4927 = vld [vmem:[%s8] sm:$0xf]
      %v4928 = vld [vmem:[%s8 + $0x4] sm:$0xf]
      %s4929 = scalar_lea.vmem %s636, 108
      %v4930 = vld [vmem:[%s4929] sm:$0xf]
      %v4931 = vld [vmem:[%s4929 + $0x4] sm:$0xf]
      %s4932 = scalar_lea.vmem %s647, 108
      %v4933 = vld [vmem:[%s4932] sm:$0xf]
      %v4934 = vld [vmem:[%s4932 + $0x4] sm:$0xf]
      %v4935 = vld [vmem:[%s4929 + $0x8] sm:$0x1]
      %v4936 = vld [vmem:[%s4932 + $0x8] sm:$0x1]
      %v4939 = vunpack.c.l.b16 %v4930
      %v4940 = vunpack.c.l.b16 %v4931
      %v4941 = vpack.c.b16 %v4940, %v4939
      %v4944 = vunpack.c.l.b16 %v4933
      %v4945 = vunpack.c.l.b16 %v4934
      %v4946 = vpack.c.b16 %v4945, %v4944
      %4947 = vrot.lane.b32.xlu0 %v4946, 4
      %v4948 = vpop.permute.xlu0 %4947
      %v4950 = vunpack.c.l.b16 %v4935
      %v4951 = vpack.c.b16 %v4950, %v4950
      %v4953 = vshrl.u32 %v4941, 16
      %v4955 = vshll.u32 %v4941, 16
      %v4957 = vrot.slane %v4955, 1
      %v4958 = vor.u32 %v4953, %v4957
      %v4960 = vshll.u32 %v4951, 16
      %v4962 = vrot.slane %v4960, 1
      %v4963 = vsel %vm740, %v4958, %v4962
      %4964 = vrot.lane.b32.xlu0 %v4963, 8
      %v4965 = vpop.permute.xlu0 %4964
      %v4967 = vunpack.c.l.b16 %v4936
      %v4968 = vpack.c.b16 %v4967, %v4967
      %v4970 = vshrl.u32 %v4946, 16
      %v4972 = vshll.u32 %v4946, 16
      %v4974 = vrot.slane %v4972, 1
      %v4975 = vor.u32 %v4970, %v4974
      %v4977 = vshll.u32 %v4968, 16
      %v4979 = vrot.slane %v4977, 1
      %v4980 = vsel %vm740, %v4975, %v4979
      %4981 = vrot.lane.b32.xlu0 %v4980, 12
      %v4982 = vpop.permute.xlu0 %4981
      %v4984 = vsel %vm772, %v4941, %v4948
      %v4986 = vsel %vm775, %v4984, %v4965
      %v4988 = vsel %vm778, %v4986, %v4982
      %v4989 = vld [vmem:[%s841] sm:$0xf]
      %v4990 = vld [vmem:[%s841 + $0x4] sm:$0xf]
      %v4993 = vunpack.c.l.b16 %v4989
      %v4994 = vunpack.c.l.b16 %v4990
      %v4995 = vpack.c.b16 %v4994, %v4993
      %v4997 = vsel %vm850, %v4988, 0
      %4999 = vmatprep.subr.bf16.mxu0 0
      %5000 = vmatpush1.bf16.msra.mxu0 0
      %5001 = vmatprep.subr.bf16.mxu0 0
      %5002 = vmatpush1.bf16.msra.mxu0 0
      %5003 = vmatprep.subr.bf16.mxu0 0
      %5004 = vmatpush1.bf16.msra.mxu0 0
      %5005 = vmatprep.subr.bf16.mxu0 0
      %5006 = vmatpush1.bf16.msra.mxu0 0
      %5007 = vmatprep.subr.bf16.mxu0 0
      %5008 = vmatpush1.bf16.msra.mxu0 0
      %5009 = vmatprep.subr.bf16.mxu0 0
      %5010 = vmatpush1.bf16.msra.mxu0 0
      %5011 = vmatprep.subr.bf16.mxu0 0
      %5012 = vmatpush1.bf16.msra.mxu0 0
      %5013 = vmatprep.subr.bf16.mxu0 0
      %5014 = vmatpush1.bf16.msra.mxu0 %v4995
      %5015 = vmatprep.subr.bf16.mxu0 0
      %5016 = vmatpush2.bf16.msra.mxu0 0
      %5017 = vmatprep.subr.bf16.mxu0 0
      %5018 = vmatpush2.bf16.msra.mxu0 0
      %5019 = vmatprep.subr.bf16.mxu0 0
      %5020 = vmatpush2.bf16.msra.mxu0 0
      %5021 = vmatprep.subr.bf16.mxu0 0
      %5022 = vmatpush2.bf16.msra.mxu0 0
      %5023 = vmatprep.subr.bf16.mxu0 0
      %5024 = vmatpush2.bf16.msra.mxu0 0
      %5025 = vmatprep.subr.bf16.mxu0 0
      %5026 = vmatpush2.bf16.msra.mxu0 0
      %5027 = vmatprep.subr.bf16.mxu0 0
      %5028 = vmatpush2.bf16.msra.mxu0 0
      %5029 = vmatprep.subr.bf16.mxu0 0
      %5030 = vmatpush2.bf16.msra.mxu0 0
      %5031 = vmatprep.mubr.bf16.mxu0 0
      %5032 = vmatmul.mubr.bf16.gmra.mxu0 %v4997
      %v5033 = vpop.f32.mrf.mxu0
      %v5034 = vadd.f32 0.0, %v5033
      %v5035 = vpop.f32.mrf.mxu0
      %v5036 = vpop.f32.mrf.mxu0
      %v5037 = vadd.f32 0.0, %v5036
      %v5038 = vpop.f32.mrf.mxu0
      %5039 = vdwg.mxu0
      %v5042 = vunpack.c.l.b16 %v4927
      %v5043 = vunpack.c.l.b16 %v4928
      %v5044 = vpack.c.b16 %v5043, %v5042
      %v5046 = vsel %vm850, %v4926, 0
      %5048 = vmatprep.subr.bf16.mxu0 0
      %5049 = vmatpush1.bf16.msra.mxu0 0
      %5050 = vmatprep.subr.bf16.mxu0 0
      %5051 = vmatpush1.bf16.msra.mxu0 0
      %5052 = vmatprep.subr.bf16.mxu0 0
      %5053 = vmatpush1.bf16.msra.mxu0 0
      %5054 = vmatprep.subr.bf16.mxu0 0
      %5055 = vmatpush1.bf16.msra.mxu0 0
      %5056 = vmatprep.subr.bf16.mxu0 0
      %5057 = vmatpush1.bf16.msra.mxu0 0
      %5058 = vmatprep.subr.bf16.mxu0 0
      %5059 = vmatpush1.bf16.msra.mxu0 0
      %5060 = vmatprep.subr.bf16.mxu0 0
      %5061 = vmatpush1.bf16.msra.mxu0 0
      %5062 = vmatprep.subr.bf16.mxu0 0
      %5063 = vmatpush1.bf16.msra.mxu0 %v5044
      %5064 = vmatprep.subr.bf16.mxu0 0
      %5065 = vmatpush2.bf16.msra.mxu0 0
      %5066 = vmatprep.subr.bf16.mxu0 0
      %5067 = vmatpush2.bf16.msra.mxu0 0
      %5068 = vmatprep.subr.bf16.mxu0 0
      %5069 = vmatpush2.bf16.msra.mxu0 0
      %5070 = vmatprep.subr.bf16.mxu0 0
      %5071 = vmatpush2.bf16.msra.mxu0 0
      %5072 = vmatprep.subr.bf16.mxu0 0
      %5073 = vmatpush2.bf16.msra.mxu0 0
      %5074 = vmatprep.subr.bf16.mxu0 0
      %5075 = vmatpush2.bf16.msra.mxu0 0
      %5076 = vmatprep.subr.bf16.mxu0 0
      %5077 = vmatpush2.bf16.msra.mxu0 0
      %5078 = vmatprep.subr.bf16.mxu0 0
      %5079 = vmatpush2.bf16.msra.mxu0 0
      %5080 = vmatprep.mubr.bf16.mxu0 0
      %5081 = vmatmul.mubr.bf16.gmra.mxu0 %v5046
      %v5082 = vpop.f32.mrf.mxu0
      %v5083 = vadd.f32 %v5034, %v5082
      %v5084 = vpop.f32.mrf.mxu0
      %v5085 = vpop.f32.mrf.mxu0
      %v5086 = vadd.f32 %v5037, %v5085
      %v5087 = vpop.f32.mrf.mxu0
      %5088 = vdwg.mxu0
      %s5089 = scalar_lea.vmem %s658, 108
      %v5090 = vld [vmem:[%s5089] sm:$0xf]
      %v5091 = vld [vmem:[%s5089 + $0x4] sm:$0xf]
      %s5092 = scalar_lea.vmem %s669, 108
      %v5093 = vld [vmem:[%s5092] sm:$0xf]
      %v5094 = vld [vmem:[%s5092 + $0x4] sm:$0xf]
      %v5095 = vld [vmem:[%s5089 + $0x8] sm:$0x1]
      %v5096 = vld [vmem:[%s5092 + $0x8] sm:$0x1]
      %v5099 = vunpack.c.l.b16 %v5090
      %v5100 = vunpack.c.l.b16 %v5091
      %v5101 = vpack.c.b16 %v5100, %v5099
      %v5104 = vunpack.c.l.b16 %v5093
      %v5105 = vunpack.c.l.b16 %v5094
      %v5106 = vpack.c.b16 %v5105, %v5104
      %5107 = vrot.lane.b32.xlu0 %v5106, 4
      %v5108 = vpop.permute.xlu0 %5107
      %v5110 = vunpack.c.l.b16 %v5095
      %v5111 = vpack.c.b16 %v5110, %v5110
      %v5113 = vshrl.u32 %v5101, 16
      %v5115 = vshll.u32 %v5101, 16
      %v5117 = vrot.slane %v5115, 1
      %v5118 = vor.u32 %v5113, %v5117
      %v5120 = vshll.u32 %v5111, 16
      %v5122 = vrot.slane %v5120, 1
      %v5123 = vsel %vm740, %v5118, %v5122
      %5124 = vrot.lane.b32.xlu0 %v5123, 8
      %v5125 = vpop.permute.xlu0 %5124
      %v5127 = vunpack.c.l.b16 %v5096
      %v5128 = vpack.c.b16 %v5127, %v5127
      %v5130 = vshrl.u32 %v5106, 16
      %v5132 = vshll.u32 %v5106, 16
      %v5134 = vrot.slane %v5132, 1
      %v5135 = vor.u32 %v5130, %v5134
      %v5137 = vshll.u32 %v5128, 16
      %v5139 = vrot.slane %v5137, 1
      %v5140 = vsel %vm740, %v5135, %v5139
      %5141 = vrot.lane.b32.xlu0 %v5140, 12
      %v5142 = vpop.permute.xlu0 %5141
      %v5144 = vsel %vm772, %v5101, %v5108
      %v5146 = vsel %vm775, %v5144, %v5125
      %v5148 = vsel %vm778, %v5146, %v5142
      %v5149 = vld [vmem:[%s1001] sm:$0xf]
      %v5150 = vld [vmem:[%s1001 + $0x4] sm:$0xf]
      %v5153 = vunpack.c.l.b16 %v5149
      %v5154 = vunpack.c.l.b16 %v5150
      %v5155 = vpack.c.b16 %v5154, %v5153
      %v5157 = vsel %vm850, %v5148, 0
      %5159 = vmatprep.subr.bf16.mxu0 0
      %5160 = vmatpush1.bf16.msra.mxu0 0
      %5161 = vmatprep.subr.bf16.mxu0 0
      %5162 = vmatpush1.bf16.msra.mxu0 0
      %5163 = vmatprep.subr.bf16.mxu0 0
      %5164 = vmatpush1.bf16.msra.mxu0 0
      %5165 = vmatprep.subr.bf16.mxu0 0
      %5166 = vmatpush1.bf16.msra.mxu0 0
      %5167 = vmatprep.subr.bf16.mxu0 0
      %5168 = vmatpush1.bf16.msra.mxu0 0
      %5169 = vmatprep.subr.bf16.mxu0 0
      %5170 = vmatpush1.bf16.msra.mxu0 0
      %5171 = vmatprep.subr.bf16.mxu0 0
      %5172 = vmatpush1.bf16.msra.mxu0 0
      %5173 = vmatprep.subr.bf16.mxu0 0
      %5174 = vmatpush1.bf16.msra.mxu0 %v5155
      %5175 = vmatprep.subr.bf16.mxu0 0
      %5176 = vmatpush2.bf16.msra.mxu0 0
      %5177 = vmatprep.subr.bf16.mxu0 0
      %5178 = vmatpush2.bf16.msra.mxu0 0
      %5179 = vmatprep.subr.bf16.mxu0 0
      %5180 = vmatpush2.bf16.msra.mxu0 0
      %5181 = vmatprep.subr.bf16.mxu0 0
      %5182 = vmatpush2.bf16.msra.mxu0 0
      %5183 = vmatprep.subr.bf16.mxu0 0
      %5184 = vmatpush2.bf16.msra.mxu0 0
      %5185 = vmatprep.subr.bf16.mxu0 0
      %5186 = vmatpush2.bf16.msra.mxu0 0
      %5187 = vmatprep.subr.bf16.mxu0 0
      %5188 = vmatpush2.bf16.msra.mxu0 0
      %5189 = vmatprep.subr.bf16.mxu0 0
      %5190 = vmatpush2.bf16.msra.mxu0 0
      %5191 = vmatprep.mubr.bf16.mxu0 0
      %5192 = vmatmul.mubr.bf16.gmra.mxu0 %v5157
      %v5193 = vpop.f32.mrf.mxu0
      %v5194 = vadd.f32 0.0, %v5193
      %v5195 = vpop.f32.mrf.mxu0
      %v5196 = vpop.f32.mrf.mxu0
      %v5197 = vadd.f32 0.0, %v5196
      %v5198 = vpop.f32.mrf.mxu0
      %5199 = vdwg.mxu0
      %v5200 = vadd.f32 %v5083, %v5194
      %v5201 = vadd.f32 %v5086, %v5197
      %s5202 = scalar_lea.vmem %s680, 108
      %v5203 = vld [vmem:[%s5202] sm:$0xf]
      %v5204 = vld [vmem:[%s5202 + $0x4] sm:$0xf]
      %s5205 = scalar_lea.vmem %s691, 108
      %v5206 = vld [vmem:[%s5205] sm:$0xf]
      %v5207 = vld [vmem:[%s5205 + $0x4] sm:$0xf]
      %v5208 = vld [vmem:[%s5202 + $0x8] sm:$0x1]
      %v5209 = vld [vmem:[%s5205 + $0x8] sm:$0x1]
      %v5212 = vunpack.c.l.b16 %v5203
      %v5213 = vunpack.c.l.b16 %v5204
      %v5214 = vpack.c.b16 %v5213, %v5212
      %v5217 = vunpack.c.l.b16 %v5206
      %v5218 = vunpack.c.l.b16 %v5207
      %v5219 = vpack.c.b16 %v5218, %v5217
      %5220 = vrot.lane.b32.xlu0 %v5219, 4
      %v5221 = vpop.permute.xlu0 %5220
      %v5223 = vunpack.c.l.b16 %v5208
      %v5224 = vpack.c.b16 %v5223, %v5223
      %v5226 = vshrl.u32 %v5214, 16
      %v5228 = vshll.u32 %v5214, 16
      %v5230 = vrot.slane %v5228, 1
      %v5231 = vor.u32 %v5226, %v5230
      %v5233 = vshll.u32 %v5224, 16
      %v5235 = vrot.slane %v5233, 1
      %v5236 = vsel %vm740, %v5231, %v5235
      %5237 = vrot.lane.b32.xlu0 %v5236, 8
      %v5238 = vpop.permute.xlu0 %5237
      %v5240 = vunpack.c.l.b16 %v5209
      %v5241 = vpack.c.b16 %v5240, %v5240
      %v5243 = vshrl.u32 %v5219, 16
      %v5245 = vshll.u32 %v5219, 16
      %v5247 = vrot.slane %v5245, 1
      %v5248 = vor.u32 %v5243, %v5247
      %v5250 = vshll.u32 %v5241, 16
      %v5252 = vrot.slane %v5250, 1
      %v5253 = vsel %vm740, %v5248, %v5252
      %5254 = vrot.lane.b32.xlu0 %v5253, 12
      %v5255 = vpop.permute.xlu0 %5254
      %v5257 = vsel %vm772, %v5214, %v5221
      %v5259 = vsel %vm775, %v5257, %v5238
      %v5261 = vsel %vm778, %v5259, %v5255
      %v5262 = vld [vmem:[%s1113] sm:$0xf]
      %v5263 = vld [vmem:[%s1113 + $0x4] sm:$0xf]
      %v5266 = vunpack.c.l.b16 %v5262
      %v5267 = vunpack.c.l.b16 %v5263
      %v5268 = vpack.c.b16 %v5267, %v5266
      %v5270 = vsel %vm850, %v5261, 0
      %5272 = vmatprep.subr.bf16.mxu0 0
      %5273 = vmatpush1.bf16.msra.mxu0 0
      %5274 = vmatprep.subr.bf16.mxu0 0
      %5275 = vmatpush1.bf16.msra.mxu0 0
      %5276 = vmatprep.subr.bf16.mxu0 0
      %5277 = vmatpush1.bf16.msra.mxu0 0
      %5278 = vmatprep.subr.bf16.mxu0 0
      %5279 = vmatpush1.bf16.msra.mxu0 0
      %5280 = vmatprep.subr.bf16.mxu0 0
      %5281 = vmatpush1.bf16.msra.mxu0 0
      %5282 = vmatprep.subr.bf16.mxu0 0
      %5283 = vmatpush1.bf16.msra.mxu0 0
      %5284 = vmatprep.subr.bf16.mxu0 0
      %5285 = vmatpush1.bf16.msra.mxu0 0
      %5286 = vmatprep.subr.bf16.mxu0 0
      %5287 = vmatpush1.bf16.msra.mxu0 %v5268
      %5288 = vmatprep.subr.bf16.mxu0 0
      %5289 = vmatpush2.bf16.msra.mxu0 0
      %5290 = vmatprep.subr.bf16.mxu0 0
      %5291 = vmatpush2.bf16.msra.mxu0 0
      %5292 = vmatprep.subr.bf16.mxu0 0
      %5293 = vmatpush2.bf16.msra.mxu0 0
      %5294 = vmatprep.subr.bf16.mxu0 0
      %5295 = vmatpush2.bf16.msra.mxu0 0
      %5296 = vmatprep.subr.bf16.mxu0 0
      %5297 = vmatpush2.bf16.msra.mxu0 0
      %5298 = vmatprep.subr.bf16.mxu0 0
      %5299 = vmatpush2.bf16.msra.mxu0 0
      %5300 = vmatprep.subr.bf16.mxu0 0
      %5301 = vmatpush2.bf16.msra.mxu0 0
      %5302 = vmatprep.subr.bf16.mxu0 0
      %5303 = vmatpush2.bf16.msra.mxu0 0
      %5304 = vmatprep.mubr.bf16.mxu0 0
      %5305 = vmatmul.mubr.bf16.gmra.mxu0 %v5270
      %v5306 = vpop.f32.mrf.mxu0
      %v5307 = vadd.f32 0.0, %v5306
      %v5308 = vpop.f32.mrf.mxu0
      %v5309 = vpop.f32.mrf.mxu0
      %v5310 = vadd.f32 0.0, %v5309
      %v5311 = vpop.f32.mrf.mxu0
      %5312 = vdwg.mxu0
      %v5313 = vadd.f32 %v5200, %v5307
      %v5314 = vadd.f32 %v5201, %v5310
      %v5315 = vmul.f32 %v5313, %v710
      %v5316 = vmul.f32 %v5314, %v710
      %v5317 = vadd.f32 %v5315, %v717
      %v5318 = vadd.f32 %v5316, %v717
      %vm5319 = vcmp.ge.f32.partialorder %v5317, 0.0
      %vm5320 = vcmp.ge.f32.partialorder %v5318, 0.0
      %v5321 = vmul.f32 %v5317, 0.2
      %v5322 = vmul.f32 %v5318, 0.2
      %v5323 = vsel %vm5319, %v5317, %v5321
      %v5324 = vsel %vm5320, %v5318, %v5322
      %s5325 = scalar_lea.vmem %s702, 144
      %5326 = vst.msk [vmem:[%s5325] sm:$0xff] %vm775, %v5323
      %5327 = vst.msk [vmem:[%s5325 + $0x8] sm:$0xff] %vm775, %v5324
      %s5328 = scalar_lea.vmem %s614, 120
      %v5329 = vld [vmem:[%s5328] sm:$0xf]
      %v5330 = vld [vmem:[%s5328 + $0x4] sm:$0xf]
      %s5331 = scalar_lea.vmem %s625, 120
      %v5332 = vld [vmem:[%s5331] sm:$0xf]
      %v5333 = vld [vmem:[%s5331 + $0x4] sm:$0xf]
      %v5334 = vld [vmem:[%s5328 + $0x8] sm:$0x1]
      %v5335 = vld [vmem:[%s5331 + $0x8] sm:$0x1]
      %v5338 = vunpack.c.l.b16 %v5329
      %v5339 = vunpack.c.l.b16 %v5330
      %v5340 = vpack.c.b16 %v5339, %v5338
      %v5343 = vunpack.c.l.b16 %v5332
      %v5344 = vunpack.c.l.b16 %v5333
      %v5345 = vpack.c.b16 %v5344, %v5343
      %5346 = vrot.lane.b32.xlu0 %v5345, 4
      %v5347 = vpop.permute.xlu0 %5346
      %v5349 = vunpack.c.l.b16 %v5334
      %v5350 = vpack.c.b16 %v5349, %v5349
      %v5352 = vshrl.u32 %v5340, 16
      %v5354 = vshll.u32 %v5340, 16
      %v5356 = vrot.slane %v5354, 1
      %v5357 = vor.u32 %v5352, %v5356
      %v5359 = vshll.u32 %v5350, 16
      %v5361 = vrot.slane %v5359, 1
      %v5362 = vsel %vm740, %v5357, %v5361
      %5363 = vrot.lane.b32.xlu0 %v5362, 8
      %v5364 = vpop.permute.xlu0 %5363
      %v5366 = vunpack.c.l.b16 %v5335
      %v5367 = vpack.c.b16 %v5366, %v5366
      %v5369 = vshrl.u32 %v5345, 16
      %v5371 = vshll.u32 %v5345, 16
      %v5373 = vrot.slane %v5371, 1
      %v5374 = vor.u32 %v5369, %v5373
      %v5376 = vshll.u32 %v5367, 16
      %v5378 = vrot.slane %v5376, 1
      %v5379 = vsel %vm740, %v5374, %v5378
      %5380 = vrot.lane.b32.xlu0 %v5379, 12
      %v5381 = vpop.permute.xlu0 %5380
      %v5383 = vsel %vm772, %v5340, %v5347
      %v5385 = vsel %vm775, %v5383, %v5364
      %v5387 = vsel %vm778, %v5385, %v5381
      %v5388 = vld [vmem:[%s8] sm:$0xf]
      %v5389 = vld [vmem:[%s8 + $0x4] sm:$0xf]
      %s5390 = scalar_lea.vmem %s636, 120
      %v5391 = vld [vmem:[%s5390] sm:$0xf]
      %v5392 = vld [vmem:[%s5390 + $0x4] sm:$0xf]
      %s5393 = scalar_lea.vmem %s647, 120
      %v5394 = vld [vmem:[%s5393] sm:$0xf]
      %v5395 = vld [vmem:[%s5393 + $0x4] sm:$0xf]
      %v5396 = vld [vmem:[%s5390 + $0x8] sm:$0x1]
      %v5397 = vld [vmem:[%s5393 + $0x8] sm:$0x1]
      %v5400 = vunpack.c.l.b16 %v5391
      %v5401 = vunpack.c.l.b16 %v5392
      %v5402 = vpack.c.b16 %v5401, %v5400
      %v5405 = vunpack.c.l.b16 %v5394
      %v5406 = vunpack.c.l.b16 %v5395
      %v5407 = vpack.c.b16 %v5406, %v5405
      %5408 = vrot.lane.b32.xlu0 %v5407, 4
      %v5409 = vpop.permute.xlu0 %5408
      %v5411 = vunpack.c.l.b16 %v5396
      %v5412 = vpack.c.b16 %v5411, %v5411
      %v5414 = vshrl.u32 %v5402, 16
      %v5416 = vshll.u32 %v5402, 16
      %v5418 = vrot.slane %v5416, 1
      %v5419 = vor.u32 %v5414, %v5418
      %v5421 = vshll.u32 %v5412, 16
      %v5423 = vrot.slane %v5421, 1
      %v5424 = vsel %vm740, %v5419, %v5423
      %5425 = vrot.lane.b32.xlu0 %v5424, 8
      %v5426 = vpop.permute.xlu0 %5425
      %v5428 = vunpack.c.l.b16 %v5397
      %v5429 = vpack.c.b16 %v5428, %v5428
      %v5431 = vshrl.u32 %v5407, 16
      %v5433 = vshll.u32 %v5407, 16
      %v5435 = vrot.slane %v5433, 1
      %v5436 = vor.u32 %v5431, %v5435
      %v5438 = vshll.u32 %v5429, 16
      %v5440 = vrot.slane %v5438, 1
      %v5441 = vsel %vm740, %v5436, %v5440
      %5442 = vrot.lane.b32.xlu0 %v5441, 12
      %v5443 = vpop.permute.xlu0 %5442
      %v5445 = vsel %vm772, %v5402, %v5409
      %v5447 = vsel %vm775, %v5445, %v5426
      %v5449 = vsel %vm778, %v5447, %v5443
      %v5450 = vld [vmem:[%s841] sm:$0xf]
      %v5451 = vld [vmem:[%s841 + $0x4] sm:$0xf]
      %v5454 = vunpack.c.l.b16 %v5450
      %v5455 = vunpack.c.l.b16 %v5451
      %v5456 = vpack.c.b16 %v5455, %v5454
      %v5458 = vsel %vm850, %v5449, 0
      %5460 = vmatprep.subr.bf16.mxu0 0
      %5461 = vmatpush1.bf16.msra.mxu0 0
      %5462 = vmatprep.subr.bf16.mxu0 0
      %5463 = vmatpush1.bf16.msra.mxu0 0
      %5464 = vmatprep.subr.bf16.mxu0 0
      %5465 = vmatpush1.bf16.msra.mxu0 0
      %5466 = vmatprep.subr.bf16.mxu0 0
      %5467 = vmatpush1.bf16.msra.mxu0 0
      %5468 = vmatprep.subr.bf16.mxu0 0
      %5469 = vmatpush1.bf16.msra.mxu0 0
      %5470 = vmatprep.subr.bf16.mxu0 0
      %5471 = vmatpush1.bf16.msra.mxu0 0
      %5472 = vmatprep.subr.bf16.mxu0 0
      %5473 = vmatpush1.bf16.msra.mxu0 0
      %5474 = vmatprep.subr.bf16.mxu0 0
      %5475 = vmatpush1.bf16.msra.mxu0 %v5456
      %5476 = vmatprep.subr.bf16.mxu0 0
      %5477 = vmatpush2.bf16.msra.mxu0 0
      %5478 = vmatprep.subr.bf16.mxu0 0
      %5479 = vmatpush2.bf16.msra.mxu0 0
      %5480 = vmatprep.subr.bf16.mxu0 0
      %5481 = vmatpush2.bf16.msra.mxu0 0
      %5482 = vmatprep.subr.bf16.mxu0 0
      %5483 = vmatpush2.bf16.msra.mxu0 0
      %5484 = vmatprep.subr.bf16.mxu0 0
      %5485 = vmatpush2.bf16.msra.mxu0 0
      %5486 = vmatprep.subr.bf16.mxu0 0
      %5487 = vmatpush2.bf16.msra.mxu0 0
      %5488 = vmatprep.subr.bf16.mxu0 0
      %5489 = vmatpush2.bf16.msra.mxu0 0
      %5490 = vmatprep.subr.bf16.mxu0 0
      %5491 = vmatpush2.bf16.msra.mxu0 0
      %5492 = vmatprep.mubr.bf16.mxu0 0
      %5493 = vmatmul.mubr.bf16.gmra.mxu0 %v5458
      %v5494 = vpop.f32.mrf.mxu0
      %v5495 = vadd.f32 0.0, %v5494
      %v5496 = vpop.f32.mrf.mxu0
      %v5497 = vpop.f32.mrf.mxu0
      %v5498 = vadd.f32 0.0, %v5497
      %v5499 = vpop.f32.mrf.mxu0
      %5500 = vdwg.mxu0
      %v5503 = vunpack.c.l.b16 %v5388
      %v5504 = vunpack.c.l.b16 %v5389
      %v5505 = vpack.c.b16 %v5504, %v5503
      %v5507 = vsel %vm850, %v5387, 0
      %5509 = vmatprep.subr.bf16.mxu0 0
      %5510 = vmatpush1.bf16.msra.mxu0 0
      %5511 = vmatprep.subr.bf16.mxu0 0
      %5512 = vmatpush1.bf16.msra.mxu0 0
      %5513 = vmatprep.subr.bf16.mxu0 0
      %5514 = vmatpush1.bf16.msra.mxu0 0
      %5515 = vmatprep.subr.bf16.mxu0 0
      %5516 = vmatpush1.bf16.msra.mxu0 0
      %5517 = vmatprep.subr.bf16.mxu0 0
      %5518 = vmatpush1.bf16.msra.mxu0 0
      %5519 = vmatprep.subr.bf16.mxu0 0
      %5520 = vmatpush1.bf16.msra.mxu0 0
      %5521 = vmatprep.subr.bf16.mxu0 0
      %5522 = vmatpush1.bf16.msra.mxu0 0
      %5523 = vmatprep.subr.bf16.mxu0 0
      %5524 = vmatpush1.bf16.msra.mxu0 %v5505
      %5525 = vmatprep.subr.bf16.mxu0 0
      %5526 = vmatpush2.bf16.msra.mxu0 0
      %5527 = vmatprep.subr.bf16.mxu0 0
      %5528 = vmatpush2.bf16.msra.mxu0 0
      %5529 = vmatprep.subr.bf16.mxu0 0
      %5530 = vmatpush2.bf16.msra.mxu0 0
      %5531 = vmatprep.subr.bf16.mxu0 0
      %5532 = vmatpush2.bf16.msra.mxu0 0
      %5533 = vmatprep.subr.bf16.mxu0 0
      %5534 = vmatpush2.bf16.msra.mxu0 0
      %5535 = vmatprep.subr.bf16.mxu0 0
      %5536 = vmatpush2.bf16.msra.mxu0 0
      %5537 = vmatprep.subr.bf16.mxu0 0
      %5538 = vmatpush2.bf16.msra.mxu0 0
      %5539 = vmatprep.subr.bf16.mxu0 0
      %5540 = vmatpush2.bf16.msra.mxu0 0
      %5541 = vmatprep.mubr.bf16.mxu0 0
      %5542 = vmatmul.mubr.bf16.gmra.mxu0 %v5507
      %v5543 = vpop.f32.mrf.mxu0
      %v5544 = vadd.f32 %v5495, %v5543
      %v5545 = vpop.f32.mrf.mxu0
      %v5546 = vpop.f32.mrf.mxu0
      %v5547 = vadd.f32 %v5498, %v5546
      %v5548 = vpop.f32.mrf.mxu0
      %5549 = vdwg.mxu0
      %s5550 = scalar_lea.vmem %s658, 120
      %v5551 = vld [vmem:[%s5550] sm:$0xf]
      %v5552 = vld [vmem:[%s5550 + $0x4] sm:$0xf]
      %s5553 = scalar_lea.vmem %s669, 120
      %v5554 = vld [vmem:[%s5553] sm:$0xf]
      %v5555 = vld [vmem:[%s5553 + $0x4] sm:$0xf]
      %v5556 = vld [vmem:[%s5550 + $0x8] sm:$0x1]
      %v5557 = vld [vmem:[%s5553 + $0x8] sm:$0x1]
      %v5560 = vunpack.c.l.b16 %v5551
      %v5561 = vunpack.c.l.b16 %v5552
      %v5562 = vpack.c.b16 %v5561, %v5560
      %v5565 = vunpack.c.l.b16 %v5554
      %v5566 = vunpack.c.l.b16 %v5555
      %v5567 = vpack.c.b16 %v5566, %v5565
      %5568 = vrot.lane.b32.xlu0 %v5567, 4
      %v5569 = vpop.permute.xlu0 %5568
      %v5571 = vunpack.c.l.b16 %v5556
      %v5572 = vpack.c.b16 %v5571, %v5571
      %v5574 = vshrl.u32 %v5562, 16
      %v5576 = vshll.u32 %v5562, 16
      %v5578 = vrot.slane %v5576, 1
      %v5579 = vor.u32 %v5574, %v5578
      %v5581 = vshll.u32 %v5572, 16
      %v5583 = vrot.slane %v5581, 1
      %v5584 = vsel %vm740, %v5579, %v5583
      %5585 = vrot.lane.b32.xlu0 %v5584, 8
      %v5586 = vpop.permute.xlu0 %5585
      %v5588 = vunpack.c.l.b16 %v5557
      %v5589 = vpack.c.b16 %v5588, %v5588
      %v5591 = vshrl.u32 %v5567, 16
      %v5593 = vshll.u32 %v5567, 16
      %v5595 = vrot.slane %v5593, 1
      %v5596 = vor.u32 %v5591, %v5595
      %v5598 = vshll.u32 %v5589, 16
      %v5600 = vrot.slane %v5598, 1
      %v5601 = vsel %vm740, %v5596, %v5600
      %5602 = vrot.lane.b32.xlu0 %v5601, 12
      %v5603 = vpop.permute.xlu0 %5602
      %v5605 = vsel %vm772, %v5562, %v5569
      %v5607 = vsel %vm775, %v5605, %v5586
      %v5609 = vsel %vm778, %v5607, %v5603
      %v5610 = vld [vmem:[%s1001] sm:$0xf]
      %v5611 = vld [vmem:[%s1001 + $0x4] sm:$0xf]
      %v5614 = vunpack.c.l.b16 %v5610
      %v5615 = vunpack.c.l.b16 %v5611
      %v5616 = vpack.c.b16 %v5615, %v5614
      %v5618 = vsel %vm850, %v5609, 0
      %5620 = vmatprep.subr.bf16.mxu0 0
      %5621 = vmatpush1.bf16.msra.mxu0 0
      %5622 = vmatprep.subr.bf16.mxu0 0
      %5623 = vmatpush1.bf16.msra.mxu0 0
      %5624 = vmatprep.subr.bf16.mxu0 0
      %5625 = vmatpush1.bf16.msra.mxu0 0
      %5626 = vmatprep.subr.bf16.mxu0 0
      %5627 = vmatpush1.bf16.msra.mxu0 0
      %5628 = vmatprep.subr.bf16.mxu0 0
      %5629 = vmatpush1.bf16.msra.mxu0 0
      %5630 = vmatprep.subr.bf16.mxu0 0
      %5631 = vmatpush1.bf16.msra.mxu0 0
      %5632 = vmatprep.subr.bf16.mxu0 0
      %5633 = vmatpush1.bf16.msra.mxu0 0
      %5634 = vmatprep.subr.bf16.mxu0 0
      %5635 = vmatpush1.bf16.msra.mxu0 %v5616
      %5636 = vmatprep.subr.bf16.mxu0 0
      %5637 = vmatpush2.bf16.msra.mxu0 0
      %5638 = vmatprep.subr.bf16.mxu0 0
      %5639 = vmatpush2.bf16.msra.mxu0 0
      %5640 = vmatprep.subr.bf16.mxu0 0
      %5641 = vmatpush2.bf16.msra.mxu0 0
      %5642 = vmatprep.subr.bf16.mxu0 0
      %5643 = vmatpush2.bf16.msra.mxu0 0
      %5644 = vmatprep.subr.bf16.mxu0 0
      %5645 = vmatpush2.bf16.msra.mxu0 0
      %5646 = vmatprep.subr.bf16.mxu0 0
      %5647 = vmatpush2.bf16.msra.mxu0 0
      %5648 = vmatprep.subr.bf16.mxu0 0
      %5649 = vmatpush2.bf16.msra.mxu0 0
      %5650 = vmatprep.subr.bf16.mxu0 0
      %5651 = vmatpush2.bf16.msra.mxu0 0
      %5652 = vmatprep.mubr.bf16.mxu0 0
      %5653 = vmatmul.mubr.bf16.gmra.mxu0 %v5618
      %v5654 = vpop.f32.mrf.mxu0
      %v5655 = vadd.f32 0.0, %v5654
      %v5656 = vpop.f32.mrf.mxu0
      %v5657 = vpop.f32.mrf.mxu0
      %v5658 = vadd.f32 0.0, %v5657
      %v5659 = vpop.f32.mrf.mxu0
      %5660 = vdwg.mxu0
      %v5661 = vadd.f32 %v5544, %v5655
      %v5662 = vadd.f32 %v5547, %v5658
      %s5663 = scalar_lea.vmem %s680, 120
      %v5664 = vld [vmem:[%s5663] sm:$0xf]
      %v5665 = vld [vmem:[%s5663 + $0x4] sm:$0xf]
      %s5666 = scalar_lea.vmem %s691, 120
      %v5667 = vld [vmem:[%s5666] sm:$0xf]
      %v5668 = vld [vmem:[%s5666 + $0x4] sm:$0xf]
      %v5669 = vld [vmem:[%s5663 + $0x8] sm:$0x1]
      %v5670 = vld [vmem:[%s5666 + $0x8] sm:$0x1]
      %v5673 = vunpack.c.l.b16 %v5664
      %v5674 = vunpack.c.l.b16 %v5665
      %v5675 = vpack.c.b16 %v5674, %v5673
      %v5678 = vunpack.c.l.b16 %v5667
      %v5679 = vunpack.c.l.b16 %v5668
      %v5680 = vpack.c.b16 %v5679, %v5678
      %5681 = vrot.lane.b32.xlu0 %v5680, 4
      %v5682 = vpop.permute.xlu0 %5681
      %v5684 = vunpack.c.l.b16 %v5669
      %v5685 = vpack.c.b16 %v5684, %v5684
      %v5687 = vshrl.u32 %v5675, 16
      %v5689 = vshll.u32 %v5675, 16
      %v5691 = vrot.slane %v5689, 1
      %v5692 = vor.u32 %v5687, %v5691
      %v5694 = vshll.u32 %v5685, 16
      %v5696 = vrot.slane %v5694, 1
      %v5697 = vsel %vm740, %v5692, %v5696
      %5698 = vrot.lane.b32.xlu0 %v5697, 8
      %v5699 = vpop.permute.xlu0 %5698
      %v5701 = vunpack.c.l.b16 %v5670
      %v5702 = vpack.c.b16 %v5701, %v5701
      %v5704 = vshrl.u32 %v5680, 16
      %v5706 = vshll.u32 %v5680, 16
      %v5708 = vrot.slane %v5706, 1
      %v5709 = vor.u32 %v5704, %v5708
      %v5711 = vshll.u32 %v5702, 16
      %v5713 = vrot.slane %v5711, 1
      %v5714 = vsel %vm740, %v5709, %v5713
      %5715 = vrot.lane.b32.xlu0 %v5714, 12
      %v5716 = vpop.permute.xlu0 %5715
      %v5718 = vsel %vm772, %v5675, %v5682
      %v5720 = vsel %vm775, %v5718, %v5699
      %v5722 = vsel %vm778, %v5720, %v5716
      %v5723 = vld [vmem:[%s1113] sm:$0xf]
      %v5724 = vld [vmem:[%s1113 + $0x4] sm:$0xf]
      %v5727 = vunpack.c.l.b16 %v5723
      %v5728 = vunpack.c.l.b16 %v5724
      %v5729 = vpack.c.b16 %v5728, %v5727
      %v5731 = vsel %vm850, %v5722, 0
      %5733 = vmatprep.subr.bf16.mxu0 0
      %5734 = vmatpush1.bf16.msra.mxu0 0
      %5735 = vmatprep.subr.bf16.mxu0 0
      %5736 = vmatpush1.bf16.msra.mxu0 0
      %5737 = vmatprep.subr.bf16.mxu0 0
      %5738 = vmatpush1.bf16.msra.mxu0 0
      %5739 = vmatprep.subr.bf16.mxu0 0
      %5740 = vmatpush1.bf16.msra.mxu0 0
      %5741 = vmatprep.subr.bf16.mxu0 0
      %5742 = vmatpush1.bf16.msra.mxu0 0
      %5743 = vmatprep.subr.bf16.mxu0 0
      %5744 = vmatpush1.bf16.msra.mxu0 0
      %5745 = vmatprep.subr.bf16.mxu0 0
      %5746 = vmatpush1.bf16.msra.mxu0 0
      %5747 = vmatprep.subr.bf16.mxu0 0
      %5748 = vmatpush1.bf16.msra.mxu0 %v5729
      %5749 = vmatprep.subr.bf16.mxu0 0
      %5750 = vmatpush2.bf16.msra.mxu0 0
      %5751 = vmatprep.subr.bf16.mxu0 0
      %5752 = vmatpush2.bf16.msra.mxu0 0
      %5753 = vmatprep.subr.bf16.mxu0 0
      %5754 = vmatpush2.bf16.msra.mxu0 0
      %5755 = vmatprep.subr.bf16.mxu0 0
      %5756 = vmatpush2.bf16.msra.mxu0 0
      %5757 = vmatprep.subr.bf16.mxu0 0
      %5758 = vmatpush2.bf16.msra.mxu0 0
      %5759 = vmatprep.subr.bf16.mxu0 0
      %5760 = vmatpush2.bf16.msra.mxu0 0
      %5761 = vmatprep.subr.bf16.mxu0 0
      %5762 = vmatpush2.bf16.msra.mxu0 0
      %5763 = vmatprep.subr.bf16.mxu0 0
      %5764 = vmatpush2.bf16.msra.mxu0 0
      %5765 = vmatprep.mubr.bf16.mxu0 0
      %5766 = vmatmul.mubr.bf16.gmra.mxu0 %v5731
      %v5767 = vpop.f32.mrf.mxu0
      %v5768 = vadd.f32 0.0, %v5767
      %v5769 = vpop.f32.mrf.mxu0
      %v5770 = vpop.f32.mrf.mxu0
      %v5771 = vadd.f32 0.0, %v5770
      %v5772 = vpop.f32.mrf.mxu0
      %5773 = vdwg.mxu0
      %v5774 = vadd.f32 %v5661, %v5768
      %v5775 = vadd.f32 %v5662, %v5771
      %v5776 = vmul.f32 %v5774, %v710
      %v5777 = vmul.f32 %v5775, %v710
      %v5778 = vadd.f32 %v5776, %v717
      %v5779 = vadd.f32 %v5777, %v717
      %vm5780 = vcmp.ge.f32.partialorder %v5778, 0.0
      %vm5781 = vcmp.ge.f32.partialorder %v5779, 0.0
      %v5782 = vmul.f32 %v5778, 0.2
      %v5783 = vmul.f32 %v5779, 0.2
      %v5784 = vsel %vm5780, %v5778, %v5782
      %v5785 = vsel %vm5781, %v5779, %v5783
      %s5786 = scalar_lea.vmem %s702, 160
      %5787 = vst.msk [vmem:[%s5786] sm:$0xff] %vm775, %v5784
      %5788 = vst.msk [vmem:[%s5786 + $0x8] sm:$0xff] %vm775, %v5785
      %s5789 = scalar_lea.vmem %s614, 132
      %v5790 = vld [vmem:[%s5789] sm:$0xf]
      %v5791 = vld [vmem:[%s5789 + $0x4] sm:$0xf]
      %s5792 = scalar_lea.vmem %s625, 132
      %v5793 = vld [vmem:[%s5792] sm:$0xf]
      %v5794 = vld [vmem:[%s5792 + $0x4] sm:$0xf]
      %v5795 = vld [vmem:[%s5789 + $0x8] sm:$0x1]
      %v5796 = vld [vmem:[%s5792 + $0x8] sm:$0x1]
      %v5799 = vunpack.c.l.b16 %v5790
      %v5800 = vunpack.c.l.b16 %v5791
      %v5801 = vpack.c.b16 %v5800, %v5799
      %v5804 = vunpack.c.l.b16 %v5793
      %v5805 = vunpack.c.l.b16 %v5794
      %v5806 = vpack.c.b16 %v5805, %v5804
      %5807 = vrot.lane.b32.xlu0 %v5806, 4
      %v5808 = vpop.permute.xlu0 %5807
      %v5810 = vunpack.c.l.b16 %v5795
      %v5811 = vpack.c.b16 %v5810, %v5810
      %v5813 = vshrl.u32 %v5801, 16
      %v5815 = vshll.u32 %v5801, 16
      %v5817 = vrot.slane %v5815, 1
      %v5818 = vor.u32 %v5813, %v5817
      %v5820 = vshll.u32 %v5811, 16
      %v5822 = vrot.slane %v5820, 1
      %v5823 = vsel %vm740, %v5818, %v5822
      %5824 = vrot.lane.b32.xlu0 %v5823, 8
      %v5825 = vpop.permute.xlu0 %5824
      %v5827 = vunpack.c.l.b16 %v5796
      %v5828 = vpack.c.b16 %v5827, %v5827
      %v5830 = vshrl.u32 %v5806, 16
      %v5832 = vshll.u32 %v5806, 16
      %v5834 = vrot.slane %v5832, 1
      %v5835 = vor.u32 %v5830, %v5834
      %v5837 = vshll.u32 %v5828, 16
      %v5839 = vrot.slane %v5837, 1
      %v5840 = vsel %vm740, %v5835, %v5839
      %5841 = vrot.lane.b32.xlu0 %v5840, 12
      %v5842 = vpop.permute.xlu0 %5841
      %v5844 = vsel %vm772, %v5801, %v5808
      %v5846 = vsel %vm775, %v5844, %v5825
      %v5848 = vsel %vm778, %v5846, %v5842
      %v5849 = vld [vmem:[%s8] sm:$0xf]
      %v5850 = vld [vmem:[%s8 + $0x4] sm:$0xf]
      %s5851 = scalar_lea.vmem %s636, 132
      %v5852 = vld [vmem:[%s5851] sm:$0xf]
      %v5853 = vld [vmem:[%s5851 + $0x4] sm:$0xf]
      %s5854 = scalar_lea.vmem %s647, 132
      %v5855 = vld [vmem:[%s5854] sm:$0xf]
      %v5856 = vld [vmem:[%s5854 + $0x4] sm:$0xf]
      %v5857 = vld [vmem:[%s5851 + $0x8] sm:$0x1]
      %v5858 = vld [vmem:[%s5854 + $0x8] sm:$0x1]
      %v5861 = vunpack.c.l.b16 %v5852
      %v5862 = vunpack.c.l.b16 %v5853
      %v5863 = vpack.c.b16 %v5862, %v5861
      %v5866 = vunpack.c.l.b16 %v5855
      %v5867 = vunpack.c.l.b16 %v5856
      %v5868 = vpack.c.b16 %v5867, %v5866
      %5869 = vrot.lane.b32.xlu0 %v5868, 4
      %v5870 = vpop.permute.xlu0 %5869
      %v5872 = vunpack.c.l.b16 %v5857
      %v5873 = vpack.c.b16 %v5872, %v5872
      %v5875 = vshrl.u32 %v5863, 16
      %v5877 = vshll.u32 %v5863, 16
      %v5879 = vrot.slane %v5877, 1
      %v5880 = vor.u32 %v5875, %v5879
      %v5882 = vshll.u32 %v5873, 16
      %v5884 = vrot.slane %v5882, 1
      %v5885 = vsel %vm740, %v5880, %v5884
      %5886 = vrot.lane.b32.xlu0 %v5885, 8
      %v5887 = vpop.permute.xlu0 %5886
      %v5889 = vunpack.c.l.b16 %v5858
      %v5890 = vpack.c.b16 %v5889, %v5889
      %v5892 = vshrl.u32 %v5868, 16
      %v5894 = vshll.u32 %v5868, 16
      %v5896 = vrot.slane %v5894, 1
      %v5897 = vor.u32 %v5892, %v5896
      %v5899 = vshll.u32 %v5890, 16
      %v5901 = vrot.slane %v5899, 1
      %v5902 = vsel %vm740, %v5897, %v5901
      %5903 = vrot.lane.b32.xlu0 %v5902, 12
      %v5904 = vpop.permute.xlu0 %5903
      %v5906 = vsel %vm772, %v5863, %v5870
      %v5908 = vsel %vm775, %v5906, %v5887
      %v5910 = vsel %vm778, %v5908, %v5904
      %v5911 = vld [vmem:[%s841] sm:$0xf]
      %v5912 = vld [vmem:[%s841 + $0x4] sm:$0xf]
      %v5915 = vunpack.c.l.b16 %v5911
      %v5916 = vunpack.c.l.b16 %v5912
      %v5917 = vpack.c.b16 %v5916, %v5915
      %v5919 = vsel %vm850, %v5910, 0
      %5921 = vmatprep.subr.bf16.mxu0 0
      %5922 = vmatpush1.bf16.msra.mxu0 0
      %5923 = vmatprep.subr.bf16.mxu0 0
      %5924 = vmatpush1.bf16.msra.mxu0 0
      %5925 = vmatprep.subr.bf16.mxu0 0
      %5926 = vmatpush1.bf16.msra.mxu0 0
      %5927 = vmatprep.subr.bf16.mxu0 0
      %5928 = vmatpush1.bf16.msra.mxu0 0
      %5929 = vmatprep.subr.bf16.mxu0 0
      %5930 = vmatpush1.bf16.msra.mxu0 0
      %5931 = vmatprep.subr.bf16.mxu0 0
      %5932 = vmatpush1.bf16.msra.mxu0 0
      %5933 = vmatprep.subr.bf16.mxu0 0
      %5934 = vmatpush1.bf16.msra.mxu0 0
      %5935 = vmatprep.subr.bf16.mxu0 0
      %5936 = vmatpush1.bf16.msra.mxu0 %v5917
      %5937 = vmatprep.subr.bf16.mxu0 0
      %5938 = vmatpush2.bf16.msra.mxu0 0
      %5939 = vmatprep.subr.bf16.mxu0 0
      %5940 = vmatpush2.bf16.msra.mxu0 0
      %5941 = vmatprep.subr.bf16.mxu0 0
      %5942 = vmatpush2.bf16.msra.mxu0 0
      %5943 = vmatprep.subr.bf16.mxu0 0
      %5944 = vmatpush2.bf16.msra.mxu0 0
      %5945 = vmatprep.subr.bf16.mxu0 0
      %5946 = vmatpush2.bf16.msra.mxu0 0
      %5947 = vmatprep.subr.bf16.mxu0 0
      %5948 = vmatpush2.bf16.msra.mxu0 0
      %5949 = vmatprep.subr.bf16.mxu0 0
      %5950 = vmatpush2.bf16.msra.mxu0 0
      %5951 = vmatprep.subr.bf16.mxu0 0
      %5952 = vmatpush2.bf16.msra.mxu0 0
      %5953 = vmatprep.mubr.bf16.mxu0 0
      %5954 = vmatmul.mubr.bf16.gmra.mxu0 %v5919
      %v5955 = vpop.f32.mrf.mxu0
      %v5956 = vadd.f32 0.0, %v5955
      %v5957 = vpop.f32.mrf.mxu0
      %v5958 = vpop.f32.mrf.mxu0
      %v5959 = vadd.f32 0.0, %v5958
      %v5960 = vpop.f32.mrf.mxu0
      %5961 = vdwg.mxu0
      %v5964 = vunpack.c.l.b16 %v5849
      %v5965 = vunpack.c.l.b16 %v5850
      %v5966 = vpack.c.b16 %v5965, %v5964
      %v5968 = vsel %vm850, %v5848, 0
      %5970 = vmatprep.subr.bf16.mxu0 0
      %5971 = vmatpush1.bf16.msra.mxu0 0
      %5972 = vmatprep.subr.bf16.mxu0 0
      %5973 = vmatpush1.bf16.msra.mxu0 0
      %5974 = vmatprep.subr.bf16.mxu0 0
      %5975 = vmatpush1.bf16.msra.mxu0 0
      %5976 = vmatprep.subr.bf16.mxu0 0
      %5977 = vmatpush1.bf16.msra.mxu0 0
      %5978 = vmatprep.subr.bf16.mxu0 0
      %5979 = vmatpush1.bf16.msra.mxu0 0
      %5980 = vmatprep.subr.bf16.mxu0 0
      %5981 = vmatpush1.bf16.msra.mxu0 0
      %5982 = vmatprep.subr.bf16.mxu0 0
      %5983 = vmatpush1.bf16.msra.mxu0 0
      %5984 = vmatprep.subr.bf16.mxu0 0
      %5985 = vmatpush1.bf16.msra.mxu0 %v5966
      %5986 = vmatprep.subr.bf16.mxu0 0
      %5987 = vmatpush2.bf16.msra.mxu0 0
      %5988 = vmatprep.subr.bf16.mxu0 0
      %5989 = vmatpush2.bf16.msra.mxu0 0
      %5990 = vmatprep.subr.bf16.mxu0 0
      %5991 = vmatpush2.bf16.msra.mxu0 0
      %5992 = vmatprep.subr.bf16.mxu0 0
      %5993 = vmatpush2.bf16.msra.mxu0 0
      %5994 = vmatprep.subr.bf16.mxu0 0
      %5995 = vmatpush2.bf16.msra.mxu0 0
      %5996 = vmatprep.subr.bf16.mxu0 0
      %5997 = vmatpush2.bf16.msra.mxu0 0
      %5998 = vmatprep.subr.bf16.mxu0 0
      %5999 = vmatpush2.bf16.msra.mxu0 0
      %6000 = vmatprep.subr.bf16.mxu0 0
      %6001 = vmatpush2.bf16.msra.mxu0 0
      %6002 = vmatprep.mubr.bf16.mxu0 0
      %6003 = vmatmul.mubr.bf16.gmra.mxu0 %v5968
      %v6004 = vpop.f32.mrf.mxu0
      %v6005 = vadd.f32 %v5956, %v6004
      %v6006 = vpop.f32.mrf.mxu0
      %v6007 = vpop.f32.mrf.mxu0
      %v6008 = vadd.f32 %v5959, %v6007
      %v6009 = vpop.f32.mrf.mxu0
      %6010 = vdwg.mxu0
      %s6011 = scalar_lea.vmem %s658, 132
      %v6012 = vld [vmem:[%s6011] sm:$0xf]
      %v6013 = vld [vmem:[%s6011 + $0x4] sm:$0xf]
      %s6014 = scalar_lea.vmem %s669, 132
      %v6015 = vld [vmem:[%s6014] sm:$0xf]
      %v6016 = vld [vmem:[%s6014 + $0x4] sm:$0xf]
      %v6017 = vld [vmem:[%s6011 + $0x8] sm:$0x1]
      %v6018 = vld [vmem:[%s6014 + $0x8] sm:$0x1]
      %v6021 = vunpack.c.l.b16 %v6012
      %v6022 = vunpack.c.l.b16 %v6013
      %v6023 = vpack.c.b16 %v6022, %v6021
      %v6026 = vunpack.c.l.b16 %v6015
      %v6027 = vunpack.c.l.b16 %v6016
      %v6028 = vpack.c.b16 %v6027, %v6026
      %6029 = vrot.lane.b32.xlu0 %v6028, 4
      %v6030 = vpop.permute.xlu0 %6029
      %v6032 = vunpack.c.l.b16 %v6017
      %v6033 = vpack.c.b16 %v6032, %v6032
      %v6035 = vshrl.u32 %v6023, 16
      %v6037 = vshll.u32 %v6023, 16
      %v6039 = vrot.slane %v6037, 1
      %v6040 = vor.u32 %v6035, %v6039
      %v6042 = vshll.u32 %v6033, 16
      %v6044 = vrot.slane %v6042, 1
      %v6045 = vsel %vm740, %v6040, %v6044
      %6046 = vrot.lane.b32.xlu0 %v6045, 8
      %v6047 = vpop.permute.xlu0 %6046
      %v6049 = vunpack.c.l.b16 %v6018
      %v6050 = vpack.c.b16 %v6049, %v6049
      %v6052 = vshrl.u32 %v6028, 16
      %v6054 = vshll.u32 %v6028, 16
      %v6056 = vrot.slane %v6054, 1
      %v6057 = vor.u32 %v6052, %v6056
      %v6059 = vshll.u32 %v6050, 16
      %v6061 = vrot.slane %v6059, 1
      %v6062 = vsel %vm740, %v6057, %v6061
      %6063 = vrot.lane.b32.xlu0 %v6062, 12
      %v6064 = vpop.permute.xlu0 %6063
      %v6066 = vsel %vm772, %v6023, %v6030
      %v6068 = vsel %vm775, %v6066, %v6047
      %v6070 = vsel %vm778, %v6068, %v6064
      %v6071 = vld [vmem:[%s1001] sm:$0xf]
      %v6072 = vld [vmem:[%s1001 + $0x4] sm:$0xf]
      %v6075 = vunpack.c.l.b16 %v6071
      %v6076 = vunpack.c.l.b16 %v6072
      %v6077 = vpack.c.b16 %v6076, %v6075
      %v6079 = vsel %vm850, %v6070, 0
      %6081 = vmatprep.subr.bf16.mxu0 0
      %6082 = vmatpush1.bf16.msra.mxu0 0
      %6083 = vmatprep.subr.bf16.mxu0 0
      %6084 = vmatpush1.bf16.msra.mxu0 0
      %6085 = vmatprep.subr.bf16.mxu0 0
      %6086 = vmatpush1.bf16.msra.mxu0 0
      %6087 = vmatprep.subr.bf16.mxu0 0
      %6088 = vmatpush1.bf16.msra.mxu0 0
      %6089 = vmatprep.subr.bf16.mxu0 0
      %6090 = vmatpush1.bf16.msra.mxu0 0
      %6091 = vmatprep.subr.bf16.mxu0 0
      %6092 = vmatpush1.bf16.msra.mxu0 0
      %6093 = vmatprep.subr.bf16.mxu0 0
      %6094 = vmatpush1.bf16.msra.mxu0 0
      %6095 = vmatprep.subr.bf16.mxu0 0
      %6096 = vmatpush1.bf16.msra.mxu0 %v6077
      %6097 = vmatprep.subr.bf16.mxu0 0
      %6098 = vmatpush2.bf16.msra.mxu0 0
      %6099 = vmatprep.subr.bf16.mxu0 0
      %6100 = vmatpush2.bf16.msra.mxu0 0
      %6101 = vmatprep.subr.bf16.mxu0 0
      %6102 = vmatpush2.bf16.msra.mxu0 0
      %6103 = vmatprep.subr.bf16.mxu0 0
      %6104 = vmatpush2.bf16.msra.mxu0 0
      %6105 = vmatprep.subr.bf16.mxu0 0
      %6106 = vmatpush2.bf16.msra.mxu0 0
      %6107 = vmatprep.subr.bf16.mxu0 0
      %6108 = vmatpush2.bf16.msra.mxu0 0
      %6109 = vmatprep.subr.bf16.mxu0 0
      %6110 = vmatpush2.bf16.msra.mxu0 0
      %6111 = vmatprep.subr.bf16.mxu0 0
      %6112 = vmatpush2.bf16.msra.mxu0 0
      %6113 = vmatprep.mubr.bf16.mxu0 0
      %6114 = vmatmul.mubr.bf16.gmra.mxu0 %v6079
      %v6115 = vpop.f32.mrf.mxu0
      %v6116 = vadd.f32 0.0, %v6115
      %v6117 = vpop.f32.mrf.mxu0
      %v6118 = vpop.f32.mrf.mxu0
      %v6119 = vadd.f32 0.0, %v6118
      %v6120 = vpop.f32.mrf.mxu0
      %6121 = vdwg.mxu0
      %v6122 = vadd.f32 %v6005, %v6116
      %v6123 = vadd.f32 %v6008, %v6119
      %s6124 = scalar_lea.vmem %s680, 132
      %v6125 = vld [vmem:[%s6124] sm:$0xf]
      %v6126 = vld [vmem:[%s6124 + $0x4] sm:$0xf]
      %s6127 = scalar_lea.vmem %s691, 132
      %v6128 = vld [vmem:[%s6127] sm:$0xf]
      %v6129 = vld [vmem:[%s6127 + $0x4] sm:$0xf]
      %v6130 = vld [vmem:[%s6124 + $0x8] sm:$0x1]
      %v6131 = vld [vmem:[%s6127 + $0x8] sm:$0x1]
      %v6134 = vunpack.c.l.b16 %v6125
      %v6135 = vunpack.c.l.b16 %v6126
      %v6136 = vpack.c.b16 %v6135, %v6134
      %v6139 = vunpack.c.l.b16 %v6128
      %v6140 = vunpack.c.l.b16 %v6129
      %v6141 = vpack.c.b16 %v6140, %v6139
      %6142 = vrot.lane.b32.xlu0 %v6141, 4
      %v6143 = vpop.permute.xlu0 %6142
      %v6145 = vunpack.c.l.b16 %v6130
      %v6146 = vpack.c.b16 %v6145, %v6145
      %v6148 = vshrl.u32 %v6136, 16
      %v6150 = vshll.u32 %v6136, 16
      %v6152 = vrot.slane %v6150, 1
      %v6153 = vor.u32 %v6148, %v6152
      %v6155 = vshll.u32 %v6146, 16
      %v6157 = vrot.slane %v6155, 1
      %v6158 = vsel %vm740, %v6153, %v6157
      %6159 = vrot.lane.b32.xlu0 %v6158, 8
      %v6160 = vpop.permute.xlu0 %6159
      %v6162 = vunpack.c.l.b16 %v6131
      %v6163 = vpack.c.b16 %v6162, %v6162
      %v6165 = vshrl.u32 %v6141, 16
      %v6167 = vshll.u32 %v6141, 16
      %v6169 = vrot.slane %v6167, 1
      %v6170 = vor.u32 %v6165, %v6169
      %v6172 = vshll.u32 %v6163, 16
      %v6174 = vrot.slane %v6172, 1
      %v6175 = vsel %vm740, %v6170, %v6174
      %6176 = vrot.lane.b32.xlu0 %v6175, 12
      %v6177 = vpop.permute.xlu0 %6176
      %v6179 = vsel %vm772, %v6136, %v6143
      %v6181 = vsel %vm775, %v6179, %v6160
      %v6183 = vsel %vm778, %v6181, %v6177
      %v6184 = vld [vmem:[%s1113] sm:$0xf]
      %v6185 = vld [vmem:[%s1113 + $0x4] sm:$0xf]
      %v6188 = vunpack.c.l.b16 %v6184
      %v6189 = vunpack.c.l.b16 %v6185
      %v6190 = vpack.c.b16 %v6189, %v6188
      %v6192 = vsel %vm850, %v6183, 0
      %6194 = vmatprep.subr.bf16.mxu0 0
      %6195 = vmatpush1.bf16.msra.mxu0 0
      %6196 = vmatprep.subr.bf16.mxu0 0
      %6197 = vmatpush1.bf16.msra.mxu0 0
      %6198 = vmatprep.subr.bf16.mxu0 0
      %6199 = vmatpush1.bf16.msra.mxu0 0
      %6200 = vmatprep.subr.bf16.mxu0 0
      %6201 = vmatpush1.bf16.msra.mxu0 0
      %6202 = vmatprep.subr.bf16.mxu0 0
      %6203 = vmatpush1.bf16.msra.mxu0 0
      %6204 = vmatprep.subr.bf16.mxu0 0
      %6205 = vmatpush1.bf16.msra.mxu0 0
      %6206 = vmatprep.subr.bf16.mxu0 0
      %6207 = vmatpush1.bf16.msra.mxu0 0
      %6208 = vmatprep.subr.bf16.mxu0 0
      %6209 = vmatpush1.bf16.msra.mxu0 %v6190
      %6210 = vmatprep.subr.bf16.mxu0 0
      %6211 = vmatpush2.bf16.msra.mxu0 0
      %6212 = vmatprep.subr.bf16.mxu0 0
      %6213 = vmatpush2.bf16.msra.mxu0 0
      %6214 = vmatprep.subr.bf16.mxu0 0
      %6215 = vmatpush2.bf16.msra.mxu0 0
      %6216 = vmatprep.subr.bf16.mxu0 0
      %6217 = vmatpush2.bf16.msra.mxu0 0
      %6218 = vmatprep.subr.bf16.mxu0 0
      %6219 = vmatpush2.bf16.msra.mxu0 0
      %6220 = vmatprep.subr.bf16.mxu0 0
      %6221 = vmatpush2.bf16.msra.mxu0 0
      %6222 = vmatprep.subr.bf16.mxu0 0
      %6223 = vmatpush2.bf16.msra.mxu0 0
      %6224 = vmatprep.subr.bf16.mxu0 0
      %6225 = vmatpush2.bf16.msra.mxu0 0
      %6226 = vmatprep.mubr.bf16.mxu0 0
      %6227 = vmatmul.mubr.bf16.gmra.mxu0 %v6192
      %v6228 = vpop.f32.mrf.mxu0
      %v6229 = vadd.f32 0.0, %v6228
      %v6230 = vpop.f32.mrf.mxu0
      %v6231 = vpop.f32.mrf.mxu0
      %v6232 = vadd.f32 0.0, %v6231
      %v6233 = vpop.f32.mrf.mxu0
      %6234 = vdwg.mxu0
      %v6235 = vadd.f32 %v6122, %v6229
      %v6236 = vadd.f32 %v6123, %v6232
      %v6237 = vmul.f32 %v6235, %v710
      %v6238 = vmul.f32 %v6236, %v710
      %v6239 = vadd.f32 %v6237, %v717
      %v6240 = vadd.f32 %v6238, %v717
      %vm6241 = vcmp.ge.f32.partialorder %v6239, 0.0
      %vm6242 = vcmp.ge.f32.partialorder %v6240, 0.0
      %v6243 = vmul.f32 %v6239, 0.2
      %v6244 = vmul.f32 %v6240, 0.2
      %v6245 = vsel %vm6241, %v6239, %v6243
      %v6246 = vsel %vm6242, %v6240, %v6244
      %s6247 = scalar_lea.vmem %s702, 176
      %6248 = vst.msk [vmem:[%s6247] sm:$0xff] %vm775, %v6245
      %6249 = vst.msk [vmem:[%s6247 + $0x8] sm:$0xff] %vm775, %v6246
      %s6250 = scalar_lea.vmem %s614, 144
      %v6251 = vld [vmem:[%s6250] sm:$0xf]
      %v6252 = vld [vmem:[%s6250 + $0x4] sm:$0xf]
      %s6253 = scalar_lea.vmem %s625, 144
      %v6254 = vld [vmem:[%s6253] sm:$0xf]
      %v6255 = vld [vmem:[%s6253 + $0x4] sm:$0xf]
      %v6256 = vld [vmem:[%s6250 + $0x8] sm:$0x1]
      %v6257 = vld [vmem:[%s6253 + $0x8] sm:$0x1]
      %v6260 = vunpack.c.l.b16 %v6251
      %v6261 = vunpack.c.l.b16 %v6252
      %v6262 = vpack.c.b16 %v6261, %v6260
      %v6265 = vunpack.c.l.b16 %v6254
      %v6266 = vunpack.c.l.b16 %v6255
      %v6267 = vpack.c.b16 %v6266, %v6265
      %6268 = vrot.lane.b32.xlu0 %v6267, 4
      %v6269 = vpop.permute.xlu0 %6268
      %v6271 = vunpack.c.l.b16 %v6256
      %v6272 = vpack.c.b16 %v6271, %v6271
      %v6274 = vshrl.u32 %v6262, 16
      %v6276 = vshll.u32 %v6262, 16
      %v6278 = vrot.slane %v6276, 1
      %v6279 = vor.u32 %v6274, %v6278
      %v6281 = vshll.u32 %v6272, 16
      %v6283 = vrot.slane %v6281, 1
      %v6284 = vsel %vm740, %v6279, %v6283
      %6285 = vrot.lane.b32.xlu0 %v6284, 8
      %v6286 = vpop.permute.xlu0 %6285
      %v6288 = vunpack.c.l.b16 %v6257
      %v6289 = vpack.c.b16 %v6288, %v6288
      %v6291 = vshrl.u32 %v6267, 16
      %v6293 = vshll.u32 %v6267, 16
      %v6295 = vrot.slane %v6293, 1
      %v6296 = vor.u32 %v6291, %v6295
      %v6298 = vshll.u32 %v6289, 16
      %v6300 = vrot.slane %v6298, 1
      %v6301 = vsel %vm740, %v6296, %v6300
      %6302 = vrot.lane.b32.xlu0 %v6301, 12
      %v6303 = vpop.permute.xlu0 %6302
      %v6305 = vsel %vm772, %v6262, %v6269
      %v6307 = vsel %vm775, %v6305, %v6286
      %v6309 = vsel %vm778, %v6307, %v6303
      %v6310 = vld [vmem:[%s8] sm:$0xf]
      %v6311 = vld [vmem:[%s8 + $0x4] sm:$0xf]
      %s6312 = scalar_lea.vmem %s636, 144
      %v6313 = vld [vmem:[%s6312] sm:$0xf]
      %v6314 = vld [vmem:[%s6312 + $0x4] sm:$0xf]
      %s6315 = scalar_lea.vmem %s647, 144
      %v6316 = vld [vmem:[%s6315] sm:$0xf]
      %v6317 = vld [vmem:[%s6315 + $0x4] sm:$0xf]
      %v6318 = vld [vmem:[%s6312 + $0x8] sm:$0x1]
      %v6319 = vld [vmem:[%s6315 + $0x8] sm:$0x1]
      %v6322 = vunpack.c.l.b16 %v6313
      %v6323 = vunpack.c.l.b16 %v6314
      %v6324 = vpack.c.b16 %v6323, %v6322
      %v6327 = vunpack.c.l.b16 %v6316
      %v6328 = vunpack.c.l.b16 %v6317
      %v6329 = vpack.c.b16 %v6328, %v6327
      %6330 = vrot.lane.b32.xlu0 %v6329, 4
      %v6331 = vpop.permute.xlu0 %6330
      %v6333 = vunpack.c.l.b16 %v6318
      %v6334 = vpack.c.b16 %v6333, %v6333
      %v6336 = vshrl.u32 %v6324, 16
      %v6338 = vshll.u32 %v6324, 16
      %v6340 = vrot.slane %v6338, 1
      %v6341 = vor.u32 %v6336, %v6340
      %v6343 = vshll.u32 %v6334, 16
      %v6345 = vrot.slane %v6343, 1
      %v6346 = vsel %vm740, %v6341, %v6345
      %6347 = vrot.lane.b32.xlu0 %v6346, 8
      %v6348 = vpop.permute.xlu0 %6347
      %v6350 = vunpack.c.l.b16 %v6319
      %v6351 = vpack.c.b16 %v6350, %v6350
      %v6353 = vshrl.u32 %v6329, 16
      %v6355 = vshll.u32 %v6329, 16
      %v6357 = vrot.slane %v6355, 1
      %v6358 = vor.u32 %v6353, %v6357
      %v6360 = vshll.u32 %v6351, 16
      %v6362 = vrot.slane %v6360, 1
      %v6363 = vsel %vm740, %v6358, %v6362
      %6364 = vrot.lane.b32.xlu0 %v6363, 12
      %v6365 = vpop.permute.xlu0 %6364
      %v6367 = vsel %vm772, %v6324, %v6331
      %v6369 = vsel %vm775, %v6367, %v6348
      %v6371 = vsel %vm778, %v6369, %v6365
      %v6372 = vld [vmem:[%s841] sm:$0xf]
      %v6373 = vld [vmem:[%s841 + $0x4] sm:$0xf]
      %v6376 = vunpack.c.l.b16 %v6372
      %v6377 = vunpack.c.l.b16 %v6373
      %v6378 = vpack.c.b16 %v6377, %v6376
      %v6380 = vsel %vm850, %v6371, 0
      %6382 = vmatprep.subr.bf16.mxu0 0
      %6383 = vmatpush1.bf16.msra.mxu0 0
      %6384 = vmatprep.subr.bf16.mxu0 0
      %6385 = vmatpush1.bf16.msra.mxu0 0
      %6386 = vmatprep.subr.bf16.mxu0 0
      %6387 = vmatpush1.bf16.msra.mxu0 0
      %6388 = vmatprep.subr.bf16.mxu0 0
      %6389 = vmatpush1.bf16.msra.mxu0 0
      %6390 = vmatprep.subr.bf16.mxu0 0
      %6391 = vmatpush1.bf16.msra.mxu0 0
      %6392 = vmatprep.subr.bf16.mxu0 0
      %6393 = vmatpush1.bf16.msra.mxu0 0
      %6394 = vmatprep.subr.bf16.mxu0 0
      %6395 = vmatpush1.bf16.msra.mxu0 0
      %6396 = vmatprep.subr.bf16.mxu0 0
      %6397 = vmatpush1.bf16.msra.mxu0 %v6378
      %6398 = vmatprep.subr.bf16.mxu0 0
      %6399 = vmatpush2.bf16.msra.mxu0 0
      %6400 = vmatprep.subr.bf16.mxu0 0
      %6401 = vmatpush2.bf16.msra.mxu0 0
      %6402 = vmatprep.subr.bf16.mxu0 0
      %6403 = vmatpush2.bf16.msra.mxu0 0
      %6404 = vmatprep.subr.bf16.mxu0 0
      %6405 = vmatpush2.bf16.msra.mxu0 0
      %6406 = vmatprep.subr.bf16.mxu0 0
      %6407 = vmatpush2.bf16.msra.mxu0 0
      %6408 = vmatprep.subr.bf16.mxu0 0
      %6409 = vmatpush2.bf16.msra.mxu0 0
      %6410 = vmatprep.subr.bf16.mxu0 0
      %6411 = vmatpush2.bf16.msra.mxu0 0
      %6412 = vmatprep.subr.bf16.mxu0 0
      %6413 = vmatpush2.bf16.msra.mxu0 0
      %6414 = vmatprep.mubr.bf16.mxu0 0
      %6415 = vmatmul.mubr.bf16.gmra.mxu0 %v6380
      %v6416 = vpop.f32.mrf.mxu0
      %v6417 = vadd.f32 0.0, %v6416
      %v6418 = vpop.f32.mrf.mxu0
      %v6419 = vpop.f32.mrf.mxu0
      %v6420 = vadd.f32 0.0, %v6419
      %v6421 = vpop.f32.mrf.mxu0
      %6422 = vdwg.mxu0
      %v6425 = vunpack.c.l.b16 %v6310
      %v6426 = vunpack.c.l.b16 %v6311
      %v6427 = vpack.c.b16 %v6426, %v6425
      %v6429 = vsel %vm850, %v6309, 0
      %6431 = vmatprep.subr.bf16.mxu0 0
      %6432 = vmatpush1.bf16.msra.mxu0 0
      %6433 = vmatprep.subr.bf16.mxu0 0
      %6434 = vmatpush1.bf16.msra.mxu0 0
      %6435 = vmatprep.subr.bf16.mxu0 0
      %6436 = vmatpush1.bf16.msra.mxu0 0
      %6437 = vmatprep.subr.bf16.mxu0 0
      %6438 = vmatpush1.bf16.msra.mxu0 0
      %6439 = vmatprep.subr.bf16.mxu0 0
      %6440 = vmatpush1.bf16.msra.mxu0 0
      %6441 = vmatprep.subr.bf16.mxu0 0
      %6442 = vmatpush1.bf16.msra.mxu0 0
      %6443 = vmatprep.subr.bf16.mxu0 0
      %6444 = vmatpush1.bf16.msra.mxu0 0
      %6445 = vmatprep.subr.bf16.mxu0 0
      %6446 = vmatpush1.bf16.msra.mxu0 %v6427
      %6447 = vmatprep.subr.bf16.mxu0 0
      %6448 = vmatpush2.bf16.msra.mxu0 0
      %6449 = vmatprep.subr.bf16.mxu0 0
      %6450 = vmatpush2.bf16.msra.mxu0 0
      %6451 = vmatprep.subr.bf16.mxu0 0
      %6452 = vmatpush2.bf16.msra.mxu0 0
      %6453 = vmatprep.subr.bf16.mxu0 0
      %6454 = vmatpush2.bf16.msra.mxu0 0
      %6455 = vmatprep.subr.bf16.mxu0 0
      %6456 = vmatpush2.bf16.msra.mxu0 0
      %6457 = vmatprep.subr.bf16.mxu0 0
      %6458 = vmatpush2.bf16.msra.mxu0 0
      %6459 = vmatprep.subr.bf16.mxu0 0
      %6460 = vmatpush2.bf16.msra.mxu0 0
      %6461 = vmatprep.subr.bf16.mxu0 0
      %6462 = vmatpush2.bf16.msra.mxu0 0
      %6463 = vmatprep.mubr.bf16.mxu0 0
      %6464 = vmatmul.mubr.bf16.gmra.mxu0 %v6429
      %v6465 = vpop.f32.mrf.mxu0
      %v6466 = vadd.f32 %v6417, %v6465
      %v6467 = vpop.f32.mrf.mxu0
      %v6468 = vpop.f32.mrf.mxu0
      %v6469 = vadd.f32 %v6420, %v6468
      %v6470 = vpop.f32.mrf.mxu0
      %6471 = vdwg.mxu0
      %s6472 = scalar_lea.vmem %s658, 144
      %v6473 = vld [vmem:[%s6472] sm:$0xf]
      %v6474 = vld [vmem:[%s6472 + $0x4] sm:$0xf]
      %s6475 = scalar_lea.vmem %s669, 144
      %v6476 = vld [vmem:[%s6475] sm:$0xf]
      %v6477 = vld [vmem:[%s6475 + $0x4] sm:$0xf]
      %v6478 = vld [vmem:[%s6472 + $0x8] sm:$0x1]
      %v6479 = vld [vmem:[%s6475 + $0x8] sm:$0x1]
      %v6482 = vunpack.c.l.b16 %v6473
      %v6483 = vunpack.c.l.b16 %v6474
      %v6484 = vpack.c.b16 %v6483, %v6482
      %v6487 = vunpack.c.l.b16 %v6476
      %v6488 = vunpack.c.l.b16 %v6477
      %v6489 = vpack.c.b16 %v6488, %v6487
      %6490 = vrot.lane.b32.xlu0 %v6489, 4
      %v6491 = vpop.permute.xlu0 %6490
      %v6493 = vunpack.c.l.b16 %v6478
      %v6494 = vpack.c.b16 %v6493, %v6493
      %v6496 = vshrl.u32 %v6484, 16
      %v6498 = vshll.u32 %v6484, 16
      %v6500 = vrot.slane %v6498, 1
      %v6501 = vor.u32 %v6496, %v6500
      %v6503 = vshll.u32 %v6494, 16
      %v6505 = vrot.slane %v6503, 1
      %v6506 = vsel %vm740, %v6501, %v6505
      %6507 = vrot.lane.b32.xlu0 %v6506, 8
      %v6508 = vpop.permute.xlu0 %6507
      %v6510 = vunpack.c.l.b16 %v6479
      %v6511 = vpack.c.b16 %v6510, %v6510
      %v6513 = vshrl.u32 %v6489, 16
      %v6515 = vshll.u32 %v6489, 16
      %v6517 = vrot.slane %v6515, 1
      %v6518 = vor.u32 %v6513, %v6517
      %v6520 = vshll.u32 %v6511, 16
      %v6522 = vrot.slane %v6520, 1
      %v6523 = vsel %vm740, %v6518, %v6522
      %6524 = vrot.lane.b32.xlu0 %v6523, 12
      %v6525 = vpop.permute.xlu0 %6524
      %v6527 = vsel %vm772, %v6484, %v6491
      %v6529 = vsel %vm775, %v6527, %v6508
      %v6531 = vsel %vm778, %v6529, %v6525
      %v6532 = vld [vmem:[%s1001] sm:$0xf]
      %v6533 = vld [vmem:[%s1001 + $0x4] sm:$0xf]
      %v6536 = vunpack.c.l.b16 %v6532
      %v6537 = vunpack.c.l.b16 %v6533
      %v6538 = vpack.c.b16 %v6537, %v6536
      %v6540 = vsel %vm850, %v6531, 0
      %6542 = vmatprep.subr.bf16.mxu0 0
      %6543 = vmatpush1.bf16.msra.mxu0 0
      %6544 = vmatprep.subr.bf16.mxu0 0
      %6545 = vmatpush1.bf16.msra.mxu0 0
      %6546 = vmatprep.subr.bf16.mxu0 0
      %6547 = vmatpush1.bf16.msra.mxu0 0
      %6548 = vmatprep.subr.bf16.mxu0 0
      %6549 = vmatpush1.bf16.msra.mxu0 0
      %6550 = vmatprep.subr.bf16.mxu0 0
      %6551 = vmatpush1.bf16.msra.mxu0 0
      %6552 = vmatprep.subr.bf16.mxu0 0
      %6553 = vmatpush1.bf16.msra.mxu0 0
      %6554 = vmatprep.subr.bf16.mxu0 0
      %6555 = vmatpush1.bf16.msra.mxu0 0
      %6556 = vmatprep.subr.bf16.mxu0 0
      %6557 = vmatpush1.bf16.msra.mxu0 %v6538
      %6558 = vmatprep.subr.bf16.mxu0 0
      %6559 = vmatpush2.bf16.msra.mxu0 0
      %6560 = vmatprep.subr.bf16.mxu0 0
      %6561 = vmatpush2.bf16.msra.mxu0 0
      %6562 = vmatprep.subr.bf16.mxu0 0
      %6563 = vmatpush2.bf16.msra.mxu0 0
      %6564 = vmatprep.subr.bf16.mxu0 0
      %6565 = vmatpush2.bf16.msra.mxu0 0
      %6566 = vmatprep.subr.bf16.mxu0 0
      %6567 = vmatpush2.bf16.msra.mxu0 0
      %6568 = vmatprep.subr.bf16.mxu0 0
      %6569 = vmatpush2.bf16.msra.mxu0 0
      %6570 = vmatprep.subr.bf16.mxu0 0
      %6571 = vmatpush2.bf16.msra.mxu0 0
      %6572 = vmatprep.subr.bf16.mxu0 0
      %6573 = vmatpush2.bf16.msra.mxu0 0
      %6574 = vmatprep.mubr.bf16.mxu0 0
      %6575 = vmatmul.mubr.bf16.gmra.mxu0 %v6540
      %v6576 = vpop.f32.mrf.mxu0
      %v6577 = vadd.f32 0.0, %v6576
      %v6578 = vpop.f32.mrf.mxu0
      %v6579 = vpop.f32.mrf.mxu0
      %v6580 = vadd.f32 0.0, %v6579
      %v6581 = vpop.f32.mrf.mxu0
      %6582 = vdwg.mxu0
      %v6583 = vadd.f32 %v6466, %v6577
      %v6584 = vadd.f32 %v6469, %v6580
      %s6585 = scalar_lea.vmem %s680, 144
      %v6586 = vld [vmem:[%s6585] sm:$0xf]
      %v6587 = vld [vmem:[%s6585 + $0x4] sm:$0xf]
      %s6588 = scalar_lea.vmem %s691, 144
      %v6589 = vld [vmem:[%s6588] sm:$0xf]
      %v6590 = vld [vmem:[%s6588 + $0x4] sm:$0xf]
      %v6591 = vld [vmem:[%s6585 + $0x8] sm:$0x1]
      %v6592 = vld [vmem:[%s6588 + $0x8] sm:$0x1]
      %v6595 = vunpack.c.l.b16 %v6586
      %v6596 = vunpack.c.l.b16 %v6587
      %v6597 = vpack.c.b16 %v6596, %v6595
      %v6600 = vunpack.c.l.b16 %v6589
      %v6601 = vunpack.c.l.b16 %v6590
      %v6602 = vpack.c.b16 %v6601, %v6600
      %6603 = vrot.lane.b32.xlu0 %v6602, 4
      %v6604 = vpop.permute.xlu0 %6603
      %v6606 = vunpack.c.l.b16 %v6591
      %v6607 = vpack.c.b16 %v6606, %v6606
      %v6609 = vshrl.u32 %v6597, 16
      %v6611 = vshll.u32 %v6597, 16
      %v6613 = vrot.slane %v6611, 1
      %v6614 = vor.u32 %v6609, %v6613
      %v6616 = vshll.u32 %v6607, 16
      %v6618 = vrot.slane %v6616, 1
      %v6619 = vsel %vm740, %v6614, %v6618
      %6620 = vrot.lane.b32.xlu0 %v6619, 8
      %v6621 = vpop.permute.xlu0 %6620
      %v6623 = vunpack.c.l.b16 %v6592
      %v6624 = vpack.c.b16 %v6623, %v6623
      %v6626 = vshrl.u32 %v6602, 16
      %v6628 = vshll.u32 %v6602, 16
      %v6630 = vrot.slane %v6628, 1
      %v6631 = vor.u32 %v6626, %v6630
      %v6633 = vshll.u32 %v6624, 16
      %v6635 = vrot.slane %v6633, 1
      %v6636 = vsel %vm740, %v6631, %v6635
      %6637 = vrot.lane.b32.xlu0 %v6636, 12
      %v6638 = vpop.permute.xlu0 %6637
      %v6640 = vsel %vm772, %v6597, %v6604
      %v6642 = vsel %vm775, %v6640, %v6621
      %v6644 = vsel %vm778, %v6642, %v6638
      %v6645 = vld [vmem:[%s1113] sm:$0xf]
      %v6646 = vld [vmem:[%s1113 + $0x4] sm:$0xf]
      %v6649 = vunpack.c.l.b16 %v6645
      %v6650 = vunpack.c.l.b16 %v6646
      %v6651 = vpack.c.b16 %v6650, %v6649
      %v6653 = vsel %vm850, %v6644, 0
      %6655 = vmatprep.subr.bf16.mxu0 0
      %6656 = vmatpush1.bf16.msra.mxu0 0
      %6657 = vmatprep.subr.bf16.mxu0 0
      %6658 = vmatpush1.bf16.msra.mxu0 0
      %6659 = vmatprep.subr.bf16.mxu0 0
      %6660 = vmatpush1.bf16.msra.mxu0 0
      %6661 = vmatprep.subr.bf16.mxu0 0
      %6662 = vmatpush1.bf16.msra.mxu0 0
      %6663 = vmatprep.subr.bf16.mxu0 0
      %6664 = vmatpush1.bf16.msra.mxu0 0
      %6665 = vmatprep.subr.bf16.mxu0 0
      %6666 = vmatpush1.bf16.msra.mxu0 0
      %6667 = vmatprep.subr.bf16.mxu0 0
      %6668 = vmatpush1.bf16.msra.mxu0 0
      %6669 = vmatprep.subr.bf16.mxu0 0
      %6670 = vmatpush1.bf16.msra.mxu0 %v6651
      %6671 = vmatprep.subr.bf16.mxu0 0
      %6672 = vmatpush2.bf16.msra.mxu0 0
      %6673 = vmatprep.subr.bf16.mxu0 0
      %6674 = vmatpush2.bf16.msra.mxu0 0
      %6675 = vmatprep.subr.bf16.mxu0 0
      %6676 = vmatpush2.bf16.msra.mxu0 0
      %6677 = vmatprep.subr.bf16.mxu0 0
      %6678 = vmatpush2.bf16.msra.mxu0 0
      %6679 = vmatprep.subr.bf16.mxu0 0
      %6680 = vmatpush2.bf16.msra.mxu0 0
      %6681 = vmatprep.subr.bf16.mxu0 0
      %6682 = vmatpush2.bf16.msra.mxu0 0
      %6683 = vmatprep.subr.bf16.mxu0 0
      %6684 = vmatpush2.bf16.msra.mxu0 0
      %6685 = vmatprep.subr.bf16.mxu0 0
      %6686 = vmatpush2.bf16.msra.mxu0 0
      %6687 = vmatprep.mubr.bf16.mxu0 0
      %6688 = vmatmul.mubr.bf16.gmra.mxu0 %v6653
      %v6689 = vpop.f32.mrf.mxu0
      %v6690 = vadd.f32 0.0, %v6689
      %v6691 = vpop.f32.mrf.mxu0
      %v6692 = vpop.f32.mrf.mxu0
      %v6693 = vadd.f32 0.0, %v6692
      %v6694 = vpop.f32.mrf.mxu0
      %6695 = vdwg.mxu0
      %v6696 = vadd.f32 %v6583, %v6690
      %v6697 = vadd.f32 %v6584, %v6693
      %v6698 = vmul.f32 %v6696, %v710
      %v6699 = vmul.f32 %v6697, %v710
      %v6700 = vadd.f32 %v6698, %v717
      %v6701 = vadd.f32 %v6699, %v717
      %vm6702 = vcmp.ge.f32.partialorder %v6700, 0.0
      %vm6703 = vcmp.ge.f32.partialorder %v6701, 0.0
      %v6704 = vmul.f32 %v6700, 0.2
      %v6705 = vmul.f32 %v6701, 0.2
      %v6706 = vsel %vm6702, %v6700, %v6704
      %v6707 = vsel %vm6703, %v6701, %v6705
      %s6708 = scalar_lea.vmem %s702, 192
      %6709 = vst.msk [vmem:[%s6708] sm:$0xff] %vm775, %v6706
      %6710 = vst.msk [vmem:[%s6708 + $0x8] sm:$0xff] %vm775, %v6707
      %s6711 = scalar_lea.vmem %s614, 156
      %v6712 = vld [vmem:[%s6711] sm:$0xf]
      %v6713 = vld [vmem:[%s6711 + $0x4] sm:$0xf]
      %s6714 = scalar_lea.vmem %s625, 156
      %v6715 = vld [vmem:[%s6714] sm:$0xf]
      %v6716 = vld [vmem:[%s6714 + $0x4] sm:$0xf]
      %v6717 = vld [vmem:[%s6711 + $0x8] sm:$0x1]
      %v6718 = vld [vmem:[%s6714 + $0x8] sm:$0x1]
      %v6721 = vunpack.c.l.b16 %v6712
      %v6722 = vunpack.c.l.b16 %v6713
      %v6723 = vpack.c.b16 %v6722, %v6721
      %v6726 = vunpack.c.l.b16 %v6715
      %v6727 = vunpack.c.l.b16 %v6716
      %v6728 = vpack.c.b16 %v6727, %v6726
      %6729 = vrot.lane.b32.xlu0 %v6728, 4
      %v6730 = vpop.permute.xlu0 %6729
      %v6732 = vunpack.c.l.b16 %v6717
      %v6733 = vpack.c.b16 %v6732, %v6732
      %v6735 = vshrl.u32 %v6723, 16
      %v6737 = vshll.u32 %v6723, 16
      %v6739 = vrot.slane %v6737, 1
      %v6740 = vor.u32 %v6735, %v6739
      %v6742 = vshll.u32 %v6733, 16
      %v6744 = vrot.slane %v6742, 1
      %v6745 = vsel %vm740, %v6740, %v6744
      %6746 = vrot.lane.b32.xlu0 %v6745, 8
      %v6747 = vpop.permute.xlu0 %6746
      %v6749 = vunpack.c.l.b16 %v6718
      %v6750 = vpack.c.b16 %v6749, %v6749
      %v6752 = vshrl.u32 %v6728, 16
      %v6754 = vshll.u32 %v6728, 16
      %v6756 = vrot.slane %v6754, 1
      %v6757 = vor.u32 %v6752, %v6756
      %v6759 = vshll.u32 %v6750, 16
      %v6761 = vrot.slane %v6759, 1
      %v6762 = vsel %vm740, %v6757, %v6761
      %6763 = vrot.lane.b32.xlu0 %v6762, 12
      %v6764 = vpop.permute.xlu0 %6763
      %v6766 = vsel %vm772, %v6723, %v6730
      %v6768 = vsel %vm775, %v6766, %v6747
      %v6770 = vsel %vm778, %v6768, %v6764
      %v6771 = vld [vmem:[%s8] sm:$0xf]
      %v6772 = vld [vmem:[%s8 + $0x4] sm:$0xf]
      %s6773 = scalar_lea.vmem %s636, 156
      %v6774 = vld [vmem:[%s6773] sm:$0xf]
      %v6775 = vld [vmem:[%s6773 + $0x4] sm:$0xf]
      %s6776 = scalar_lea.vmem %s647, 156
      %v6777 = vld [vmem:[%s6776] sm:$0xf]
      %v6778 = vld [vmem:[%s6776 + $0x4] sm:$0xf]
      %v6779 = vld [vmem:[%s6773 + $0x8] sm:$0x1]
      %v6780 = vld [vmem:[%s6776 + $0x8] sm:$0x1]
      %v6783 = vunpack.c.l.b16 %v6774
      %v6784 = vunpack.c.l.b16 %v6775
      %v6785 = vpack.c.b16 %v6784, %v6783
      %v6788 = vunpack.c.l.b16 %v6777
      %v6789 = vunpack.c.l.b16 %v6778
      %v6790 = vpack.c.b16 %v6789, %v6788
      %6791 = vrot.lane.b32.xlu0 %v6790, 4
      %v6792 = vpop.permute.xlu0 %6791
      %v6794 = vunpack.c.l.b16 %v6779
      %v6795 = vpack.c.b16 %v6794, %v6794
      %v6797 = vshrl.u32 %v6785, 16
      %v6799 = vshll.u32 %v6785, 16
      %v6801 = vrot.slane %v6799, 1
      %v6802 = vor.u32 %v6797, %v6801
      %v6804 = vshll.u32 %v6795, 16
      %v6806 = vrot.slane %v6804, 1
      %v6807 = vsel %vm740, %v6802, %v6806
      %6808 = vrot.lane.b32.xlu0 %v6807, 8
      %v6809 = vpop.permute.xlu0 %6808
      %v6811 = vunpack.c.l.b16 %v6780
      %v6812 = vpack.c.b16 %v6811, %v6811
      %v6814 = vshrl.u32 %v6790, 16
      %v6816 = vshll.u32 %v6790, 16
      %v6818 = vrot.slane %v6816, 1
      %v6819 = vor.u32 %v6814, %v6818
      %v6821 = vshll.u32 %v6812, 16
      %v6823 = vrot.slane %v6821, 1
      %v6824 = vsel %vm740, %v6819, %v6823
      %6825 = vrot.lane.b32.xlu0 %v6824, 12
      %v6826 = vpop.permute.xlu0 %6825
      %v6828 = vsel %vm772, %v6785, %v6792
      %v6830 = vsel %vm775, %v6828, %v6809
      %v6832 = vsel %vm778, %v6830, %v6826
      %v6833 = vld [vmem:[%s841] sm:$0xf]
      %v6834 = vld [vmem:[%s841 + $0x4] sm:$0xf]
      %v6837 = vunpack.c.l.b16 %v6833
      %v6838 = vunpack.c.l.b16 %v6834
      %v6839 = vpack.c.b16 %v6838, %v6837
      %v6841 = vsel %vm850, %v6832, 0
      %6843 = vmatprep.subr.bf16.mxu0 0
      %6844 = vmatpush1.bf16.msra.mxu0 0
      %6845 = vmatprep.subr.bf16.mxu0 0
      %6846 = vmatpush1.bf16.msra.mxu0 0
      %6847 = vmatprep.subr.bf16.mxu0 0
      %6848 = vmatpush1.bf16.msra.mxu0 0
      %6849 = vmatprep.subr.bf16.mxu0 0
      %6850 = vmatpush1.bf16.msra.mxu0 0
      %6851 = vmatprep.subr.bf16.mxu0 0
      %6852 = vmatpush1.bf16.msra.mxu0 0
      %6853 = vmatprep.subr.bf16.mxu0 0
      %6854 = vmatpush1.bf16.msra.mxu0 0
      %6855 = vmatprep.subr.bf16.mxu0 0
      %6856 = vmatpush1.bf16.msra.mxu0 0
      %6857 = vmatprep.subr.bf16.mxu0 0
      %6858 = vmatpush1.bf16.msra.mxu0 %v6839
      %6859 = vmatprep.subr.bf16.mxu0 0
      %6860 = vmatpush2.bf16.msra.mxu0 0
      %6861 = vmatprep.subr.bf16.mxu0 0
      %6862 = vmatpush2.bf16.msra.mxu0 0
      %6863 = vmatprep.subr.bf16.mxu0 0
      %6864 = vmatpush2.bf16.msra.mxu0 0
      %6865 = vmatprep.subr.bf16.mxu0 0
      %6866 = vmatpush2.bf16.msra.mxu0 0
      %6867 = vmatprep.subr.bf16.mxu0 0
      %6868 = vmatpush2.bf16.msra.mxu0 0
      %6869 = vmatprep.subr.bf16.mxu0 0
      %6870 = vmatpush2.bf16.msra.mxu0 0
      %6871 = vmatprep.subr.bf16.mxu0 0
      %6872 = vmatpush2.bf16.msra.mxu0 0
      %6873 = vmatprep.subr.bf16.mxu0 0
      %6874 = vmatpush2.bf16.msra.mxu0 0
      %6875 = vmatprep.mubr.bf16.mxu0 0
      %6876 = vmatmul.mubr.bf16.gmra.mxu0 %v6841
      %v6877 = vpop.f32.mrf.mxu0
      %v6878 = vadd.f32 0.0, %v6877
      %v6879 = vpop.f32.mrf.mxu0
      %v6880 = vpop.f32.mrf.mxu0
      %v6881 = vadd.f32 0.0, %v6880
      %v6882 = vpop.f32.mrf.mxu0
      %6883 = vdwg.mxu0
      %v6886 = vunpack.c.l.b16 %v6771
      %v6887 = vunpack.c.l.b16 %v6772
      %v6888 = vpack.c.b16 %v6887, %v6886
      %v6890 = vsel %vm850, %v6770, 0
      %6892 = vmatprep.subr.bf16.mxu0 0
      %6893 = vmatpush1.bf16.msra.mxu0 0
      %6894 = vmatprep.subr.bf16.mxu0 0
      %6895 = vmatpush1.bf16.msra.mxu0 0
      %6896 = vmatprep.subr.bf16.mxu0 0
      %6897 = vmatpush1.bf16.msra.mxu0 0
      %6898 = vmatprep.subr.bf16.mxu0 0
      %6899 = vmatpush1.bf16.msra.mxu0 0
      %6900 = vmatprep.subr.bf16.mxu0 0
      %6901 = vmatpush1.bf16.msra.mxu0 0
      %6902 = vmatprep.subr.bf16.mxu0 0
      %6903 = vmatpush1.bf16.msra.mxu0 0
      %6904 = vmatprep.subr.bf16.mxu0 0
      %6905 = vmatpush1.bf16.msra.mxu0 0
      %6906 = vmatprep.subr.bf16.mxu0 0
      %6907 = vmatpush1.bf16.msra.mxu0 %v6888
      %6908 = vmatprep.subr.bf16.mxu0 0
      %6909 = vmatpush2.bf16.msra.mxu0 0
      %6910 = vmatprep.subr.bf16.mxu0 0
      %6911 = vmatpush2.bf16.msra.mxu0 0
      %6912 = vmatprep.subr.bf16.mxu0 0
      %6913 = vmatpush2.bf16.msra.mxu0 0
      %6914 = vmatprep.subr.bf16.mxu0 0
      %6915 = vmatpush2.bf16.msra.mxu0 0
      %6916 = vmatprep.subr.bf16.mxu0 0
      %6917 = vmatpush2.bf16.msra.mxu0 0
      %6918 = vmatprep.subr.bf16.mxu0 0
      %6919 = vmatpush2.bf16.msra.mxu0 0
      %6920 = vmatprep.subr.bf16.mxu0 0
      %6921 = vmatpush2.bf16.msra.mxu0 0
      %6922 = vmatprep.subr.bf16.mxu0 0
      %6923 = vmatpush2.bf16.msra.mxu0 0
      %6924 = vmatprep.mubr.bf16.mxu0 0
      %6925 = vmatmul.mubr.bf16.gmra.mxu0 %v6890
      %v6926 = vpop.f32.mrf.mxu0
      %v6927 = vadd.f32 %v6878, %v6926
      %v6928 = vpop.f32.mrf.mxu0
      %v6929 = vpop.f32.mrf.mxu0
      %v6930 = vadd.f32 %v6881, %v6929
      %v6931 = vpop.f32.mrf.mxu0
      %6932 = vdwg.mxu0
      %s6933 = scalar_lea.vmem %s658, 156
      %v6934 = vld [vmem:[%s6933] sm:$0xf]
      %v6935 = vld [vmem:[%s6933 + $0x4] sm:$0xf]
      %s6936 = scalar_lea.vmem %s669, 156
      %v6937 = vld [vmem:[%s6936] sm:$0xf]
      %v6938 = vld [vmem:[%s6936 + $0x4] sm:$0xf]
      %v6939 = vld [vmem:[%s6933 + $0x8] sm:$0x1]
      %v6940 = vld [vmem:[%s6936 + $0x8] sm:$0x1]
      %v6943 = vunpack.c.l.b16 %v6934
      %v6944 = vunpack.c.l.b16 %v6935
      %v6945 = vpack.c.b16 %v6944, %v6943
      %v6948 = vunpack.c.l.b16 %v6937
      %v6949 = vunpack.c.l.b16 %v6938
      %v6950 = vpack.c.b16 %v6949, %v6948
      %6951 = vrot.lane.b32.xlu0 %v6950, 4
      %v6952 = vpop.permute.xlu0 %6951
      %v6954 = vunpack.c.l.b16 %v6939
      %v6955 = vpack.c.b16 %v6954, %v6954
      %v6957 = vshrl.u32 %v6945, 16
      %v6959 = vshll.u32 %v6945, 16
      %v6961 = vrot.slane %v6959, 1
      %v6962 = vor.u32 %v6957, %v6961
      %v6964 = vshll.u32 %v6955, 16
      %v6966 = vrot.slane %v6964, 1
      %v6967 = vsel %vm740, %v6962, %v6966
      %6968 = vrot.lane.b32.xlu0 %v6967, 8
      %v6969 = vpop.permute.xlu0 %6968
      %v6971 = vunpack.c.l.b16 %v6940
      %v6972 = vpack.c.b16 %v6971, %v6971
      %v6974 = vshrl.u32 %v6950, 16
      %v6976 = vshll.u32 %v6950, 16
      %v6978 = vrot.slane %v6976, 1
      %v6979 = vor.u32 %v6974, %v6978
      %v6981 = vshll.u32 %v6972, 16
      %v6983 = vrot.slane %v6981, 1
      %v6984 = vsel %vm740, %v6979, %v6983
      %6985 = vrot.lane.b32.xlu0 %v6984, 12
      %v6986 = vpop.permute.xlu0 %6985
      %v6988 = vsel %vm772, %v6945, %v6952
      %v6990 = vsel %vm775, %v6988, %v6969
      %v6992 = vsel %vm778, %v6990, %v6986
      %v6993 = vld [vmem:[%s1001] sm:$0xf]
      %v6994 = vld [vmem:[%s1001 + $0x4] sm:$0xf]
      %v6997 = vunpack.c.l.b16 %v6993
      %v6998 = vunpack.c.l.b16 %v6994
      %v6999 = vpack.c.b16 %v6998, %v6997
      %v7001 = vsel %vm850, %v6992, 0
      %7003 = vmatprep.subr.bf16.mxu0 0
      %7004 = vmatpush1.bf16.msra.mxu0 0
      %7005 = vmatprep.subr.bf16.mxu0 0
      %7006 = vmatpush1.bf16.msra.mxu0 0
      %7007 = vmatprep.subr.bf16.mxu0 0
      %7008 = vmatpush1.bf16.msra.mxu0 0
      %7009 = vmatprep.subr.bf16.mxu0 0
      %7010 = vmatpush1.bf16.msra.mxu0 0
      %7011 = vmatprep.subr.bf16.mxu0 0
      %7012 = vmatpush1.bf16.msra.mxu0 0
      %7013 = vmatprep.subr.bf16.mxu0 0
      %7014 = vmatpush1.bf16.msra.mxu0 0
      %7015 = vmatprep.subr.bf16.mxu0 0
      %7016 = vmatpush1.bf16.msra.mxu0 0
      %7017 = vmatprep.subr.bf16.mxu0 0
      %7018 = vmatpush1.bf16.msra.mxu0 %v6999
      %7019 = vmatprep.subr.bf16.mxu0 0
      %7020 = vmatpush2.bf16.msra.mxu0 0
      %7021 = vmatprep.subr.bf16.mxu0 0
      %7022 = vmatpush2.bf16.msra.mxu0 0
      %7023 = vmatprep.subr.bf16.mxu0 0
      %7024 = vmatpush2.bf16.msra.mxu0 0
      %7025 = vmatprep.subr.bf16.mxu0 0
      %7026 = vmatpush2.bf16.msra.mxu0 0
      %7027 = vmatprep.subr.bf16.mxu0 0
      %7028 = vmatpush2.bf16.msra.mxu0 0
      %7029 = vmatprep.subr.bf16.mxu0 0
      %7030 = vmatpush2.bf16.msra.mxu0 0
      %7031 = vmatprep.subr.bf16.mxu0 0
      %7032 = vmatpush2.bf16.msra.mxu0 0
      %7033 = vmatprep.subr.bf16.mxu0 0
      %7034 = vmatpush2.bf16.msra.mxu0 0
      %7035 = vmatprep.mubr.bf16.mxu0 0
      %7036 = vmatmul.mubr.bf16.gmra.mxu0 %v7001
      %v7037 = vpop.f32.mrf.mxu0
      %v7038 = vadd.f32 0.0, %v7037
      %v7039 = vpop.f32.mrf.mxu0
      %v7040 = vpop.f32.mrf.mxu0
      %v7041 = vadd.f32 0.0, %v7040
      %v7042 = vpop.f32.mrf.mxu0
      %7043 = vdwg.mxu0
      %v7044 = vadd.f32 %v6927, %v7038
      %v7045 = vadd.f32 %v6930, %v7041
      %s7046 = scalar_lea.vmem %s680, 156
      %v7047 = vld [vmem:[%s7046] sm:$0xf]
      %v7048 = vld [vmem:[%s7046 + $0x4] sm:$0xf]
      %s7049 = scalar_lea.vmem %s691, 156
      %v7050 = vld [vmem:[%s7049] sm:$0xf]
      %v7051 = vld [vmem:[%s7049 + $0x4] sm:$0xf]
      %v7052 = vld [vmem:[%s7046 + $0x8] sm:$0x1]
      %v7053 = vld [vmem:[%s7049 + $0x8] sm:$0x1]
      %v7056 = vunpack.c.l.b16 %v7047
      %v7057 = vunpack.c.l.b16 %v7048
      %v7058 = vpack.c.b16 %v7057, %v7056
      %v7061 = vunpack.c.l.b16 %v7050
      %v7062 = vunpack.c.l.b16 %v7051
      %v7063 = vpack.c.b16 %v7062, %v7061
      %7064 = vrot.lane.b32.xlu0 %v7063, 4
      %v7065 = vpop.permute.xlu0 %7064
      %v7067 = vunpack.c.l.b16 %v7052
      %v7068 = vpack.c.b16 %v7067, %v7067
      %v7070 = vshrl.u32 %v7058, 16
      %v7072 = vshll.u32 %v7058, 16
      %v7074 = vrot.slane %v7072, 1
      %v7075 = vor.u32 %v7070, %v7074
      %v7077 = vshll.u32 %v7068, 16
      %v7079 = vrot.slane %v7077, 1
      %v7080 = vsel %vm740, %v7075, %v7079
      %7081 = vrot.lane.b32.xlu0 %v7080, 8
      %v7082 = vpop.permute.xlu0 %7081
      %v7084 = vunpack.c.l.b16 %v7053
      %v7085 = vpack.c.b16 %v7084, %v7084
      %v7087 = vshrl.u32 %v7063, 16
      %v7089 = vshll.u32 %v7063, 16
      %v7091 = vrot.slane %v7089, 1
      %v7092 = vor.u32 %v7087, %v7091
      %v7094 = vshll.u32 %v7085, 16
      %v7096 = vrot.slane %v7094, 1
      %v7097 = vsel %vm740, %v7092, %v7096
      %7098 = vrot.lane.b32.xlu0 %v7097, 12
      %v7099 = vpop.permute.xlu0 %7098
      %v7101 = vsel %vm772, %v7058, %v7065
      %v7103 = vsel %vm775, %v7101, %v7082
      %v7105 = vsel %vm778, %v7103, %v7099
      %v7106 = vld [vmem:[%s1113] sm:$0xf]
      %v7107 = vld [vmem:[%s1113 + $0x4] sm:$0xf]
      %v7110 = vunpack.c.l.b16 %v7106
      %v7111 = vunpack.c.l.b16 %v7107
      %v7112 = vpack.c.b16 %v7111, %v7110
      %v7114 = vsel %vm850, %v7105, 0
      %7116 = vmatprep.subr.bf16.mxu0 0
      %7117 = vmatpush1.bf16.msra.mxu0 0
      %7118 = vmatprep.subr.bf16.mxu0 0
      %7119 = vmatpush1.bf16.msra.mxu0 0
      %7120 = vmatprep.subr.bf16.mxu0 0
      %7121 = vmatpush1.bf16.msra.mxu0 0
      %7122 = vmatprep.subr.bf16.mxu0 0
      %7123 = vmatpush1.bf16.msra.mxu0 0
      %7124 = vmatprep.subr.bf16.mxu0 0
      %7125 = vmatpush1.bf16.msra.mxu0 0
      %7126 = vmatprep.subr.bf16.mxu0 0
      %7127 = vmatpush1.bf16.msra.mxu0 0
      %7128 = vmatprep.subr.bf16.mxu0 0
      %7129 = vmatpush1.bf16.msra.mxu0 0
      %7130 = vmatprep.subr.bf16.mxu0 0
      %7131 = vmatpush1.bf16.msra.mxu0 %v7112
      %7132 = vmatprep.subr.bf16.mxu0 0
      %7133 = vmatpush2.bf16.msra.mxu0 0
      %7134 = vmatprep.subr.bf16.mxu0 0
      %7135 = vmatpush2.bf16.msra.mxu0 0
      %7136 = vmatprep.subr.bf16.mxu0 0
      %7137 = vmatpush2.bf16.msra.mxu0 0
      %7138 = vmatprep.subr.bf16.mxu0 0
      %7139 = vmatpush2.bf16.msra.mxu0 0
      %7140 = vmatprep.subr.bf16.mxu0 0
      %7141 = vmatpush2.bf16.msra.mxu0 0
      %7142 = vmatprep.subr.bf16.mxu0 0
      %7143 = vmatpush2.bf16.msra.mxu0 0
      %7144 = vmatprep.subr.bf16.mxu0 0
      %7145 = vmatpush2.bf16.msra.mxu0 0
      %7146 = vmatprep.subr.bf16.mxu0 0
      %7147 = vmatpush2.bf16.msra.mxu0 0
      %7148 = vmatprep.mubr.bf16.mxu0 0
      %7149 = vmatmul.mubr.bf16.gmra.mxu0 %v7114
      %v7150 = vpop.f32.mrf.mxu0
      %v7151 = vadd.f32 0.0, %v7150
      %v7152 = vpop.f32.mrf.mxu0
      %v7153 = vpop.f32.mrf.mxu0
      %v7154 = vadd.f32 0.0, %v7153
      %v7155 = vpop.f32.mrf.mxu0
      %7156 = vdwg.mxu0
      %v7157 = vadd.f32 %v7044, %v7151
      %v7158 = vadd.f32 %v7045, %v7154
      %v7159 = vmul.f32 %v7157, %v710
      %v7160 = vmul.f32 %v7158, %v710
      %v7161 = vadd.f32 %v7159, %v717
      %v7162 = vadd.f32 %v7160, %v717
      %vm7163 = vcmp.ge.f32.partialorder %v7161, 0.0
      %vm7164 = vcmp.ge.f32.partialorder %v7162, 0.0
      %v7165 = vmul.f32 %v7161, 0.2
      %v7166 = vmul.f32 %v7162, 0.2
      %v7167 = vsel %vm7163, %v7161, %v7165
      %v7168 = vsel %vm7164, %v7162, %v7166
      %s7169 = scalar_lea.vmem %s702, 208
      %7170 = vst.msk [vmem:[%s7169] sm:$0xff] %vm775, %v7167
      %7171 = vst.msk [vmem:[%s7169 + $0x8] sm:$0xff] %vm775, %v7168
      %s7172 = scalar_lea.vmem %s614, 168
      %v7173 = vld [vmem:[%s7172] sm:$0xf]
      %v7174 = vld [vmem:[%s7172 + $0x4] sm:$0xf]
      %s7175 = scalar_lea.vmem %s625, 168
      %v7176 = vld [vmem:[%s7175] sm:$0xf]
      %v7177 = vld [vmem:[%s7175 + $0x4] sm:$0xf]
      %v7178 = vld [vmem:[%s7172 + $0x8] sm:$0x1]
      %v7179 = vld [vmem:[%s7175 + $0x8] sm:$0x1]
      %v7182 = vunpack.c.l.b16 %v7173
      %v7183 = vunpack.c.l.b16 %v7174
      %v7184 = vpack.c.b16 %v7183, %v7182
      %v7187 = vunpack.c.l.b16 %v7176
      %v7188 = vunpack.c.l.b16 %v7177
      %v7189 = vpack.c.b16 %v7188, %v7187
      %7190 = vrot.lane.b32.xlu0 %v7189, 4
      %v7191 = vpop.permute.xlu0 %7190
      %v7193 = vunpack.c.l.b16 %v7178
      %v7194 = vpack.c.b16 %v7193, %v7193
      %v7196 = vshrl.u32 %v7184, 16
      %v7198 = vshll.u32 %v7184, 16
      %v7200 = vrot.slane %v7198, 1
      %v7201 = vor.u32 %v7196, %v7200
      %v7203 = vshll.u32 %v7194, 16
      %v7205 = vrot.slane %v7203, 1
      %v7206 = vsel %vm740, %v7201, %v7205
      %7207 = vrot.lane.b32.xlu0 %v7206, 8
      %v7208 = vpop.permute.xlu0 %7207
      %v7210 = vunpack.c.l.b16 %v7179
      %v7211 = vpack.c.b16 %v7210, %v7210
      %v7213 = vshrl.u32 %v7189, 16
      %v7215 = vshll.u32 %v7189, 16
      %v7217 = vrot.slane %v7215, 1
      %v7218 = vor.u32 %v7213, %v7217
      %v7220 = vshll.u32 %v7211, 16
      %v7222 = vrot.slane %v7220, 1
      %v7223 = vsel %vm740, %v7218, %v7222
      %7224 = vrot.lane.b32.xlu0 %v7223, 12
      %v7225 = vpop.permute.xlu0 %7224
      %v7227 = vsel %vm772, %v7184, %v7191
      %v7229 = vsel %vm775, %v7227, %v7208
      %v7231 = vsel %vm778, %v7229, %v7225
      %v7232 = vld [vmem:[%s8] sm:$0xf]
      %v7233 = vld [vmem:[%s8 + $0x4] sm:$0xf]
      %s7234 = scalar_lea.vmem %s636, 168
      %v7235 = vld [vmem:[%s7234] sm:$0xf]
      %v7236 = vld [vmem:[%s7234 + $0x4] sm:$0xf]
      %s7237 = scalar_lea.vmem %s647, 168
      %v7238 = vld [vmem:[%s7237] sm:$0xf]
      %v7239 = vld [vmem:[%s7237 + $0x4] sm:$0xf]
      %v7240 = vld [vmem:[%s7234 + $0x8] sm:$0x1]
      %v7241 = vld [vmem:[%s7237 + $0x8] sm:$0x1]
      %v7244 = vunpack.c.l.b16 %v7235
      %v7245 = vunpack.c.l.b16 %v7236
      %v7246 = vpack.c.b16 %v7245, %v7244
      %v7249 = vunpack.c.l.b16 %v7238
      %v7250 = vunpack.c.l.b16 %v7239
      %v7251 = vpack.c.b16 %v7250, %v7249
      %7252 = vrot.lane.b32.xlu0 %v7251, 4
      %v7253 = vpop.permute.xlu0 %7252
      %v7255 = vunpack.c.l.b16 %v7240
      %v7256 = vpack.c.b16 %v7255, %v7255
      %v7258 = vshrl.u32 %v7246, 16
      %v7260 = vshll.u32 %v7246, 16
      %v7262 = vrot.slane %v7260, 1
      %v7263 = vor.u32 %v7258, %v7262
      %v7265 = vshll.u32 %v7256, 16
      %v7267 = vrot.slane %v7265, 1
      %v7268 = vsel %vm740, %v7263, %v7267
      %7269 = vrot.lane.b32.xlu0 %v7268, 8
      %v7270 = vpop.permute.xlu0 %7269
      %v7272 = vunpack.c.l.b16 %v7241
      %v7273 = vpack.c.b16 %v7272, %v7272
      %v7275 = vshrl.u32 %v7251, 16
      %v7277 = vshll.u32 %v7251, 16
      %v7279 = vrot.slane %v7277, 1
      %v7280 = vor.u32 %v7275, %v7279
      %v7282 = vshll.u32 %v7273, 16
      %v7284 = vrot.slane %v7282, 1
      %v7285 = vsel %vm740, %v7280, %v7284
      %7286 = vrot.lane.b32.xlu0 %v7285, 12
      %v7287 = vpop.permute.xlu0 %7286
      %v7289 = vsel %vm772, %v7246, %v7253
      %v7291 = vsel %vm775, %v7289, %v7270
      %v7293 = vsel %vm778, %v7291, %v7287
      %v7294 = vld [vmem:[%s841] sm:$0xf]
      %v7295 = vld [vmem:[%s841 + $0x4] sm:$0xf]
      %v7298 = vunpack.c.l.b16 %v7294
      %v7299 = vunpack.c.l.b16 %v7295
      %v7300 = vpack.c.b16 %v7299, %v7298
      %v7302 = vsel %vm850, %v7293, 0
      %7304 = vmatprep.subr.bf16.mxu0 0
      %7305 = vmatpush1.bf16.msra.mxu0 0
      %7306 = vmatprep.subr.bf16.mxu0 0
      %7307 = vmatpush1.bf16.msra.mxu0 0
      %7308 = vmatprep.subr.bf16.mxu0 0
      %7309 = vmatpush1.bf16.msra.mxu0 0
      %7310 = vmatprep.subr.bf16.mxu0 0
      %7311 = vmatpush1.bf16.msra.mxu0 0
      %7312 = vmatprep.subr.bf16.mxu0 0
      %7313 = vmatpush1.bf16.msra.mxu0 0
      %7314 = vmatprep.subr.bf16.mxu0 0
      %7315 = vmatpush1.bf16.msra.mxu0 0
      %7316 = vmatprep.subr.bf16.mxu0 0
      %7317 = vmatpush1.bf16.msra.mxu0 0
      %7318 = vmatprep.subr.bf16.mxu0 0
      %7319 = vmatpush1.bf16.msra.mxu0 %v7300
      %7320 = vmatprep.subr.bf16.mxu0 0
      %7321 = vmatpush2.bf16.msra.mxu0 0
      %7322 = vmatprep.subr.bf16.mxu0 0
      %7323 = vmatpush2.bf16.msra.mxu0 0
      %7324 = vmatprep.subr.bf16.mxu0 0
      %7325 = vmatpush2.bf16.msra.mxu0 0
      %7326 = vmatprep.subr.bf16.mxu0 0
      %7327 = vmatpush2.bf16.msra.mxu0 0
      %7328 = vmatprep.subr.bf16.mxu0 0
      %7329 = vmatpush2.bf16.msra.mxu0 0
      %7330 = vmatprep.subr.bf16.mxu0 0
      %7331 = vmatpush2.bf16.msra.mxu0 0
      %7332 = vmatprep.subr.bf16.mxu0 0
      %7333 = vmatpush2.bf16.msra.mxu0 0
      %7334 = vmatprep.subr.bf16.mxu0 0
      %7335 = vmatpush2.bf16.msra.mxu0 0
      %7336 = vmatprep.mubr.bf16.mxu0 0
      %7337 = vmatmul.mubr.bf16.gmra.mxu0 %v7302
      %v7338 = vpop.f32.mrf.mxu0
      %v7339 = vadd.f32 0.0, %v7338
      %v7340 = vpop.f32.mrf.mxu0
      %v7341 = vpop.f32.mrf.mxu0
      %v7342 = vadd.f32 0.0, %v7341
      %v7343 = vpop.f32.mrf.mxu0
      %7344 = vdwg.mxu0
      %v7347 = vunpack.c.l.b16 %v7232
      %v7348 = vunpack.c.l.b16 %v7233
      %v7349 = vpack.c.b16 %v7348, %v7347
      %v7351 = vsel %vm850, %v7231, 0
      %7353 = vmatprep.subr.bf16.mxu0 0
      %7354 = vmatpush1.bf16.msra.mxu0 0
      %7355 = vmatprep.subr.bf16.mxu0 0
      %7356 = vmatpush1.bf16.msra.mxu0 0
      %7357 = vmatprep.subr.bf16.mxu0 0
      %7358 = vmatpush1.bf16.msra.mxu0 0
      %7359 = vmatprep.subr.bf16.mxu0 0
      %7360 = vmatpush1.bf16.msra.mxu0 0
      %7361 = vmatprep.subr.bf16.mxu0 0
      %7362 = vmatpush1.bf16.msra.mxu0 0
      %7363 = vmatprep.subr.bf16.mxu0 0
      %7364 = vmatpush1.bf16.msra.mxu0 0
      %7365 = vmatprep.subr.bf16.mxu0 0
      %7366 = vmatpush1.bf16.msra.mxu0 0
      %7367 = vmatprep.subr.bf16.mxu0 0
      %7368 = vmatpush1.bf16.msra.mxu0 %v7349
      %7369 = vmatprep.subr.bf16.mxu0 0
      %7370 = vmatpush2.bf16.msra.mxu0 0
      %7371 = vmatprep.subr.bf16.mxu0 0
      %7372 = vmatpush2.bf16.msra.mxu0 0
      %7373 = vmatprep.subr.bf16.mxu0 0
      %7374 = vmatpush2.bf16.msra.mxu0 0
      %7375 = vmatprep.subr.bf16.mxu0 0
      %7376 = vmatpush2.bf16.msra.mxu0 0
      %7377 = vmatprep.subr.bf16.mxu0 0
      %7378 = vmatpush2.bf16.msra.mxu0 0
      %7379 = vmatprep.subr.bf16.mxu0 0
      %7380 = vmatpush2.bf16.msra.mxu0 0
      %7381 = vmatprep.subr.bf16.mxu0 0
      %7382 = vmatpush2.bf16.msra.mxu0 0
      %7383 = vmatprep.subr.bf16.mxu0 0
      %7384 = vmatpush2.bf16.msra.mxu0 0
      %7385 = vmatprep.mubr.bf16.mxu0 0
      %7386 = vmatmul.mubr.bf16.gmra.mxu0 %v7351
      %v7387 = vpop.f32.mrf.mxu0
      %v7388 = vadd.f32 %v7339, %v7387
      %v7389 = vpop.f32.mrf.mxu0
      %v7390 = vpop.f32.mrf.mxu0
      %v7391 = vadd.f32 %v7342, %v7390
      %v7392 = vpop.f32.mrf.mxu0
      %7393 = vdwg.mxu0
      %s7394 = scalar_lea.vmem %s658, 168
      %v7395 = vld [vmem:[%s7394] sm:$0xf]
      %v7396 = vld [vmem:[%s7394 + $0x4] sm:$0xf]
      %s7397 = scalar_lea.vmem %s669, 168
      %v7398 = vld [vmem:[%s7397] sm:$0xf]
      %v7399 = vld [vmem:[%s7397 + $0x4] sm:$0xf]
      %v7400 = vld [vmem:[%s7394 + $0x8] sm:$0x1]
      %v7401 = vld [vmem:[%s7397 + $0x8] sm:$0x1]
      %v7404 = vunpack.c.l.b16 %v7395
      %v7405 = vunpack.c.l.b16 %v7396
      %v7406 = vpack.c.b16 %v7405, %v7404
      %v7409 = vunpack.c.l.b16 %v7398
      %v7410 = vunpack.c.l.b16 %v7399
      %v7411 = vpack.c.b16 %v7410, %v7409
      %7412 = vrot.lane.b32.xlu0 %v7411, 4
      %v7413 = vpop.permute.xlu0 %7412
      %v7415 = vunpack.c.l.b16 %v7400
      %v7416 = vpack.c.b16 %v7415, %v7415
      %v7418 = vshrl.u32 %v7406, 16
      %v7420 = vshll.u32 %v7406, 16
      %v7422 = vrot.slane %v7420, 1
      %v7423 = vor.u32 %v7418, %v7422
      %v7425 = vshll.u32 %v7416, 16
      %v7427 = vrot.slane %v7425, 1
      %v7428 = vsel %vm740, %v7423, %v7427
      %7429 = vrot.lane.b32.xlu0 %v7428, 8
      %v7430 = vpop.permute.xlu0 %7429
      %v7432 = vunpack.c.l.b16 %v7401
      %v7433 = vpack.c.b16 %v7432, %v7432
      %v7435 = vshrl.u32 %v7411, 16
      %v7437 = vshll.u32 %v7411, 16
      %v7439 = vrot.slane %v7437, 1
      %v7440 = vor.u32 %v7435, %v7439
      %v7442 = vshll.u32 %v7433, 16
      %v7444 = vrot.slane %v7442, 1
      %v7445 = vsel %vm740, %v7440, %v7444
      %7446 = vrot.lane.b32.xlu0 %v7445, 12
      %v7447 = vpop.permute.xlu0 %7446
      %v7449 = vsel %vm772, %v7406, %v7413
      %v7451 = vsel %vm775, %v7449, %v7430
      %v7453 = vsel %vm778, %v7451, %v7447
      %v7454 = vld [vmem:[%s1001] sm:$0xf]
      %v7455 = vld [vmem:[%s1001 + $0x4] sm:$0xf]
      %v7458 = vunpack.c.l.b16 %v7454
      %v7459 = vunpack.c.l.b16 %v7455
      %v7460 = vpack.c.b16 %v7459, %v7458
      %v7462 = vsel %vm850, %v7453, 0
      %7464 = vmatprep.subr.bf16.mxu0 0
      %7465 = vmatpush1.bf16.msra.mxu0 0
      %7466 = vmatprep.subr.bf16.mxu0 0
      %7467 = vmatpush1.bf16.msra.mxu0 0
      %7468 = vmatprep.subr.bf16.mxu0 0
      %7469 = vmatpush1.bf16.msra.mxu0 0
      %7470 = vmatprep.subr.bf16.mxu0 0
      %7471 = vmatpush1.bf16.msra.mxu0 0
      %7472 = vmatprep.subr.bf16.mxu0 0
      %7473 = vmatpush1.bf16.msra.mxu0 0
      %7474 = vmatprep.subr.bf16.mxu0 0
      %7475 = vmatpush1.bf16.msra.mxu0 0
      %7476 = vmatprep.subr.bf16.mxu0 0
      %7477 = vmatpush1.bf16.msra.mxu0 0
      %7478 = vmatprep.subr.bf16.mxu0 0
      %7479 = vmatpush1.bf16.msra.mxu0 %v7460
      %7480 = vmatprep.subr.bf16.mxu0 0
      %7481 = vmatpush2.bf16.msra.mxu0 0
      %7482 = vmatprep.subr.bf16.mxu0 0
      %7483 = vmatpush2.bf16.msra.mxu0 0
      %7484 = vmatprep.subr.bf16.mxu0 0
      %7485 = vmatpush2.bf16.msra.mxu0 0
      %7486 = vmatprep.subr.bf16.mxu0 0
      %7487 = vmatpush2.bf16.msra.mxu0 0
      %7488 = vmatprep.subr.bf16.mxu0 0
      %7489 = vmatpush2.bf16.msra.mxu0 0
      %7490 = vmatprep.subr.bf16.mxu0 0
      %7491 = vmatpush2.bf16.msra.mxu0 0
      %7492 = vmatprep.subr.bf16.mxu0 0
      %7493 = vmatpush2.bf16.msra.mxu0 0
      %7494 = vmatprep.subr.bf16.mxu0 0
      %7495 = vmatpush2.bf16.msra.mxu0 0
      %7496 = vmatprep.mubr.bf16.mxu0 0
      %7497 = vmatmul.mubr.bf16.gmra.mxu0 %v7462
      %v7498 = vpop.f32.mrf.mxu0
      %v7499 = vadd.f32 0.0, %v7498
      %v7500 = vpop.f32.mrf.mxu0
      %v7501 = vpop.f32.mrf.mxu0
      %v7502 = vadd.f32 0.0, %v7501
      %v7503 = vpop.f32.mrf.mxu0
      %7504 = vdwg.mxu0
      %v7505 = vadd.f32 %v7388, %v7499
      %v7506 = vadd.f32 %v7391, %v7502
      %s7507 = scalar_lea.vmem %s680, 168
      %v7508 = vld [vmem:[%s7507] sm:$0xf]
      %v7509 = vld [vmem:[%s7507 + $0x4] sm:$0xf]
      %s7510 = scalar_lea.vmem %s691, 168
      %v7511 = vld [vmem:[%s7510] sm:$0xf]
      %v7512 = vld [vmem:[%s7510 + $0x4] sm:$0xf]
      %v7513 = vld [vmem:[%s7507 + $0x8] sm:$0x1]
      %v7514 = vld [vmem:[%s7510 + $0x8] sm:$0x1]
      %v7517 = vunpack.c.l.b16 %v7508
      %v7518 = vunpack.c.l.b16 %v7509
      %v7519 = vpack.c.b16 %v7518, %v7517
      %v7522 = vunpack.c.l.b16 %v7511
      %v7523 = vunpack.c.l.b16 %v7512
      %v7524 = vpack.c.b16 %v7523, %v7522
      %7525 = vrot.lane.b32.xlu0 %v7524, 4
      %v7526 = vpop.permute.xlu0 %7525
      %v7528 = vunpack.c.l.b16 %v7513
      %v7529 = vpack.c.b16 %v7528, %v7528
      %v7531 = vshrl.u32 %v7519, 16
      %v7533 = vshll.u32 %v7519, 16
      %v7535 = vrot.slane %v7533, 1
      %v7536 = vor.u32 %v7531, %v7535
      %v7538 = vshll.u32 %v7529, 16
      %v7540 = vrot.slane %v7538, 1
      %v7541 = vsel %vm740, %v7536, %v7540
      %7542 = vrot.lane.b32.xlu0 %v7541, 8
      %v7543 = vpop.permute.xlu0 %7542
      %v7545 = vunpack.c.l.b16 %v7514
      %v7546 = vpack.c.b16 %v7545, %v7545
      %v7548 = vshrl.u32 %v7524, 16
      %v7550 = vshll.u32 %v7524, 16
      %v7552 = vrot.slane %v7550, 1
      %v7553 = vor.u32 %v7548, %v7552
      %v7555 = vshll.u32 %v7546, 16
      %v7557 = vrot.slane %v7555, 1
      %v7558 = vsel %vm740, %v7553, %v7557
      %7559 = vrot.lane.b32.xlu0 %v7558, 12
      %v7560 = vpop.permute.xlu0 %7559
      %v7562 = vsel %vm772, %v7519, %v7526
      %v7564 = vsel %vm775, %v7562, %v7543
      %v7566 = vsel %vm778, %v7564, %v7560
      %v7567 = vld [vmem:[%s1113] sm:$0xf]
      %v7568 = vld [vmem:[%s1113 + $0x4] sm:$0xf]
      %v7571 = vunpack.c.l.b16 %v7567
      %v7572 = vunpack.c.l.b16 %v7568
      %v7573 = vpack.c.b16 %v7572, %v7571
      %v7575 = vsel %vm850, %v7566, 0
      %7577 = vmatprep.subr.bf16.mxu0 0
      %7578 = vmatpush1.bf16.msra.mxu0 0
      %7579 = vmatprep.subr.bf16.mxu0 0
      %7580 = vmatpush1.bf16.msra.mxu0 0
      %7581 = vmatprep.subr.bf16.mxu0 0
      %7582 = vmatpush1.bf16.msra.mxu0 0
      %7583 = vmatprep.subr.bf16.mxu0 0
      %7584 = vmatpush1.bf16.msra.mxu0 0
      %7585 = vmatprep.subr.bf16.mxu0 0
      %7586 = vmatpush1.bf16.msra.mxu0 0
      %7587 = vmatprep.subr.bf16.mxu0 0
      %7588 = vmatpush1.bf16.msra.mxu0 0
      %7589 = vmatprep.subr.bf16.mxu0 0
      %7590 = vmatpush1.bf16.msra.mxu0 0
      %7591 = vmatprep.subr.bf16.mxu0 0
      %7592 = vmatpush1.bf16.msra.mxu0 %v7573
      %7593 = vmatprep.subr.bf16.mxu0 0
      %7594 = vmatpush2.bf16.msra.mxu0 0
      %7595 = vmatprep.subr.bf16.mxu0 0
      %7596 = vmatpush2.bf16.msra.mxu0 0
      %7597 = vmatprep.subr.bf16.mxu0 0
      %7598 = vmatpush2.bf16.msra.mxu0 0
      %7599 = vmatprep.subr.bf16.mxu0 0
      %7600 = vmatpush2.bf16.msra.mxu0 0
      %7601 = vmatprep.subr.bf16.mxu0 0
      %7602 = vmatpush2.bf16.msra.mxu0 0
      %7603 = vmatprep.subr.bf16.mxu0 0
      %7604 = vmatpush2.bf16.msra.mxu0 0
      %7605 = vmatprep.subr.bf16.mxu0 0
      %7606 = vmatpush2.bf16.msra.mxu0 0
      %7607 = vmatprep.subr.bf16.mxu0 0
      %7608 = vmatpush2.bf16.msra.mxu0 0
      %7609 = vmatprep.mubr.bf16.mxu0 0
      %7610 = vmatmul.mubr.bf16.gmra.mxu0 %v7575
      %v7611 = vpop.f32.mrf.mxu0
      %v7612 = vadd.f32 0.0, %v7611
      %v7613 = vpop.f32.mrf.mxu0
      %v7614 = vpop.f32.mrf.mxu0
      %v7615 = vadd.f32 0.0, %v7614
      %v7616 = vpop.f32.mrf.mxu0
      %7617 = vdwg.mxu0
      %v7618 = vadd.f32 %v7505, %v7612
      %v7619 = vadd.f32 %v7506, %v7615
      %v7620 = vmul.f32 %v7618, %v710
      %v7621 = vmul.f32 %v7619, %v710
      %v7622 = vadd.f32 %v7620, %v717
      %v7623 = vadd.f32 %v7621, %v717
      %vm7624 = vcmp.ge.f32.partialorder %v7622, 0.0
      %vm7625 = vcmp.ge.f32.partialorder %v7623, 0.0
      %v7626 = vmul.f32 %v7622, 0.2
      %v7627 = vmul.f32 %v7623, 0.2
      %v7628 = vsel %vm7624, %v7622, %v7626
      %v7629 = vsel %vm7625, %v7623, %v7627
      %s7630 = scalar_lea.vmem %s702, 224
      %7631 = vst.msk [vmem:[%s7630] sm:$0xff] %vm775, %v7628
      %7632 = vst.msk [vmem:[%s7630 + $0x8] sm:$0xff] %vm775, %v7629
      %s7633 = scalar_lea.vmem %s614, 180
      %v7634 = vld [vmem:[%s7633] sm:$0xf]
      %v7635 = vld [vmem:[%s7633 + $0x4] sm:$0xf]
      %s7636 = scalar_lea.vmem %s625, 180
      %v7637 = vld [vmem:[%s7636] sm:$0xf]
      %v7638 = vld [vmem:[%s7636 + $0x4] sm:$0xf]
      %v7639 = vld [vmem:[%s7633 + $0x8] sm:$0x1]
      %v7640 = vld [vmem:[%s7636 + $0x8] sm:$0x1]
      %v7643 = vunpack.c.l.b16 %v7634
      %v7644 = vunpack.c.l.b16 %v7635
      %v7645 = vpack.c.b16 %v7644, %v7643
      %v7648 = vunpack.c.l.b16 %v7637
      %v7649 = vunpack.c.l.b16 %v7638
      %v7650 = vpack.c.b16 %v7649, %v7648
      %7651 = vrot.lane.b32.xlu0 %v7650, 4
      %v7652 = vpop.permute.xlu0 %7651
      %v7654 = vunpack.c.l.b16 %v7639
      %v7655 = vpack.c.b16 %v7654, %v7654
      %v7657 = vshrl.u32 %v7645, 16
      %v7659 = vshll.u32 %v7645, 16
      %v7661 = vrot.slane %v7659, 1
      %v7662 = vor.u32 %v7657, %v7661
      %v7664 = vshll.u32 %v7655, 16
      %v7666 = vrot.slane %v7664, 1
      %v7667 = vsel %vm740, %v7662, %v7666
      %7668 = vrot.lane.b32.xlu0 %v7667, 8
      %v7669 = vpop.permute.xlu0 %7668
      %v7671 = vunpack.c.l.b16 %v7640
      %v7672 = vpack.c.b16 %v7671, %v7671
      %v7674 = vshrl.u32 %v7650, 16
      %v7676 = vshll.u32 %v7650, 16
      %v7678 = vrot.slane %v7676, 1
      %v7679 = vor.u32 %v7674, %v7678
      %v7681 = vshll.u32 %v7672, 16
      %v7683 = vrot.slane %v7681, 1
      %v7684 = vsel %vm740, %v7679, %v7683
      %7685 = vrot.lane.b32.xlu0 %v7684, 12
      %v7686 = vpop.permute.xlu0 %7685
      %v7688 = vsel %vm772, %v7645, %v7652
      %v7690 = vsel %vm775, %v7688, %v7669
      %v7692 = vsel %vm778, %v7690, %v7686
      %v7693 = vld [vmem:[%s8] sm:$0xf]
      %v7694 = vld [vmem:[%s8 + $0x4] sm:$0xf]
      %s7695 = scalar_lea.vmem %s636, 180
      %v7696 = vld [vmem:[%s7695] sm:$0xf]
      %v7697 = vld [vmem:[%s7695 + $0x4] sm:$0xf]
      %s7698 = scalar_lea.vmem %s647, 180
      %v7699 = vld [vmem:[%s7698] sm:$0xf]
      %v7700 = vld [vmem:[%s7698 + $0x4] sm:$0xf]
      %v7701 = vld [vmem:[%s7695 + $0x8] sm:$0x1]
      %v7702 = vld [vmem:[%s7698 + $0x8] sm:$0x1]
      %v7705 = vunpack.c.l.b16 %v7696
      %v7706 = vunpack.c.l.b16 %v7697
      %v7707 = vpack.c.b16 %v7706, %v7705
      %v7710 = vunpack.c.l.b16 %v7699
      %v7711 = vunpack.c.l.b16 %v7700
      %v7712 = vpack.c.b16 %v7711, %v7710
      %7713 = vrot.lane.b32.xlu0 %v7712, 4
      %v7714 = vpop.permute.xlu0 %7713
      %v7716 = vunpack.c.l.b16 %v7701
      %v7717 = vpack.c.b16 %v7716, %v7716
      %v7719 = vshrl.u32 %v7707, 16
      %v7721 = vshll.u32 %v7707, 16
      %v7723 = vrot.slane %v7721, 1
      %v7724 = vor.u32 %v7719, %v7723
      %v7726 = vshll.u32 %v7717, 16
      %v7728 = vrot.slane %v7726, 1
      %v7729 = vsel %vm740, %v7724, %v7728
      %7730 = vrot.lane.b32.xlu0 %v7729, 8
      %v7731 = vpop.permute.xlu0 %7730
      %v7733 = vunpack.c.l.b16 %v7702
      %v7734 = vpack.c.b16 %v7733, %v7733
      %v7736 = vshrl.u32 %v7712, 16
      %v7738 = vshll.u32 %v7712, 16
      %v7740 = vrot.slane %v7738, 1
      %v7741 = vor.u32 %v7736, %v7740
      %v7743 = vshll.u32 %v7734, 16
      %v7745 = vrot.slane %v7743, 1
      %v7746 = vsel %vm740, %v7741, %v7745
      %7747 = vrot.lane.b32.xlu0 %v7746, 12
      %v7748 = vpop.permute.xlu0 %7747
      %v7750 = vsel %vm772, %v7707, %v7714
      %v7752 = vsel %vm775, %v7750, %v7731
      %v7754 = vsel %vm778, %v7752, %v7748
      %v7755 = vld [vmem:[%s841] sm:$0xf]
      %v7756 = vld [vmem:[%s841 + $0x4] sm:$0xf]
      %v7759 = vunpack.c.l.b16 %v7755
      %v7760 = vunpack.c.l.b16 %v7756
      %v7761 = vpack.c.b16 %v7760, %v7759
      %v7763 = vsel %vm850, %v7754, 0
      %7765 = vmatprep.subr.bf16.mxu0 0
      %7766 = vmatpush1.bf16.msra.mxu0 0
      %7767 = vmatprep.subr.bf16.mxu0 0
      %7768 = vmatpush1.bf16.msra.mxu0 0
      %7769 = vmatprep.subr.bf16.mxu0 0
      %7770 = vmatpush1.bf16.msra.mxu0 0
      %7771 = vmatprep.subr.bf16.mxu0 0
      %7772 = vmatpush1.bf16.msra.mxu0 0
      %7773 = vmatprep.subr.bf16.mxu0 0
      %7774 = vmatpush1.bf16.msra.mxu0 0
      %7775 = vmatprep.subr.bf16.mxu0 0
      %7776 = vmatpush1.bf16.msra.mxu0 0
      %7777 = vmatprep.subr.bf16.mxu0 0
      %7778 = vmatpush1.bf16.msra.mxu0 0
      %7779 = vmatprep.subr.bf16.mxu0 0
      %7780 = vmatpush1.bf16.msra.mxu0 %v7761
      %7781 = vmatprep.subr.bf16.mxu0 0
      %7782 = vmatpush2.bf16.msra.mxu0 0
      %7783 = vmatprep.subr.bf16.mxu0 0
      %7784 = vmatpush2.bf16.msra.mxu0 0
      %7785 = vmatprep.subr.bf16.mxu0 0
      %7786 = vmatpush2.bf16.msra.mxu0 0
      %7787 = vmatprep.subr.bf16.mxu0 0
      %7788 = vmatpush2.bf16.msra.mxu0 0
      %7789 = vmatprep.subr.bf16.mxu0 0
      %7790 = vmatpush2.bf16.msra.mxu0 0
      %7791 = vmatprep.subr.bf16.mxu0 0
      %7792 = vmatpush2.bf16.msra.mxu0 0
      %7793 = vmatprep.subr.bf16.mxu0 0
      %7794 = vmatpush2.bf16.msra.mxu0 0
      %7795 = vmatprep.subr.bf16.mxu0 0
      %7796 = vmatpush2.bf16.msra.mxu0 0
      %7797 = vmatprep.mubr.bf16.mxu0 0
      %7798 = vmatmul.mubr.bf16.gmra.mxu0 %v7763
      %v7799 = vpop.f32.mrf.mxu0
      %v7800 = vadd.f32 0.0, %v7799
      %v7801 = vpop.f32.mrf.mxu0
      %v7802 = vpop.f32.mrf.mxu0
      %v7803 = vadd.f32 0.0, %v7802
      %v7804 = vpop.f32.mrf.mxu0
      %7805 = vdwg.mxu0
      %v7808 = vunpack.c.l.b16 %v7693
      %v7809 = vunpack.c.l.b16 %v7694
      %v7810 = vpack.c.b16 %v7809, %v7808
      %v7812 = vsel %vm850, %v7692, 0
      %7814 = vmatprep.subr.bf16.mxu0 0
      %7815 = vmatpush1.bf16.msra.mxu0 0
      %7816 = vmatprep.subr.bf16.mxu0 0
      %7817 = vmatpush1.bf16.msra.mxu0 0
      %7818 = vmatprep.subr.bf16.mxu0 0
      %7819 = vmatpush1.bf16.msra.mxu0 0
      %7820 = vmatprep.subr.bf16.mxu0 0
      %7821 = vmatpush1.bf16.msra.mxu0 0
      %7822 = vmatprep.subr.bf16.mxu0 0
      %7823 = vmatpush1.bf16.msra.mxu0 0
      %7824 = vmatprep.subr.bf16.mxu0 0
      %7825 = vmatpush1.bf16.msra.mxu0 0
      %7826 = vmatprep.subr.bf16.mxu0 0
      %7827 = vmatpush1.bf16.msra.mxu0 0
      %7828 = vmatprep.subr.bf16.mxu0 0
      %7829 = vmatpush1.bf16.msra.mxu0 %v7810
      %7830 = vmatprep.subr.bf16.mxu0 0
      %7831 = vmatpush2.bf16.msra.mxu0 0
      %7832 = vmatprep.subr.bf16.mxu0 0
      %7833 = vmatpush2.bf16.msra.mxu0 0
      %7834 = vmatprep.subr.bf16.mxu0 0
      %7835 = vmatpush2.bf16.msra.mxu0 0
      %7836 = vmatprep.subr.bf16.mxu0 0
      %7837 = vmatpush2.bf16.msra.mxu0 0
      %7838 = vmatprep.subr.bf16.mxu0 0
      %7839 = vmatpush2.bf16.msra.mxu0 0
      %7840 = vmatprep.subr.bf16.mxu0 0
      %7841 = vmatpush2.bf16.msra.mxu0 0
      %7842 = vmatprep.subr.bf16.mxu0 0
      %7843 = vmatpush2.bf16.msra.mxu0 0
      %7844 = vmatprep.subr.bf16.mxu0 0
      %7845 = vmatpush2.bf16.msra.mxu0 0
      %7846 = vmatprep.mubr.bf16.mxu0 0
      %7847 = vmatmul.mubr.bf16.gmra.mxu0 %v7812
      %v7848 = vpop.f32.mrf.mxu0
      %v7849 = vadd.f32 %v7800, %v7848
      %v7850 = vpop.f32.mrf.mxu0
      %v7851 = vpop.f32.mrf.mxu0
      %v7852 = vadd.f32 %v7803, %v7851
      %v7853 = vpop.f32.mrf.mxu0
      %7854 = vdwg.mxu0
      %s7855 = scalar_lea.vmem %s658, 180
      %v7856 = vld [vmem:[%s7855] sm:$0xf]
      %v7857 = vld [vmem:[%s7855 + $0x4] sm:$0xf]
      %s7858 = scalar_lea.vmem %s669, 180
      %v7859 = vld [vmem:[%s7858] sm:$0xf]
      %v7860 = vld [vmem:[%s7858 + $0x4] sm:$0xf]
      %v7861 = vld [vmem:[%s7855 + $0x8] sm:$0x1]
      %v7862 = vld [vmem:[%s7858 + $0x8] sm:$0x1]
      %v7865 = vunpack.c.l.b16 %v7856
      %v7866 = vunpack.c.l.b16 %v7857
      %v7867 = vpack.c.b16 %v7866, %v7865
      %v7870 = vunpack.c.l.b16 %v7859
      %v7871 = vunpack.c.l.b16 %v7860
      %v7872 = vpack.c.b16 %v7871, %v7870
      %7873 = vrot.lane.b32.xlu0 %v7872, 4
      %v7874 = vpop.permute.xlu0 %7873
      %v7876 = vunpack.c.l.b16 %v7861
      %v7877 = vpack.c.b16 %v7876, %v7876
      %v7879 = vshrl.u32 %v7867, 16
      %v7881 = vshll.u32 %v7867, 16
      %v7883 = vrot.slane %v7881, 1
      %v7884 = vor.u32 %v7879, %v7883
      %v7886 = vshll.u32 %v7877, 16
      %v7888 = vrot.slane %v7886, 1
      %v7889 = vsel %vm740, %v7884, %v7888
      %7890 = vrot.lane.b32.xlu0 %v7889, 8
      %v7891 = vpop.permute.xlu0 %7890
      %v7893 = vunpack.c.l.b16 %v7862
      %v7894 = vpack.c.b16 %v7893, %v7893
      %v7896 = vshrl.u32 %v7872, 16
      %v7898 = vshll.u32 %v7872, 16
      %v7900 = vrot.slane %v7898, 1
      %v7901 = vor.u32 %v7896, %v7900
      %v7903 = vshll.u32 %v7894, 16
      %v7905 = vrot.slane %v7903, 1
      %v7906 = vsel %vm740, %v7901, %v7905
      %7907 = vrot.lane.b32.xlu0 %v7906, 12
      %v7908 = vpop.permute.xlu0 %7907
      %v7910 = vsel %vm772, %v7867, %v7874
      %v7912 = vsel %vm775, %v7910, %v7891
      %v7914 = vsel %vm778, %v7912, %v7908
      %v7915 = vld [vmem:[%s1001] sm:$0xf]
      %v7916 = vld [vmem:[%s1001 + $0x4] sm:$0xf]
      %v7919 = vunpack.c.l.b16 %v7915
      %v7920 = vunpack.c.l.b16 %v7916
      %v7921 = vpack.c.b16 %v7920, %v7919
      %v7923 = vsel %vm850, %v7914, 0
      %7925 = vmatprep.subr.bf16.mxu0 0
      %7926 = vmatpush1.bf16.msra.mxu0 0
      %7927 = vmatprep.subr.bf16.mxu0 0
      %7928 = vmatpush1.bf16.msra.mxu0 0
      %7929 = vmatprep.subr.bf16.mxu0 0
      %7930 = vmatpush1.bf16.msra.mxu0 0
      %7931 = vmatprep.subr.bf16.mxu0 0
      %7932 = vmatpush1.bf16.msra.mxu0 0
      %7933 = vmatprep.subr.bf16.mxu0 0
      %7934 = vmatpush1.bf16.msra.mxu0 0
      %7935 = vmatprep.subr.bf16.mxu0 0
      %7936 = vmatpush1.bf16.msra.mxu0 0
      %7937 = vmatprep.subr.bf16.mxu0 0
      %7938 = vmatpush1.bf16.msra.mxu0 0
      %7939 = vmatprep.subr.bf16.mxu0 0
      %7940 = vmatpush1.bf16.msra.mxu0 %v7921
      %7941 = vmatprep.subr.bf16.mxu0 0
      %7942 = vmatpush2.bf16.msra.mxu0 0
      %7943 = vmatprep.subr.bf16.mxu0 0
      %7944 = vmatpush2.bf16.msra.mxu0 0
      %7945 = vmatprep.subr.bf16.mxu0 0
      %7946 = vmatpush2.bf16.msra.mxu0 0
      %7947 = vmatprep.subr.bf16.mxu0 0
      %7948 = vmatpush2.bf16.msra.mxu0 0
      %7949 = vmatprep.subr.bf16.mxu0 0
      %7950 = vmatpush2.bf16.msra.mxu0 0
      %7951 = vmatprep.subr.bf16.mxu0 0
      %7952 = vmatpush2.bf16.msra.mxu0 0
      %7953 = vmatprep.subr.bf16.mxu0 0
      %7954 = vmatpush2.bf16.msra.mxu0 0
      %7955 = vmatprep.subr.bf16.mxu0 0
      %7956 = vmatpush2.bf16.msra.mxu0 0
      %7957 = vmatprep.mubr.bf16.mxu0 0
      %7958 = vmatmul.mubr.bf16.gmra.mxu0 %v7923
      %v7959 = vpop.f32.mrf.mxu0
      %v7960 = vadd.f32 0.0, %v7959
      %v7961 = vpop.f32.mrf.mxu0
      %v7962 = vpop.f32.mrf.mxu0
      %v7963 = vadd.f32 0.0, %v7962
      %v7964 = vpop.f32.mrf.mxu0
      %7965 = vdwg.mxu0
      %v7966 = vadd.f32 %v7849, %v7960
      %v7967 = vadd.f32 %v7852, %v7963
      %s7968 = scalar_lea.vmem %s680, 180
      %v7969 = vld [vmem:[%s7968] sm:$0xf]
      %v7970 = vld [vmem:[%s7968 + $0x4] sm:$0xf]
      %s7971 = scalar_lea.vmem %s691, 180
      %v7972 = vld [vmem:[%s7971] sm:$0xf]
      %v7973 = vld [vmem:[%s7971 + $0x4] sm:$0xf]
      %v7974 = vld [vmem:[%s7968 + $0x8] sm:$0x1]
      %v7975 = vld [vmem:[%s7971 + $0x8] sm:$0x1]
      %v7978 = vunpack.c.l.b16 %v7969
      %v7979 = vunpack.c.l.b16 %v7970
      %v7980 = vpack.c.b16 %v7979, %v7978
      %v7983 = vunpack.c.l.b16 %v7972
      %v7984 = vunpack.c.l.b16 %v7973
      %v7985 = vpack.c.b16 %v7984, %v7983
      %7986 = vrot.lane.b32.xlu0 %v7985, 4
      %v7987 = vpop.permute.xlu0 %7986
      %v7989 = vunpack.c.l.b16 %v7974
      %v7990 = vpack.c.b16 %v7989, %v7989
      %v7992 = vshrl.u32 %v7980, 16
      %v7994 = vshll.u32 %v7980, 16
      %v7996 = vrot.slane %v7994, 1
      %v7997 = vor.u32 %v7992, %v7996
      %v7999 = vshll.u32 %v7990, 16
      %v8001 = vrot.slane %v7999, 1
      %v8002 = vsel %vm740, %v7997, %v8001
      %8003 = vrot.lane.b32.xlu0 %v8002, 8
      %v8004 = vpop.permute.xlu0 %8003
      %v8006 = vunpack.c.l.b16 %v7975
      %v8007 = vpack.c.b16 %v8006, %v8006
      %v8009 = vshrl.u32 %v7985, 16
      %v8011 = vshll.u32 %v7985, 16
      %v8013 = vrot.slane %v8011, 1
      %v8014 = vor.u32 %v8009, %v8013
      %v8016 = vshll.u32 %v8007, 16
      %v8018 = vrot.slane %v8016, 1
      %v8019 = vsel %vm740, %v8014, %v8018
      %8020 = vrot.lane.b32.xlu0 %v8019, 12
      %v8021 = vpop.permute.xlu0 %8020
      %v8023 = vsel %vm772, %v7980, %v7987
      %v8025 = vsel %vm775, %v8023, %v8004
      %v8027 = vsel %vm778, %v8025, %v8021
      %v8028 = vld [vmem:[%s1113] sm:$0xf]
      %v8029 = vld [vmem:[%s1113 + $0x4] sm:$0xf]
      %v8032 = vunpack.c.l.b16 %v8028
      %v8033 = vunpack.c.l.b16 %v8029
      %v8034 = vpack.c.b16 %v8033, %v8032
      %v8036 = vsel %vm850, %v8027, 0
      %8038 = vmatprep.subr.bf16.mxu0 0
      %8039 = vmatpush1.bf16.msra.mxu0 0
      %8040 = vmatprep.subr.bf16.mxu0 0
      %8041 = vmatpush1.bf16.msra.mxu0 0
      %8042 = vmatprep.subr.bf16.mxu0 0
      %8043 = vmatpush1.bf16.msra.mxu0 0
      %8044 = vmatprep.subr.bf16.mxu0 0
      %8045 = vmatpush1.bf16.msra.mxu0 0
      %8046 = vmatprep.subr.bf16.mxu0 0
      %8047 = vmatpush1.bf16.msra.mxu0 0
      %8048 = vmatprep.subr.bf16.mxu0 0
      %8049 = vmatpush1.bf16.msra.mxu0 0
      %8050 = vmatprep.subr.bf16.mxu0 0
      %8051 = vmatpush1.bf16.msra.mxu0 0
      %8052 = vmatprep.subr.bf16.mxu0 0
      %8053 = vmatpush1.bf16.msra.mxu0 %v8034
      %8054 = vmatprep.subr.bf16.mxu0 0
      %8055 = vmatpush2.bf16.msra.mxu0 0
      %8056 = vmatprep.subr.bf16.mxu0 0
      %8057 = vmatpush2.bf16.msra.mxu0 0
      %8058 = vmatprep.subr.bf16.mxu0 0
      %8059 = vmatpush2.bf16.msra.mxu0 0
      %8060 = vmatprep.subr.bf16.mxu0 0
      %8061 = vmatpush2.bf16.msra.mxu0 0
      %8062 = vmatprep.subr.bf16.mxu0 0
      %8063 = vmatpush2.bf16.msra.mxu0 0
      %8064 = vmatprep.subr.bf16.mxu0 0
      %8065 = vmatpush2.bf16.msra.mxu0 0
      %8066 = vmatprep.subr.bf16.mxu0 0
      %8067 = vmatpush2.bf16.msra.mxu0 0
      %8068 = vmatprep.subr.bf16.mxu0 0
      %8069 = vmatpush2.bf16.msra.mxu0 0
      %8070 = vmatprep.mubr.bf16.mxu0 0
      %8071 = vmatmul.mubr.bf16.gmra.mxu0 %v8036
      %v8072 = vpop.f32.mrf.mxu0
      %v8073 = vadd.f32 0.0, %v8072
      %v8074 = vpop.f32.mrf.mxu0
      %v8075 = vpop.f32.mrf.mxu0
      %v8076 = vadd.f32 0.0, %v8075
      %v8077 = vpop.f32.mrf.mxu0
      %8078 = vdwg.mxu0
      %v8079 = vadd.f32 %v7966, %v8073
      %v8080 = vadd.f32 %v7967, %v8076
      %v8081 = vmul.f32 %v8079, %v710
      %v8082 = vmul.f32 %v8080, %v710
      %v8083 = vadd.f32 %v8081, %v717
      %v8084 = vadd.f32 %v8082, %v717
      %vm8085 = vcmp.ge.f32.partialorder %v8083, 0.0
      %vm8086 = vcmp.ge.f32.partialorder %v8084, 0.0
      %v8087 = vmul.f32 %v8083, 0.2
      %v8088 = vmul.f32 %v8084, 0.2
      %v8089 = vsel %vm8085, %v8083, %v8087
      %v8090 = vsel %vm8086, %v8084, %v8088
      %s8091 = scalar_lea.vmem %s702, 240
      %8092 = vst.msk [vmem:[%s8091] sm:$0xff] %vm775, %v8089
      %8093 = vst.msk [vmem:[%s8091 + $0x8] sm:$0xff] %vm775, %v8090
      %s8094 = smul.u32 16, %s27
      %p8095 = scmp.lt.s32.totalorder %s26, 1
      %s8096 = scalar_select %p8095, %s26, 1
      %p8097 = scmp.lt.s32.totalorder %s8094, 15
      %s8098 = scalar_select %p8097, %s8094, 15
      %s8099 = smul.addr %s8098, 2
      %s8100 = smul.addr %s8096, 32
      %s8101 = sadd.s32 %s8099, %s8100
      %s8102 = smul.addr %s8101, 8
      %s8103 = scalar_lea.vmem %s11, %s8102
      // Predicated region
      $region65: #{tpu_custom_call.1} parent=63 // pred_check
        %p8104 = pneg %p341
      $region66: #{tpu_custom_call.1} parent=63 // pred_check_branch
        %8106 = sbr.rel (%p8104) target = $region68
      $region67: #{tpu_custom_call.1} parent=63 // pred_region
        %s8107 = smul.u32 16, %s27
      $region68: #{tpu_custom_call.1} parent=63 // pred_fallthru
        _
    $region64: #{tpu_custom_call.1} parent=5 // pred_fallthru
      _
    %p8108 = scmp.le.s32.totalorder 2, %s17
    // Predicated region
    $region69: #{tpu_custom_call.1} parent=5 // pred_check
      %p8109 = pneg %p8108
    $region70: #{tpu_custom_call.1} parent=5 // pred_check_branch
      %8111 = sbr.rel (%p8109) target = $region72
    $region71: #{tpu_custom_call.1} parent=5 // pred_region
      %s8112 = ssub.s32 %s17, 2
      // Predicated region
      $region73: #{tpu_custom_call.1} parent=71 // pred_check
        %p8113 = pneg %p347
      $region74: #{tpu_custom_call.1} parent=71 // pred_check_branch
        %8115 = sbr.rel (%p8113) target = $region76
      $region75: #{tpu_custom_call.1} parent=71 // pred_region
        %s8116 = smul.u32 16, %s29
        %p8117 = scmp.lt.s32.totalorder %s28, 1
        %s8118 = scalar_select %p8117, %s28, 1
        %p8119 = scmp.lt.s32.totalorder %s8116, 15
        %s8120 = scalar_select %p8119, %s8116, 15
        %s8121 = smul.addr %s8120, 2
        %s8122 = smul.addr %s8118, 32
        %s8123 = sadd.s32 %s8121, %s8122
        %s8124 = smul.addr %s8123, 8
        %s8125 = scalar_lea.vmem %s11, %s8124
      $region76: #{tpu_custom_call.1} parent=71 // pred_fallthru
        _
    $region72: #{tpu_custom_call.1} parent=5 // pred_fallthru
      _
  $region6: #{tpu_custom_call.1} parent=0 // loop_footer
    %s21 = sadd.s32 1, %s17
  $region7: #{tpu_custom_call.1} parent=0 // loop_footer_branch
    %16 = sbr.rel target = $region3
  $region8: #{tpu_custom_call.1} parent=0 // loop_exit
    _

</llo_original>
